<compile_context>
chip_gen: v6e
topology: v6e:2x2x1
jax: 0.10.0
libtpu: 0.0.40
codegen_flags: <defaults>
</compile_context>

<pallas_src>
import jax
import jax.numpy as jnp
from jax.experimental import pallas as pl
from jax.experimental.pallas import tpu as pltpu


# ----------------------------------------------------------------------------
# One-time parameter folding (kept out of the hot path).
#
# Folded activation layout: folded[n, r, j, p*C + c] == dense[n, r, 2*j + p, c]
# ----------------------------------------------------------------------------
def _round_up(v, m):
    return -(-v // m) * m


def _fold_conv3x3_weight(w_oihw, dtype, kin_pad, kout_pad):
    """(Cout, Cin, 3, 3) torch conv weight -> (3, 3, kin_pad, kout_pad) folded."""
    cout, cin = int(w_oihw.shape[0]), int(w_oihw.shape[1])
    w = jnp.transpose(w_oihw, (2, 3, 1, 0)).astype(jnp.float32)   # (ky, kx, Cin, Cout)
    wf = jnp.zeros((3, 3, kin_pad, kout_pad), jnp.float32)
    for ps in range(2):                                # output column phase
        for kx in range(3):                            # original column tap
            t = ps + kx - 1
            sh = t // 2                                # folded tap shift in {-1,0,1}
            pi = t - 2 * sh                            # input column phase
            wf = wf.at[:, sh + 1,
                       pi * cin:(pi + 1) * cin,
                       ps * cout:(ps + 1) * cout].set(w[:, kx])
    return wf.astype(dtype)


def _fold_upconv_weight(w_iohw, dtype, kout_pad):
    """(Cin, Cout, 2, 2) ConvTranspose2d weight -> (2, Cin, kout_pad)."""
    cin, cout = int(w_iohw.shape[0]), int(w_iohw.shape[1])
    w = jnp.transpose(w_iohw, (2, 0, 3, 1)).reshape(2, cin, 2 * cout)  # (dy, Cin, dx*Cout)
    if kout_pad > 2 * cout:
        w = jnp.pad(w, ((0, 0), (0, 0), (0, kout_pad - 2 * cout)))
    return w.astype(dtype)


def _padded_bias(b, kout_pad):
    b2 = jnp.tile(b.astype(jnp.float32), 2)
    out = jnp.zeros((1, kout_pad), jnp.float32)
    return out.at[0, :b2.shape[0]].set(b2)


def prepare_unet_up_block_params(params, out_size, compute_dtype=jnp.bfloat16,
                                 lane_multiple=128):
    """Fold / pad / cast every parameter once (no per-call weight reshuffles)."""
    up_w, c1_w, c2_w = params["up_w"], params["c1_w"], params["c2_w"]
    in_size = int(up_w.shape[0])
    cb = in_size - out_size                       # bridge channels after the concat split
    co2p = _round_up(2 * out_size, lane_multiple)   # folded upconv output channels
    cb2p = _round_up(2 * cb, lane_multiple)         # folded bridge channels
    cout2p = _round_up(2 * out_size, lane_multiple)  # folded conv output channels

    w1u = _fold_conv3x3_weight(c1_w[:, :out_size], compute_dtype, co2p, cout2p)
    w1b = _fold_conv3x3_weight(c1_w[:, out_size:], compute_dtype, cb2p, cout2p)

    return {
        "wup": _fold_upconv_weight(up_w, compute_dtype, co2p),       # (2, Ci, co2p)
        "bup": _padded_bias(params["up_b"], co2p),                   # (1, co2p) f32
        "w1": jnp.concatenate([w1u, w1b], axis=2),                   # (3,3, co2p+cb2p, cout2p)
        "b1": _padded_bias(params["c1_b"], cout2p),
        "w2": _fold_conv3x3_weight(c2_w, compute_dtype, cout2p, cout2p),
        "b2": _padded_bias(params["c2_b"], cout2p),
        "out_size": out_size,
    }


# ----------------------------------------------------------------------------
# Fused Pallas kernel: one image per grid step, all intermediates in VMEM.
# ----------------------------------------------------------------------------
_LH = 8   # left halo width -> interior stores start on a sublane (8) boundary


def _fused_up_block_kernel(x_ref, br_ref, wup_ref, bup_ref, w1_ref, b1_ref,
                           w2_ref, b2_ref, o_ref, cat_pad, h_pad):
    H, W, ci = x_ref.shape[1], x_ref.shape[2], x_ref.shape[3]
    H2 = 2 * H
    LH = _LH
    f32 = jnp.float32
    K1 = cat_pad.shape[-1]
    co2p = wup_ref.shape[2]
    cout2p = h_pad.shape[-1]
    Wp = cat_pad.shape[1]

    def mm(a, b):   # 2-D MXU matmul, f32 accumulation
        return jax.lax.dot_general(a, b, (((1,), (0,)), ((), ())),
                                   preferred_element_type=f32)

    # ---- zero only the 1-wide halo borders (interiors fully rewritten below);
    #      done every step so it is megacore-safe. -----------------------------
    cat_pad[0:1] = jnp.zeros((1, Wp, K1), cat_pad.dtype)
    cat_pad[H2 + 1:H2 + 2] = jnp.zeros((1, Wp, K1), cat_pad.dtype)
    cat_pad[:, LH - 1:LH] = jnp.zeros((H2 + 2, 1, K1), cat_pad.dtype)
    cat_pad[:, LH + W:LH + W + 1] = jnp.zeros((H2 + 2, 1, K1), cat_pad.dtype)
    h_pad[0:1] = jnp.zeros((1, Wp, cout2p), h_pad.dtype)
    h_pad[H2 + 1:H2 + 2] = jnp.zeros((1, Wp, cout2p), h_pad.dtype)
    h_pad[:, LH - 1:LH] = jnp.zeros((H2 + 2, 1, cout2p), h_pad.dtype)
    h_pad[:, LH + W:LH + W + 1] = jnp.zeros((H2 + 2, 1, cout2p), h_pad.dtype)

    # ---- ConvTranspose2d(k=2, s=2): one matmul per output-row parity --------
    x2 = x_ref[0].reshape(H * W, ci)
    y0 = (mm(x2, wup_ref[0]) + bup_ref[0]).astype(cat_pad.dtype).reshape(H, W, co2p)
    y1 = (mm(x2, wup_ref[1]) + bup_ref[0]).astype(cat_pad.dtype).reshape(H, W, co2p)
    # Row-interleave the parities via leading-dim stack (no lane/sublane moves).
    y = jnp.stack([y0, y1], axis=1).reshape(H2, W, co2p)

    # ---- merged [up ++ bridge] padded buffer (concat never materialized in HBM)
    cat_pad[1:H2 + 1, LH:LH + W, 0:co2p] = y
    cat_pad[1:H2 + 1, LH:LH + W, co2p:] = br_ref[0]

    # ---- 3x3 conv (pad=1) over folded columns: 9 matmuls, SSA accumulation --
    def conv3x3(src_ref, w_ref):
        kdim = src_ref.shape[-1]
        acc = None
        for ky in range(3):
            for kx in range(3):
                win = src_ref[ky:ky + H2, LH - 1 + kx:LH - 1 + kx + W, :]
                d = mm(win.reshape(H2 * W, kdim), w_ref[ky, kx])
                acc = d if acc is None else acc + d
        return acc

    h = jnp.maximum(conv3x3(cat_pad, w1_ref) + b1_ref[0], 0.0)       # f32 epilogue
    h_pad[1:H2 + 1, LH:LH + W, :] = h.reshape(H2, W, cout2p).astype(h_pad.dtype)

    o = jnp.maximum(conv3x3(h_pad, w2_ref) + b2_ref[0], 0.0)
    o_ref[0] = o.reshape(H2, W, cout2p).astype(o_ref.dtype)


# ----------------------------------------------------------------------------
# Forward wrapper (NCHW in / NCHW out, matching the PyTorch module).
# ----------------------------------------------------------------------------
def unet_up_block_forward(prepped, x_nchw, bridge_nchw, *,
                          compute_dtype=jnp.bfloat16, out_dtype=jnp.float32):
    N, ci, H, W = (int(s) for s in x_nchw.shape)
    co2p = int(prepped["wup"].shape[-1])
    k1p = int(prepped["w1"].shape[2])
    cb2p = k1p - co2p
    cout2p = int(prepped["b2"].shape[-1])
    cout = int(prepped["out_size"])
    H2, W2 = 2 * H, 2 * W
    Wp = W + 2 * _LH

    # NCHW -> NHWC boundary glue (keep NHWC end-to-end inside a full model).
    x = jnp.transpose(x_nchw, (0, 2, 3, 1)).astype(compute_dtype)
    bridge = jnp.transpose(bridge_nchw, (0, 2, 3, 1))
    offy = (bridge.shape[1] - H2) // 2
    offx = (bridge.shape[2] - W2) // 2
    crop = bridge[:, offy:offy + H2, offx:offx + W2, :]               # center_crop
    cb = int(crop.shape[-1])
    # fold the column phase onto the channel axis (contiguous reshape) + lane pad.
    crop_f = crop.reshape(N, H2, W, 2 * cb).astype(compute_dtype)
    if cb2p > 2 * cb:
        crop_f = jnp.pad(crop_f, ((0, 0), (0, 0), (0, 0), (0, cb2p - 2 * cb)))

    # VMEM budget: scratch + double-buffered I/O blocks + weights (+ headroom).
    isz = jnp.dtype(compute_dtype).itemsize
    osz = jnp.dtype(out_dtype).itemsize
    scratch_b = (H2 + 2) * Wp * (k1p + cout2p) * isz
    io_b = 2 * (H * W * ci * isz + H2 * W * cb2p * isz + H2 * W * cout2p * osz)
    wt_b = 2 * ((2 * ci * co2p + 9 * k1p * cout2p + 9 * cout2p * cout2p) * isz
                + 3 * cout2p * 4)
    vmem_limit = int(min(max(scratch_b + io_b + wt_b + (8 << 20), 32 << 20), 100 << 20))

    out_f = pl.pallas_call(
        _fused_up_block_kernel,
        out_shape=jax.ShapeDtypeStruct((N, H2, W, cout2p), out_dtype),
        grid=(N,),
        in_specs=[
            pl.BlockSpec((1, H, W, ci), lambda n: (n, 0, 0, 0)),
            pl.BlockSpec((1, H2, W, cb2p), lambda n: (n, 0, 0, 0)),
            pl.BlockSpec((2, ci, co2p), lambda n: (0, 0, 0)),
            pl.BlockSpec((1, co2p), lambda n: (0, 0)),
            pl.BlockSpec((3, 3, k1p, cout2p), lambda n: (0, 0, 0, 0)),
            pl.BlockSpec((1, cout2p), lambda n: (0, 0)),
            pl.BlockSpec((3, 3, cout2p, cout2p), lambda n: (0, 0, 0, 0)),
            pl.BlockSpec((1, cout2p), lambda n: (0, 0)),
        ],
        out_specs=pl.BlockSpec((1, H2, W, cout2p), lambda n: (n, 0, 0, 0)),
        scratch_shapes=[
            pltpu.VMEM((H2 + 2, Wp, k1p), compute_dtype),     # padded [up ++ bridge]
            pltpu.VMEM((H2 + 2, Wp, cout2p), compute_dtype),  # padded conv1 output
        ],
        compiler_params=pltpu.CompilerParams(
            dimension_semantics=("parallel",),
            vmem_limit_bytes=vmem_limit,
        ),
    )(x, crop_f, prepped["wup"], prepped["bup"], prepped["w1"], prepped["b1"],
      prepped["w2"], prepped["b2"])

    # drop lane padding, un-fold the column phase (contiguous reshape), back to NCHW.
    out = out_f[..., :2 * cout].reshape(N, H2, W2, cout)
    return jnp.transpose(out, (0, 3, 1, 2)).astype(out_dtype)


# ----------------------------------------------------------------------------
# Pure-JAX reference (for correctness check)
# ----------------------------------------------------------------------------
def reference_forward(params, x, bridge):
    N, Ci, H, W = x.shape
    Co = params["up_b"].shape[0]
    up = jnp.einsum("ncij,cokl->noikjl", x, params["up_w"]).reshape(N, Co, 2 * H, 2 * W)
    up = up + params["up_b"][None, :, None, None]
    th, tw = up.shape[2], up.shape[3]
    dy = (bridge.shape[2] - th) // 2
    dx = (bridge.shape[3] - tw) // 2
    crop = bridge[:, :, dy:dy + th, dx:dx + tw]
    out = jnp.concatenate([up, crop], axis=1)

    def conv(xv, wv, bv):
        dn = jax.lax.conv_dimension_numbers(xv.shape, wv.shape, ("NCHW", "OIHW", "NCHW"))
        y = jax.lax.conv_general_dilated(xv, wv, (1, 1), ((1, 1), (1, 1)),
                                         dimension_numbers=dn)
        return jnp.maximum(y + bv[None, :, None, None], 0.0)

    h = conv(out, params["c1_w"], params["c1_b"])
    return conv(h, params["c2_w"], params["c2_b"])


# ----------------------------------------------------------------------------
if __name__ == "__main__":
    in_size, out_size = 8, 4          # in_size = out_size + bridge_channels
    N, H, W = 2, 8, 8                 # x spatial; up -> 16x16
    bridge_c, bH, bW = in_size - out_size, 18, 18   # crop exercises center_crop

    key = jax.random.PRNGKey(0)
    ks = jax.random.split(key, 8)
    params = {
        "up_w": 0.1 * jax.random.normal(ks[0], (in_size, out_size, 2, 2), jnp.float32),
        "up_b": 0.1 * jax.random.normal(ks[1], (out_size,), jnp.float32),
        "c1_w": 0.1 * jax.random.normal(ks[2], (out_size, in_size, 3, 3), jnp.float32),
        "c1_b": 0.1 * jax.random.normal(ks[3], (out_size,), jnp.float32),
        "c2_w": 0.1 * jax.random.normal(ks[4], (out_size, out_size, 3, 3), jnp.float32),
        "c2_b": 0.1 * jax.random.normal(ks[5], (out_size,), jnp.float32),
    }
    x = jax.random.normal(ks[6], (N, in_size, H, W), jnp.float32)
    bridge = jax.random.normal(ks[7], (N, bridge_c, bH, bW), jnp.float32)

    ref = jax.block_until_ready(reference_forward(params, x, bridge))

    # f32 path: exact check of the folded / fused math.
    pp_f32 = prepare_unet_up_block_params(params, out_size, jnp.float32)
    out_f32 = jax.block_until_ready(
        unet_up_block_forward(pp_f32, x, bridge, compute_dtype=jnp.float32))
    assert out_f32.shape == (N, out_size, 2 * H, 2 * W), out_f32.shape
    assert jnp.allclose(out_f32, ref, rtol=1e-4, atol=1e-4), \
        float(jnp.max(jnp.abs(out_f32 - ref)))

    # bf16 MXU operands (fast path), f32 accumulation + epilogue.
    pp_bf16 = prepare_unet_up_block_params(params, out_size, jnp.bfloat16)
    out_bf16 = jax.block_until_ready(
        unet_up_block_forward(pp_bf16, x, bridge, compute_dtype=jnp.bfloat16))
    assert out_bf16.shape == (N, out_size, 2 * H, 2 * W), out_bf16.shape
    assert jnp.allclose(out_bf16, ref, rtol=5e-2, atol=5e-2), \
        float(jnp.max(jnp.abs(out_bf16 - ref)))

    print("KERNEL_OK")
</pallas_src>

<mosaic_0001>
module attributes {stable_mosaic.version = 11 : i64} {
  func.func @_fused_up_block_kernel(%arg0: i32, %arg1: memref<1x8x8x8xf32, #tpu.memory_space<vmem>>, %arg2: memref<1x16x8x128xf32, #tpu.memory_space<vmem>>, %arg3: memref<2x8x128xf32, #tpu.memory_space<vmem>>, %arg4: memref<1x128xf32, #tpu.memory_space<vmem>>, %arg5: memref<3x3x256x128xf32, #tpu.memory_space<vmem>>, %arg6: memref<1x128xf32, #tpu.memory_space<vmem>>, %arg7: memref<3x3x128x128xf32, #tpu.memory_space<vmem>>, %arg8: memref<1x128xf32, #tpu.memory_space<vmem>>, %arg9: memref<1x16x8x128xf32, #tpu.memory_space<vmem>>, %arg10: memref<18x24x256xf32, #tpu.memory_space<vmem>>, %arg11: memref<18x24x128xf32, #tpu.memory_space<vmem>>) attributes {dimension_semantics = [#tpu.dimension_semantics<parallel>], iteration_bounds = array<i64: 2>, scalar_prefetch = 0 : i64, scratch_operands = 2 : i64, tpu.core_type = #tpu.core_type<tc>, window_params = [{transform_indices = @transform_0, window_bounds = array<i64: 1, 8, 8, 8>}, {transform_indices = @transform_1, window_bounds = array<i64: 1, 16, 8, 128>}, {pipeline_mode = #tpu.pipeline_mode<synchronous>, transform_indices = @transform_2, window_bounds = array<i64: 2, 8, 128>}, {pipeline_mode = #tpu.pipeline_mode<synchronous>, transform_indices = @transform_3, window_bounds = array<i64: 1, 128>}, {pipeline_mode = #tpu.pipeline_mode<synchronous>, transform_indices = @transform_4, window_bounds = array<i64: 3, 3, 256, 128>}, {pipeline_mode = #tpu.pipeline_mode<synchronous>, transform_indices = @transform_5, window_bounds = array<i64: 1, 128>}, {pipeline_mode = #tpu.pipeline_mode<synchronous>, transform_indices = @transform_6, window_bounds = array<i64: 3, 3, 128, 128>}, {pipeline_mode = #tpu.pipeline_mode<synchronous>, transform_indices = @transform_7, window_bounds = array<i64: 1, 128>}, {transform_indices = @transform_8, window_bounds = array<i64: 1, 16, 8, 128>}]} {
    %cst = arith.constant 0.000000e+00 : f32
    %0 = vector.broadcast %cst : f32 to vector<1x24x256xf32>
    %c0 = arith.constant 0 : index
    %c0_0 = arith.constant 0 : index
    %c0_1 = arith.constant 0 : index
    %1 = vector.load %arg10[%c0, %c0_0, %c0_1] : memref<18x24x256xf32, #tpu.memory_space<vmem>>, vector<1x24x256xf32>
    tpu.vector_store %arg10[%c0, %c0_0, %c0_1], %0 {strides = array<i32>} : memref<18x24x256xf32, #tpu.memory_space<vmem>>, vector<1x24x256xf32>,
    %cst_2 = arith.constant 0.000000e+00 : f32
    %2 = vector.broadcast %cst_2 : f32 to vector<1x24x256xf32>
    %c17 = arith.constant 17 : index
    %c0_3 = arith.constant 0 : index
    %c0_4 = arith.constant 0 : index
    %3 = vector.load %arg10[%c17, %c0_3, %c0_4] : memref<18x24x256xf32, #tpu.memory_space<vmem>>, vector<1x24x256xf32>
    tpu.vector_store %arg10[%c17, %c0_3, %c0_4], %2 {strides = array<i32>} : memref<18x24x256xf32, #tpu.memory_space<vmem>>, vector<1x24x256xf32>,
    %cst_5 = arith.constant 0.000000e+00 : f32
    %4 = vector.broadcast %cst_5 : f32 to vector<18x1x256xf32>
    %c0_6 = arith.constant 0 : index
    %c7 = arith.constant 7 : index
    %c0_7 = arith.constant 0 : index
    %5 = vector.load %arg10[%c0_6, %c7, %c0_7] : memref<18x24x256xf32, #tpu.memory_space<vmem>>, vector<18x1x256xf32>
    tpu.vector_store %arg10[%c0_6, %c7, %c0_7], %4 {strides = array<i32>} : memref<18x24x256xf32, #tpu.memory_space<vmem>>, vector<18x1x256xf32>,
    %cst_8 = arith.constant 0.000000e+00 : f32
    %6 = vector.broadcast %cst_8 : f32 to vector<18x1x256xf32>
    %c0_9 = arith.constant 0 : index
    %c16 = arith.constant 16 : index
    %c0_10 = arith.constant 0 : index
    %7 = vector.load %arg10[%c0_9, %c16, %c0_10] : memref<18x24x256xf32, #tpu.memory_space<vmem>>, vector<18x1x256xf32>
    tpu.vector_store %arg10[%c0_9, %c16, %c0_10], %6 {strides = array<i32>} : memref<18x24x256xf32, #tpu.memory_space<vmem>>, vector<18x1x256xf32>,
    %cst_11 = arith.constant 0.000000e+00 : f32
    %8 = vector.broadcast %cst_11 : f32 to vector<1x24x128xf32>
    %c0_12 = arith.constant 0 : index
    %c0_13 = arith.constant 0 : index
    %c0_14 = arith.constant 0 : index
    %9 = vector.load %arg11[%c0_12, %c0_13, %c0_14] : memref<18x24x128xf32, #tpu.memory_space<vmem>>, vector<1x24x128xf32>
    tpu.vector_store %arg11[%c0_12, %c0_13, %c0_14], %8 {strides = array<i32>} : memref<18x24x128xf32, #tpu.memory_space<vmem>>, vector<1x24x128xf32>,
    %cst_15 = arith.constant 0.000000e+00 : f32
    %10 = vector.broadcast %cst_15 : f32 to vector<1x24x128xf32>
    %c17_16 = arith.constant 17 : index
    %c0_17 = arith.constant 0 : index
    %c0_18 = arith.constant 0 : index
    %11 = vector.load %arg11[%c17_16, %c0_17, %c0_18] : memref<18x24x128xf32, #tpu.memory_space<vmem>>, vector<1x24x128xf32>
    tpu.vector_store %arg11[%c17_16, %c0_17, %c0_18], %10 {strides = array<i32>} : memref<18x24x128xf32, #tpu.memory_space<vmem>>, vector<1x24x128xf32>,
    %cst_19 = arith.constant 0.000000e+00 : f32
    %12 = vector.broadcast %cst_19 : f32 to vector<18x1x128xf32>
    %c0_20 = arith.constant 0 : index
    %c7_21 = arith.constant 7 : index
    %c0_22 = arith.constant 0 : index
    %13 = vector.load %arg11[%c0_20, %c7_21, %c0_22] : memref<18x24x128xf32, #tpu.memory_space<vmem>>, vector<18x1x128xf32>
    tpu.vector_store %arg11[%c0_20, %c7_21, %c0_22], %12 {strides = array<i32>} : memref<18x24x128xf32, #tpu.memory_space<vmem>>, vector<18x1x128xf32>,
    %cst_23 = arith.constant 0.000000e+00 : f32
    %14 = vector.broadcast %cst_23 : f32 to vector<18x1x128xf32>
    %c0_24 = arith.constant 0 : index
    %c16_25 = arith.constant 16 : index
    %c0_26 = arith.constant 0 : index
    %15 = vector.load %arg11[%c0_24, %c16_25, %c0_26] : memref<18x24x128xf32, #tpu.memory_space<vmem>>, vector<18x1x128xf32>
    tpu.vector_store %arg11[%c0_24, %c16_25, %c0_26], %14 {strides = array<i32>} : memref<18x24x128xf32, #tpu.memory_space<vmem>>, vector<18x1x128xf32>,
    %c0_27 = arith.constant 0 : index
    %c0_28 = arith.constant 0 : index
    %c0_29 = arith.constant 0 : index
    %c0_30 = arith.constant 0 : index
    %16 = vector.load %arg1[%c0_27, %c0_28, %c0_29, %c0_30] : memref<1x8x8x8xf32, #tpu.memory_space<vmem>>, vector<1x8x8x8xf32>
    %17 = vector.shape_cast %16 : vector<1x8x8x8xf32> to vector<8x8x8xf32>
    %18 = vector.shape_cast %17 : vector<8x8x8xf32> to vector<64x8xf32>
    %c0_31 = arith.constant 0 : index
    %c0_32 = arith.constant 0 : index
    %c0_33 = arith.constant 0 : index
    %19 = vector.load %arg3[%c0_31, %c0_32, %c0_33] : memref<2x8x128xf32, #tpu.memory_space<vmem>>, vector<1x8x128xf32>
    %20 = vector.shape_cast %19 : vector<1x8x128xf32> to vector<8x128xf32>
    %cst_34 = arith.constant dense<0.000000e+00> : vector<64x128xf32>
    %21 = tpu.matmul %18, %20, %cst_34 {dimension_numbers = #tpu.dot_dimension_numbers<[1], [0], [0], [1], [0, 0, 1, 1], [], []>} : vector<64x8xf32>, vector<8x128xf32>, vector<64x128xf32> -> vector<64x128xf32>
    %c0_35 = arith.constant 0 : index
    %c0_36 = arith.constant 0 : index
    %22 = vector.load %arg4[%c0_35, %c0_36] : memref<1x128xf32, #tpu.memory_space<vmem>>, vector<1x128xf32>
    %23 = vector.shape_cast %22 : vector<1x128xf32> to vector<128xf32>
    %24 = vector.shape_cast %23 : vector<128xf32> to vector<1x128xf32>
    %25 = vector.broadcast %24 : vector<1x128xf32> to vector<64x128xf32>
    %26 = arith.addf %21, %25 : vector<64x128xf32>
    %27 = vector.shape_cast %26 : vector<64x128xf32> to vector<8x8x128xf32>
    %c1 = arith.constant 1 : index
    %c0_37 = arith.constant 0 : index
    %c0_38 = arith.constant 0 : index
    %28 = vector.load %arg3[%c1, %c0_37, %c0_38] : memref<2x8x128xf32, #tpu.memory_space<vmem>>, vector<1x8x128xf32>
    %29 = vector.shape_cast %28 : vector<1x8x128xf32> to vector<8x128xf32>
    %cst_39 = arith.constant dense<0.000000e+00> : vector<64x128xf32>
    %30 = tpu.matmul %18, %29, %cst_39 {dimension_numbers = #tpu.dot_dimension_numbers<[1], [0], [0], [1], [0, 0, 1, 1], [], []>} : vector<64x8xf32>, vector<8x128xf32>, vector<64x128xf32> -> vector<64x128xf32>
    %c0_40 = arith.constant 0 : index
    %c0_41 = arith.constant 0 : index
    %31 = vector.load %arg4[%c0_40, %c0_41] : memref<1x128xf32, #tpu.memory_space<vmem>>, vector<1x128xf32>
    %32 = vector.shape_cast %31 : vector<1x128xf32> to vector<128xf32>
    %33 = vector.shape_cast %32 : vector<128xf32> to vector<1x128xf32>
    %34 = vector.broadcast %33 : vector<1x128xf32> to vector<64x128xf32>
    %35 = arith.addf %30, %34 : vector<64x128xf32>
    %36 = vector.shape_cast %35 : vector<64x128xf32> to vector<8x8x128xf32>
    %37 = vector.shape_cast %27 : vector<8x8x128xf32> to vector<8x1x8x128xf32>
    %38 = vector.shape_cast %36 : vector<8x8x128xf32> to vector<8x1x8x128xf32>
    %39 = tpu.concatenate %37, %38 in 1 : vector<8x1x8x128xf32>, vector<8x1x8x128xf32> -> vector<8x2x8x128xf32>
    %40 = vector.shape_cast %39 : vector<8x2x8x128xf32> to vector<16x8x128xf32>
    %c1_42 = arith.constant 1 : index
    %c8 = arith.constant 8 : index
    %c0_43 = arith.constant 0 : index
    %41 = vector.load %arg10[%c1_42, %c8, %c0_43] : memref<18x24x256xf32, #tpu.memory_space<vmem>>, vector<16x8x128xf32>
    tpu.vector_store %arg10[%c1_42, %c8, %c0_43], %40 {strides = array<i32>} : memref<18x24x256xf32, #tpu.memory_space<vmem>>, vector<16x8x128xf32>,
    %c0_44 = arith.constant 0 : index
    %c0_45 = arith.constant 0 : index
    %c0_46 = arith.constant 0 : index
    %c0_47 = arith.constant 0 : index
    %42 = vector.load %arg2[%c0_44, %c0_45, %c0_46, %c0_47] : memref<1x16x8x128xf32, #tpu.memory_space<vmem>>, vector<1x16x8x128xf32>
    %43 = vector.shape_cast %42 : vector<1x16x8x128xf32> to vector<16x8x128xf32>
    %c1_48 = arith.constant 1 : index
    %c8_49 = arith.constant 8 : index
    %c128 = arith.constant 128 : index
    %44 = vector.load %arg10[%c1_48, %c8_49, %c128] : memref<18x24x256xf32, #tpu.memory_space<vmem>>, vector<16x8x128xf32>
    tpu.vector_store %arg10[%c1_48, %c8_49, %c128], %43 {strides = array<i32>} : memref<18x24x256xf32, #tpu.memory_space<vmem>>, vector<16x8x128xf32>,
    %c0_50 = arith.constant 0 : index
    %c7_51 = arith.constant 7 : index
    %c0_52 = arith.constant 0 : index
    %45 = vector.load %arg10[%c0_50, %c7_51, %c0_52] : memref<18x24x256xf32, #tpu.memory_space<vmem>>, vector<16x8x256xf32>
    %46 = vector.shape_cast %45 : vector<16x8x256xf32> to vector<128x256xf32>
    %c0_53 = arith.constant 0 : index
    %c0_54 = arith.constant 0 : index
    %c0_55 = arith.constant 0 : index
    %c0_56 = arith.constant 0 : index
    %47 = vector.load %arg5[%c0_53, %c0_54, %c0_55, %c0_56] : memref<3x3x256x128xf32, #tpu.memory_space<vmem>>, vector<1x1x256x128xf32>
    %48 = vector.shape_cast %47 : vector<1x1x256x128xf32> to vector<256x128xf32>
    %cst_57 = arith.constant dense<0.000000e+00> : vector<128x128xf32>
    %49 = tpu.matmul %46, %48, %cst_57 {dimension_numbers = #tpu.dot_dimension_numbers<[1], [0], [0], [1], [0, 0, 1, 1], [], []>} : vector<128x256xf32>, vector<256x128xf32>, vector<128x128xf32> -> vector<128x128xf32>
    %c0_58 = arith.constant 0 : index
    %c8_59 = arith.constant 8 : index
    %c0_60 = arith.constant 0 : index
    %50 = vector.load %arg10[%c0_58, %c8_59, %c0_60] : memref<18x24x256xf32, #tpu.memory_space<vmem>>, vector<16x8x256xf32>
    %51 = vector.shape_cast %50 : vector<16x8x256xf32> to vector<128x256xf32>
    %c0_61 = arith.constant 0 : index
    %c1_62 = arith.constant 1 : index
    %c0_63 = arith.constant 0 : index
    %c0_64 = arith.constant 0 : index
    %52 = vector.load %arg5[%c0_61, %c1_62, %c0_63, %c0_64] : memref<3x3x256x128xf32, #tpu.memory_space<vmem>>, vector<1x1x256x128xf32>
    %53 = vector.shape_cast %52 : vector<1x1x256x128xf32> to vector<256x128xf32>
    %cst_65 = arith.constant dense<0.000000e+00> : vector<128x128xf32>
    %54 = tpu.matmul %51, %53, %cst_65 {dimension_numbers = #tpu.dot_dimension_numbers<[1], [0], [0], [1], [0, 0, 1, 1], [], []>} : vector<128x256xf32>, vector<256x128xf32>, vector<128x128xf32> -> vector<128x128xf32>
    %55 = arith.addf %49, %54 : vector<128x128xf32>
    %c0_66 = arith.constant 0 : index
    %c9 = arith.constant 9 : index
    %c0_67 = arith.constant 0 : index
    %56 = vector.load %arg10[%c0_66, %c9, %c0_67] : memref<18x24x256xf32, #tpu.memory_space<vmem>>, vector<16x8x256xf32>
    %57 = vector.shape_cast %56 : vector<16x8x256xf32> to vector<128x256xf32>
    %c0_68 = arith.constant 0 : index
    %c2 = arith.constant 2 : index
    %c0_69 = arith.constant 0 : index
    %c0_70 = arith.constant 0 : index
    %58 = vector.load %arg5[%c0_68, %c2, %c0_69, %c0_70] : memref<3x3x256x128xf32, #tpu.memory_space<vmem>>, vector<1x1x256x128xf32>
    %59 = vector.shape_cast %58 : vector<1x1x256x128xf32> to vector<256x128xf32>
    %cst_71 = arith.constant dense<0.000000e+00> : vector<128x128xf32>
    %60 = tpu.matmul %57, %59, %cst_71 {dimension_numbers = #tpu.dot_dimension_numbers<[1], [0], [0], [1], [0, 0, 1, 1], [], []>} : vector<128x256xf32>, vector<256x128xf32>, vector<128x128xf32> -> vector<128x128xf32>
    %61 = arith.addf %55, %60 : vector<128x128xf32>
    %c1_72 = arith.constant 1 : index
    %c7_73 = arith.constant 7 : index
    %c0_74 = arith.constant 0 : index
    %62 = vector.load %arg10[%c1_72, %c7_73, %c0_74] : memref<18x24x256xf32, #tpu.memory_space<vmem>>, vector<16x8x256xf32>
    %63 = vector.shape_cast %62 : vector<16x8x256xf32> to vector<128x256xf32>
    %c1_75 = arith.constant 1 : index
    %c0_76 = arith.constant 0 : index
    %c0_77 = arith.constant 0 : index
    %c0_78 = arith.constant 0 : index
    %64 = vector.load %arg5[%c1_75, %c0_76, %c0_77, %c0_78] : memref<3x3x256x128xf32, #tpu.memory_space<vmem>>, vector<1x1x256x128xf32>
    %65 = vector.shape_cast %64 : vector<1x1x256x128xf32> to vector<256x128xf32>
    %cst_79 = arith.constant dense<0.000000e+00> : vector<128x128xf32>
    %66 = tpu.matmul %63, %65, %cst_79 {dimension_numbers = #tpu.dot_dimension_numbers<[1], [0], [0], [1], [0, 0, 1, 1], [], []>} : vector<128x256xf32>, vector<256x128xf32>, vector<128x128xf32> -> vector<128x128xf32>
    %67 = arith.addf %61, %66 : vector<128x128xf32>
    %c1_80 = arith.constant 1 : index
    %c8_81 = arith.constant 8 : index
    %c0_82 = arith.constant 0 : index
    %68 = vector.load %arg10[%c1_80, %c8_81, %c0_82] : memref<18x24x256xf32, #tpu.memory_space<vmem>>, vector<16x8x256xf32>
    %69 = vector.shape_cast %68 : vector<16x8x256xf32> to vector<128x256xf32>
    %c1_83 = arith.constant 1 : index
    %c1_84 = arith.constant 1 : index
    %c0_85 = arith.constant 0 : index
    %c0_86 = arith.constant 0 : index
    %70 = vector.load %arg5[%c1_83, %c1_84, %c0_85, %c0_86] : memref<3x3x256x128xf32, #tpu.memory_space<vmem>>, vector<1x1x256x128xf32>
    %71 = vector.shape_cast %70 : vector<1x1x256x128xf32> to vector<256x128xf32>
    %cst_87 = arith.constant dense<0.000000e+00> : vector<128x128xf32>
    %72 = tpu.matmul %69, %71, %cst_87 {dimension_numbers = #tpu.dot_dimension_numbers<[1], [0], [0], [1], [0, 0, 1, 1], [], []>} : vector<128x256xf32>, vector<256x128xf32>, vector<128x128xf32> -> vector<128x128xf32>
    %73 = arith.addf %67, %72 : vector<128x128xf32>
    %c1_88 = arith.constant 1 : index
    %c9_89 = arith.constant 9 : index
    %c0_90 = arith.constant 0 : index
    %74 = vector.load %arg10[%c1_88, %c9_89, %c0_90] : memref<18x24x256xf32, #tpu.memory_space<vmem>>, vector<16x8x256xf32>
    %75 = vector.shape_cast %74 : vector<16x8x256xf32> to vector<128x256xf32>
    %c1_91 = arith.constant 1 : index
    %c2_92 = arith.constant 2 : index
    %c0_93 = arith.constant 0 : index
    %c0_94 = arith.constant 0 : index
    %76 = vector.load %arg5[%c1_91, %c2_92, %c0_93, %c0_94] : memref<3x3x256x128xf32, #tpu.memory_space<vmem>>, vector<1x1x256x128xf32>
    %77 = vector.shape_cast %76 : vector<1x1x256x128xf32> to vector<256x128xf32>
    %cst_95 = arith.constant dense<0.000000e+00> : vector<128x128xf32>
    %78 = tpu.matmul %75, %77, %cst_95 {dimension_numbers = #tpu.dot_dimension_numbers<[1], [0], [0], [1], [0, 0, 1, 1], [], []>} : vector<128x256xf32>, vector<256x128xf32>, vector<128x128xf32> -> vector<128x128xf32>
    %79 = arith.addf %73, %78 : vector<128x128xf32>
    %c2_96 = arith.constant 2 : index
    %c7_97 = arith.constant 7 : index
    %c0_98 = arith.constant 0 : index
    %80 = vector.load %arg10[%c2_96, %c7_97, %c0_98] : memref<18x24x256xf32, #tpu.memory_space<vmem>>, vector<16x8x256xf32>
    %81 = vector.shape_cast %80 : vector<16x8x256xf32> to vector<128x256xf32>
    %c2_99 = arith.constant 2 : index
    %c0_100 = arith.constant 0 : index
    %c0_101 = arith.constant 0 : index
    %c0_102 = arith.constant 0 : index
    %82 = vector.load %arg5[%c2_99, %c0_100, %c0_101, %c0_102] : memref<3x3x256x128xf32, #tpu.memory_space<vmem>>, vector<1x1x256x128xf32>
    %83 = vector.shape_cast %82 : vector<1x1x256x128xf32> to vector<256x128xf32>
    %cst_103 = arith.constant dense<0.000000e+00> : vector<128x128xf32>
    %84 = tpu.matmul %81, %83, %cst_103 {dimension_numbers = #tpu.dot_dimension_numbers<[1], [0], [0], [1], [0, 0, 1, 1], [], []>} : vector<128x256xf32>, vector<256x128xf32>, vector<128x128xf32> -> vector<128x128xf32>
    %85 = arith.addf %79, %84 : vector<128x128xf32>
    %c2_104 = arith.constant 2 : index
    %c8_105 = arith.constant 8 : index
    %c0_106 = arith.constant 0 : index
    %86 = vector.load %arg10[%c2_104, %c8_105, %c0_106] : memref<18x24x256xf32, #tpu.memory_space<vmem>>, vector<16x8x256xf32>
    %87 = vector.shape_cast %86 : vector<16x8x256xf32> to vector<128x256xf32>
    %c2_107 = arith.constant 2 : index
    %c1_108 = arith.constant 1 : index
    %c0_109 = arith.constant 0 : index
    %c0_110 = arith.constant 0 : index
    %88 = vector.load %arg5[%c2_107, %c1_108, %c0_109, %c0_110] : memref<3x3x256x128xf32, #tpu.memory_space<vmem>>, vector<1x1x256x128xf32>
    %89 = vector.shape_cast %88 : vector<1x1x256x128xf32> to vector<256x128xf32>
    %cst_111 = arith.constant dense<0.000000e+00> : vector<128x128xf32>
    %90 = tpu.matmul %87, %89, %cst_111 {dimension_numbers = #tpu.dot_dimension_numbers<[1], [0], [0], [1], [0, 0, 1, 1], [], []>} : vector<128x256xf32>, vector<256x128xf32>, vector<128x128xf32> -> vector<128x128xf32>
    %91 = arith.addf %85, %90 : vector<128x128xf32>
    %c2_112 = arith.constant 2 : index
    %c9_113 = arith.constant 9 : index
    %c0_114 = arith.constant 0 : index
    %92 = vector.load %arg10[%c2_112, %c9_113, %c0_114] : memref<18x24x256xf32, #tpu.memory_space<vmem>>, vector<16x8x256xf32>
    %93 = vector.shape_cast %92 : vector<16x8x256xf32> to vector<128x256xf32>
    %c2_115 = arith.constant 2 : index
    %c2_116 = arith.constant 2 : index
    %c0_117 = arith.constant 0 : index
    %c0_118 = arith.constant 0 : index
    %94 = vector.load %arg5[%c2_115, %c2_116, %c0_117, %c0_118] : memref<3x3x256x128xf32, #tpu.memory_space<vmem>>, vector<1x1x256x128xf32>
    %95 = vector.shape_cast %94 : vector<1x1x256x128xf32> to vector<256x128xf32>
    %cst_119 = arith.constant dense<0.000000e+00> : vector<128x128xf32>
    %96 = tpu.matmul %93, %95, %cst_119 {dimension_numbers = #tpu.dot_dimension_numbers<[1], [0], [0], [1], [0, 0, 1, 1], [], []>} : vector<128x256xf32>, vector<256x128xf32>, vector<128x128xf32> -> vector<128x128xf32>
    %97 = arith.addf %91, %96 : vector<128x128xf32>
    %c0_120 = arith.constant 0 : index
    %c0_121 = arith.constant 0 : index
    %98 = vector.load %arg6[%c0_120, %c0_121] : memref<1x128xf32, #tpu.memory_space<vmem>>, vector<1x128xf32>
    %99 = vector.shape_cast %98 : vector<1x128xf32> to vector<128xf32>
    %100 = vector.shape_cast %99 : vector<128xf32> to vector<1x128xf32>
    %101 = vector.broadcast %100 : vector<1x128xf32> to vector<128x128xf32>
    %102 = arith.addf %97, %101 : vector<128x128xf32>
    %cst_122 = arith.constant 0.000000e+00 : f32
    %103 = vector.broadcast %cst_122 : f32 to vector<128x128xf32>
    %104 = arith.maximumf %102, %103 : vector<128x128xf32>
    %105 = vector.shape_cast %104 : vector<128x128xf32> to vector<16x8x128xf32>
    %c1_123 = arith.constant 1 : index
    %c8_124 = arith.constant 8 : index
    %c0_125 = arith.constant 0 : index
    %106 = vector.load %arg11[%c1_123, %c8_124, %c0_125] : memref<18x24x128xf32, #tpu.memory_space<vmem>>, vector<16x8x128xf32>
    tpu.vector_store %arg11[%c1_123, %c8_124, %c0_125], %105 {strides = array<i32>} : memref<18x24x128xf32, #tpu.memory_space<vmem>>, vector<16x8x128xf32>,
    %c0_126 = arith.constant 0 : index
    %c7_127 = arith.constant 7 : index
    %c0_128 = arith.constant 0 : index
    %107 = vector.load %arg11[%c0_126, %c7_127, %c0_128] : memref<18x24x128xf32, #tpu.memory_space<vmem>>, vector<16x8x128xf32>
    %108 = vector.shape_cast %107 : vector<16x8x128xf32> to vector<128x128xf32>
    %c0_129 = arith.constant 0 : index
    %c0_130 = arith.constant 0 : index
    %c0_131 = arith.constant 0 : index
    %c0_132 = arith.constant 0 : index
    %109 = vector.load %arg7[%c0_129, %c0_130, %c0_131, %c0_132] : memref<3x3x128x128xf32, #tpu.memory_space<vmem>>, vector<1x1x128x128xf32>
    %110 = vector.shape_cast %109 : vector<1x1x128x128xf32> to vector<128x128xf32>
    %cst_133 = arith.constant dense<0.000000e+00> : vector<128x128xf32>
    %111 = tpu.matmul %108, %110, %cst_133 {dimension_numbers = #tpu.dot_dimension_numbers<[1], [0], [0], [1], [0, 0, 1, 1], [], []>} : vector<128x128xf32>, vector<128x128xf32>, vector<128x128xf32> -> vector<128x128xf32>
    %c0_134 = arith.constant 0 : index
    %c8_135 = arith.constant 8 : index
    %c0_136 = arith.constant 0 : index
    %112 = vector.load %arg11[%c0_134, %c8_135, %c0_136] : memref<18x24x128xf32, #tpu.memory_space<vmem>>, vector<16x8x128xf32>
    %113 = vector.shape_cast %112 : vector<16x8x128xf32> to vector<128x128xf32>
    %c0_137 = arith.constant 0 : index
    %c1_138 = arith.constant 1 : index
    %c0_139 = arith.constant 0 : index
    %c0_140 = arith.constant 0 : index
    %114 = vector.load %arg7[%c0_137, %c1_138, %c0_139, %c0_140] : memref<3x3x128x128xf32, #tpu.memory_space<vmem>>, vector<1x1x128x128xf32>
    %115 = vector.shape_cast %114 : vector<1x1x128x128xf32> to vector<128x128xf32>
    %cst_141 = arith.constant dense<0.000000e+00> : vector<128x128xf32>
    %116 = tpu.matmul %113, %115, %cst_141 {dimension_numbers = #tpu.dot_dimension_numbers<[1], [0], [0], [1], [0, 0, 1, 1], [], []>} : vector<128x128xf32>, vector<128x128xf32>, vector<128x128xf32> -> vector<128x128xf32>
    %117 = arith.addf %111, %116 : vector<128x128xf32>
    %c0_142 = arith.constant 0 : index
    %c9_143 = arith.constant 9 : index
    %c0_144 = arith.constant 0 : index
    %118 = vector.load %arg11[%c0_142, %c9_143, %c0_144] : memref<18x24x128xf32, #tpu.memory_space<vmem>>, vector<16x8x128xf32>
    %119 = vector.shape_cast %118 : vector<16x8x128xf32> to vector<128x128xf32>
    %c0_145 = arith.constant 0 : index
    %c2_146 = arith.constant 2 : index
    %c0_147 = arith.constant 0 : index
    %c0_148 = arith.constant 0 : index
    %120 = vector.load %arg7[%c0_145, %c2_146, %c0_147, %c0_148] : memref<3x3x128x128xf32, #tpu.memory_space<vmem>>, vector<1x1x128x128xf32>
    %121 = vector.shape_cast %120 : vector<1x1x128x128xf32> to vector<128x128xf32>
    %cst_149 = arith.constant dense<0.000000e+00> : vector<128x128xf32>
    %122 = tpu.matmul %119, %121, %cst_149 {dimension_numbers = #tpu.dot_dimension_numbers<[1], [0], [0], [1], [0, 0, 1, 1], [], []>} : vector<128x128xf32>, vector<128x128xf32>, vector<128x128xf32> -> vector<128x128xf32>
    %123 = arith.addf %117, %122 : vector<128x128xf32>
    %c1_150 = arith.constant 1 : index
    %c7_151 = arith.constant 7 : index
    %c0_152 = arith.constant 0 : index
    %124 = vector.load %arg11[%c1_150, %c7_151, %c0_152] : memref<18x24x128xf32, #tpu.memory_space<vmem>>, vector<16x8x128xf32>
    %125 = vector.shape_cast %124 : vector<16x8x128xf32> to vector<128x128xf32>
    %c1_153 = arith.constant 1 : index
    %c0_154 = arith.constant 0 : index
    %c0_155 = arith.constant 0 : index
    %c0_156 = arith.constant 0 : index
    %126 = vector.load %arg7[%c1_153, %c0_154, %c0_155, %c0_156] : memref<3x3x128x128xf32, #tpu.memory_space<vmem>>, vector<1x1x128x128xf32>
    %127 = vector.shape_cast %126 : vector<1x1x128x128xf32> to vector<128x128xf32>
    %cst_157 = arith.constant dense<0.000000e+00> : vector<128x128xf32>
    %128 = tpu.matmul %125, %127, %cst_157 {dimension_numbers = #tpu.dot_dimension_numbers<[1], [0], [0], [1], [0, 0, 1, 1], [], []>} : vector<128x128xf32>, vector<128x128xf32>, vector<128x128xf32> -> vector<128x128xf32>
    %129 = arith.addf %123, %128 : vector<128x128xf32>
    %c1_158 = arith.constant 1 : index
    %c8_159 = arith.constant 8 : index
    %c0_160 = arith.constant 0 : index
    %130 = vector.load %arg11[%c1_158, %c8_159, %c0_160] : memref<18x24x128xf32, #tpu.memory_space<vmem>>, vector<16x8x128xf32>
    %131 = vector.shape_cast %130 : vector<16x8x128xf32> to vector<128x128xf32>
    %c1_161 = arith.constant 1 : index
    %c1_162 = arith.constant 1 : index
    %c0_163 = arith.constant 0 : index
    %c0_164 = arith.constant 0 : index
    %132 = vector.load %arg7[%c1_161, %c1_162, %c0_163, %c0_164] : memref<3x3x128x128xf32, #tpu.memory_space<vmem>>, vector<1x1x128x128xf32>
    %133 = vector.shape_cast %132 : vector<1x1x128x128xf32> to vector<128x128xf32>
    %cst_165 = arith.constant dense<0.000000e+00> : vector<128x128xf32>
    %134 = tpu.matmul %131, %133, %cst_165 {dimension_numbers = #tpu.dot_dimension_numbers<[1], [0], [0], [1], [0, 0, 1, 1], [], []>} : vector<128x128xf32>, vector<128x128xf32>, vector<128x128xf32> -> vector<128x128xf32>
    %135 = arith.addf %129, %134 : vector<128x128xf32>
    %c1_166 = arith.constant 1 : index
    %c9_167 = arith.constant 9 : index
    %c0_168 = arith.constant 0 : index
    %136 = vector.load %arg11[%c1_166, %c9_167, %c0_168] : memref<18x24x128xf32, #tpu.memory_space<vmem>>, vector<16x8x128xf32>
    %137 = vector.shape_cast %136 : vector<16x8x128xf32> to vector<128x128xf32>
    %c1_169 = arith.constant 1 : index
    %c2_170 = arith.constant 2 : index
    %c0_171 = arith.constant 0 : index
    %c0_172 = arith.constant 0 : index
    %138 = vector.load %arg7[%c1_169, %c2_170, %c0_171, %c0_172] : memref<3x3x128x128xf32, #tpu.memory_space<vmem>>, vector<1x1x128x128xf32>
    %139 = vector.shape_cast %138 : vector<1x1x128x128xf32> to vector<128x128xf32>
    %cst_173 = arith.constant dense<0.000000e+00> : vector<128x128xf32>
    %140 = tpu.matmul %137, %139, %cst_173 {dimension_numbers = #tpu.dot_dimension_numbers<[1], [0], [0], [1], [0, 0, 1, 1], [], []>} : vector<128x128xf32>, vector<128x128xf32>, vector<128x128xf32> -> vector<128x128xf32>
    %141 = arith.addf %135, %140 : vector<128x128xf32>
    %c2_174 = arith.constant 2 : index
    %c7_175 = arith.constant 7 : index
    %c0_176 = arith.constant 0 : index
    %142 = vector.load %arg11[%c2_174, %c7_175, %c0_176] : memref<18x24x128xf32, #tpu.memory_space<vmem>>, vector<16x8x128xf32>
    %143 = vector.shape_cast %142 : vector<16x8x128xf32> to vector<128x128xf32>
    %c2_177 = arith.constant 2 : index
    %c0_178 = arith.constant 0 : index
    %c0_179 = arith.constant 0 : index
    %c0_180 = arith.constant 0 : index
    %144 = vector.load %arg7[%c2_177, %c0_178, %c0_179, %c0_180] : memref<3x3x128x128xf32, #tpu.memory_space<vmem>>, vector<1x1x128x128xf32>
    %145 = vector.shape_cast %144 : vector<1x1x128x128xf32> to vector<128x128xf32>
    %cst_181 = arith.constant dense<0.000000e+00> : vector<128x128xf32>
    %146 = tpu.matmul %143, %145, %cst_181 {dimension_numbers = #tpu.dot_dimension_numbers<[1], [0], [0], [1], [0, 0, 1, 1], [], []>} : vector<128x128xf32>, vector<128x128xf32>, vector<128x128xf32> -> vector<128x128xf32>
    %147 = arith.addf %141, %146 : vector<128x128xf32>
    %c2_182 = arith.constant 2 : index
    %c8_183 = arith.constant 8 : index
    %c0_184 = arith.constant 0 : index
    %148 = vector.load %arg11[%c2_182, %c8_183, %c0_184] : memref<18x24x128xf32, #tpu.memory_space<vmem>>, vector<16x8x128xf32>
    %149 = vector.shape_cast %148 : vector<16x8x128xf32> to vector<128x128xf32>
    %c2_185 = arith.constant 2 : index
    %c1_186 = arith.constant 1 : index
    %c0_187 = arith.constant 0 : index
    %c0_188 = arith.constant 0 : index
    %150 = vector.load %arg7[%c2_185, %c1_186, %c0_187, %c0_188] : memref<3x3x128x128xf32, #tpu.memory_space<vmem>>, vector<1x1x128x128xf32>
    %151 = vector.shape_cast %150 : vector<1x1x128x128xf32> to vector<128x128xf32>
    %cst_189 = arith.constant dense<0.000000e+00> : vector<128x128xf32>
    %152 = tpu.matmul %149, %151, %cst_189 {dimension_numbers = #tpu.dot_dimension_numbers<[1], [0], [0], [1], [0, 0, 1, 1], [], []>} : vector<128x128xf32>, vector<128x128xf32>, vector<128x128xf32> -> vector<128x128xf32>
    %153 = arith.addf %147, %152 : vector<128x128xf32>
    %c2_190 = arith.constant 2 : index
    %c9_191 = arith.constant 9 : index
    %c0_192 = arith.constant 0 : index
    %154 = vector.load %arg11[%c2_190, %c9_191, %c0_192] : memref<18x24x128xf32, #tpu.memory_space<vmem>>, vector<16x8x128xf32>
    %155 = vector.shape_cast %154 : vector<16x8x128xf32> to vector<128x128xf32>
    %c2_193 = arith.constant 2 : index
    %c2_194 = arith.constant 2 : index
    %c0_195 = arith.constant 0 : index
    %c0_196 = arith.constant 0 : index
    %156 = vector.load %arg7[%c2_193, %c2_194, %c0_195, %c0_196] : memref<3x3x128x128xf32, #tpu.memory_space<vmem>>, vector<1x1x128x128xf32>
    %157 = vector.shape_cast %156 : vector<1x1x128x128xf32> to vector<128x128xf32>
    %cst_197 = arith.constant dense<0.000000e+00> : vector<128x128xf32>
    %158 = tpu.matmul %155, %157, %cst_197 {dimension_numbers = #tpu.dot_dimension_numbers<[1], [0], [0], [1], [0, 0, 1, 1], [], []>} : vector<128x128xf32>, vector<128x128xf32>, vector<128x128xf32> -> vector<128x128xf32>
    %159 = arith.addf %153, %158 : vector<128x128xf32>
    %c0_198 = arith.constant 0 : index
    %c0_199 = arith.constant 0 : index
    %160 = vector.load %arg8[%c0_198, %c0_199] : memref<1x128xf32, #tpu.memory_space<vmem>>, vector<1x128xf32>
    %161 = vector.shape_cast %160 : vector<1x128xf32> to vector<128xf32>
    %162 = vector.shape_cast %161 : vector<128xf32> to vector<1x128xf32>
    %163 = vector.broadcast %162 : vector<1x128xf32> to vector<128x128xf32>
    %164 = arith.addf %159, %163 : vector<128x128xf32>
    %cst_200 = arith.constant 0.000000e+00 : f32
    %165 = vector.broadcast %cst_200 : f32 to vector<128x128xf32>
    %166 = arith.maximumf %164, %165 : vector<128x128xf32>
    %167 = vector.shape_cast %166 : vector<128x128xf32> to vector<16x8x128xf32>
    %c0_201 = arith.constant 0 : index
    %c0_202 = arith.constant 0 : index
    %c0_203 = arith.constant 0 : index
    %c0_204 = arith.constant 0 : index
    %168 = vector.load %arg9[%c0_201, %c0_202, %c0_203, %c0_204] : memref<1x16x8x128xf32, #tpu.memory_space<vmem>>, vector<1x16x8x128xf32>
    %169 = vector.shape_cast %168 : vector<1x16x8x128xf32> to vector<16x8x128xf32>
    %170 = vector.shape_cast %167 : vector<16x8x128xf32> to vector<1x16x8x128xf32>
    tpu.vector_store %arg9[%c0_201, %c0_202, %c0_203, %c0_204], %170 {strides = array<i32>} : memref<1x16x8x128xf32, #tpu.memory_space<vmem>>, vector<1x16x8x128xf32>,
    return
  }
  func.func @transform_0(%arg0: i32) -> (i32, i32, i32, i32) {
    %c0_i32 = arith.constant 0 : i32
    %c0_i32_0 = arith.constant 0 : i32
    %c0_i32_1 = arith.constant 0 : i32
    %c0_i32_2 = arith.constant 0 : i32
    return %arg0, %c0_i32, %c0_i32_0, %c0_i32_1 : i32, i32, i32, i32
  }
  func.func @transform_1(%arg0: i32) -> (i32, i32, i32, i32) {
    %c0_i32 = arith.constant 0 : i32
    %c0_i32_0 = arith.constant 0 : i32
    %c0_i32_1 = arith.constant 0 : i32
    %c0_i32_2 = arith.constant 0 : i32
    return %arg0, %c0_i32, %c0_i32_0, %c0_i32_1 : i32, i32, i32, i32
  }
  func.func @transform_2(%arg0: i32) -> (i32, i32, i32) {
    %c0_i32 = arith.constant 0 : i32
    %c0_i32_0 = arith.constant 0 : i32
    %c0_i32_1 = arith.constant 0 : i32
    %c0_i32_2 = arith.constant 0 : i32
    return %c0_i32, %c0_i32_0, %c0_i32_1 : i32, i32, i32
  }
  func.func @transform_3(%arg0: i32) -> (i32, i32) {
    %c0_i32 = arith.constant 0 : i32
    %c0_i32_0 = arith.constant 0 : i32
    %c0_i32_1 = arith.constant 0 : i32
    return %c0_i32, %c0_i32_0 : i32, i32
  }
  func.func @transform_4(%arg0: i32) -> (i32, i32, i32, i32) {
    %c0_i32 = arith.constant 0 : i32
    %c0_i32_0 = arith.constant 0 : i32
    %c0_i32_1 = arith.constant 0 : i32
    %c0_i32_2 = arith.constant 0 : i32
    %c0_i32_3 = arith.constant 0 : i32
    return %c0_i32, %c0_i32_0, %c0_i32_1, %c0_i32_2 : i32, i32, i32, i32
  }
  func.func @transform_5(%arg0: i32) -> (i32, i32) {
    %c0_i32 = arith.constant 0 : i32
    %c0_i32_0 = arith.constant 0 : i32
    %c0_i32_1 = arith.constant 0 : i32
    return %c0_i32, %c0_i32_0 : i32, i32
  }
  func.func @transform_6(%arg0: i32) -> (i32, i32, i32, i32) {
    %c0_i32 = arith.constant 0 : i32
    %c0_i32_0 = arith.constant 0 : i32
    %c0_i32_1 = arith.constant 0 : i32
    %c0_i32_2 = arith.constant 0 : i32
    %c0_i32_3 = arith.constant 0 : i32
    return %c0_i32, %c0_i32_0, %c0_i32_1, %c0_i32_2 : i32, i32, i32, i32
  }
  func.func @transform_7(%arg0: i32) -> (i32, i32) {
    %c0_i32 = arith.constant 0 : i32
    %c0_i32_0 = arith.constant 0 : i32
    %c0_i32_1 = arith.constant 0 : i32
    return %c0_i32, %c0_i32_0 : i32, i32
  }
  func.func @transform_8(%arg0: i32) -> (i32, i32, i32, i32) {
    %c0_i32 = arith.constant 0 : i32
    %c0_i32_0 = arith.constant 0 : i32
    %c0_i32_1 = arith.constant 0 : i32
    %c0_i32_2 = arith.constant 0 : i32
    return %arg0, %c0_i32, %c0_i32_0, %c0_i32_1 : i32, i32, i32, i32
  }
}

</mosaic_0001>

<llo_original>
// kernel: tpu_custom_call.1
$region0: #{tpu_custom_call.1}
  #allocation0 [shape = 'u32[]', space=smem, size = 0x4, offset = 0x4, fixed_abs, tag = 'smem constant byte address 0x4 - core index']
  #allocation1 [shape = 'u32[144,128]{1,0:T(1,128)}', space=vmem, size = 0x12000, scoped, tag = 'internal scratch']
  #allocation2 [shape = 'f32[18,24,256]{2,1,0:T(8,128)}', space=vmem, size = 0x6c000, scoped, tag = 'scratch operand']
  #allocation3 [shape = 'f32[18,24,128]{2,1,0:T(8,128)}', space=vmem, size = 0x36000, scoped, tag = 'scratch operand']
  %s0 = inlined_call_operand.hbm [shape: f32[2,8,8,8], index: 0, kind: input, shape index: {}]
  %s1 = inlined_call_operand.hbm [shape: f32[2,16,8,128], index: 1, kind: input, shape index: {}]
  %s2 = inlined_call_operand.hbm [shape: f32[2,8,128], index: 2, kind: input, shape index: {}]
  %s3 = inlined_call_operand.hbm [shape: f32[1,128], index: 3, kind: input, shape index: {}]
  %s4 = inlined_call_operand.hbm [shape: f32[3,3,256,128], index: 4, kind: input, shape index: {}]
  %s5 = inlined_call_operand.hbm [shape: f32[1,128], index: 5, kind: input, shape index: {}]
  %s6 = inlined_call_operand.hbm [shape: f32[3,3,128,128], index: 6, kind: input, shape index: {}]
  %s7 = inlined_call_operand.hbm [shape: f32[1,128], index: 7, kind: input, shape index: {}]
  %s8 = inlined_call_operand.hbm [shape: f32[2,16,8,128], index: 8, kind: output, shape index: {}]
  %s9 = sld [smem:[#allocation0]]
  $region97: #{tpu_custom_call.1} parent=0
    _
  %s11 = ssub.s32 1, %s9
  %s12 = scalar_select 0, %s11, %s9
  $region1: #{tpu_custom_call.1} parent=0
    #allocation4 [shape = 'u8[65536]{0}', space=vmem, size = 0x10000, scoped, tag = 'input window, operand 0']
    #allocation5 [shape = 's32[2]{0}', space=sflag, size = 0x8, scoped, tag = 'scoped memory for tpu_custom_call.1']
    #allocation6 [shape = 's32[2]{0}', space=sflag, size = 0x8, scoped, tag = 'scoped memory for tpu_custom_call.1']
    #allocation7 [shape = 'u8[131072]{0}', space=vmem, size = 0x20000, scoped, tag = 'input window, operand 1']
    #allocation8 [shape = 's32[2]{0}', space=sflag, size = 0x8, scoped, tag = 'scoped memory for tpu_custom_call.1']
    #allocation9 [shape = 'u8[8192]{0}', space=vmem, size = 0x2000, scoped, tag = 'input window, operand 2, single buffered']
    #allocation10 [shape = 'u8[512]{0}', space=vmem, size = 0x400, scoped, tag = 'input window, operand 3, single buffered']
    #allocation11 [shape = 's32[1]{0}', space=sflag, size = 0x4, scoped, tag = 'scoped memory for tpu_custom_call.1']
    #allocation12 [shape = 'u8[1179648]{0}', space=vmem, size = 0x120000, scoped, tag = 'input window, operand 4, single buffered']
    #allocation13 [shape = 'u8[512]{0}', space=vmem, size = 0x400, scoped, tag = 'input window, operand 5, single buffered']
    #allocation14 [shape = 's32[1]{0}', space=sflag, size = 0x4, scoped, tag = 'scoped memory for tpu_custom_call.1']
    #allocation15 [shape = 'u8[589824]{0}', space=vmem, size = 0x90000, scoped, tag = 'input window, operand 6, single buffered']
    #allocation16 [shape = 'u8[512]{0}', space=vmem, size = 0x400, scoped, tag = 'input window, operand 7, single buffered']
    #allocation17 [shape = 's32[1]{0}', space=sflag, size = 0x4, scoped, tag = 'scoped memory for tpu_custom_call.1']
    #allocation18 [shape = 'u8[131072]{0}', space=vmem, size = 0x20000, scoped, tag = 'output window, operand 0']
    %13 = vsyncpa [#allocation5], 0
    %s14 = scalar_lea.sflag [#allocation5], 1
    %15 = vsyncpa %s14, 0
    %16 = vsyncpa [#allocation8], 0
    %s17 = scalar_lea.sflag [#allocation8], 1
    %18 = vsyncpa %s17, 0
    %19 = vsyncpa [#allocation11], 0
    %20 = vsyncpa [#allocation14], 0
    %21 = vsyncpa [#allocation17], 0
    %22 = vsyncpa [#allocation6], 0
    %s23 = scalar_lea.sflag [#allocation6], 1
    %24 = vsyncpa %s23, 0
    loop: start=0, step=1, limit=4
    $region2: #{tpu_custom_call.1} parent=1 // loop_pre_header
      _
    $region3: #{tpu_custom_call.1} parent=1 // loop_header
      %s26 = sphi 0, %s30
      %p27 = scmp.ge.s32.totalorder %s26, 4
      %s36 = sphi 0, %s38
      %s39 = sphi 0, %s36
      %s40 = sphi 0, %s39
      %s56 = sphi 0, %s40
      %s62 = sphi 0, %s64
      %s65 = sphi 0, %s62
      %s66 = sphi 0, %s65
      %s82 = sphi 0, %s66
      %s86 = sphi 0, %s86
      %s88 = sphi 0, %s86
      %s89 = sphi 0, %s88
      %s103 = sphi 0, %s89
      %s107 = sphi 0, %s107
      %s109 = sphi 0, %s107
      %s110 = sphi 0, %s109
      %s124 = sphi 0, %s110
      %s128 = sphi 0, %s128
      %s130 = sphi 0, %s128
      %s131 = sphi 0, %s130
      %s145 = sphi 0, %s131
      %s149 = sphi 0, %s149
      %s151 = sphi 0, %s149
      %s152 = sphi 0, %s151
      %s166 = sphi 0, %s152
      %s170 = sphi 0, %s170
      %s172 = sphi 0, %s170
      %s173 = sphi 0, %s172
      %s187 = sphi 0, %s173
      %s191 = sphi 0, %s191
      %s193 = sphi 0, %s191
      %s194 = sphi 0, %s193
      %s208 = sphi 0, %s194
      %s214 = sphi 0, %s216
      %s217 = sphi 0, %s214
      %s218 = sphi 0, %s217
      %s234 = sphi 0, %s218
    $region4: #{tpu_custom_call.1} parent=1 // loop_header_branch
      %29 = sbr.rel (%p27) target = $region8
    $region5: #{tpu_custom_call.1} parent=1 // loop_body
      %s31 = ssub.s32 %s26, 1
      %s32 = ssub.s32 %s26, 2
      %s33 = sadd.s32 %s26, 1
      %s34 = ssub.s32 %s26, %s33
      %p35 = scmp.eq.s32.totalorder %s34, 0
      %s37 = sadd.s32 %s36, 1
      %s38 = scalar_select %p35, %s36, %s37
      %p41 = pneg %p35
      %p42 = scmp.eq.s32.totalorder %s26, 1
      %p43 = por %p41, %p42
      %p44 = scmp.ne.s32.totalorder %s36, %s39
      %p45 = scmp.eq.s32.totalorder %s26, 0
      %p46 = por %p44, %p45
      %p47 = scmp.ne.s32.totalorder %s36, %s39
      %p48 = scmp.eq.s32.totalorder %s31, 1
      %p49 = por %p47, %p48
      %p50 = scmp.ne.s32.totalorder %s39, %s40
      %p51 = scmp.eq.s32.totalorder %s31, 0
      %p52 = por %p50, %p51
      %p53 = scmp.ne.s32.totalorder %s39, %s40
      %p54 = scmp.eq.s32.totalorder %s32, 1
      %p55 = por %p53, %p54
      %p57 = scmp.ne.s32.totalorder %s40, %s56
      %p58 = scmp.eq.s32.totalorder %s32, 0
      %p59 = por %p57, %p58
      %s60 = ssub.s32 %s26, %s33
      %p61 = scmp.eq.s32.totalorder %s60, 0
      %s63 = sadd.s32 %s62, 1
      %s64 = scalar_select %p61, %s62, %s63
      %p67 = pneg %p61
      %p68 = scmp.eq.s32.totalorder %s26, 1
      %p69 = por %p67, %p68
      %p70 = scmp.ne.s32.totalorder %s62, %s65
      %p71 = scmp.eq.s32.totalorder %s26, 0
      %p72 = por %p70, %p71
      %p73 = scmp.ne.s32.totalorder %s62, %s65
      %p74 = scmp.eq.s32.totalorder %s31, 1
      %p75 = por %p73, %p74
      %p76 = scmp.ne.s32.totalorder %s65, %s66
      %p77 = scmp.eq.s32.totalorder %s31, 0
      %p78 = por %p76, %p77
      %p79 = scmp.ne.s32.totalorder %s65, %s66
      %p80 = scmp.eq.s32.totalorder %s32, 1
      %p81 = por %p79, %p80
      %p83 = scmp.ne.s32.totalorder %s66, %s82
      %p84 = scmp.eq.s32.totalorder %s32, 0
      %p85 = por %p83, %p84
      %s87 = sadd.s32 %s86, 1
      %p90 = scmp.eq.s32.totalorder %s26, 1
      %p91 = scmp.ne.s32.totalorder %s86, %s88
      %p92 = scmp.eq.s32.totalorder %s26, 0
      %p93 = por %p91, %p92
      %p94 = scmp.ne.s32.totalorder %s86, %s88
      %p95 = scmp.eq.s32.totalorder %s31, 1
      %p96 = por %p94, %p95
      %p97 = scmp.ne.s32.totalorder %s88, %s89
      %p98 = scmp.eq.s32.totalorder %s31, 0
      %p99 = por %p97, %p98
      %p100 = scmp.ne.s32.totalorder %s88, %s89
      %p101 = scmp.eq.s32.totalorder %s32, 1
      %p102 = por %p100, %p101
      %p104 = scmp.ne.s32.totalorder %s89, %s103
      %p105 = scmp.eq.s32.totalorder %s32, 0
      %p106 = por %p104, %p105
      %s108 = sadd.s32 %s107, 1
      %p111 = scmp.eq.s32.totalorder %s26, 1
      %p112 = scmp.ne.s32.totalorder %s107, %s109
      %p113 = scmp.eq.s32.totalorder %s26, 0
      %p114 = por %p112, %p113
      %p115 = scmp.ne.s32.totalorder %s107, %s109
      %p116 = scmp.eq.s32.totalorder %s31, 1
      %p117 = por %p115, %p116
      %p118 = scmp.ne.s32.totalorder %s109, %s110
      %p119 = scmp.eq.s32.totalorder %s31, 0
      %p120 = por %p118, %p119
      %p121 = scmp.ne.s32.totalorder %s109, %s110
      %p122 = scmp.eq.s32.totalorder %s32, 1
      %p123 = por %p121, %p122
      %p125 = scmp.ne.s32.totalorder %s110, %s124
      %p126 = scmp.eq.s32.totalorder %s32, 0
      %p127 = por %p125, %p126
      %s129 = sadd.s32 %s128, 1
      %p132 = scmp.eq.s32.totalorder %s26, 1
      %p133 = scmp.ne.s32.totalorder %s128, %s130
      %p134 = scmp.eq.s32.totalorder %s26, 0
      %p135 = por %p133, %p134
      %p136 = scmp.ne.s32.totalorder %s128, %s130
      %p137 = scmp.eq.s32.totalorder %s31, 1
      %p138 = por %p136, %p137
      %p139 = scmp.ne.s32.totalorder %s130, %s131
      %p140 = scmp.eq.s32.totalorder %s31, 0
      %p141 = por %p139, %p140
      %p142 = scmp.ne.s32.totalorder %s130, %s131
      %p143 = scmp.eq.s32.totalorder %s32, 1
      %p144 = por %p142, %p143
      %p146 = scmp.ne.s32.totalorder %s131, %s145
      %p147 = scmp.eq.s32.totalorder %s32, 0
      %p148 = por %p146, %p147
      %s150 = sadd.s32 %s149, 1
      %p153 = scmp.eq.s32.totalorder %s26, 1
      %p154 = scmp.ne.s32.totalorder %s149, %s151
      %p155 = scmp.eq.s32.totalorder %s26, 0
      %p156 = por %p154, %p155
      %p157 = scmp.ne.s32.totalorder %s149, %s151
      %p158 = scmp.eq.s32.totalorder %s31, 1
      %p159 = por %p157, %p158
      %p160 = scmp.ne.s32.totalorder %s151, %s152
      %p161 = scmp.eq.s32.totalorder %s31, 0
      %p162 = por %p160, %p161
      %p163 = scmp.ne.s32.totalorder %s151, %s152
      %p164 = scmp.eq.s32.totalorder %s32, 1
      %p165 = por %p163, %p164
      %p167 = scmp.ne.s32.totalorder %s152, %s166
      %p168 = scmp.eq.s32.totalorder %s32, 0
      %p169 = por %p167, %p168
      %s171 = sadd.s32 %s170, 1
      %p174 = scmp.eq.s32.totalorder %s26, 1
      %p175 = scmp.ne.s32.totalorder %s170, %s172
      %p176 = scmp.eq.s32.totalorder %s26, 0
      %p177 = por %p175, %p176
      %p178 = scmp.ne.s32.totalorder %s170, %s172
      %p179 = scmp.eq.s32.totalorder %s31, 1
      %p180 = por %p178, %p179
      %p181 = scmp.ne.s32.totalorder %s172, %s173
      %p182 = scmp.eq.s32.totalorder %s31, 0
      %p183 = por %p181, %p182
      %p184 = scmp.ne.s32.totalorder %s172, %s173
      %p185 = scmp.eq.s32.totalorder %s32, 1
      %p186 = por %p184, %p185
      %p188 = scmp.ne.s32.totalorder %s173, %s187
      %p189 = scmp.eq.s32.totalorder %s32, 0
      %p190 = por %p188, %p189
      %s192 = sadd.s32 %s191, 1
      %p195 = scmp.eq.s32.totalorder %s26, 1
      %p196 = scmp.ne.s32.totalorder %s191, %s193
      %p197 = scmp.eq.s32.totalorder %s26, 0
      %p198 = por %p196, %p197
      %p199 = scmp.ne.s32.totalorder %s191, %s193
      %p200 = scmp.eq.s32.totalorder %s31, 1
      %p201 = por %p199, %p200
      %p202 = scmp.ne.s32.totalorder %s193, %s194
      %p203 = scmp.eq.s32.totalorder %s31, 0
      %p204 = por %p202, %p203
      %p205 = scmp.ne.s32.totalorder %s193, %s194
      %p206 = scmp.eq.s32.totalorder %s32, 1
      %p207 = por %p205, %p206
      %p209 = scmp.ne.s32.totalorder %s194, %s208
      %p210 = scmp.eq.s32.totalorder %s32, 0
      %p211 = por %p209, %p210
      %s212 = ssub.s32 %s26, %s33
      %p213 = scmp.eq.s32.totalorder %s212, 0
      %s215 = sadd.s32 %s214, 1
      %s216 = scalar_select %p213, %s214, %s215
      %p219 = pneg %p213
      %p220 = scmp.eq.s32.totalorder %s26, 1
      %p221 = por %p219, %p220
      %p222 = scmp.ne.s32.totalorder %s214, %s217
      %p223 = scmp.eq.s32.totalorder %s26, 0
      %p224 = por %p222, %p223
      %p225 = scmp.ne.s32.totalorder %s214, %s217
      %p226 = scmp.eq.s32.totalorder %s31, 1
      %p227 = por %p225, %p226
      %p228 = scmp.ne.s32.totalorder %s217, %s218
      %p229 = scmp.eq.s32.totalorder %s31, 0
      %p230 = por %p228, %p229
      %p231 = scmp.ne.s32.totalorder %s217, %s218
      %p232 = scmp.eq.s32.totalorder %s32, 1
      %p233 = por %p231, %p232
      %p235 = scmp.ne.s32.totalorder %s218, %s234
      %p236 = scmp.eq.s32.totalorder %s32, 0
      %p237 = por %p235, %p236
      %p238 = scmp.le.s32.totalorder 1, %s26
      %p239 = scmp.lt.s32.totalorder %s26, 3
      %p240 = pnand %p238, %p239
      %p241 = pneg %p240
      // Predicated region
      $region9: #{tpu_custom_call.1} parent=5 // pred_check
        _
      $region10: #{tpu_custom_call.1} parent=5 // pred_check_branch
        %243 = sbr.rel (%p240) target = $region12
      $region11: #{tpu_custom_call.1} parent=5 // pred_region
        %s244 = ssub.s32 %s26, 1
        // Predicated region
        $region13: #{tpu_custom_call.1} parent=11 // pred_check
          %p245 = pneg %p99
        $region14: #{tpu_custom_call.1} parent=11 // pred_check_branch
          %247 = sbr.rel (%p245) target = $region16
        $region15: #{tpu_custom_call.1} parent=11 // pred_region
          %s249 = ssub.s32 256, 256
          %250 = vsyncadd [#allocation8], %s249
          %s251 = sshll.u32 [#allocation9], 4
          %s252 = int_to_ptr.vmem [resolvable:$true] %s251
          %257 = dma.hbm_to_vmem [thread:$0]  %s2, 256, %s252, [#allocation8], 128, 128, 8
        $region16: #{tpu_custom_call.1} parent=11 // pred_fallthru
          _
        // Predicated region
        $region17: #{tpu_custom_call.1} parent=11 // pred_check
          %p258 = pneg %p120
        $region18: #{tpu_custom_call.1} parent=11 // pred_check_branch
          %260 = sbr.rel (%p258) target = $region20
        $region19: #{tpu_custom_call.1} parent=11 // pred_region
          %s262 = ssub.s32 16, 16
          %263 = vsyncadd [#allocation11], %s262
          %s265 = sshll.u32 [#allocation10], 4
          %s266 = int_to_ptr.vmem [resolvable:$true] %s265
          %268 = dma.hbm_to_vmem [thread:$0]  %s3, 16, %s266, [#allocation11]
        $region20: #{tpu_custom_call.1} parent=11 // pred_fallthru
          _
        // Predicated region
        $region21: #{tpu_custom_call.1} parent=11 // pred_check
          %p269 = pneg %p141
        $region22: #{tpu_custom_call.1} parent=11 // pred_check_branch
          %271 = sbr.rel (%p269) target = $region24
        $region23: #{tpu_custom_call.1} parent=11 // pred_region
          %s273 = ssub.s32 36864, 36864
          %274 = vsyncadd [#allocation11], %s273
          %s275 = sshll.u32 [#allocation12], 4
          %s276 = int_to_ptr.vmem [resolvable:$true] %s275
          %281 = dma.hbm_to_vmem [thread:$0]  %s4, 36864, %s276, [#allocation11], 128, 128, 8
        $region24: #{tpu_custom_call.1} parent=11 // pred_fallthru
          _
        // Predicated region
        $region25: #{tpu_custom_call.1} parent=11 // pred_check
          %p282 = pneg %p162
        $region26: #{tpu_custom_call.1} parent=11 // pred_check_branch
          %284 = sbr.rel (%p282) target = $region28
        $region27: #{tpu_custom_call.1} parent=11 // pred_region
          %s286 = ssub.s32 16, 16
          %287 = vsyncadd [#allocation14], %s286
          %s289 = sshll.u32 [#allocation13], 4
          %s290 = int_to_ptr.vmem [resolvable:$true] %s289
          %292 = dma.hbm_to_vmem [thread:$0]  %s5, 16, %s290, [#allocation14]
        $region28: #{tpu_custom_call.1} parent=11 // pred_fallthru
          _
        // Predicated region
        $region29: #{tpu_custom_call.1} parent=11 // pred_check
          %p293 = pneg %p183
        $region30: #{tpu_custom_call.1} parent=11 // pred_check_branch
          %295 = sbr.rel (%p293) target = $region32
        $region31: #{tpu_custom_call.1} parent=11 // pred_region
          %s297 = ssub.s32 18432, 18432
          %298 = vsyncadd [#allocation14], %s297
          %s299 = sshll.u32 [#allocation15], 4
          %s300 = int_to_ptr.vmem [resolvable:$true] %s299
          %305 = dma.hbm_to_vmem [thread:$0]  %s6, 18432, %s300, [#allocation14], 128, 128, 8
        $region32: #{tpu_custom_call.1} parent=11 // pred_fallthru
          _
        // Predicated region
        $region33: #{tpu_custom_call.1} parent=11 // pred_check
          %p306 = pneg %p204
        $region34: #{tpu_custom_call.1} parent=11 // pred_check_branch
          %308 = sbr.rel (%p306) target = $region36
        $region35: #{tpu_custom_call.1} parent=11 // pred_region
          %s310 = ssub.s32 16, 16
          %311 = vsyncadd [#allocation17], %s310
          %s313 = sshll.u32 [#allocation16], 4
          %s314 = int_to_ptr.vmem [resolvable:$true] %s313
          %316 = dma.hbm_to_vmem [thread:$0]  %s7, 16, %s314, [#allocation17]
        $region36: #{tpu_custom_call.1} parent=11 // pred_fallthru
          _
      $region12: #{tpu_custom_call.1} parent=5 // pred_fallthru
        _
      %p317 = scmp.lt.s32.totalorder %s26, 2
      // Predicated region
      $region37: #{tpu_custom_call.1} parent=5 // pred_check
        %p318 = pneg %p317
      $region38: #{tpu_custom_call.1} parent=5 // pred_check_branch
        %320 = sbr.rel (%p318) target = $region40
      $region39: #{tpu_custom_call.1} parent=5 // pred_region
        // Predicated region
        $region41: #{tpu_custom_call.1} parent=39 // pred_check
          %p321 = pneg %p46
        $region42: #{tpu_custom_call.1} parent=39 // pred_check_branch
          %323 = sbr.rel (%p321) target = $region44
        $region43: #{tpu_custom_call.1} parent=39 // pred_region
          %s324 = sand.u32 %s36, 1
          %s325 = scalar_lea.sflag [#allocation5], %s324
          %s326 = sand.u32 %s36, 1
          %s327 = smul.addr %s326, 64
          %s328 = scalar_lea.vmem [#allocation4], %s327
          %s330 = ssub.s32 1024, 1024
          %331 = vsyncadd %s325, %s330
          %s332 = smul.addr %s26, 8
          %s333 = smul.addr %s332, 128
          %s334 = scalar_lea.hbm %s0, %s333
          %s335 = sshll.u32 %s328, 4
          %s336 = int_to_ptr.vmem [resolvable:$true] %s335
          %341 = dma.hbm_to_vmem [thread:$0]  %s334, 1024, %s336, %s325, 128, 128, 8
        $region44: #{tpu_custom_call.1} parent=39 // pred_fallthru
          _
        // Predicated region
        $region45: #{tpu_custom_call.1} parent=39 // pred_check
          %p342 = pneg %p72
        $region46: #{tpu_custom_call.1} parent=39 // pred_check_branch
          %344 = sbr.rel (%p342) target = $region48
        $region47: #{tpu_custom_call.1} parent=39 // pred_region
          %s345 = sand.u32 %s26, 1
          %s346 = scalar_lea.sflag [#allocation8], %s345
          %s347 = sand.u32 %s62, 1
          %s348 = smul.addr %s347, 128
          %s349 = scalar_lea.vmem [#allocation7], %s348
          %s351 = ssub.s32 2048, 2048
          %352 = vsyncadd %s346, %s351
          %s353 = smul.addr %s26, 16
          %s354 = smul.addr %s353, 128
          %s355 = scalar_lea.hbm %s1, %s354
          %s356 = sshll.u32 %s349, 4
          %s357 = int_to_ptr.vmem [resolvable:$true] %s356
          %362 = dma.hbm_to_vmem [thread:$0]  %s355, 2048, %s357, %s346, 128, 128, 8
        $region48: #{tpu_custom_call.1} parent=39 // pred_fallthru
          _
      $region40: #{tpu_custom_call.1} parent=5 // pred_fallthru
        _
      %p363 = scmp.le.s32.totalorder 1, %s26
      %p364 = scmp.lt.s32.totalorder %s26, 3
      %p365 = pnand %p363, %p364
      %p366 = pneg %p365
      // Predicated region
      $region49: #{tpu_custom_call.1} parent=5 // pred_check
        _
      $region50: #{tpu_custom_call.1} parent=5 // pred_check_branch
        %368 = sbr.rel (%p365) target = $region52
      $region51: #{tpu_custom_call.1} parent=5 // pred_region
        %s369 = ssub.s32 %s26, 1
        %s370 = sand.u32 %s39, 1
        %s371 = scalar_lea.sflag [#allocation5], %s370
        %s372 = sand.u32 %s39, 1
        %s373 = smul.addr %s372, 64
        %s374 = scalar_lea.vmem [#allocation4], %s373
        // Predicated region
        $region53: #{tpu_custom_call.1} parent=51 // pred_check
          %p375 = pneg %p52
        $region54: #{tpu_custom_call.1} parent=51 // pred_check_branch
          %377 = sbr.rel (%p375) target = $region56
        $region55: #{tpu_custom_call.1} parent=51 // pred_region
          %378 = dma.done %s371, 1024
        $region56: #{tpu_custom_call.1} parent=51 // pred_fallthru
          _
        %s379 = sand.u32 %s31, 1
        %s380 = scalar_lea.sflag [#allocation8], %s379
        %s381 = sand.u32 %s65, 1
        %s382 = smul.addr %s381, 128
        %s383 = scalar_lea.vmem [#allocation7], %s382
        // Predicated region
        $region57: #{tpu_custom_call.1} parent=51 // pred_check
          %p384 = pneg %p78
        $region58: #{tpu_custom_call.1} parent=51 // pred_check_branch
          %386 = sbr.rel (%p384) target = $region60
        $region59: #{tpu_custom_call.1} parent=51 // pred_region
          %387 = dma.done %s380, 2048
        $region60: #{tpu_custom_call.1} parent=51 // pred_fallthru
          _
        // Predicated region
        $region61: #{tpu_custom_call.1} parent=51 // pred_check
          %p388 = pneg %p99
        $region62: #{tpu_custom_call.1} parent=51 // pred_check_branch
          %390 = sbr.rel (%p388) target = $region64
        $region63: #{tpu_custom_call.1} parent=51 // pred_region
          %391 = dma.done [#allocation8], 256
        $region64: #{tpu_custom_call.1} parent=51 // pred_fallthru
          _
        // Predicated region
        $region65: #{tpu_custom_call.1} parent=51 // pred_check
          %p392 = pneg %p120
        $region66: #{tpu_custom_call.1} parent=51 // pred_check_branch
          %394 = sbr.rel (%p392) target = $region68
        $region67: #{tpu_custom_call.1} parent=51 // pred_region
          %395 = dma.done [#allocation11], 16
        $region68: #{tpu_custom_call.1} parent=51 // pred_fallthru
          _
        // Predicated region
        $region69: #{tpu_custom_call.1} parent=51 // pred_check
          %p396 = pneg %p141
        $region70: #{tpu_custom_call.1} parent=51 // pred_check_branch
          %398 = sbr.rel (%p396) target = $region72
        $region71: #{tpu_custom_call.1} parent=51 // pred_region
          %399 = dma.done [#allocation11], 36864
        $region72: #{tpu_custom_call.1} parent=51 // pred_fallthru
          _
        // Predicated region
        $region73: #{tpu_custom_call.1} parent=51 // pred_check
          %p400 = pneg %p162
        $region74: #{tpu_custom_call.1} parent=51 // pred_check_branch
          %402 = sbr.rel (%p400) target = $region76
        $region75: #{tpu_custom_call.1} parent=51 // pred_region
          %403 = dma.done [#allocation14], 16
        $region76: #{tpu_custom_call.1} parent=51 // pred_fallthru
          _
        // Predicated region
        $region77: #{tpu_custom_call.1} parent=51 // pred_check
          %p404 = pneg %p183
        $region78: #{tpu_custom_call.1} parent=51 // pred_check_branch
          %406 = sbr.rel (%p404) target = $region80
        $region79: #{tpu_custom_call.1} parent=51 // pred_region
          %407 = dma.done [#allocation14], 18432
        $region80: #{tpu_custom_call.1} parent=51 // pred_fallthru
          _
        // Predicated region
        $region81: #{tpu_custom_call.1} parent=51 // pred_check
          %p408 = pneg %p204
        $region82: #{tpu_custom_call.1} parent=51 // pred_check_branch
          %410 = sbr.rel (%p408) target = $region84
        $region83: #{tpu_custom_call.1} parent=51 // pred_region
          %411 = dma.done [#allocation17], 16
        $region84: #{tpu_custom_call.1} parent=51 // pred_fallthru
          _
        %s412 = sand.u32 %s39, 1
        %s413 = scalar_lea.sflag [#allocation5], %s412
        %s414 = sand.u32 %s39, 1
        %s415 = smul.addr %s414, 64
        %s416 = scalar_lea.vmem [#allocation4], %s415
        %p417 = pneg %p52
        %p418 = pneg %p49
        %s419 = sand.u32 %s31, 1
        %s420 = scalar_lea.sflag [#allocation8], %s419
        %s421 = sand.u32 %s65, 1
        %s422 = smul.addr %s421, 128
        %s423 = scalar_lea.vmem [#allocation7], %s422
        %p424 = pneg %p78
        %p425 = pneg %p75
        %p426 = pneg %p99
        %p427 = pneg %p96
        %p428 = pneg %p120
        %p429 = pneg %p117
        %p430 = pneg %p141
        %p431 = pneg %p138
        %p432 = pneg %p162
        %p433 = pneg %p159
        %p434 = pneg %p183
        %p435 = pneg %p180
        %p436 = pneg %p204
        %p437 = pneg %p201
        %p438 = pneg %p230
        %p439 = pneg %p227
        %s440 = sand.u32 %s217, 1
        %s441 = scalar_lea.sflag [#allocation6], %s440
        %s442 = sand.u32 %s217, 1
        %s443 = smul.addr %s442, 128
        %s444 = scalar_lea.vmem [#allocation18], %s443
        %445 = vst [vmem:[#allocation2] sm:$0xff] 0.0
        %446 = vst [vmem:[#allocation2 + $0x8] sm:$0xff] 0.0
        %447 = vst [vmem:[#allocation2 + $0x10] sm:$0xff] 0.0
        %448 = vst [vmem:[#allocation2 + $0x18] sm:$0xff] 0.0
        %449 = vst [vmem:[#allocation2 + $0x20] sm:$0xff] 0.0
        %450 = vst [vmem:[#allocation2 + $0x28] sm:$0xff] 0.0
        %s451 = scalar_lea.vmem [#allocation2], 816
        %452 = vst [vmem:[%s451] sm:$0xff] 0.0
        %453 = vst [vmem:[%s451 + $0x8] sm:$0xff] 0.0
        %454 = vst [vmem:[%s451 + $0x10] sm:$0xff] 0.0
        %455 = vst [vmem:[%s451 + $0x18] sm:$0xff] 0.0
        %456 = vst [vmem:[%s451 + $0x20] sm:$0xff] 0.0
        %457 = vst [vmem:[%s451 + $0x28] sm:$0xff] 0.0
        %v458 = vlaneseq
        %vm459 = vcmp.ge.s32.totalorder %v458, 0
        %vm460 = vcmp.lt.s32.totalorder %v458, 256
        %vm461 = vmand %vm459, %vm460
        %s462 = scalar_lea.vmem [#allocation2], 7
        %463 = vst.msk [vmem:[%s462] ss:$8 sm:$0x3] %vm461, 0.0
        %464 = vst.msk [vmem:[%s462] ss:$8 sm:$0x0] %vm461, 0.0
        %s465 = scalar_lea.vmem [#allocation2], 55
        %466 = vst.msk [vmem:[%s465] ss:$8 sm:$0x3] %vm461, 0.0
        %467 = vst.msk [vmem:[%s465] ss:$8 sm:$0x0] %vm461, 0.0
        %s468 = scalar_lea.vmem [#allocation2], 103
        %469 = vst.msk [vmem:[%s468] ss:$8 sm:$0x3] %vm461, 0.0
        %470 = vst.msk [vmem:[%s468] ss:$8 sm:$0x0] %vm461, 0.0
        %s471 = scalar_lea.vmem [#allocation2], 151
        %472 = vst.msk [vmem:[%s471] ss:$8 sm:$0x3] %vm461, 0.0
        %473 = vst.msk [vmem:[%s471] ss:$8 sm:$0x0] %vm461, 0.0
        %s474 = scalar_lea.vmem [#allocation2], 199
        %475 = vst.msk [vmem:[%s474] ss:$8 sm:$0x3] %vm461, 0.0
        %476 = vst.msk [vmem:[%s474] ss:$8 sm:$0x0] %vm461, 0.0
        %s477 = scalar_lea.vmem [#allocation2], 247
        %478 = vst.msk [vmem:[%s477] ss:$8 sm:$0x3] %vm461, 0.0
        %479 = vst.msk [vmem:[%s477] ss:$8 sm:$0x0] %vm461, 0.0
        %s480 = scalar_lea.vmem [#allocation2], 295
        %481 = vst.msk [vmem:[%s480] ss:$8 sm:$0x3] %vm461, 0.0
        %482 = vst.msk [vmem:[%s480] ss:$8 sm:$0x0] %vm461, 0.0
        %s483 = scalar_lea.vmem [#allocation2], 343
        %484 = vst.msk [vmem:[%s483] ss:$8 sm:$0x3] %vm461, 0.0
        %485 = vst.msk [vmem:[%s483] ss:$8 sm:$0x0] %vm461, 0.0
        %s486 = scalar_lea.vmem [#allocation2], 391
        %487 = vst.msk [vmem:[%s486] ss:$8 sm:$0x3] %vm461, 0.0
        %488 = vst.msk [vmem:[%s486] ss:$8 sm:$0x0] %vm461, 0.0
        %s489 = scalar_lea.vmem [#allocation2], 439
        %490 = vst.msk [vmem:[%s489] ss:$8 sm:$0x3] %vm461, 0.0
        %491 = vst.msk [vmem:[%s489] ss:$8 sm:$0x0] %vm461, 0.0
        %s492 = scalar_lea.vmem [#allocation2], 487
        %493 = vst.msk [vmem:[%s492] ss:$8 sm:$0x3] %vm461, 0.0
        %494 = vst.msk [vmem:[%s492] ss:$8 sm:$0x0] %vm461, 0.0
        %s495 = scalar_lea.vmem [#allocation2], 535
        %496 = vst.msk [vmem:[%s495] ss:$8 sm:$0x3] %vm461, 0.0
        %497 = vst.msk [vmem:[%s495] ss:$8 sm:$0x0] %vm461, 0.0
        %s498 = scalar_lea.vmem [#allocation2], 583
        %499 = vst.msk [vmem:[%s498] ss:$8 sm:$0x3] %vm461, 0.0
        %500 = vst.msk [vmem:[%s498] ss:$8 sm:$0x0] %vm461, 0.0
        %s501 = scalar_lea.vmem [#allocation2], 631
        %502 = vst.msk [vmem:[%s501] ss:$8 sm:$0x3] %vm461, 0.0
        %503 = vst.msk [vmem:[%s501] ss:$8 sm:$0x0] %vm461, 0.0
        %s504 = scalar_lea.vmem [#allocation2], 679
        %505 = vst.msk [vmem:[%s504] ss:$8 sm:$0x3] %vm461, 0.0
        %506 = vst.msk [vmem:[%s504] ss:$8 sm:$0x0] %vm461, 0.0
        %s507 = scalar_lea.vmem [#allocation2], 727
        %508 = vst.msk [vmem:[%s507] ss:$8 sm:$0x3] %vm461, 0.0
        %509 = vst.msk [vmem:[%s507] ss:$8 sm:$0x0] %vm461, 0.0
        %s510 = scalar_lea.vmem [#allocation2], 775
        %511 = vst.msk [vmem:[%s510] ss:$8 sm:$0x3] %vm461, 0.0
        %512 = vst.msk [vmem:[%s510] ss:$8 sm:$0x0] %vm461, 0.0
        %s513 = scalar_lea.vmem [#allocation2], 823
        %514 = vst.msk [vmem:[%s513] ss:$8 sm:$0x3] %vm461, 0.0
        %515 = vst.msk [vmem:[%s513] ss:$8 sm:$0x0] %vm461, 0.0
        %s516 = scalar_lea.vmem [#allocation2], 32
        %517 = vst.msk [vmem:[%s516] ss:$8 sm:$0x3] %vm461, 0.0
        %518 = vst.msk [vmem:[%s516] ss:$8 sm:$0x0] %vm461, 0.0
        %s519 = scalar_lea.vmem [#allocation2], 80
        %520 = vst.msk [vmem:[%s519] ss:$8 sm:$0x3] %vm461, 0.0
        %521 = vst.msk [vmem:[%s519] ss:$8 sm:$0x0] %vm461, 0.0
        %s522 = scalar_lea.vmem [#allocation2], 128
        %523 = vst.msk [vmem:[%s522] ss:$8 sm:$0x3] %vm461, 0.0
        %524 = vst.msk [vmem:[%s522] ss:$8 sm:$0x0] %vm461, 0.0
        %s525 = scalar_lea.vmem [#allocation2], 176
        %526 = vst.msk [vmem:[%s525] ss:$8 sm:$0x3] %vm461, 0.0
        %527 = vst.msk [vmem:[%s525] ss:$8 sm:$0x0] %vm461, 0.0
        %s528 = scalar_lea.vmem [#allocation2], 224
        %529 = vst.msk [vmem:[%s528] ss:$8 sm:$0x3] %vm461, 0.0
        %530 = vst.msk [vmem:[%s528] ss:$8 sm:$0x0] %vm461, 0.0
        %s531 = scalar_lea.vmem [#allocation2], 272
        %532 = vst.msk [vmem:[%s531] ss:$8 sm:$0x3] %vm461, 0.0
        %533 = vst.msk [vmem:[%s531] ss:$8 sm:$0x0] %vm461, 0.0
        %s534 = scalar_lea.vmem [#allocation2], 320
        %535 = vst.msk [vmem:[%s534] ss:$8 sm:$0x3] %vm461, 0.0
        %536 = vst.msk [vmem:[%s534] ss:$8 sm:$0x0] %vm461, 0.0
        %s537 = scalar_lea.vmem [#allocation2], 368
        %538 = vst.msk [vmem:[%s537] ss:$8 sm:$0x3] %vm461, 0.0
        %539 = vst.msk [vmem:[%s537] ss:$8 sm:$0x0] %vm461, 0.0
        %s540 = scalar_lea.vmem [#allocation2], 416
        %541 = vst.msk [vmem:[%s540] ss:$8 sm:$0x3] %vm461, 0.0
        %542 = vst.msk [vmem:[%s540] ss:$8 sm:$0x0] %vm461, 0.0
        %s543 = scalar_lea.vmem [#allocation2], 464
        %544 = vst.msk [vmem:[%s543] ss:$8 sm:$0x3] %vm461, 0.0
        %545 = vst.msk [vmem:[%s543] ss:$8 sm:$0x0] %vm461, 0.0
        %s546 = scalar_lea.vmem [#allocation2], 512
        %547 = vst.msk [vmem:[%s546] ss:$8 sm:$0x3] %vm461, 0.0
        %548 = vst.msk [vmem:[%s546] ss:$8 sm:$0x0] %vm461, 0.0
        %s549 = scalar_lea.vmem [#allocation2], 560
        %550 = vst.msk [vmem:[%s549] ss:$8 sm:$0x3] %vm461, 0.0
        %551 = vst.msk [vmem:[%s549] ss:$8 sm:$0x0] %vm461, 0.0
        %s552 = scalar_lea.vmem [#allocation2], 608
        %553 = vst.msk [vmem:[%s552] ss:$8 sm:$0x3] %vm461, 0.0
        %554 = vst.msk [vmem:[%s552] ss:$8 sm:$0x0] %vm461, 0.0
        %s555 = scalar_lea.vmem [#allocation2], 656
        %556 = vst.msk [vmem:[%s555] ss:$8 sm:$0x3] %vm461, 0.0
        %557 = vst.msk [vmem:[%s555] ss:$8 sm:$0x0] %vm461, 0.0
        %s558 = scalar_lea.vmem [#allocation2], 704
        %559 = vst.msk [vmem:[%s558] ss:$8 sm:$0x3] %vm461, 0.0
        %560 = vst.msk [vmem:[%s558] ss:$8 sm:$0x0] %vm461, 0.0
        %s561 = scalar_lea.vmem [#allocation2], 752
        %562 = vst.msk [vmem:[%s561] ss:$8 sm:$0x3] %vm461, 0.0
        %563 = vst.msk [vmem:[%s561] ss:$8 sm:$0x0] %vm461, 0.0
        %s564 = scalar_lea.vmem [#allocation2], 800
        %565 = vst.msk [vmem:[%s564] ss:$8 sm:$0x3] %vm461, 0.0
        %566 = vst.msk [vmem:[%s564] ss:$8 sm:$0x0] %vm461, 0.0
        %s567 = scalar_lea.vmem [#allocation2], 848
        %568 = vst.msk [vmem:[%s567] ss:$8 sm:$0x3] %vm461, 0.0
        %569 = vst.msk [vmem:[%s567] ss:$8 sm:$0x0] %vm461, 0.0
        %570 = vst [vmem:[#allocation3] sm:$0xff] 0.0
        %571 = vst [vmem:[#allocation3 + $0x8] sm:$0xff] 0.0
        %572 = vst [vmem:[#allocation3 + $0x10] sm:$0xff] 0.0
        %s573 = scalar_lea.vmem [#allocation3], 408
        %574 = vst [vmem:[%s573] sm:$0xff] 0.0
        %575 = vst [vmem:[%s573 + $0x8] sm:$0xff] 0.0
        %576 = vst [vmem:[%s573 + $0x10] sm:$0xff] 0.0
        %577 = vst [vmem:[#allocation3 + $0x7] sm:$0x1] 0.0
        %578 = vst [vmem:[#allocation3 + $0x1f] sm:$0x1] 0.0
        %579 = vst [vmem:[#allocation3 + $0x37] sm:$0x1] 0.0
        %580 = vst [vmem:[#allocation3 + $0x4f] sm:$0x1] 0.0
        %581 = vst [vmem:[#allocation3 + $0x67] sm:$0x1] 0.0
        %582 = vst [vmem:[#allocation3 + $0x7f] sm:$0x1] 0.0
        %583 = vst [vmem:[#allocation3 + $0x97] sm:$0x1] 0.0
        %584 = vst [vmem:[#allocation3 + $0xaf] sm:$0x1] 0.0
        %585 = vst [vmem:[#allocation3 + $0xc7] sm:$0x1] 0.0
        %586 = vst [vmem:[#allocation3 + $0xdf] sm:$0x1] 0.0
        %587 = vst [vmem:[#allocation3 + $0xf7] sm:$0x1] 0.0
        %588 = vst [vmem:[#allocation3 + $0x10f] sm:$0x1] 0.0
        %589 = vst [vmem:[#allocation3 + $0x127] sm:$0x1] 0.0
        %590 = vst [vmem:[#allocation3 + $0x13f] sm:$0x1] 0.0
        %591 = vst [vmem:[#allocation3 + $0x157] sm:$0x1] 0.0
        %592 = vst [vmem:[#allocation3 + $0x16f] sm:$0x1] 0.0
        %593 = vst [vmem:[#allocation3 + $0x187] sm:$0x1] 0.0
        %594 = vst [vmem:[#allocation3 + $0x19f] sm:$0x1] 0.0
        %595 = vst [vmem:[#allocation3 + $0x10] sm:$0x1] 0.0
        %596 = vst [vmem:[#allocation3 + $0x28] sm:$0x1] 0.0
        %597 = vst [vmem:[#allocation3 + $0x40] sm:$0x1] 0.0
        %598 = vst [vmem:[#allocation3 + $0x58] sm:$0x1] 0.0
        %599 = vst [vmem:[#allocation3 + $0x70] sm:$0x1] 0.0
        %600 = vst [vmem:[#allocation3 + $0x88] sm:$0x1] 0.0
        %601 = vst [vmem:[#allocation3 + $0xa0] sm:$0x1] 0.0
        %602 = vst [vmem:[#allocation3 + $0xb8] sm:$0x1] 0.0
        %603 = vst [vmem:[#allocation3 + $0xd0] sm:$0x1] 0.0
        %604 = vst [vmem:[#allocation3 + $0xe8] sm:$0x1] 0.0
        %605 = vst [vmem:[#allocation3 + $0x100] sm:$0x1] 0.0
        %606 = vst [vmem:[#allocation3 + $0x118] sm:$0x1] 0.0
        %607 = vst [vmem:[#allocation3 + $0x130] sm:$0x1] 0.0
        %608 = vst [vmem:[#allocation3 + $0x148] sm:$0x1] 0.0
        %609 = vst [vmem:[#allocation3 + $0x160] sm:$0x1] 0.0
        %610 = vst [vmem:[#allocation3 + $0x178] sm:$0x1] 0.0
        %611 = vst [vmem:[#allocation3 + $0x190] sm:$0x1] 0.0
        %612 = vst [vmem:[#allocation3 + $0x1a8] sm:$0x1] 0.0
        %v613 = vld [vmem:[%s374] sm:$0xff]
        %v614 = vld [vmem:[%s374 + $0x8] sm:$0xff]
        %v615 = vld [vmem:[%s374 + $0x10] sm:$0xff]
        %v616 = vld [vmem:[%s374 + $0x18] sm:$0xff]
        %v617 = vld [vmem:[%s374 + $0x20] sm:$0xff]
        %v618 = vld [vmem:[%s374 + $0x28] sm:$0xff]
        %v619 = vld [vmem:[%s374 + $0x30] sm:$0xff]
        %v620 = vld [vmem:[%s374 + $0x38] sm:$0xff]
        %v621 = vld [vmem:[#allocation9] sm:$0xff]
        %v622 = vld [vmem:[#allocation10] sm:$0x1]
        %v624 = vlaneseq
        %v625 = vshrl.u32 %v624, 7
        %v626 = vsub.s32 0, %v625
        %v627 = vrot.slane %v622, %v626
        %vm629 = vcmask 64512
        %v631 = vsel %vm629, %v613, 0
        %v634 = vsel %vm629, %v614, 0
        %v637 = vsel %vm629, %v615, 0
        %v640 = vsel %vm629, %v616, 0
        %v643 = vsel %vm629, %v617, 0
        %v646 = vsel %vm629, %v618, 0
        %v649 = vsel %vm629, %v619, 0
        %v652 = vsel %vm629, %v620, 0
        %654 = vmatprep.subr.mxu0 0.0
        %655 = vmatpush1.msra.mxu0 0.0
        %656 = vmatprep.subr.mxu0 0.0
        %657 = vmatpush1.msra.mxu0 0.0
        %658 = vmatprep.subr.mxu0 0.0
        %659 = vmatpush1.msra.mxu0 0.0
        %660 = vmatprep.subr.mxu0 0.0
        %661 = vmatpush1.msra.mxu0 0.0
        %662 = vmatprep.subr.mxu0 0.0
        %663 = vmatpush1.msra.mxu0 0.0
        %664 = vmatprep.subr.mxu0 0.0
        %665 = vmatpush1.msra.mxu0 0.0
        %666 = vmatprep.subr.mxu0 0.0
        %667 = vmatpush1.msra.mxu0 0.0
        %668 = vmatprep.subr.mxu0 0.0
        %669 = vmatpush1.msra.mxu0 0.0
        %670 = vmatprep.subr.mxu0 0.0
        %671 = vmatpush1.msra.mxu0 0.0
        %672 = vmatprep.subr.mxu0 0.0
        %673 = vmatpush1.msra.mxu0 0.0
        %674 = vmatprep.subr.mxu0 0.0
        %675 = vmatpush1.msra.mxu0 0.0
        %676 = vmatprep.subr.mxu0 0.0
        %677 = vmatpush1.msra.mxu0 0.0
        %678 = vmatprep.subr.mxu0 0.0
        %679 = vmatpush1.msra.mxu0 0.0
        %680 = vmatprep.subr.mxu0 0.0
        %681 = vmatpush1.msra.mxu0 0.0
        %682 = vmatprep.subr.mxu0 0.0
        %683 = vmatpush1.msra.mxu0 0.0
        %684 = vmatprep.subr.mxu0 0.0
        %685 = vmatpush1.msra.mxu0 %v621
        %686 = vmatprep.subr.mxu0 0.0
        %687 = vmatpush2.msra.mxu0 0.0
        %688 = vmatprep.subr.mxu0 0.0
        %689 = vmatpush2.msra.mxu0 0.0
        %690 = vmatprep.subr.mxu0 0.0
        %691 = vmatpush2.msra.mxu0 0.0
        %692 = vmatprep.subr.mxu0 0.0
        %693 = vmatpush2.msra.mxu0 0.0
        %694 = vmatprep.subr.mxu0 0.0
        %695 = vmatpush2.msra.mxu0 0.0
        %696 = vmatprep.subr.mxu0 0.0
        %697 = vmatpush2.msra.mxu0 0.0
        %698 = vmatprep.subr.mxu0 0.0
        %699 = vmatpush2.msra.mxu0 0.0
        %700 = vmatprep.subr.mxu0 0.0
        %701 = vmatpush2.msra.mxu0 0.0
        %702 = vmatprep.subr.mxu0 0.0
        %703 = vmatpush2.msra.mxu0 0.0
        %704 = vmatprep.subr.mxu0 0.0
        %705 = vmatpush2.msra.mxu0 0.0
        %706 = vmatprep.subr.mxu0 0.0
        %707 = vmatpush2.msra.mxu0 0.0
        %708 = vmatprep.subr.mxu0 0.0
        %709 = vmatpush2.msra.mxu0 0.0
        %710 = vmatprep.subr.mxu0 0.0
        %711 = vmatpush2.msra.mxu0 0.0
        %712 = vmatprep.subr.mxu0 0.0
        %713 = vmatpush2.msra.mxu0 0.0
        %714 = vmatprep.subr.mxu0 0.0
        %715 = vmatpush2.msra.mxu0 0.0
        %716 = vmatprep.subr.mxu0 0.0
        %717 = vmatpush2.msra.mxu0 0.0
        %718 = vmatprep.mubr.f32.mxu0 0.0
        %719 = vmatmul.mubr.f32.gmra.mxu0 %v631
        %v720 = vpop.f32.mrf.mxu0
        %v721 = vadd.f32 %v627, %v720
        %v722 = vpop.f32.mrf.mxu0
        %723 = vmatprep.mubr.f32.mxu0 0.0
        %724 = vmatmul.mubr.f32.gmra.mxu0 %v634
        %v725 = vpop.f32.mrf.mxu0
        %v726 = vadd.f32 %v627, %v725
        %v727 = vpop.f32.mrf.mxu0
        %728 = vmatprep.mubr.f32.mxu0 0.0
        %729 = vmatmul.mubr.f32.gmra.mxu0 %v637
        %v730 = vpop.f32.mrf.mxu0
        %v731 = vadd.f32 %v627, %v730
        %v732 = vpop.f32.mrf.mxu0
        %733 = vmatprep.mubr.f32.mxu0 0.0
        %734 = vmatmul.mubr.f32.gmra.mxu0 %v640
        %v735 = vpop.f32.mrf.mxu0
        %v736 = vadd.f32 %v627, %v735
        %v737 = vpop.f32.mrf.mxu0
        %738 = vmatprep.mubr.f32.mxu0 0.0
        %739 = vmatmul.mubr.f32.gmra.mxu0 %v643
        %v740 = vpop.f32.mrf.mxu0
        %v741 = vadd.f32 %v627, %v740
        %v742 = vpop.f32.mrf.mxu0
        %743 = vmatprep.mubr.f32.mxu0 0.0
        %744 = vmatmul.mubr.f32.gmra.mxu0 %v646
        %v745 = vpop.f32.mrf.mxu0
        %v746 = vadd.f32 %v627, %v745
        %v747 = vpop.f32.mrf.mxu0
        %748 = vmatprep.mubr.f32.mxu0 0.0
        %749 = vmatmul.mubr.f32.gmra.mxu0 %v649
        %v750 = vpop.f32.mrf.mxu0
        %v751 = vadd.f32 %v627, %v750
        %v752 = vpop.f32.mrf.mxu0
        %753 = vmatprep.mubr.f32.mxu0 0.0
        %754 = vmatmul.mubr.f32.gmra.mxu0 %v652
        %v755 = vpop.f32.mrf.mxu0
        %v756 = vadd.f32 %v627, %v755
        %v757 = vpop.f32.mrf.mxu0
        %758 = vdwg.mxu0
        %s759 = scalar_lea.vmem [#allocation9], 8
        %v760 = vld [vmem:[%s759] sm:$0xff]
        %761 = vmatprep.subr.mxu0 0.0
        %762 = vmatpush1.msra.mxu0 0.0
        %763 = vmatprep.subr.mxu0 0.0
        %764 = vmatpush1.msra.mxu0 0.0
        %765 = vmatprep.subr.mxu0 0.0
        %766 = vmatpush1.msra.mxu0 0.0
        %767 = vmatprep.subr.mxu0 0.0
        %768 = vmatpush1.msra.mxu0 0.0
        %769 = vmatprep.subr.mxu0 0.0
        %770 = vmatpush1.msra.mxu0 0.0
        %771 = vmatprep.subr.mxu0 0.0
        %772 = vmatpush1.msra.mxu0 0.0
        %773 = vmatprep.subr.mxu0 0.0
        %774 = vmatpush1.msra.mxu0 0.0
        %775 = vmatprep.subr.mxu0 0.0
        %776 = vmatpush1.msra.mxu0 0.0
        %777 = vmatprep.subr.mxu0 0.0
        %778 = vmatpush1.msra.mxu0 0.0
        %779 = vmatprep.subr.mxu0 0.0
        %780 = vmatpush1.msra.mxu0 0.0
        %781 = vmatprep.subr.mxu0 0.0
        %782 = vmatpush1.msra.mxu0 0.0
        %783 = vmatprep.subr.mxu0 0.0
        %784 = vmatpush1.msra.mxu0 0.0
        %785 = vmatprep.subr.mxu0 0.0
        %786 = vmatpush1.msra.mxu0 0.0
        %787 = vmatprep.subr.mxu0 0.0
        %788 = vmatpush1.msra.mxu0 0.0
        %789 = vmatprep.subr.mxu0 0.0
        %790 = vmatpush1.msra.mxu0 0.0
        %791 = vmatprep.subr.mxu0 0.0
        %792 = vmatpush1.msra.mxu0 %v760
        %793 = vmatprep.subr.mxu0 0.0
        %794 = vmatpush2.msra.mxu0 0.0
        %795 = vmatprep.subr.mxu0 0.0
        %796 = vmatpush2.msra.mxu0 0.0
        %797 = vmatprep.subr.mxu0 0.0
        %798 = vmatpush2.msra.mxu0 0.0
        %799 = vmatprep.subr.mxu0 0.0
        %800 = vmatpush2.msra.mxu0 0.0
        %801 = vmatprep.subr.mxu0 0.0
        %802 = vmatpush2.msra.mxu0 0.0
        %803 = vmatprep.subr.mxu0 0.0
        %804 = vmatpush2.msra.mxu0 0.0
        %805 = vmatprep.subr.mxu0 0.0
        %806 = vmatpush2.msra.mxu0 0.0
        %807 = vmatprep.subr.mxu0 0.0
        %808 = vmatpush2.msra.mxu0 0.0
        %809 = vmatprep.subr.mxu0 0.0
        %810 = vmatpush2.msra.mxu0 0.0
        %811 = vmatprep.subr.mxu0 0.0
        %812 = vmatpush2.msra.mxu0 0.0
        %813 = vmatprep.subr.mxu0 0.0
        %814 = vmatpush2.msra.mxu0 0.0
        %815 = vmatprep.subr.mxu0 0.0
        %816 = vmatpush2.msra.mxu0 0.0
        %817 = vmatprep.subr.mxu0 0.0
        %818 = vmatpush2.msra.mxu0 0.0
        %819 = vmatprep.subr.mxu0 0.0
        %820 = vmatpush2.msra.mxu0 0.0
        %821 = vmatprep.subr.mxu0 0.0
        %822 = vmatpush2.msra.mxu0 0.0
        %823 = vmatprep.subr.mxu0 0.0
        %824 = vmatpush2.msra.mxu0 0.0
        %825 = vmatprep.mubr.f32.mxu0 0.0
        %826 = vmatmul.mubr.f32.gmra.mxu0 %v631
        %v827 = vpop.f32.mrf.mxu0
        %v828 = vadd.f32 %v627, %v827
        %v829 = vpop.f32.mrf.mxu0
        %830 = vmatprep.mubr.f32.mxu0 0.0
        %831 = vmatmul.mubr.f32.gmra.mxu0 %v634
        %v832 = vpop.f32.mrf.mxu0
        %v833 = vadd.f32 %v627, %v832
        %v834 = vpop.f32.mrf.mxu0
        %835 = vmatprep.mubr.f32.mxu0 0.0
        %836 = vmatmul.mubr.f32.gmra.mxu0 %v637
        %v837 = vpop.f32.mrf.mxu0
        %v838 = vadd.f32 %v627, %v837
        %v839 = vpop.f32.mrf.mxu0
        %840 = vmatprep.mubr.f32.mxu0 0.0
        %841 = vmatmul.mubr.f32.gmra.mxu0 %v640
        %v842 = vpop.f32.mrf.mxu0
        %v843 = vadd.f32 %v627, %v842
        %v844 = vpop.f32.mrf.mxu0
        %845 = vmatprep.mubr.f32.mxu0 0.0
        %846 = vmatmul.mubr.f32.gmra.mxu0 %v643
        %v847 = vpop.f32.mrf.mxu0
        %v848 = vadd.f32 %v627, %v847
        %v849 = vpop.f32.mrf.mxu0
        %850 = vmatprep.mubr.f32.mxu0 0.0
        %851 = vmatmul.mubr.f32.gmra.mxu0 %v646
        %v852 = vpop.f32.mrf.mxu0
        %v853 = vadd.f32 %v627, %v852
        %v854 = vpop.f32.mrf.mxu0
        %855 = vmatprep.mubr.f32.mxu0 0.0
        %856 = vmatmul.mubr.f32.gmra.mxu0 %v649
        %v857 = vpop.f32.mrf.mxu0
        %v858 = vadd.f32 %v627, %v857
        %v859 = vpop.f32.mrf.mxu0
        %860 = vmatprep.mubr.f32.mxu0 0.0
        %861 = vmatmul.mubr.f32.gmra.mxu0 %v652
        %v862 = vpop.f32.mrf.mxu0
        %v863 = vadd.f32 %v627, %v862
        %v864 = vpop.f32.mrf.mxu0
        %865 = vdwg.mxu0
        %s866 = scalar_lea.vmem [#allocation2], 48
        %867 = vst [vmem:[%s866 + $0x10] sm:$0xff] %v721
        %868 = vst [vmem:[%s866 + $0x40] sm:$0xff] %v828
        %869 = vst [vmem:[%s866 + $0x70] sm:$0xff] %v726
        %870 = vst [vmem:[%s866 + $0xa0] sm:$0xff] %v833
        %871 = vst [vmem:[%s866 + $0xd0] sm:$0xff] %v731
        %872 = vst [vmem:[%s866 + $0x100] sm:$0xff] %v838
        %873 = vst [vmem:[%s866 + $0x130] sm:$0xff] %v736
        %874 = vst [vmem:[%s866 + $0x160] sm:$0xff] %v843
        %875 = vst [vmem:[%s866 + $0x190] sm:$0xff] %v741
        %876 = vst [vmem:[%s866 + $0x1c0] sm:$0xff] %v848
        %877 = vst [vmem:[%s866 + $0x1f0] sm:$0xff] %v746
        %878 = vst [vmem:[%s866 + $0x220] sm:$0xff] %v853
        %879 = vst [vmem:[%s866 + $0x250] sm:$0xff] %v751
        %880 = vst [vmem:[%s866 + $0x280] sm:$0xff] %v858
        %881 = vst [vmem:[%s866 + $0x2b0] sm:$0xff] %v756
        %882 = vst [vmem:[%s866 + $0x2e0] sm:$0xff] %v863
        %v883 = vld [vmem:[%s383] sm:$0xff]
        %v884 = vld [vmem:[%s383 + $0x8] sm:$0xff]
        %v885 = vld [vmem:[%s383 + $0x10] sm:$0xff]
        %v886 = vld [vmem:[%s383 + $0x18] sm:$0xff]
        %v887 = vld [vmem:[%s383 + $0x20] sm:$0xff]
        %v888 = vld [vmem:[%s383 + $0x28] sm:$0xff]
        %v889 = vld [vmem:[%s383 + $0x30] sm:$0xff]
        %v890 = vld [vmem:[%s383 + $0x38] sm:$0xff]
        %v891 = vld [vmem:[%s383 + $0x40] sm:$0xff]
        %v892 = vld [vmem:[%s383 + $0x48] sm:$0xff]
        %v893 = vld [vmem:[%s383 + $0x50] sm:$0xff]
        %v894 = vld [vmem:[%s383 + $0x58] sm:$0xff]
        %v895 = vld [vmem:[%s383 + $0x60] sm:$0xff]
        %v896 = vld [vmem:[%s383 + $0x68] sm:$0xff]
        %v897 = vld [vmem:[%s383 + $0x70] sm:$0xff]
        %v898 = vld [vmem:[%s383 + $0x78] sm:$0xff]
        %899 = vst [vmem:[%s866 + $0x18] sm:$0xff] %v883
        %900 = vst [vmem:[%s866 + $0x48] sm:$0xff] %v884
        %901 = vst [vmem:[%s866 + $0x78] sm:$0xff] %v885
        %902 = vst [vmem:[%s866 + $0xa8] sm:$0xff] %v886
        %903 = vst [vmem:[%s866 + $0xd8] sm:$0xff] %v887
        %904 = vst [vmem:[%s866 + $0x108] sm:$0xff] %v888
        %905 = vst [vmem:[%s866 + $0x138] sm:$0xff] %v889
        %906 = vst [vmem:[%s866 + $0x168] sm:$0xff] %v890
        %907 = vst [vmem:[%s866 + $0x198] sm:$0xff] %v891
        %908 = vst [vmem:[%s866 + $0x1c8] sm:$0xff] %v892
        %909 = vst [vmem:[%s866 + $0x1f8] sm:$0xff] %v893
        %910 = vst [vmem:[%s866 + $0x228] sm:$0xff] %v894
        %911 = vst [vmem:[%s866 + $0x258] sm:$0xff] %v895
        %912 = vst [vmem:[%s866 + $0x288] sm:$0xff] %v896
        %913 = vst [vmem:[%s866 + $0x2b8] sm:$0xff] %v897
        %914 = vst [vmem:[%s866 + $0x2e8] sm:$0xff] %v898
        %v915 = vld [vmem:[#allocation2] sm:$0x80]
        %v916 = vld [vmem:[#allocation2 + $0x8] sm:$0x80]
        %v917 = vld [vmem:[#allocation2 + $0x10] sm:$0x7f]
        %v918 = vld [vmem:[#allocation2 + $0x18] sm:$0x7f]
        %v919 = vld [vmem:[#allocation2 + $0x30] sm:$0x80]
        %v920 = vld [vmem:[#allocation2 + $0x38] sm:$0x80]
        %v921 = vld [vmem:[#allocation2 + $0x40] sm:$0x7f]
        %v922 = vld [vmem:[#allocation2 + $0x48] sm:$0x7f]
        %v923 = vld [vmem:[#allocation2 + $0x60] sm:$0x80]
        %v924 = vld [vmem:[#allocation2 + $0x68] sm:$0x80]
        %v925 = vld [vmem:[#allocation2 + $0x70] sm:$0x7f]
        %v926 = vld [vmem:[#allocation2 + $0x78] sm:$0x7f]
        %v927 = vld [vmem:[#allocation2 + $0x90] sm:$0x80]
        %v928 = vld [vmem:[#allocation2 + $0x98] sm:$0x80]
        %v929 = vld [vmem:[#allocation2 + $0xa0] sm:$0x7f]
        %v930 = vld [vmem:[#allocation2 + $0xa8] sm:$0x7f]
        %v931 = vld [vmem:[#allocation2 + $0xc0] sm:$0x80]
        %v932 = vld [vmem:[#allocation2 + $0xc8] sm:$0x80]
        %v933 = vld [vmem:[#allocation2 + $0xd0] sm:$0x7f]
        %v934 = vld [vmem:[#allocation2 + $0xd8] sm:$0x7f]
        %v935 = vld [vmem:[#allocation2 + $0xf0] sm:$0x80]
        %v936 = vld [vmem:[#allocation2 + $0xf8] sm:$0x80]
        %v937 = vld [vmem:[#allocation2 + $0x100] sm:$0x7f]
        %v938 = vld [vmem:[#allocation2 + $0x108] sm:$0x7f]
        %v939 = vld [vmem:[#allocation2 + $0x120] sm:$0x80]
        %v940 = vld [vmem:[#allocation2 + $0x128] sm:$0x80]
        %v941 = vld [vmem:[#allocation2 + $0x130] sm:$0x7f]
        %v942 = vld [vmem:[#allocation2 + $0x138] sm:$0x7f]
        %v943 = vld [vmem:[#allocation2 + $0x150] sm:$0x80]
        %v944 = vld [vmem:[#allocation2 + $0x158] sm:$0x80]
        %v945 = vld [vmem:[#allocation2 + $0x160] sm:$0x7f]
        %v946 = vld [vmem:[#allocation2 + $0x168] sm:$0x7f]
        %v947 = vld [vmem:[#allocation2 + $0x180] sm:$0x80]
        %v948 = vld [vmem:[#allocation2 + $0x188] sm:$0x80]
        %v949 = vld [vmem:[#allocation2 + $0x190] sm:$0x7f]
        %v950 = vld [vmem:[#allocation2 + $0x198] sm:$0x7f]
        %v951 = vld [vmem:[#allocation2 + $0x1b0] sm:$0x80]
        %v952 = vld [vmem:[#allocation2 + $0x1b8] sm:$0x80]
        %v953 = vld [vmem:[#allocation2 + $0x1c0] sm:$0x7f]
        %v954 = vld [vmem:[#allocation2 + $0x1c8] sm:$0x7f]
        %v955 = vld [vmem:[#allocation2 + $0x1e0] sm:$0x80]
        %v956 = vld [vmem:[#allocation2 + $0x1e8] sm:$0x80]
        %v957 = vld [vmem:[#allocation2 + $0x1f0] sm:$0x7f]
        %v958 = vld [vmem:[#allocation2 + $0x1f8] sm:$0x7f]
        %v959 = vld [vmem:[#allocation2 + $0x210] sm:$0x80]
        %v960 = vld [vmem:[#allocation2 + $0x218] sm:$0x80]
        %v961 = vld [vmem:[#allocation2 + $0x220] sm:$0x7f]
        %v962 = vld [vmem:[#allocation2 + $0x228] sm:$0x7f]
        %v963 = vld [vmem:[#allocation2 + $0x240] sm:$0x80]
        %v964 = vld [vmem:[#allocation2 + $0x248] sm:$0x80]
        %v965 = vld [vmem:[#allocation2 + $0x250] sm:$0x7f]
        %v966 = vld [vmem:[#allocation2 + $0x258] sm:$0x7f]
        %v967 = vld [vmem:[#allocation2 + $0x270] sm:$0x80]
        %v968 = vld [vmem:[#allocation2 + $0x278] sm:$0x80]
        %v969 = vld [vmem:[#allocation2 + $0x280] sm:$0x7f]
        %v970 = vld [vmem:[#allocation2 + $0x288] sm:$0x7f]
        %v971 = vld [vmem:[#allocation2 + $0x2a0] sm:$0x80]
        %v972 = vld [vmem:[#allocation2 + $0x2a8] sm:$0x80]
        %v973 = vld [vmem:[#allocation2 + $0x2b0] sm:$0x7f]
        %v974 = vld [vmem:[#allocation2 + $0x2b8] sm:$0x7f]
        %v975 = vld [vmem:[#allocation2 + $0x2d0] sm:$0x80]
        %v976 = vld [vmem:[#allocation2 + $0x2d8] sm:$0x80]
        %v977 = vld [vmem:[#allocation2 + $0x2e0] sm:$0x7f]
        %v978 = vld [vmem:[#allocation2 + $0x2e8] sm:$0x7f]
        %vm1043 = vcmask 1040384
        %v1044 = vrot.slane %v915, 7
        %v1045 = vrot.slane %v917, 7
        %v1046 = vsel %vm1043, %v1044, %v1045
        %v1047 = vrot.slane %v916, 7
        %v1048 = vrot.slane %v918, 7
        %v1049 = vsel %vm1043, %v1047, %v1048
        %v1050 = vrot.slane %v919, 7
        %v1051 = vrot.slane %v921, 7
        %v1052 = vsel %vm1043, %v1050, %v1051
        %v1053 = vrot.slane %v920, 7
        %v1054 = vrot.slane %v922, 7
        %v1055 = vsel %vm1043, %v1053, %v1054
        %v1056 = vrot.slane %v923, 7
        %v1057 = vrot.slane %v925, 7
        %v1058 = vsel %vm1043, %v1056, %v1057
        %v1059 = vrot.slane %v924, 7
        %v1060 = vrot.slane %v926, 7
        %v1061 = vsel %vm1043, %v1059, %v1060
        %v1062 = vrot.slane %v927, 7
        %v1063 = vrot.slane %v929, 7
        %v1064 = vsel %vm1043, %v1062, %v1063
        %v1065 = vrot.slane %v928, 7
        %v1066 = vrot.slane %v930, 7
        %v1067 = vsel %vm1043, %v1065, %v1066
        %v1068 = vrot.slane %v931, 7
        %v1069 = vrot.slane %v933, 7
        %v1070 = vsel %vm1043, %v1068, %v1069
        %v1071 = vrot.slane %v932, 7
        %v1072 = vrot.slane %v934, 7
        %v1073 = vsel %vm1043, %v1071, %v1072
        %v1074 = vrot.slane %v935, 7
        %v1075 = vrot.slane %v937, 7
        %v1076 = vsel %vm1043, %v1074, %v1075
        %v1077 = vrot.slane %v936, 7
        %v1078 = vrot.slane %v938, 7
        %v1079 = vsel %vm1043, %v1077, %v1078
        %v1080 = vrot.slane %v939, 7
        %v1081 = vrot.slane %v941, 7
        %v1082 = vsel %vm1043, %v1080, %v1081
        %v1083 = vrot.slane %v940, 7
        %v1084 = vrot.slane %v942, 7
        %v1085 = vsel %vm1043, %v1083, %v1084
        %v1086 = vrot.slane %v943, 7
        %v1087 = vrot.slane %v945, 7
        %v1088 = vsel %vm1043, %v1086, %v1087
        %v1089 = vrot.slane %v944, 7
        %v1090 = vrot.slane %v946, 7
        %v1091 = vsel %vm1043, %v1089, %v1090
        %v1092 = vrot.slane %v947, 7
        %v1093 = vrot.slane %v949, 7
        %v1094 = vsel %vm1043, %v1092, %v1093
        %v1095 = vrot.slane %v948, 7
        %v1096 = vrot.slane %v950, 7
        %v1097 = vsel %vm1043, %v1095, %v1096
        %v1098 = vrot.slane %v951, 7
        %v1099 = vrot.slane %v953, 7
        %v1100 = vsel %vm1043, %v1098, %v1099
        %v1101 = vrot.slane %v952, 7
        %v1102 = vrot.slane %v954, 7
        %v1103 = vsel %vm1043, %v1101, %v1102
        %v1104 = vrot.slane %v955, 7
        %v1105 = vrot.slane %v957, 7
        %v1106 = vsel %vm1043, %v1104, %v1105
        %v1107 = vrot.slane %v956, 7
        %v1108 = vrot.slane %v958, 7
        %v1109 = vsel %vm1043, %v1107, %v1108
        %v1110 = vrot.slane %v959, 7
        %v1111 = vrot.slane %v961, 7
        %v1112 = vsel %vm1043, %v1110, %v1111
        %v1113 = vrot.slane %v960, 7
        %v1114 = vrot.slane %v962, 7
        %v1115 = vsel %vm1043, %v1113, %v1114
        %v1116 = vrot.slane %v963, 7
        %v1117 = vrot.slane %v965, 7
        %v1118 = vsel %vm1043, %v1116, %v1117
        %v1119 = vrot.slane %v964, 7
        %v1120 = vrot.slane %v966, 7
        %v1121 = vsel %vm1043, %v1119, %v1120
        %v1122 = vrot.slane %v967, 7
        %v1123 = vrot.slane %v969, 7
        %v1124 = vsel %vm1043, %v1122, %v1123
        %v1125 = vrot.slane %v968, 7
        %v1126 = vrot.slane %v970, 7
        %v1127 = vsel %vm1043, %v1125, %v1126
        %v1128 = vrot.slane %v971, 7
        %v1129 = vrot.slane %v973, 7
        %v1130 = vsel %vm1043, %v1128, %v1129
        %v1131 = vrot.slane %v972, 7
        %v1132 = vrot.slane %v974, 7
        %v1133 = vsel %vm1043, %v1131, %v1132
        %v1134 = vrot.slane %v975, 7
        %v1135 = vrot.slane %v977, 7
        %v1136 = vsel %vm1043, %v1134, %v1135
        %v1137 = vrot.slane %v976, 7
        %v1138 = vrot.slane %v978, 7
        %v1139 = vsel %vm1043, %v1137, %v1138
        %v1172 = vld [vmem:[#allocation12] sm:$0xff]
        %v1173 = vld [vmem:[#allocation12 + $0x8] sm:$0xff]
        %v1174 = vld [vmem:[#allocation12 + $0x10] sm:$0xff]
        %v1175 = vld [vmem:[#allocation12 + $0x18] sm:$0xff]
        %v1176 = vld [vmem:[#allocation12 + $0x20] sm:$0xff]
        %v1177 = vld [vmem:[#allocation12 + $0x28] sm:$0xff]
        %v1178 = vld [vmem:[#allocation12 + $0x30] sm:$0xff]
        %v1179 = vld [vmem:[#allocation12 + $0x38] sm:$0xff]
        %v1180 = vld [vmem:[#allocation12 + $0x40] sm:$0xff]
        %v1181 = vld [vmem:[#allocation12 + $0x48] sm:$0xff]
        %v1182 = vld [vmem:[#allocation12 + $0x50] sm:$0xff]
        %v1183 = vld [vmem:[#allocation12 + $0x58] sm:$0xff]
        %v1184 = vld [vmem:[#allocation12 + $0x60] sm:$0xff]
        %v1185 = vld [vmem:[#allocation12 + $0x68] sm:$0xff]
        %v1186 = vld [vmem:[#allocation12 + $0x70] sm:$0xff]
        %v1187 = vld [vmem:[#allocation12 + $0x78] sm:$0xff]
        %v1188 = vld [vmem:[#allocation12 + $0x80] sm:$0xff]
        %v1189 = vld [vmem:[#allocation12 + $0x88] sm:$0xff]
        %v1190 = vld [vmem:[#allocation12 + $0x90] sm:$0xff]
        %v1191 = vld [vmem:[#allocation12 + $0x98] sm:$0xff]
        %v1192 = vld [vmem:[#allocation12 + $0xa0] sm:$0xff]
        %v1193 = vld [vmem:[#allocation12 + $0xa8] sm:$0xff]
        %v1194 = vld [vmem:[#allocation12 + $0xb0] sm:$0xff]
        %v1195 = vld [vmem:[#allocation12 + $0xb8] sm:$0xff]
        %v1196 = vld [vmem:[#allocation12 + $0xc0] sm:$0xff]
        %v1197 = vld [vmem:[#allocation12 + $0xc8] sm:$0xff]
        %v1198 = vld [vmem:[#allocation12 + $0xd0] sm:$0xff]
        %v1199 = vld [vmem:[#allocation12 + $0xd8] sm:$0xff]
        %v1200 = vld [vmem:[#allocation12 + $0xe0] sm:$0xff]
        %v1201 = vld [vmem:[#allocation12 + $0xe8] sm:$0xff]
        %v1202 = vld [vmem:[#allocation12 + $0xf0] sm:$0xff]
        %v1203 = vld [vmem:[#allocation12 + $0xf8] sm:$0xff]
        %v1204 = vld [vmem:[#allocation2 + $0x10] sm:$0xff]
        %v1205 = vld [vmem:[#allocation2 + $0x18] sm:$0xff]
        %v1206 = vld [vmem:[#allocation2 + $0x40] sm:$0xff]
        %v1207 = vld [vmem:[#allocation2 + $0x48] sm:$0xff]
        %v1208 = vld [vmem:[#allocation2 + $0x70] sm:$0xff]
        %v1209 = vld [vmem:[#allocation2 + $0x78] sm:$0xff]
        %v1210 = vld [vmem:[#allocation2 + $0xa0] sm:$0xff]
        %v1211 = vld [vmem:[#allocation2 + $0xa8] sm:$0xff]
        %v1212 = vld [vmem:[#allocation2 + $0xd0] sm:$0xff]
        %v1213 = vld [vmem:[#allocation2 + $0xd8] sm:$0xff]
        %v1214 = vld [vmem:[#allocation2 + $0x100] sm:$0xff]
        %v1215 = vld [vmem:[#allocation2 + $0x108] sm:$0xff]
        %v1216 = vld [vmem:[#allocation2 + $0x130] sm:$0xff]
        %v1217 = vld [vmem:[#allocation2 + $0x138] sm:$0xff]
        %v1218 = vld [vmem:[#allocation2 + $0x160] sm:$0xff]
        %v1219 = vld [vmem:[#allocation2 + $0x168] sm:$0xff]
        %v1220 = vld [vmem:[#allocation2 + $0x190] sm:$0xff]
        %v1221 = vld [vmem:[#allocation2 + $0x198] sm:$0xff]
        %v1222 = vld [vmem:[#allocation2 + $0x1c0] sm:$0xff]
        %v1223 = vld [vmem:[#allocation2 + $0x1c8] sm:$0xff]
        %v1224 = vld [vmem:[#allocation2 + $0x1f0] sm:$0xff]
        %v1225 = vld [vmem:[#allocation2 + $0x1f8] sm:$0xff]
        %v1226 = vld [vmem:[#allocation2 + $0x220] sm:$0xff]
        %v1227 = vld [vmem:[#allocation2 + $0x228] sm:$0xff]
        %v1228 = vld [vmem:[#allocation2 + $0x250] sm:$0xff]
        %v1229 = vld [vmem:[#allocation2 + $0x258] sm:$0xff]
        %v1230 = vld [vmem:[#allocation2 + $0x280] sm:$0xff]
        %v1231 = vld [vmem:[#allocation2 + $0x288] sm:$0xff]
        %v1232 = vld [vmem:[#allocation2 + $0x2b0] sm:$0xff]
        %v1233 = vld [vmem:[#allocation2 + $0x2b8] sm:$0xff]
        %v1234 = vld [vmem:[#allocation2 + $0x2e0] sm:$0xff]
        %v1235 = vld [vmem:[#allocation2 + $0x2e8] sm:$0xff]
        %s1236 = scalar_lea.vmem [#allocation12], 256
        %v1237 = vld [vmem:[%s1236] sm:$0xff]
        %v1238 = vld [vmem:[%s1236 + $0x8] sm:$0xff]
        %v1239 = vld [vmem:[%s1236 + $0x10] sm:$0xff]
        %v1240 = vld [vmem:[%s1236 + $0x18] sm:$0xff]
        %v1241 = vld [vmem:[%s1236 + $0x20] sm:$0xff]
        %v1242 = vld [vmem:[%s1236 + $0x28] sm:$0xff]
        %v1243 = vld [vmem:[%s1236 + $0x30] sm:$0xff]
        %v1244 = vld [vmem:[%s1236 + $0x38] sm:$0xff]
        %v1245 = vld [vmem:[%s1236 + $0x40] sm:$0xff]
        %v1246 = vld [vmem:[%s1236 + $0x48] sm:$0xff]
        %v1247 = vld [vmem:[%s1236 + $0x50] sm:$0xff]
        %v1248 = vld [vmem:[%s1236 + $0x58] sm:$0xff]
        %v1249 = vld [vmem:[%s1236 + $0x60] sm:$0xff]
        %v1250 = vld [vmem:[%s1236 + $0x68] sm:$0xff]
        %v1251 = vld [vmem:[%s1236 + $0x70] sm:$0xff]
        %v1252 = vld [vmem:[%s1236 + $0x78] sm:$0xff]
        %v1253 = vld [vmem:[%s1236 + $0x80] sm:$0xff]
        %v1254 = vld [vmem:[%s1236 + $0x88] sm:$0xff]
        %v1255 = vld [vmem:[%s1236 + $0x90] sm:$0xff]
        %v1256 = vld [vmem:[%s1236 + $0x98] sm:$0xff]
        %v1257 = vld [vmem:[%s1236 + $0xa0] sm:$0xff]
        %v1258 = vld [vmem:[%s1236 + $0xa8] sm:$0xff]
        %v1259 = vld [vmem:[%s1236 + $0xb0] sm:$0xff]
        %v1260 = vld [vmem:[%s1236 + $0xb8] sm:$0xff]
        %v1261 = vld [vmem:[%s1236 + $0xc0] sm:$0xff]
        %v1262 = vld [vmem:[%s1236 + $0xc8] sm:$0xff]
        %v1263 = vld [vmem:[%s1236 + $0xd0] sm:$0xff]
        %v1264 = vld [vmem:[%s1236 + $0xd8] sm:$0xff]
        %v1265 = vld [vmem:[%s1236 + $0xe0] sm:$0xff]
        %v1266 = vld [vmem:[%s1236 + $0xe8] sm:$0xff]
        %v1267 = vld [vmem:[%s1236 + $0xf0] sm:$0xff]
        %v1268 = vld [vmem:[%s1236 + $0xf8] sm:$0xff]
        %1269 = vmatprep.subr.mxu0 0.0
        %1270 = vmatpush1.msra.mxu0 %v1252
        %1271 = vmatprep.subr.mxu0 0.0
        %1272 = vmatpush1.msra.mxu0 %v1251
        %1273 = vmatprep.subr.mxu0 0.0
        %1274 = vmatpush1.msra.mxu0 %v1250
        %1275 = vmatprep.subr.mxu0 0.0
        %1276 = vmatpush1.msra.mxu0 %v1249
        %1277 = vmatprep.subr.mxu0 0.0
        %1278 = vmatpush1.msra.mxu0 %v1248
        %1279 = vmatprep.subr.mxu0 0.0
        %1280 = vmatpush1.msra.mxu0 %v1247
        %1281 = vmatprep.subr.mxu0 0.0
        %1282 = vmatpush1.msra.mxu0 %v1246
        %1283 = vmatprep.subr.mxu0 0.0
        %1284 = vmatpush1.msra.mxu0 %v1245
        %1285 = vmatprep.subr.mxu0 0.0
        %1286 = vmatpush1.msra.mxu0 %v1244
        %1287 = vmatprep.subr.mxu0 0.0
        %1288 = vmatpush1.msra.mxu0 %v1243
        %1289 = vmatprep.subr.mxu0 0.0
        %1290 = vmatpush1.msra.mxu0 %v1242
        %1291 = vmatprep.subr.mxu0 0.0
        %1292 = vmatpush1.msra.mxu0 %v1241
        %1293 = vmatprep.subr.mxu0 0.0
        %1294 = vmatpush1.msra.mxu0 %v1240
        %1295 = vmatprep.subr.mxu0 0.0
        %1296 = vmatpush1.msra.mxu0 %v1239
        %1297 = vmatprep.subr.mxu0 0.0
        %1298 = vmatpush1.msra.mxu0 %v1238
        %1299 = vmatprep.subr.mxu0 0.0
        %1300 = vmatpush1.msra.mxu0 %v1237
        %1301 = vmatprep.subr.mxu0 0.0
        %1302 = vmatpush2.msra.mxu0 %v1268
        %1303 = vmatprep.subr.mxu0 0.0
        %1304 = vmatpush2.msra.mxu0 %v1267
        %1305 = vmatprep.subr.mxu0 0.0
        %1306 = vmatpush2.msra.mxu0 %v1266
        %1307 = vmatprep.subr.mxu0 0.0
        %1308 = vmatpush2.msra.mxu0 %v1265
        %1309 = vmatprep.subr.mxu0 0.0
        %1310 = vmatpush2.msra.mxu0 %v1264
        %1311 = vmatprep.subr.mxu0 0.0
        %1312 = vmatpush2.msra.mxu0 %v1263
        %1313 = vmatprep.subr.mxu0 0.0
        %1314 = vmatpush2.msra.mxu0 %v1262
        %1315 = vmatprep.subr.mxu0 0.0
        %1316 = vmatpush2.msra.mxu0 %v1261
        %1317 = vmatprep.subr.mxu0 0.0
        %1318 = vmatpush2.msra.mxu0 %v1260
        %1319 = vmatprep.subr.mxu0 0.0
        %1320 = vmatpush2.msra.mxu0 %v1259
        %1321 = vmatprep.subr.mxu0 0.0
        %1322 = vmatpush2.msra.mxu0 %v1258
        %1323 = vmatprep.subr.mxu0 0.0
        %1324 = vmatpush2.msra.mxu0 %v1257
        %1325 = vmatprep.subr.mxu0 0.0
        %1326 = vmatpush2.msra.mxu0 %v1256
        %1327 = vmatprep.subr.mxu0 0.0
        %1328 = vmatpush2.msra.mxu0 %v1255
        %1329 = vmatprep.subr.mxu0 0.0
        %1330 = vmatpush2.msra.mxu0 %v1254
        %1331 = vmatprep.subr.mxu0 0.0
        %1332 = vmatpush2.msra.mxu0 %v1253
        %1333 = vmatprep.mubr.f32.mxu0 %v1205
        %1334 = vmatmul.mubr.f32.gmra.mxu0 %v1204
        %v1335 = vpop.f32.mrf.mxu0
        %v1336 = vadd.f32 0.0, %v1335
        %v1337 = vpop.f32.mrf.mxu0
        %1338 = vmatprep.mubr.f32.mxu0 %v1207
        %1339 = vmatmul.mubr.f32.gmra.mxu0 %v1206
        %v1340 = vpop.f32.mrf.mxu0
        %v1341 = vadd.f32 0.0, %v1340
        %v1342 = vpop.f32.mrf.mxu0
        %1343 = vmatprep.mubr.f32.mxu0 %v1209
        %1344 = vmatmul.mubr.f32.gmra.mxu0 %v1208
        %v1345 = vpop.f32.mrf.mxu0
        %v1346 = vadd.f32 0.0, %v1345
        %v1347 = vpop.f32.mrf.mxu0
        %1348 = vmatprep.mubr.f32.mxu0 %v1211
        %1349 = vmatmul.mubr.f32.gmra.mxu0 %v1210
        %v1350 = vpop.f32.mrf.mxu0
        %v1351 = vadd.f32 0.0, %v1350
        %v1352 = vpop.f32.mrf.mxu0
        %1353 = vmatprep.mubr.f32.mxu0 %v1213
        %1354 = vmatmul.mubr.f32.gmra.mxu0 %v1212
        %v1355 = vpop.f32.mrf.mxu0
        %v1356 = vadd.f32 0.0, %v1355
        %v1357 = vpop.f32.mrf.mxu0
        %1358 = vmatprep.mubr.f32.mxu0 %v1215
        %1359 = vmatmul.mubr.f32.gmra.mxu0 %v1214
        %v1360 = vpop.f32.mrf.mxu0
        %v1361 = vadd.f32 0.0, %v1360
        %v1362 = vpop.f32.mrf.mxu0
        %1363 = vmatprep.mubr.f32.mxu0 %v1217
        %1364 = vmatmul.mubr.f32.gmra.mxu0 %v1216
        %v1365 = vpop.f32.mrf.mxu0
        %v1366 = vadd.f32 0.0, %v1365
        %v1367 = vpop.f32.mrf.mxu0
        %1368 = vmatprep.mubr.f32.mxu0 %v1219
        %1369 = vmatmul.mubr.f32.gmra.mxu0 %v1218
        %v1370 = vpop.f32.mrf.mxu0
        %v1371 = vadd.f32 0.0, %v1370
        %v1372 = vpop.f32.mrf.mxu0
        %1373 = vmatprep.mubr.f32.mxu0 %v1221
        %1374 = vmatmul.mubr.f32.gmra.mxu0 %v1220
        %v1375 = vpop.f32.mrf.mxu0
        %v1376 = vadd.f32 0.0, %v1375
        %v1377 = vpop.f32.mrf.mxu0
        %1378 = vmatprep.mubr.f32.mxu0 %v1223
        %1379 = vmatmul.mubr.f32.gmra.mxu0 %v1222
        %v1380 = vpop.f32.mrf.mxu0
        %v1381 = vadd.f32 0.0, %v1380
        %v1382 = vpop.f32.mrf.mxu0
        %1383 = vmatprep.mubr.f32.mxu0 %v1225
        %1384 = vmatmul.mubr.f32.gmra.mxu0 %v1224
        %v1385 = vpop.f32.mrf.mxu0
        %v1386 = vadd.f32 0.0, %v1385
        %v1387 = vpop.f32.mrf.mxu0
        %1388 = vmatprep.mubr.f32.mxu0 %v1227
        %1389 = vmatmul.mubr.f32.gmra.mxu0 %v1226
        %v1390 = vpop.f32.mrf.mxu0
        %v1391 = vadd.f32 0.0, %v1390
        %v1392 = vpop.f32.mrf.mxu0
        %1393 = vmatprep.mubr.f32.mxu0 %v1229
        %1394 = vmatmul.mubr.f32.gmra.mxu0 %v1228
        %v1395 = vpop.f32.mrf.mxu0
        %v1396 = vadd.f32 0.0, %v1395
        %v1397 = vpop.f32.mrf.mxu0
        %1398 = vmatprep.mubr.f32.mxu0 %v1231
        %1399 = vmatmul.mubr.f32.gmra.mxu0 %v1230
        %v1400 = vpop.f32.mrf.mxu0
        %v1401 = vadd.f32 0.0, %v1400
        %v1402 = vpop.f32.mrf.mxu0
        %1403 = vmatprep.mubr.f32.mxu0 %v1233
        %1404 = vmatmul.mubr.f32.gmra.mxu0 %v1232
        %v1405 = vpop.f32.mrf.mxu0
        %v1406 = vadd.f32 0.0, %v1405
        %v1407 = vpop.f32.mrf.mxu0
        %1408 = vmatprep.mubr.f32.mxu0 %v1235
        %1409 = vmatmul.mubr.f32.gmra.mxu0 %v1234
        %v1410 = vpop.f32.mrf.mxu0
        %v1411 = vadd.f32 0.0, %v1410
        %v1412 = vpop.f32.mrf.mxu0
        %1413 = vdwg.mxu0
        %1414 = vmatprep.subr.mxu0 0.0
        %1415 = vmatpush1.msra.mxu0 %v1187
        %1416 = vmatprep.subr.mxu0 0.0
        %1417 = vmatpush1.msra.mxu0 %v1186
        %1418 = vmatprep.subr.mxu0 0.0
        %1419 = vmatpush1.msra.mxu0 %v1185
        %1420 = vmatprep.subr.mxu0 0.0
        %1421 = vmatpush1.msra.mxu0 %v1184
        %1422 = vmatprep.subr.mxu0 0.0
        %1423 = vmatpush1.msra.mxu0 %v1183
        %1424 = vmatprep.subr.mxu0 0.0
        %1425 = vmatpush1.msra.mxu0 %v1182
        %1426 = vmatprep.subr.mxu0 0.0
        %1427 = vmatpush1.msra.mxu0 %v1181
        %1428 = vmatprep.subr.mxu0 0.0
        %1429 = vmatpush1.msra.mxu0 %v1180
        %1430 = vmatprep.subr.mxu0 0.0
        %1431 = vmatpush1.msra.mxu0 %v1179
        %1432 = vmatprep.subr.mxu0 0.0
        %1433 = vmatpush1.msra.mxu0 %v1178
        %1434 = vmatprep.subr.mxu0 0.0
        %1435 = vmatpush1.msra.mxu0 %v1177
        %1436 = vmatprep.subr.mxu0 0.0
        %1437 = vmatpush1.msra.mxu0 %v1176
        %1438 = vmatprep.subr.mxu0 0.0
        %1439 = vmatpush1.msra.mxu0 %v1175
        %1440 = vmatprep.subr.mxu0 0.0
        %1441 = vmatpush1.msra.mxu0 %v1174
        %1442 = vmatprep.subr.mxu0 0.0
        %1443 = vmatpush1.msra.mxu0 %v1173
        %1444 = vmatprep.subr.mxu0 0.0
        %1445 = vmatpush1.msra.mxu0 %v1172
        %1446 = vmatprep.subr.mxu0 0.0
        %1447 = vmatpush2.msra.mxu0 %v1203
        %1448 = vmatprep.subr.mxu0 0.0
        %1449 = vmatpush2.msra.mxu0 %v1202
        %1450 = vmatprep.subr.mxu0 0.0
        %1451 = vmatpush2.msra.mxu0 %v1201
        %1452 = vmatprep.subr.mxu0 0.0
        %1453 = vmatpush2.msra.mxu0 %v1200
        %1454 = vmatprep.subr.mxu0 0.0
        %1455 = vmatpush2.msra.mxu0 %v1199
        %1456 = vmatprep.subr.mxu0 0.0
        %1457 = vmatpush2.msra.mxu0 %v1198
        %1458 = vmatprep.subr.mxu0 0.0
        %1459 = vmatpush2.msra.mxu0 %v1197
        %1460 = vmatprep.subr.mxu0 0.0
        %1461 = vmatpush2.msra.mxu0 %v1196
        %1462 = vmatprep.subr.mxu0 0.0
        %1463 = vmatpush2.msra.mxu0 %v1195
        %1464 = vmatprep.subr.mxu0 0.0
        %1465 = vmatpush2.msra.mxu0 %v1194
        %1466 = vmatprep.subr.mxu0 0.0
        %1467 = vmatpush2.msra.mxu0 %v1193
        %1468 = vmatprep.subr.mxu0 0.0
        %1469 = vmatpush2.msra.mxu0 %v1192
        %1470 = vmatprep.subr.mxu0 0.0
        %1471 = vmatpush2.msra.mxu0 %v1191
        %1472 = vmatprep.subr.mxu0 0.0
        %1473 = vmatpush2.msra.mxu0 %v1190
        %1474 = vmatprep.subr.mxu0 0.0
        %1475 = vmatpush2.msra.mxu0 %v1189
        %1476 = vmatprep.subr.mxu0 0.0
        %1477 = vmatpush2.msra.mxu0 %v1188
        %1478 = vmatprep.mubr.f32.mxu0 %v1049
        %1479 = vmatmul.mubr.f32.gmra.mxu0 %v1046
        %v1480 = vpop.f32.mrf.mxu0
        %v1481 = vadd.f32 %v1336, %v1480
        %v1482 = vpop.f32.mrf.mxu0
        %1483 = vmatprep.mubr.f32.mxu0 %v1055
        %1484 = vmatmul.mubr.f32.gmra.mxu0 %v1052
        %v1485 = vpop.f32.mrf.mxu0
        %v1486 = vadd.f32 %v1341, %v1485
        %v1487 = vpop.f32.mrf.mxu0
        %1488 = vmatprep.mubr.f32.mxu0 %v1061
        %1489 = vmatmul.mubr.f32.gmra.mxu0 %v1058
        %v1490 = vpop.f32.mrf.mxu0
        %v1491 = vadd.f32 %v1346, %v1490
        %v1492 = vpop.f32.mrf.mxu0
        %1493 = vmatprep.mubr.f32.mxu0 %v1067
        %1494 = vmatmul.mubr.f32.gmra.mxu0 %v1064
        %v1495 = vpop.f32.mrf.mxu0
        %v1496 = vadd.f32 %v1351, %v1495
        %v1497 = vpop.f32.mrf.mxu0
        %1498 = vmatprep.mubr.f32.mxu0 %v1073
        %1499 = vmatmul.mubr.f32.gmra.mxu0 %v1070
        %v1500 = vpop.f32.mrf.mxu0
        %v1501 = vadd.f32 %v1356, %v1500
        %v1502 = vpop.f32.mrf.mxu0
        %1503 = vmatprep.mubr.f32.mxu0 %v1079
        %1504 = vmatmul.mubr.f32.gmra.mxu0 %v1076
        %v1505 = vpop.f32.mrf.mxu0
        %v1506 = vadd.f32 %v1361, %v1505
        %v1507 = vpop.f32.mrf.mxu0
        %1508 = vmatprep.mubr.f32.mxu0 %v1085
        %1509 = vmatmul.mubr.f32.gmra.mxu0 %v1082
        %v1510 = vpop.f32.mrf.mxu0
        %v1511 = vadd.f32 %v1366, %v1510
        %v1512 = vpop.f32.mrf.mxu0
        %1513 = vmatprep.mubr.f32.mxu0 %v1091
        %1514 = vmatmul.mubr.f32.gmra.mxu0 %v1088
        %v1515 = vpop.f32.mrf.mxu0
        %v1516 = vadd.f32 %v1371, %v1515
        %v1517 = vpop.f32.mrf.mxu0
        %1518 = vmatprep.mubr.f32.mxu0 %v1097
        %1519 = vmatmul.mubr.f32.gmra.mxu0 %v1094
        %v1520 = vpop.f32.mrf.mxu0
        %v1521 = vadd.f32 %v1376, %v1520
        %v1522 = vpop.f32.mrf.mxu0
        %1523 = vmatprep.mubr.f32.mxu0 %v1103
        %1524 = vmatmul.mubr.f32.gmra.mxu0 %v1100
        %v1525 = vpop.f32.mrf.mxu0
        %v1526 = vadd.f32 %v1381, %v1525
        %v1527 = vpop.f32.mrf.mxu0
        %1528 = vmatprep.mubr.f32.mxu0 %v1109
        %1529 = vmatmul.mubr.f32.gmra.mxu0 %v1106
        %v1530 = vpop.f32.mrf.mxu0
        %v1531 = vadd.f32 %v1386, %v1530
        %v1532 = vpop.f32.mrf.mxu0
        %1533 = vmatprep.mubr.f32.mxu0 %v1115
        %1534 = vmatmul.mubr.f32.gmra.mxu0 %v1112
        %v1535 = vpop.f32.mrf.mxu0
        %v1536 = vadd.f32 %v1391, %v1535
        %v1537 = vpop.f32.mrf.mxu0
        %1538 = vmatprep.mubr.f32.mxu0 %v1121
        %1539 = vmatmul.mubr.f32.gmra.mxu0 %v1118
        %v1540 = vpop.f32.mrf.mxu0
        %v1541 = vadd.f32 %v1396, %v1540
        %v1542 = vpop.f32.mrf.mxu0
        %1543 = vmatprep.mubr.f32.mxu0 %v1127
        %1544 = vmatmul.mubr.f32.gmra.mxu0 %v1124
        %v1545 = vpop.f32.mrf.mxu0
        %v1546 = vadd.f32 %v1401, %v1545
        %v1547 = vpop.f32.mrf.mxu0
        %1548 = vmatprep.mubr.f32.mxu0 %v1133
        %1549 = vmatmul.mubr.f32.gmra.mxu0 %v1130
        %v1550 = vpop.f32.mrf.mxu0
        %v1551 = vadd.f32 %v1406, %v1550
        %v1552 = vpop.f32.mrf.mxu0
        %1553 = vmatprep.mubr.f32.mxu0 %v1139
        %1554 = vmatmul.mubr.f32.gmra.mxu0 %v1136
        %v1555 = vpop.f32.mrf.mxu0
        %v1556 = vadd.f32 %v1411, %v1555
        %v1557 = vpop.f32.mrf.mxu0
        %1558 = vdwg.mxu0
        %v1559 = vld [vmem:[#allocation2 + $0x10] sm:$0xfe]
        %v1560 = vld [vmem:[#allocation2 + $0x18] sm:$0xfe]
        %v1561 = vld [vmem:[#allocation2 + $0x20] sm:$0x1]
        %v1562 = vld [vmem:[#allocation2 + $0x28] sm:$0x1]
        %v1563 = vld [vmem:[#allocation2 + $0x40] sm:$0xfe]
        %v1564 = vld [vmem:[#allocation2 + $0x48] sm:$0xfe]
        %v1565 = vld [vmem:[#allocation2 + $0x50] sm:$0x1]
        %v1566 = vld [vmem:[#allocation2 + $0x58] sm:$0x1]
        %v1567 = vld [vmem:[#allocation2 + $0x70] sm:$0xfe]
        %v1568 = vld [vmem:[#allocation2 + $0x78] sm:$0xfe]
        %v1569 = vld [vmem:[#allocation2 + $0x80] sm:$0x1]
        %v1570 = vld [vmem:[#allocation2 + $0x88] sm:$0x1]
        %v1571 = vld [vmem:[#allocation2 + $0xa0] sm:$0xfe]
        %v1572 = vld [vmem:[#allocation2 + $0xa8] sm:$0xfe]
        %v1573 = vld [vmem:[#allocation2 + $0xb0] sm:$0x1]
        %v1574 = vld [vmem:[#allocation2 + $0xb8] sm:$0x1]
        %v1575 = vld [vmem:[#allocation2 + $0xd0] sm:$0xfe]
        %v1576 = vld [vmem:[#allocation2 + $0xd8] sm:$0xfe]
        %v1577 = vld [vmem:[#allocation2 + $0xe0] sm:$0x1]
        %v1578 = vld [vmem:[#allocation2 + $0xe8] sm:$0x1]
        %v1579 = vld [vmem:[#allocation2 + $0x100] sm:$0xfe]
        %v1580 = vld [vmem:[#allocation2 + $0x108] sm:$0xfe]
        %v1581 = vld [vmem:[#allocation2 + $0x110] sm:$0x1]
        %v1582 = vld [vmem:[#allocation2 + $0x118] sm:$0x1]
        %v1583 = vld [vmem:[#allocation2 + $0x130] sm:$0xfe]
        %v1584 = vld [vmem:[#allocation2 + $0x138] sm:$0xfe]
        %v1585 = vld [vmem:[#allocation2 + $0x140] sm:$0x1]
        %v1586 = vld [vmem:[#allocation2 + $0x148] sm:$0x1]
        %v1587 = vld [vmem:[#allocation2 + $0x160] sm:$0xfe]
        %v1588 = vld [vmem:[#allocation2 + $0x168] sm:$0xfe]
        %v1589 = vld [vmem:[#allocation2 + $0x170] sm:$0x1]
        %v1590 = vld [vmem:[#allocation2 + $0x178] sm:$0x1]
        %v1591 = vld [vmem:[#allocation2 + $0x190] sm:$0xfe]
        %v1592 = vld [vmem:[#allocation2 + $0x198] sm:$0xfe]
        %v1593 = vld [vmem:[#allocation2 + $0x1a0] sm:$0x1]
        %v1594 = vld [vmem:[#allocation2 + $0x1a8] sm:$0x1]
        %v1595 = vld [vmem:[#allocation2 + $0x1c0] sm:$0xfe]
        %v1596 = vld [vmem:[#allocation2 + $0x1c8] sm:$0xfe]
        %v1597 = vld [vmem:[#allocation2 + $0x1d0] sm:$0x1]
        %v1598 = vld [vmem:[#allocation2 + $0x1d8] sm:$0x1]
        %v1599 = vld [vmem:[#allocation2 + $0x1f0] sm:$0xfe]
        %v1600 = vld [vmem:[#allocation2 + $0x1f8] sm:$0xfe]
        %v1601 = vld [vmem:[#allocation2 + $0x200] sm:$0x1]
        %v1602 = vld [vmem:[#allocation2 + $0x208] sm:$0x1]
        %v1603 = vld [vmem:[#allocation2 + $0x220] sm:$0xfe]
        %v1604 = vld [vmem:[#allocation2 + $0x228] sm:$0xfe]
        %v1605 = vld [vmem:[#allocation2 + $0x230] sm:$0x1]
        %v1606 = vld [vmem:[#allocation2 + $0x238] sm:$0x1]
        %v1607 = vld [vmem:[#allocation2 + $0x250] sm:$0xfe]
        %v1608 = vld [vmem:[#allocation2 + $0x258] sm:$0xfe]
        %v1609 = vld [vmem:[#allocation2 + $0x260] sm:$0x1]
        %v1610 = vld [vmem:[#allocation2 + $0x268] sm:$0x1]
        %v1611 = vld [vmem:[#allocation2 + $0x280] sm:$0xfe]
        %v1612 = vld [vmem:[#allocation2 + $0x288] sm:$0xfe]
        %v1613 = vld [vmem:[#allocation2 + $0x290] sm:$0x1]
        %v1614 = vld [vmem:[#allocation2 + $0x298] sm:$0x1]
        %v1615 = vld [vmem:[#allocation2 + $0x2b0] sm:$0xfe]
        %v1616 = vld [vmem:[#allocation2 + $0x2b8] sm:$0xfe]
        %v1617 = vld [vmem:[#allocation2 + $0x2c0] sm:$0x1]
        %v1618 = vld [vmem:[#allocation2 + $0x2c8] sm:$0x1]
        %v1619 = vld [vmem:[#allocation2 + $0x2e0] sm:$0xfe]
        %v1620 = vld [vmem:[#allocation2 + $0x2e8] sm:$0xfe]
        %v1621 = vld [vmem:[#allocation2 + $0x2f0] sm:$0x1]
        %v1622 = vld [vmem:[#allocation2 + $0x2f8] sm:$0x1]
        %vm1687 = vcmask 1046528
        %v1688 = vrot.slane %v1559, 1
        %v1689 = vrot.slane %v1561, 1
        %v1690 = vsel %vm1687, %v1688, %v1689
        %v1691 = vrot.slane %v1560, 1
        %v1692 = vrot.slane %v1562, 1
        %v1693 = vsel %vm1687, %v1691, %v1692
        %v1694 = vrot.slane %v1563, 1
        %v1695 = vrot.slane %v1565, 1
        %v1696 = vsel %vm1687, %v1694, %v1695
        %v1697 = vrot.slane %v1564, 1
        %v1698 = vrot.slane %v1566, 1
        %v1699 = vsel %vm1687, %v1697, %v1698
        %v1700 = vrot.slane %v1567, 1
        %v1701 = vrot.slane %v1569, 1
        %v1702 = vsel %vm1687, %v1700, %v1701
        %v1703 = vrot.slane %v1568, 1
        %v1704 = vrot.slane %v1570, 1
        %v1705 = vsel %vm1687, %v1703, %v1704
        %v1706 = vrot.slane %v1571, 1
        %v1707 = vrot.slane %v1573, 1
        %v1708 = vsel %vm1687, %v1706, %v1707
        %v1709 = vrot.slane %v1572, 1
        %v1710 = vrot.slane %v1574, 1
        %v1711 = vsel %vm1687, %v1709, %v1710
        %v1712 = vrot.slane %v1575, 1
        %v1713 = vrot.slane %v1577, 1
        %v1714 = vsel %vm1687, %v1712, %v1713
        %v1715 = vrot.slane %v1576, 1
        %v1716 = vrot.slane %v1578, 1
        %v1717 = vsel %vm1687, %v1715, %v1716
        %v1718 = vrot.slane %v1579, 1
        %v1719 = vrot.slane %v1581, 1
        %v1720 = vsel %vm1687, %v1718, %v1719
        %v1721 = vrot.slane %v1580, 1
        %v1722 = vrot.slane %v1582, 1
        %v1723 = vsel %vm1687, %v1721, %v1722
        %v1724 = vrot.slane %v1583, 1
        %v1725 = vrot.slane %v1585, 1
        %v1726 = vsel %vm1687, %v1724, %v1725
        %v1727 = vrot.slane %v1584, 1
        %v1728 = vrot.slane %v1586, 1
        %v1729 = vsel %vm1687, %v1727, %v1728
        %v1730 = vrot.slane %v1587, 1
        %v1731 = vrot.slane %v1589, 1
        %v1732 = vsel %vm1687, %v1730, %v1731
        %v1733 = vrot.slane %v1588, 1
        %v1734 = vrot.slane %v1590, 1
        %v1735 = vsel %vm1687, %v1733, %v1734
        %v1736 = vrot.slane %v1591, 1
        %v1737 = vrot.slane %v1593, 1
        %v1738 = vsel %vm1687, %v1736, %v1737
        %v1739 = vrot.slane %v1592, 1
        %v1740 = vrot.slane %v1594, 1
        %v1741 = vsel %vm1687, %v1739, %v1740
        %v1742 = vrot.slane %v1595, 1
        %v1743 = vrot.slane %v1597, 1
        %v1744 = vsel %vm1687, %v1742, %v1743
        %v1745 = vrot.slane %v1596, 1
        %v1746 = vrot.slane %v1598, 1
        %v1747 = vsel %vm1687, %v1745, %v1746
        %v1748 = vrot.slane %v1599, 1
        %v1749 = vrot.slane %v1601, 1
        %v1750 = vsel %vm1687, %v1748, %v1749
        %v1751 = vrot.slane %v1600, 1
        %v1752 = vrot.slane %v1602, 1
        %v1753 = vsel %vm1687, %v1751, %v1752
        %v1754 = vrot.slane %v1603, 1
        %v1755 = vrot.slane %v1605, 1
        %v1756 = vsel %vm1687, %v1754, %v1755
        %v1757 = vrot.slane %v1604, 1
        %v1758 = vrot.slane %v1606, 1
        %v1759 = vsel %vm1687, %v1757, %v1758
        %v1760 = vrot.slane %v1607, 1
        %v1761 = vrot.slane %v1609, 1
        %v1762 = vsel %vm1687, %v1760, %v1761
        %v1763 = vrot.slane %v1608, 1
        %v1764 = vrot.slane %v1610, 1
        %v1765 = vsel %vm1687, %v1763, %v1764
        %v1766 = vrot.slane %v1611, 1
        %v1767 = vrot.slane %v1613, 1
        %v1768 = vsel %vm1687, %v1766, %v1767
        %v1769 = vrot.slane %v1612, 1
        %v1770 = vrot.slane %v1614, 1
        %v1771 = vsel %vm1687, %v1769, %v1770
        %v1772 = vrot.slane %v1615, 1
        %v1773 = vrot.slane %v1617, 1
        %v1774 = vsel %vm1687, %v1772, %v1773
        %v1775 = vrot.slane %v1616, 1
        %v1776 = vrot.slane %v1618, 1
        %v1777 = vsel %vm1687, %v1775, %v1776
        %v1778 = vrot.slane %v1619, 1
        %v1779 = vrot.slane %v1621, 1
        %v1780 = vsel %vm1687, %v1778, %v1779
        %v1781 = vrot.slane %v1620, 1
        %v1782 = vrot.slane %v1622, 1
        %v1783 = vsel %vm1687, %v1781, %v1782
        %s1816 = scalar_lea.vmem [#allocation12], 512
        %v1817 = vld [vmem:[%s1816] sm:$0xff]
        %v1818 = vld [vmem:[%s1816 + $0x8] sm:$0xff]
        %v1819 = vld [vmem:[%s1816 + $0x10] sm:$0xff]
        %v1820 = vld [vmem:[%s1816 + $0x18] sm:$0xff]
        %v1821 = vld [vmem:[%s1816 + $0x20] sm:$0xff]
        %v1822 = vld [vmem:[%s1816 + $0x28] sm:$0xff]
        %v1823 = vld [vmem:[%s1816 + $0x30] sm:$0xff]
        %v1824 = vld [vmem:[%s1816 + $0x38] sm:$0xff]
        %v1825 = vld [vmem:[%s1816 + $0x40] sm:$0xff]
        %v1826 = vld [vmem:[%s1816 + $0x48] sm:$0xff]
        %v1827 = vld [vmem:[%s1816 + $0x50] sm:$0xff]
        %v1828 = vld [vmem:[%s1816 + $0x58] sm:$0xff]
        %v1829 = vld [vmem:[%s1816 + $0x60] sm:$0xff]
        %v1830 = vld [vmem:[%s1816 + $0x68] sm:$0xff]
        %v1831 = vld [vmem:[%s1816 + $0x70] sm:$0xff]
        %v1832 = vld [vmem:[%s1816 + $0x78] sm:$0xff]
        %v1833 = vld [vmem:[%s1816 + $0x80] sm:$0xff]
        %v1834 = vld [vmem:[%s1816 + $0x88] sm:$0xff]
        %v1835 = vld [vmem:[%s1816 + $0x90] sm:$0xff]
        %v1836 = vld [vmem:[%s1816 + $0x98] sm:$0xff]
        %v1837 = vld [vmem:[%s1816 + $0xa0] sm:$0xff]
        %v1838 = vld [vmem:[%s1816 + $0xa8] sm:$0xff]
        %v1839 = vld [vmem:[%s1816 + $0xb0] sm:$0xff]
        %v1840 = vld [vmem:[%s1816 + $0xb8] sm:$0xff]
        %v1841 = vld [vmem:[%s1816 + $0xc0] sm:$0xff]
        %v1842 = vld [vmem:[%s1816 + $0xc8] sm:$0xff]
        %v1843 = vld [vmem:[%s1816 + $0xd0] sm:$0xff]
        %v1844 = vld [vmem:[%s1816 + $0xd8] sm:$0xff]
        %v1845 = vld [vmem:[%s1816 + $0xe0] sm:$0xff]
        %v1846 = vld [vmem:[%s1816 + $0xe8] sm:$0xff]
        %v1847 = vld [vmem:[%s1816 + $0xf0] sm:$0xff]
        %v1848 = vld [vmem:[%s1816 + $0xf8] sm:$0xff]
        %1849 = vmatprep.subr.mxu0 0.0
        %1850 = vmatpush1.msra.mxu0 %v1832
        %1851 = vmatprep.subr.mxu0 0.0
        %1852 = vmatpush1.msra.mxu0 %v1831
        %1853 = vmatprep.subr.mxu0 0.0
        %1854 = vmatpush1.msra.mxu0 %v1830
        %1855 = vmatprep.subr.mxu0 0.0
        %1856 = vmatpush1.msra.mxu0 %v1829
        %1857 = vmatprep.subr.mxu0 0.0
        %1858 = vmatpush1.msra.mxu0 %v1828
        %1859 = vmatprep.subr.mxu0 0.0
        %1860 = vmatpush1.msra.mxu0 %v1827
        %1861 = vmatprep.subr.mxu0 0.0
        %1862 = vmatpush1.msra.mxu0 %v1826
        %1863 = vmatprep.subr.mxu0 0.0
        %1864 = vmatpush1.msra.mxu0 %v1825
        %1865 = vmatprep.subr.mxu0 0.0
        %1866 = vmatpush1.msra.mxu0 %v1824
        %1867 = vmatprep.subr.mxu0 0.0
        %1868 = vmatpush1.msra.mxu0 %v1823
        %1869 = vmatprep.subr.mxu0 0.0
        %1870 = vmatpush1.msra.mxu0 %v1822
        %1871 = vmatprep.subr.mxu0 0.0
        %1872 = vmatpush1.msra.mxu0 %v1821
        %1873 = vmatprep.subr.mxu0 0.0
        %1874 = vmatpush1.msra.mxu0 %v1820
        %1875 = vmatprep.subr.mxu0 0.0
        %1876 = vmatpush1.msra.mxu0 %v1819
        %1877 = vmatprep.subr.mxu0 0.0
        %1878 = vmatpush1.msra.mxu0 %v1818
        %1879 = vmatprep.subr.mxu0 0.0
        %1880 = vmatpush1.msra.mxu0 %v1817
        %1881 = vmatprep.subr.mxu0 0.0
        %1882 = vmatpush2.msra.mxu0 %v1848
        %1883 = vmatprep.subr.mxu0 0.0
        %1884 = vmatpush2.msra.mxu0 %v1847
        %1885 = vmatprep.subr.mxu0 0.0
        %1886 = vmatpush2.msra.mxu0 %v1846
        %1887 = vmatprep.subr.mxu0 0.0
        %1888 = vmatpush2.msra.mxu0 %v1845
        %1889 = vmatprep.subr.mxu0 0.0
        %1890 = vmatpush2.msra.mxu0 %v1844
        %1891 = vmatprep.subr.mxu0 0.0
        %1892 = vmatpush2.msra.mxu0 %v1843
        %1893 = vmatprep.subr.mxu0 0.0
        %1894 = vmatpush2.msra.mxu0 %v1842
        %1895 = vmatprep.subr.mxu0 0.0
        %1896 = vmatpush2.msra.mxu0 %v1841
        %1897 = vmatprep.subr.mxu0 0.0
        %1898 = vmatpush2.msra.mxu0 %v1840
        %1899 = vmatprep.subr.mxu0 0.0
        %1900 = vmatpush2.msra.mxu0 %v1839
        %1901 = vmatprep.subr.mxu0 0.0
        %1902 = vmatpush2.msra.mxu0 %v1838
        %1903 = vmatprep.subr.mxu0 0.0
        %1904 = vmatpush2.msra.mxu0 %v1837
        %1905 = vmatprep.subr.mxu0 0.0
        %1906 = vmatpush2.msra.mxu0 %v1836
        %1907 = vmatprep.subr.mxu0 0.0
        %1908 = vmatpush2.msra.mxu0 %v1835
        %1909 = vmatprep.subr.mxu0 0.0
        %1910 = vmatpush2.msra.mxu0 %v1834
        %1911 = vmatprep.subr.mxu0 0.0
        %1912 = vmatpush2.msra.mxu0 %v1833
        %1913 = vmatprep.mubr.f32.mxu0 %v1693
        %1914 = vmatmul.mubr.f32.gmra.mxu0 %v1690
        %v1915 = vpop.f32.mrf.mxu0
        %v1916 = vadd.f32 0.0, %v1915
        %v1917 = vpop.f32.mrf.mxu0
        %1918 = vmatprep.mubr.f32.mxu0 %v1699
        %1919 = vmatmul.mubr.f32.gmra.mxu0 %v1696
        %v1920 = vpop.f32.mrf.mxu0
        %v1921 = vadd.f32 0.0, %v1920
        %v1922 = vpop.f32.mrf.mxu0
        %1923 = vmatprep.mubr.f32.mxu0 %v1705
        %1924 = vmatmul.mubr.f32.gmra.mxu0 %v1702
        %v1925 = vpop.f32.mrf.mxu0
        %v1926 = vadd.f32 0.0, %v1925
        %v1927 = vpop.f32.mrf.mxu0
        %1928 = vmatprep.mubr.f32.mxu0 %v1711
        %1929 = vmatmul.mubr.f32.gmra.mxu0 %v1708
        %v1930 = vpop.f32.mrf.mxu0
        %v1931 = vadd.f32 0.0, %v1930
        %v1932 = vpop.f32.mrf.mxu0
        %1933 = vmatprep.mubr.f32.mxu0 %v1717
        %1934 = vmatmul.mubr.f32.gmra.mxu0 %v1714
        %v1935 = vpop.f32.mrf.mxu0
        %v1936 = vadd.f32 0.0, %v1935
        %v1937 = vpop.f32.mrf.mxu0
        %1938 = vmatprep.mubr.f32.mxu0 %v1723
        %1939 = vmatmul.mubr.f32.gmra.mxu0 %v1720
        %v1940 = vpop.f32.mrf.mxu0
        %v1941 = vadd.f32 0.0, %v1940
        %v1942 = vpop.f32.mrf.mxu0
        %1943 = vmatprep.mubr.f32.mxu0 %v1729
        %1944 = vmatmul.mubr.f32.gmra.mxu0 %v1726
        %v1945 = vpop.f32.mrf.mxu0
        %v1946 = vadd.f32 0.0, %v1945
        %v1947 = vpop.f32.mrf.mxu0
        %1948 = vmatprep.mubr.f32.mxu0 %v1735
        %1949 = vmatmul.mubr.f32.gmra.mxu0 %v1732
        %v1950 = vpop.f32.mrf.mxu0
        %v1951 = vadd.f32 0.0, %v1950
        %v1952 = vpop.f32.mrf.mxu0
        %1953 = vmatprep.mubr.f32.mxu0 %v1741
        %1954 = vmatmul.mubr.f32.gmra.mxu0 %v1738
        %v1955 = vpop.f32.mrf.mxu0
        %v1956 = vadd.f32 0.0, %v1955
        %v1957 = vpop.f32.mrf.mxu0
        %1958 = vmatprep.mubr.f32.mxu0 %v1747
        %1959 = vmatmul.mubr.f32.gmra.mxu0 %v1744
        %v1960 = vpop.f32.mrf.mxu0
        %v1961 = vadd.f32 0.0, %v1960
        %v1962 = vpop.f32.mrf.mxu0
        %1963 = vmatprep.mubr.f32.mxu0 %v1753
        %1964 = vmatmul.mubr.f32.gmra.mxu0 %v1750
        %v1965 = vpop.f32.mrf.mxu0
        %v1966 = vadd.f32 0.0, %v1965
        %v1967 = vpop.f32.mrf.mxu0
        %1968 = vmatprep.mubr.f32.mxu0 %v1759
        %1969 = vmatmul.mubr.f32.gmra.mxu0 %v1756
        %v1970 = vpop.f32.mrf.mxu0
        %v1971 = vadd.f32 0.0, %v1970
        %v1972 = vpop.f32.mrf.mxu0
        %1973 = vmatprep.mubr.f32.mxu0 %v1765
        %1974 = vmatmul.mubr.f32.gmra.mxu0 %v1762
        %v1975 = vpop.f32.mrf.mxu0
        %v1976 = vadd.f32 0.0, %v1975
        %v1977 = vpop.f32.mrf.mxu0
        %1978 = vmatprep.mubr.f32.mxu0 %v1771
        %1979 = vmatmul.mubr.f32.gmra.mxu0 %v1768
        %v1980 = vpop.f32.mrf.mxu0
        %v1981 = vadd.f32 0.0, %v1980
        %v1982 = vpop.f32.mrf.mxu0
        %1983 = vmatprep.mubr.f32.mxu0 %v1777
        %1984 = vmatmul.mubr.f32.gmra.mxu0 %v1774
        %v1985 = vpop.f32.mrf.mxu0
        %v1986 = vadd.f32 0.0, %v1985
        %v1987 = vpop.f32.mrf.mxu0
        %1988 = vmatprep.mubr.f32.mxu0 %v1783
        %1989 = vmatmul.mubr.f32.gmra.mxu0 %v1780
        %v1990 = vpop.f32.mrf.mxu0
        %v1991 = vadd.f32 0.0, %v1990
        %v1992 = vpop.f32.mrf.mxu0
        %1993 = vdwg.mxu0
        %v1994 = vadd.f32 %v1481, %v1916
        %v1995 = vadd.f32 %v1486, %v1921
        %v1996 = vadd.f32 %v1491, %v1926
        %v1997 = vadd.f32 %v1496, %v1931
        %v1998 = vadd.f32 %v1501, %v1936
        %v1999 = vadd.f32 %v1506, %v1941
        %v2000 = vadd.f32 %v1511, %v1946
        %v2001 = vadd.f32 %v1516, %v1951
        %v2002 = vadd.f32 %v1521, %v1956
        %v2003 = vadd.f32 %v1526, %v1961
        %v2004 = vadd.f32 %v1531, %v1966
        %v2005 = vadd.f32 %v1536, %v1971
        %v2006 = vadd.f32 %v1541, %v1976
        %v2007 = vadd.f32 %v1546, %v1981
        %v2008 = vadd.f32 %v1551, %v1986
        %v2009 = vadd.f32 %v1556, %v1991
        %v2010 = vld [vmem:[%s866] sm:$0x80]
        %v2011 = vld [vmem:[%s866 + $0x8] sm:$0x80]
        %v2012 = vld [vmem:[%s866 + $0x10] sm:$0x7f]
        %v2013 = vld [vmem:[%s866 + $0x18] sm:$0x7f]
        %v2014 = vld [vmem:[%s866 + $0x30] sm:$0x80]
        %v2015 = vld [vmem:[%s866 + $0x38] sm:$0x80]
        %v2016 = vld [vmem:[%s866 + $0x40] sm:$0x7f]
        %v2017 = vld [vmem:[%s866 + $0x48] sm:$0x7f]
        %v2018 = vld [vmem:[%s866 + $0x60] sm:$0x80]
        %v2019 = vld [vmem:[%s866 + $0x68] sm:$0x80]
        %v2020 = vld [vmem:[%s866 + $0x70] sm:$0x7f]
        %v2021 = vld [vmem:[%s866 + $0x78] sm:$0x7f]
        %v2022 = vld [vmem:[%s866 + $0x90] sm:$0x80]
        %v2023 = vld [vmem:[%s866 + $0x98] sm:$0x80]
        %v2024 = vld [vmem:[%s866 + $0xa0] sm:$0x7f]
        %v2025 = vld [vmem:[%s866 + $0xa8] sm:$0x7f]
        %v2026 = vld [vmem:[%s866 + $0xc0] sm:$0x80]
        %v2027 = vld [vmem:[%s866 + $0xc8] sm:$0x80]
        %v2028 = vld [vmem:[%s866 + $0xd0] sm:$0x7f]
        %v2029 = vld [vmem:[%s866 + $0xd8] sm:$0x7f]
        %v2030 = vld [vmem:[%s866 + $0xf0] sm:$0x80]
        %v2031 = vld [vmem:[%s866 + $0xf8] sm:$0x80]
        %v2032 = vld [vmem:[%s866 + $0x100] sm:$0x7f]
        %v2033 = vld [vmem:[%s866 + $0x108] sm:$0x7f]
        %v2034 = vld [vmem:[%s866 + $0x120] sm:$0x80]
        %v2035 = vld [vmem:[%s866 + $0x128] sm:$0x80]
        %v2036 = vld [vmem:[%s866 + $0x130] sm:$0x7f]
        %v2037 = vld [vmem:[%s866 + $0x138] sm:$0x7f]
        %v2038 = vld [vmem:[%s866 + $0x150] sm:$0x80]
        %v2039 = vld [vmem:[%s866 + $0x158] sm:$0x80]
        %v2040 = vld [vmem:[%s866 + $0x160] sm:$0x7f]
        %v2041 = vld [vmem:[%s866 + $0x168] sm:$0x7f]
        %v2042 = vld [vmem:[%s866 + $0x180] sm:$0x80]
        %v2043 = vld [vmem:[%s866 + $0x188] sm:$0x80]
        %v2044 = vld [vmem:[%s866 + $0x190] sm:$0x7f]
        %v2045 = vld [vmem:[%s866 + $0x198] sm:$0x7f]
        %v2046 = vld [vmem:[%s866 + $0x1b0] sm:$0x80]
        %v2047 = vld [vmem:[%s866 + $0x1b8] sm:$0x80]
        %v2048 = vld [vmem:[%s866 + $0x1c0] sm:$0x7f]
        %v2049 = vld [vmem:[%s866 + $0x1c8] sm:$0x7f]
        %v2050 = vld [vmem:[%s866 + $0x1e0] sm:$0x80]
        %v2051 = vld [vmem:[%s866 + $0x1e8] sm:$0x80]
        %v2052 = vld [vmem:[%s866 + $0x1f0] sm:$0x7f]
        %v2053 = vld [vmem:[%s866 + $0x1f8] sm:$0x7f]
        %v2054 = vld [vmem:[%s866 + $0x210] sm:$0x80]
        %v2055 = vld [vmem:[%s866 + $0x218] sm:$0x80]
        %v2056 = vld [vmem:[%s866 + $0x220] sm:$0x7f]
        %v2057 = vld [vmem:[%s866 + $0x228] sm:$0x7f]
        %v2058 = vld [vmem:[%s866 + $0x240] sm:$0x80]
        %v2059 = vld [vmem:[%s866 + $0x248] sm:$0x80]
        %v2060 = vld [vmem:[%s866 + $0x250] sm:$0x7f]
        %v2061 = vld [vmem:[%s866 + $0x258] sm:$0x7f]
        %v2062 = vld [vmem:[%s866 + $0x270] sm:$0x80]
        %v2063 = vld [vmem:[%s866 + $0x278] sm:$0x80]
        %v2064 = vld [vmem:[%s866 + $0x280] sm:$0x7f]
        %v2065 = vld [vmem:[%s866 + $0x288] sm:$0x7f]
        %v2066 = vld [vmem:[%s866 + $0x2a0] sm:$0x80]
        %v2067 = vld [vmem:[%s866 + $0x2a8] sm:$0x80]
        %v2068 = vld [vmem:[%s866 + $0x2b0] sm:$0x7f]
        %v2069 = vld [vmem:[%s866 + $0x2b8] sm:$0x7f]
        %v2070 = vld [vmem:[%s866 + $0x2d0] sm:$0x80]
        %v2071 = vld [vmem:[%s866 + $0x2d8] sm:$0x80]
        %v2072 = vld [vmem:[%s866 + $0x2e0] sm:$0x7f]
        %v2073 = vld [vmem:[%s866 + $0x2e8] sm:$0x7f]
        %v2138 = vrot.slane %v2010, 7
        %v2139 = vrot.slane %v2012, 7
        %v2140 = vsel %vm1043, %v2138, %v2139
        %v2141 = vrot.slane %v2011, 7
        %v2142 = vrot.slane %v2013, 7
        %v2143 = vsel %vm1043, %v2141, %v2142
        %v2144 = vrot.slane %v2014, 7
        %v2145 = vrot.slane %v2016, 7
        %v2146 = vsel %vm1043, %v2144, %v2145
        %v2147 = vrot.slane %v2015, 7
        %v2148 = vrot.slane %v2017, 7
        %v2149 = vsel %vm1043, %v2147, %v2148
        %v2150 = vrot.slane %v2018, 7
        %v2151 = vrot.slane %v2020, 7
        %v2152 = vsel %vm1043, %v2150, %v2151
        %v2153 = vrot.slane %v2019, 7
        %v2154 = vrot.slane %v2021, 7
        %v2155 = vsel %vm1043, %v2153, %v2154
        %v2156 = vrot.slane %v2022, 7
        %v2157 = vrot.slane %v2024, 7
        %v2158 = vsel %vm1043, %v2156, %v2157
        %v2159 = vrot.slane %v2023, 7
        %v2160 = vrot.slane %v2025, 7
        %v2161 = vsel %vm1043, %v2159, %v2160
        %v2162 = vrot.slane %v2026, 7
        %v2163 = vrot.slane %v2028, 7
        %v2164 = vsel %vm1043, %v2162, %v2163
        %v2165 = vrot.slane %v2027, 7
        %v2166 = vrot.slane %v2029, 7
        %v2167 = vsel %vm1043, %v2165, %v2166
        %v2168 = vrot.slane %v2030, 7
        %v2169 = vrot.slane %v2032, 7
        %v2170 = vsel %vm1043, %v2168, %v2169
        %v2171 = vrot.slane %v2031, 7
        %v2172 = vrot.slane %v2033, 7
        %v2173 = vsel %vm1043, %v2171, %v2172
        %v2174 = vrot.slane %v2034, 7
        %v2175 = vrot.slane %v2036, 7
        %v2176 = vsel %vm1043, %v2174, %v2175
        %v2177 = vrot.slane %v2035, 7
        %v2178 = vrot.slane %v2037, 7
        %v2179 = vsel %vm1043, %v2177, %v2178
        %v2180 = vrot.slane %v2038, 7
        %v2181 = vrot.slane %v2040, 7
        %v2182 = vsel %vm1043, %v2180, %v2181
        %v2183 = vrot.slane %v2039, 7
        %v2184 = vrot.slane %v2041, 7
        %v2185 = vsel %vm1043, %v2183, %v2184
        %v2186 = vrot.slane %v2042, 7
        %v2187 = vrot.slane %v2044, 7
        %v2188 = vsel %vm1043, %v2186, %v2187
        %v2189 = vrot.slane %v2043, 7
        %v2190 = vrot.slane %v2045, 7
        %v2191 = vsel %vm1043, %v2189, %v2190
        %v2192 = vrot.slane %v2046, 7
        %v2193 = vrot.slane %v2048, 7
        %v2194 = vsel %vm1043, %v2192, %v2193
        %v2195 = vrot.slane %v2047, 7
        %v2196 = vrot.slane %v2049, 7
        %v2197 = vsel %vm1043, %v2195, %v2196
        %v2198 = vrot.slane %v2050, 7
        %v2199 = vrot.slane %v2052, 7
        %v2200 = vsel %vm1043, %v2198, %v2199
        %v2201 = vrot.slane %v2051, 7
        %v2202 = vrot.slane %v2053, 7
        %v2203 = vsel %vm1043, %v2201, %v2202
        %v2204 = vrot.slane %v2054, 7
        %v2205 = vrot.slane %v2056, 7
        %v2206 = vsel %vm1043, %v2204, %v2205
        %v2207 = vrot.slane %v2055, 7
        %v2208 = vrot.slane %v2057, 7
        %v2209 = vsel %vm1043, %v2207, %v2208
        %v2210 = vrot.slane %v2058, 7
        %v2211 = vrot.slane %v2060, 7
        %v2212 = vsel %vm1043, %v2210, %v2211
        %v2213 = vrot.slane %v2059, 7
        %v2214 = vrot.slane %v2061, 7
        %v2215 = vsel %vm1043, %v2213, %v2214
        %v2216 = vrot.slane %v2062, 7
        %v2217 = vrot.slane %v2064, 7
        %v2218 = vsel %vm1043, %v2216, %v2217
        %v2219 = vrot.slane %v2063, 7
        %v2220 = vrot.slane %v2065, 7
        %v2221 = vsel %vm1043, %v2219, %v2220
        %v2222 = vrot.slane %v2066, 7
        %v2223 = vrot.slane %v2068, 7
        %v2224 = vsel %vm1043, %v2222, %v2223
        %v2225 = vrot.slane %v2067, 7
        %v2226 = vrot.slane %v2069, 7
        %v2227 = vsel %vm1043, %v2225, %v2226
        %v2228 = vrot.slane %v2070, 7
        %v2229 = vrot.slane %v2072, 7
        %v2230 = vsel %vm1043, %v2228, %v2229
        %v2231 = vrot.slane %v2071, 7
        %v2232 = vrot.slane %v2073, 7
        %v2233 = vsel %vm1043, %v2231, %v2232
        %s2266 = scalar_lea.vmem [#allocation12], 768
        %v2267 = vld [vmem:[%s2266] sm:$0xff]
        %v2268 = vld [vmem:[%s2266 + $0x8] sm:$0xff]
        %v2269 = vld [vmem:[%s2266 + $0x10] sm:$0xff]
        %v2270 = vld [vmem:[%s2266 + $0x18] sm:$0xff]
        %v2271 = vld [vmem:[%s2266 + $0x20] sm:$0xff]
        %v2272 = vld [vmem:[%s2266 + $0x28] sm:$0xff]
        %v2273 = vld [vmem:[%s2266 + $0x30] sm:$0xff]
        %v2274 = vld [vmem:[%s2266 + $0x38] sm:$0xff]
        %v2275 = vld [vmem:[%s2266 + $0x40] sm:$0xff]
        %v2276 = vld [vmem:[%s2266 + $0x48] sm:$0xff]
        %v2277 = vld [vmem:[%s2266 + $0x50] sm:$0xff]
        %v2278 = vld [vmem:[%s2266 + $0x58] sm:$0xff]
        %v2279 = vld [vmem:[%s2266 + $0x60] sm:$0xff]
        %v2280 = vld [vmem:[%s2266 + $0x68] sm:$0xff]
        %v2281 = vld [vmem:[%s2266 + $0x70] sm:$0xff]
        %v2282 = vld [vmem:[%s2266 + $0x78] sm:$0xff]
        %v2283 = vld [vmem:[%s2266 + $0x80] sm:$0xff]
        %v2284 = vld [vmem:[%s2266 + $0x88] sm:$0xff]
        %v2285 = vld [vmem:[%s2266 + $0x90] sm:$0xff]
        %v2286 = vld [vmem:[%s2266 + $0x98] sm:$0xff]
        %v2287 = vld [vmem:[%s2266 + $0xa0] sm:$0xff]
        %v2288 = vld [vmem:[%s2266 + $0xa8] sm:$0xff]
        %v2289 = vld [vmem:[%s2266 + $0xb0] sm:$0xff]
        %v2290 = vld [vmem:[%s2266 + $0xb8] sm:$0xff]
        %v2291 = vld [vmem:[%s2266 + $0xc0] sm:$0xff]
        %v2292 = vld [vmem:[%s2266 + $0xc8] sm:$0xff]
        %v2293 = vld [vmem:[%s2266 + $0xd0] sm:$0xff]
        %v2294 = vld [vmem:[%s2266 + $0xd8] sm:$0xff]
        %v2295 = vld [vmem:[%s2266 + $0xe0] sm:$0xff]
        %v2296 = vld [vmem:[%s2266 + $0xe8] sm:$0xff]
        %v2297 = vld [vmem:[%s2266 + $0xf0] sm:$0xff]
        %v2298 = vld [vmem:[%s2266 + $0xf8] sm:$0xff]
        %2299 = vmatprep.subr.mxu0 0.0
        %2300 = vmatpush1.msra.mxu0 %v2282
        %2301 = vmatprep.subr.mxu0 0.0
        %2302 = vmatpush1.msra.mxu0 %v2281
        %2303 = vmatprep.subr.mxu0 0.0
        %2304 = vmatpush1.msra.mxu0 %v2280
        %2305 = vmatprep.subr.mxu0 0.0
        %2306 = vmatpush1.msra.mxu0 %v2279
        %2307 = vmatprep.subr.mxu0 0.0
        %2308 = vmatpush1.msra.mxu0 %v2278
        %2309 = vmatprep.subr.mxu0 0.0
        %2310 = vmatpush1.msra.mxu0 %v2277
        %2311 = vmatprep.subr.mxu0 0.0
        %2312 = vmatpush1.msra.mxu0 %v2276
        %2313 = vmatprep.subr.mxu0 0.0
        %2314 = vmatpush1.msra.mxu0 %v2275
        %2315 = vmatprep.subr.mxu0 0.0
        %2316 = vmatpush1.msra.mxu0 %v2274
        %2317 = vmatprep.subr.mxu0 0.0
        %2318 = vmatpush1.msra.mxu0 %v2273
        %2319 = vmatprep.subr.mxu0 0.0
        %2320 = vmatpush1.msra.mxu0 %v2272
        %2321 = vmatprep.subr.mxu0 0.0
        %2322 = vmatpush1.msra.mxu0 %v2271
        %2323 = vmatprep.subr.mxu0 0.0
        %2324 = vmatpush1.msra.mxu0 %v2270
        %2325 = vmatprep.subr.mxu0 0.0
        %2326 = vmatpush1.msra.mxu0 %v2269
        %2327 = vmatprep.subr.mxu0 0.0
        %2328 = vmatpush1.msra.mxu0 %v2268
        %2329 = vmatprep.subr.mxu0 0.0
        %2330 = vmatpush1.msra.mxu0 %v2267
        %2331 = vmatprep.subr.mxu0 0.0
        %2332 = vmatpush2.msra.mxu0 %v2298
        %2333 = vmatprep.subr.mxu0 0.0
        %2334 = vmatpush2.msra.mxu0 %v2297
        %2335 = vmatprep.subr.mxu0 0.0
        %2336 = vmatpush2.msra.mxu0 %v2296
        %2337 = vmatprep.subr.mxu0 0.0
        %2338 = vmatpush2.msra.mxu0 %v2295
        %2339 = vmatprep.subr.mxu0 0.0
        %2340 = vmatpush2.msra.mxu0 %v2294
        %2341 = vmatprep.subr.mxu0 0.0
        %2342 = vmatpush2.msra.mxu0 %v2293
        %2343 = vmatprep.subr.mxu0 0.0
        %2344 = vmatpush2.msra.mxu0 %v2292
        %2345 = vmatprep.subr.mxu0 0.0
        %2346 = vmatpush2.msra.mxu0 %v2291
        %2347 = vmatprep.subr.mxu0 0.0
        %2348 = vmatpush2.msra.mxu0 %v2290
        %2349 = vmatprep.subr.mxu0 0.0
        %2350 = vmatpush2.msra.mxu0 %v2289
        %2351 = vmatprep.subr.mxu0 0.0
        %2352 = vmatpush2.msra.mxu0 %v2288
        %2353 = vmatprep.subr.mxu0 0.0
        %2354 = vmatpush2.msra.mxu0 %v2287
        %2355 = vmatprep.subr.mxu0 0.0
        %2356 = vmatpush2.msra.mxu0 %v2286
        %2357 = vmatprep.subr.mxu0 0.0
        %2358 = vmatpush2.msra.mxu0 %v2285
        %2359 = vmatprep.subr.mxu0 0.0
        %2360 = vmatpush2.msra.mxu0 %v2284
        %2361 = vmatprep.subr.mxu0 0.0
        %2362 = vmatpush2.msra.mxu0 %v2283
        %2363 = vmatprep.mubr.f32.mxu0 %v2143
        %2364 = vmatmul.mubr.f32.gmra.mxu0 %v2140
        %v2365 = vpop.f32.mrf.mxu0
        %v2366 = vadd.f32 0.0, %v2365
        %v2367 = vpop.f32.mrf.mxu0
        %2368 = vmatprep.mubr.f32.mxu0 %v2149
        %2369 = vmatmul.mubr.f32.gmra.mxu0 %v2146
        %v2370 = vpop.f32.mrf.mxu0
        %v2371 = vadd.f32 0.0, %v2370
        %v2372 = vpop.f32.mrf.mxu0
        %2373 = vmatprep.mubr.f32.mxu0 %v2155
        %2374 = vmatmul.mubr.f32.gmra.mxu0 %v2152
        %v2375 = vpop.f32.mrf.mxu0
        %v2376 = vadd.f32 0.0, %v2375
        %v2377 = vpop.f32.mrf.mxu0
        %2378 = vmatprep.mubr.f32.mxu0 %v2161
        %2379 = vmatmul.mubr.f32.gmra.mxu0 %v2158
        %v2380 = vpop.f32.mrf.mxu0
        %v2381 = vadd.f32 0.0, %v2380
        %v2382 = vpop.f32.mrf.mxu0
        %2383 = vmatprep.mubr.f32.mxu0 %v2167
        %2384 = vmatmul.mubr.f32.gmra.mxu0 %v2164
        %v2385 = vpop.f32.mrf.mxu0
        %v2386 = vadd.f32 0.0, %v2385
        %v2387 = vpop.f32.mrf.mxu0
        %2388 = vmatprep.mubr.f32.mxu0 %v2173
        %2389 = vmatmul.mubr.f32.gmra.mxu0 %v2170
        %v2390 = vpop.f32.mrf.mxu0
        %v2391 = vadd.f32 0.0, %v2390
        %v2392 = vpop.f32.mrf.mxu0
        %2393 = vmatprep.mubr.f32.mxu0 %v2179
        %2394 = vmatmul.mubr.f32.gmra.mxu0 %v2176
        %v2395 = vpop.f32.mrf.mxu0
        %v2396 = vadd.f32 0.0, %v2395
        %v2397 = vpop.f32.mrf.mxu0
        %2398 = vmatprep.mubr.f32.mxu0 %v2185
        %2399 = vmatmul.mubr.f32.gmra.mxu0 %v2182
        %v2400 = vpop.f32.mrf.mxu0
        %v2401 = vadd.f32 0.0, %v2400
        %v2402 = vpop.f32.mrf.mxu0
        %2403 = vmatprep.mubr.f32.mxu0 %v2191
        %2404 = vmatmul.mubr.f32.gmra.mxu0 %v2188
        %v2405 = vpop.f32.mrf.mxu0
        %v2406 = vadd.f32 0.0, %v2405
        %v2407 = vpop.f32.mrf.mxu0
        %2408 = vmatprep.mubr.f32.mxu0 %v2197
        %2409 = vmatmul.mubr.f32.gmra.mxu0 %v2194
        %v2410 = vpop.f32.mrf.mxu0
        %v2411 = vadd.f32 0.0, %v2410
        %v2412 = vpop.f32.mrf.mxu0
        %2413 = vmatprep.mubr.f32.mxu0 %v2203
        %2414 = vmatmul.mubr.f32.gmra.mxu0 %v2200
        %v2415 = vpop.f32.mrf.mxu0
        %v2416 = vadd.f32 0.0, %v2415
        %v2417 = vpop.f32.mrf.mxu0
        %2418 = vmatprep.mubr.f32.mxu0 %v2209
        %2419 = vmatmul.mubr.f32.gmra.mxu0 %v2206
        %v2420 = vpop.f32.mrf.mxu0
        %v2421 = vadd.f32 0.0, %v2420
        %v2422 = vpop.f32.mrf.mxu0
        %2423 = vmatprep.mubr.f32.mxu0 %v2215
        %2424 = vmatmul.mubr.f32.gmra.mxu0 %v2212
        %v2425 = vpop.f32.mrf.mxu0
        %v2426 = vadd.f32 0.0, %v2425
        %v2427 = vpop.f32.mrf.mxu0
        %2428 = vmatprep.mubr.f32.mxu0 %v2221
        %2429 = vmatmul.mubr.f32.gmra.mxu0 %v2218
        %v2430 = vpop.f32.mrf.mxu0
        %v2431 = vadd.f32 0.0, %v2430
        %v2432 = vpop.f32.mrf.mxu0
        %2433 = vmatprep.mubr.f32.mxu0 %v2227
        %2434 = vmatmul.mubr.f32.gmra.mxu0 %v2224
        %v2435 = vpop.f32.mrf.mxu0
        %v2436 = vadd.f32 0.0, %v2435
        %v2437 = vpop.f32.mrf.mxu0
        %2438 = vmatprep.mubr.f32.mxu0 %v2233
        %2439 = vmatmul.mubr.f32.gmra.mxu0 %v2230
        %v2440 = vpop.f32.mrf.mxu0
        %v2441 = vadd.f32 0.0, %v2440
        %v2442 = vpop.f32.mrf.mxu0
        %2443 = vdwg.mxu0
        %v2444 = vadd.f32 %v1994, %v2366
        %v2445 = vadd.f32 %v1995, %v2371
        %v2446 = vadd.f32 %v1996, %v2376
        %v2447 = vadd.f32 %v1997, %v2381
        %v2448 = vadd.f32 %v1998, %v2386
        %v2449 = vadd.f32 %v1999, %v2391
        %v2450 = vadd.f32 %v2000, %v2396
        %v2451 = vadd.f32 %v2001, %v2401
        %v2452 = vadd.f32 %v2002, %v2406
        %v2453 = vadd.f32 %v2003, %v2411
        %v2454 = vadd.f32 %v2004, %v2416
        %v2455 = vadd.f32 %v2005, %v2421
        %v2456 = vadd.f32 %v2006, %v2426
        %v2457 = vadd.f32 %v2007, %v2431
        %v2458 = vadd.f32 %v2008, %v2436
        %v2459 = vadd.f32 %v2009, %v2441
        %v2460 = vld [vmem:[%s866 + $0x10] sm:$0xff]
        %v2461 = vld [vmem:[%s866 + $0x18] sm:$0xff]
        %v2462 = vld [vmem:[%s866 + $0x40] sm:$0xff]
        %v2463 = vld [vmem:[%s866 + $0x48] sm:$0xff]
        %v2464 = vld [vmem:[%s866 + $0x70] sm:$0xff]
        %v2465 = vld [vmem:[%s866 + $0x78] sm:$0xff]
        %v2466 = vld [vmem:[%s866 + $0xa0] sm:$0xff]
        %v2467 = vld [vmem:[%s866 + $0xa8] sm:$0xff]
        %v2468 = vld [vmem:[%s866 + $0xd0] sm:$0xff]
        %v2469 = vld [vmem:[%s866 + $0xd8] sm:$0xff]
        %v2470 = vld [vmem:[%s866 + $0x100] sm:$0xff]
        %v2471 = vld [vmem:[%s866 + $0x108] sm:$0xff]
        %v2472 = vld [vmem:[%s866 + $0x130] sm:$0xff]
        %v2473 = vld [vmem:[%s866 + $0x138] sm:$0xff]
        %v2474 = vld [vmem:[%s866 + $0x160] sm:$0xff]
        %v2475 = vld [vmem:[%s866 + $0x168] sm:$0xff]
        %v2476 = vld [vmem:[%s866 + $0x190] sm:$0xff]
        %v2477 = vld [vmem:[%s866 + $0x198] sm:$0xff]
        %v2478 = vld [vmem:[%s866 + $0x1c0] sm:$0xff]
        %v2479 = vld [vmem:[%s866 + $0x1c8] sm:$0xff]
        %v2480 = vld [vmem:[%s866 + $0x1f0] sm:$0xff]
        %v2481 = vld [vmem:[%s866 + $0x1f8] sm:$0xff]
        %v2482 = vld [vmem:[%s866 + $0x220] sm:$0xff]
        %v2483 = vld [vmem:[%s866 + $0x228] sm:$0xff]
        %v2484 = vld [vmem:[%s866 + $0x250] sm:$0xff]
        %v2485 = vld [vmem:[%s866 + $0x258] sm:$0xff]
        %v2486 = vld [vmem:[%s866 + $0x280] sm:$0xff]
        %v2487 = vld [vmem:[%s866 + $0x288] sm:$0xff]
        %v2488 = vld [vmem:[%s866 + $0x2b0] sm:$0xff]
        %v2489 = vld [vmem:[%s866 + $0x2b8] sm:$0xff]
        %v2490 = vld [vmem:[%s866 + $0x2e0] sm:$0xff]
        %v2491 = vld [vmem:[%s866 + $0x2e8] sm:$0xff]
        %s2492 = scalar_lea.vmem [#allocation12], 1024
        %v2493 = vld [vmem:[%s2492] sm:$0xff]
        %v2494 = vld [vmem:[%s2492 + $0x8] sm:$0xff]
        %v2495 = vld [vmem:[%s2492 + $0x10] sm:$0xff]
        %v2496 = vld [vmem:[%s2492 + $0x18] sm:$0xff]
        %v2497 = vld [vmem:[%s2492 + $0x20] sm:$0xff]
        %v2498 = vld [vmem:[%s2492 + $0x28] sm:$0xff]
        %v2499 = vld [vmem:[%s2492 + $0x30] sm:$0xff]
        %v2500 = vld [vmem:[%s2492 + $0x38] sm:$0xff]
        %v2501 = vld [vmem:[%s2492 + $0x40] sm:$0xff]
        %v2502 = vld [vmem:[%s2492 + $0x48] sm:$0xff]
        %v2503 = vld [vmem:[%s2492 + $0x50] sm:$0xff]
        %v2504 = vld [vmem:[%s2492 + $0x58] sm:$0xff]
        %v2505 = vld [vmem:[%s2492 + $0x60] sm:$0xff]
        %v2506 = vld [vmem:[%s2492 + $0x68] sm:$0xff]
        %v2507 = vld [vmem:[%s2492 + $0x70] sm:$0xff]
        %v2508 = vld [vmem:[%s2492 + $0x78] sm:$0xff]
        %v2509 = vld [vmem:[%s2492 + $0x80] sm:$0xff]
        %v2510 = vld [vmem:[%s2492 + $0x88] sm:$0xff]
        %v2511 = vld [vmem:[%s2492 + $0x90] sm:$0xff]
        %v2512 = vld [vmem:[%s2492 + $0x98] sm:$0xff]
        %v2513 = vld [vmem:[%s2492 + $0xa0] sm:$0xff]
        %v2514 = vld [vmem:[%s2492 + $0xa8] sm:$0xff]
        %v2515 = vld [vmem:[%s2492 + $0xb0] sm:$0xff]
        %v2516 = vld [vmem:[%s2492 + $0xb8] sm:$0xff]
        %v2517 = vld [vmem:[%s2492 + $0xc0] sm:$0xff]
        %v2518 = vld [vmem:[%s2492 + $0xc8] sm:$0xff]
        %v2519 = vld [vmem:[%s2492 + $0xd0] sm:$0xff]
        %v2520 = vld [vmem:[%s2492 + $0xd8] sm:$0xff]
        %v2521 = vld [vmem:[%s2492 + $0xe0] sm:$0xff]
        %v2522 = vld [vmem:[%s2492 + $0xe8] sm:$0xff]
        %v2523 = vld [vmem:[%s2492 + $0xf0] sm:$0xff]
        %v2524 = vld [vmem:[%s2492 + $0xf8] sm:$0xff]
        %2525 = vmatprep.subr.mxu0 0.0
        %2526 = vmatpush1.msra.mxu0 %v2508
        %2527 = vmatprep.subr.mxu0 0.0
        %2528 = vmatpush1.msra.mxu0 %v2507
        %2529 = vmatprep.subr.mxu0 0.0
        %2530 = vmatpush1.msra.mxu0 %v2506
        %2531 = vmatprep.subr.mxu0 0.0
        %2532 = vmatpush1.msra.mxu0 %v2505
        %2533 = vmatprep.subr.mxu0 0.0
        %2534 = vmatpush1.msra.mxu0 %v2504
        %2535 = vmatprep.subr.mxu0 0.0
        %2536 = vmatpush1.msra.mxu0 %v2503
        %2537 = vmatprep.subr.mxu0 0.0
        %2538 = vmatpush1.msra.mxu0 %v2502
        %2539 = vmatprep.subr.mxu0 0.0
        %2540 = vmatpush1.msra.mxu0 %v2501
        %2541 = vmatprep.subr.mxu0 0.0
        %2542 = vmatpush1.msra.mxu0 %v2500
        %2543 = vmatprep.subr.mxu0 0.0
        %2544 = vmatpush1.msra.mxu0 %v2499
        %2545 = vmatprep.subr.mxu0 0.0
        %2546 = vmatpush1.msra.mxu0 %v2498
        %2547 = vmatprep.subr.mxu0 0.0
        %2548 = vmatpush1.msra.mxu0 %v2497
        %2549 = vmatprep.subr.mxu0 0.0
        %2550 = vmatpush1.msra.mxu0 %v2496
        %2551 = vmatprep.subr.mxu0 0.0
        %2552 = vmatpush1.msra.mxu0 %v2495
        %2553 = vmatprep.subr.mxu0 0.0
        %2554 = vmatpush1.msra.mxu0 %v2494
        %2555 = vmatprep.subr.mxu0 0.0
        %2556 = vmatpush1.msra.mxu0 %v2493
        %2557 = vmatprep.subr.mxu0 0.0
        %2558 = vmatpush2.msra.mxu0 %v2524
        %2559 = vmatprep.subr.mxu0 0.0
        %2560 = vmatpush2.msra.mxu0 %v2523
        %2561 = vmatprep.subr.mxu0 0.0
        %2562 = vmatpush2.msra.mxu0 %v2522
        %2563 = vmatprep.subr.mxu0 0.0
        %2564 = vmatpush2.msra.mxu0 %v2521
        %2565 = vmatprep.subr.mxu0 0.0
        %2566 = vmatpush2.msra.mxu0 %v2520
        %2567 = vmatprep.subr.mxu0 0.0
        %2568 = vmatpush2.msra.mxu0 %v2519
        %2569 = vmatprep.subr.mxu0 0.0
        %2570 = vmatpush2.msra.mxu0 %v2518
        %2571 = vmatprep.subr.mxu0 0.0
        %2572 = vmatpush2.msra.mxu0 %v2517
        %2573 = vmatprep.subr.mxu0 0.0
        %2574 = vmatpush2.msra.mxu0 %v2516
        %2575 = vmatprep.subr.mxu0 0.0
        %2576 = vmatpush2.msra.mxu0 %v2515
        %2577 = vmatprep.subr.mxu0 0.0
        %2578 = vmatpush2.msra.mxu0 %v2514
        %2579 = vmatprep.subr.mxu0 0.0
        %2580 = vmatpush2.msra.mxu0 %v2513
        %2581 = vmatprep.subr.mxu0 0.0
        %2582 = vmatpush2.msra.mxu0 %v2512
        %2583 = vmatprep.subr.mxu0 0.0
        %2584 = vmatpush2.msra.mxu0 %v2511
        %2585 = vmatprep.subr.mxu0 0.0
        %2586 = vmatpush2.msra.mxu0 %v2510
        %2587 = vmatprep.subr.mxu0 0.0
        %2588 = vmatpush2.msra.mxu0 %v2509
        %2589 = vmatprep.mubr.f32.mxu0 %v2461
        %2590 = vmatmul.mubr.f32.gmra.mxu0 %v2460
        %v2591 = vpop.f32.mrf.mxu0
        %v2592 = vadd.f32 0.0, %v2591
        %v2593 = vpop.f32.mrf.mxu0
        %2594 = vmatprep.mubr.f32.mxu0 %v2463
        %2595 = vmatmul.mubr.f32.gmra.mxu0 %v2462
        %v2596 = vpop.f32.mrf.mxu0
        %v2597 = vadd.f32 0.0, %v2596
        %v2598 = vpop.f32.mrf.mxu0
        %2599 = vmatprep.mubr.f32.mxu0 %v2465
        %2600 = vmatmul.mubr.f32.gmra.mxu0 %v2464
        %v2601 = vpop.f32.mrf.mxu0
        %v2602 = vadd.f32 0.0, %v2601
        %v2603 = vpop.f32.mrf.mxu0
        %2604 = vmatprep.mubr.f32.mxu0 %v2467
        %2605 = vmatmul.mubr.f32.gmra.mxu0 %v2466
        %v2606 = vpop.f32.mrf.mxu0
        %v2607 = vadd.f32 0.0, %v2606
        %v2608 = vpop.f32.mrf.mxu0
        %2609 = vmatprep.mubr.f32.mxu0 %v2469
        %2610 = vmatmul.mubr.f32.gmra.mxu0 %v2468
        %v2611 = vpop.f32.mrf.mxu0
        %v2612 = vadd.f32 0.0, %v2611
        %v2613 = vpop.f32.mrf.mxu0
        %2614 = vmatprep.mubr.f32.mxu0 %v2471
        %2615 = vmatmul.mubr.f32.gmra.mxu0 %v2470
        %v2616 = vpop.f32.mrf.mxu0
        %v2617 = vadd.f32 0.0, %v2616
        %v2618 = vpop.f32.mrf.mxu0
        %2619 = vmatprep.mubr.f32.mxu0 %v2473
        %2620 = vmatmul.mubr.f32.gmra.mxu0 %v2472
        %v2621 = vpop.f32.mrf.mxu0
        %v2622 = vadd.f32 0.0, %v2621
        %v2623 = vpop.f32.mrf.mxu0
        %2624 = vmatprep.mubr.f32.mxu0 %v2475
        %2625 = vmatmul.mubr.f32.gmra.mxu0 %v2474
        %v2626 = vpop.f32.mrf.mxu0
        %v2627 = vadd.f32 0.0, %v2626
        %v2628 = vpop.f32.mrf.mxu0
        %2629 = vmatprep.mubr.f32.mxu0 %v2477
        %2630 = vmatmul.mubr.f32.gmra.mxu0 %v2476
        %v2631 = vpop.f32.mrf.mxu0
        %v2632 = vadd.f32 0.0, %v2631
        %v2633 = vpop.f32.mrf.mxu0
        %2634 = vmatprep.mubr.f32.mxu0 %v2479
        %2635 = vmatmul.mubr.f32.gmra.mxu0 %v2478
        %v2636 = vpop.f32.mrf.mxu0
        %v2637 = vadd.f32 0.0, %v2636
        %v2638 = vpop.f32.mrf.mxu0
        %2639 = vmatprep.mubr.f32.mxu0 %v2481
        %2640 = vmatmul.mubr.f32.gmra.mxu0 %v2480
        %v2641 = vpop.f32.mrf.mxu0
        %v2642 = vadd.f32 0.0, %v2641
        %v2643 = vpop.f32.mrf.mxu0
        %2644 = vmatprep.mubr.f32.mxu0 %v2483
        %2645 = vmatmul.mubr.f32.gmra.mxu0 %v2482
        %v2646 = vpop.f32.mrf.mxu0
        %v2647 = vadd.f32 0.0, %v2646
        %v2648 = vpop.f32.mrf.mxu0
        %2649 = vmatprep.mubr.f32.mxu0 %v2485
        %2650 = vmatmul.mubr.f32.gmra.mxu0 %v2484
        %v2651 = vpop.f32.mrf.mxu0
        %v2652 = vadd.f32 0.0, %v2651
        %v2653 = vpop.f32.mrf.mxu0
        %2654 = vmatprep.mubr.f32.mxu0 %v2487
        %2655 = vmatmul.mubr.f32.gmra.mxu0 %v2486
        %v2656 = vpop.f32.mrf.mxu0
        %v2657 = vadd.f32 0.0, %v2656
        %v2658 = vpop.f32.mrf.mxu0
        %2659 = vmatprep.mubr.f32.mxu0 %v2489
        %2660 = vmatmul.mubr.f32.gmra.mxu0 %v2488
        %v2661 = vpop.f32.mrf.mxu0
        %v2662 = vadd.f32 0.0, %v2661
        %v2663 = vpop.f32.mrf.mxu0
        %2664 = vmatprep.mubr.f32.mxu0 %v2491
        %2665 = vmatmul.mubr.f32.gmra.mxu0 %v2490
        %v2666 = vpop.f32.mrf.mxu0
        %v2667 = vadd.f32 0.0, %v2666
        %v2668 = vpop.f32.mrf.mxu0
        %2669 = vdwg.mxu0
        %v2670 = vadd.f32 %v2444, %v2592
        %v2671 = vadd.f32 %v2445, %v2597
        %v2672 = vadd.f32 %v2446, %v2602
        %v2673 = vadd.f32 %v2447, %v2607
        %v2674 = vadd.f32 %v2448, %v2612
        %v2675 = vadd.f32 %v2449, %v2617
        %v2676 = vadd.f32 %v2450, %v2622
        %v2677 = vadd.f32 %v2451, %v2627
        %v2678 = vadd.f32 %v2452, %v2632
        %v2679 = vadd.f32 %v2453, %v2637
        %v2680 = vadd.f32 %v2454, %v2642
        %v2681 = vadd.f32 %v2455, %v2647
        %v2682 = vadd.f32 %v2456, %v2652
        %v2683 = vadd.f32 %v2457, %v2657
        %v2684 = vadd.f32 %v2458, %v2662
        %v2685 = vadd.f32 %v2459, %v2667
        %v2686 = vld [vmem:[%s866 + $0x10] sm:$0xfe]
        %v2687 = vld [vmem:[%s866 + $0x18] sm:$0xfe]
        %v2688 = vld [vmem:[%s866 + $0x20] sm:$0x1]
        %v2689 = vld [vmem:[%s866 + $0x28] sm:$0x1]
        %v2690 = vld [vmem:[%s866 + $0x40] sm:$0xfe]
        %v2691 = vld [vmem:[%s866 + $0x48] sm:$0xfe]
        %v2692 = vld [vmem:[%s866 + $0x50] sm:$0x1]
        %v2693 = vld [vmem:[%s866 + $0x58] sm:$0x1]
        %v2694 = vld [vmem:[%s866 + $0x70] sm:$0xfe]
        %v2695 = vld [vmem:[%s866 + $0x78] sm:$0xfe]
        %v2696 = vld [vmem:[%s866 + $0x80] sm:$0x1]
        %v2697 = vld [vmem:[%s866 + $0x88] sm:$0x1]
        %v2698 = vld [vmem:[%s866 + $0xa0] sm:$0xfe]
        %v2699 = vld [vmem:[%s866 + $0xa8] sm:$0xfe]
        %v2700 = vld [vmem:[%s866 + $0xb0] sm:$0x1]
        %v2701 = vld [vmem:[%s866 + $0xb8] sm:$0x1]
        %v2702 = vld [vmem:[%s866 + $0xd0] sm:$0xfe]
        %v2703 = vld [vmem:[%s866 + $0xd8] sm:$0xfe]
        %v2704 = vld [vmem:[%s866 + $0xe0] sm:$0x1]
        %v2705 = vld [vmem:[%s866 + $0xe8] sm:$0x1]
        %v2706 = vld [vmem:[%s866 + $0x100] sm:$0xfe]
        %v2707 = vld [vmem:[%s866 + $0x108] sm:$0xfe]
        %v2708 = vld [vmem:[%s866 + $0x110] sm:$0x1]
        %v2709 = vld [vmem:[%s866 + $0x118] sm:$0x1]
        %v2710 = vld [vmem:[%s866 + $0x130] sm:$0xfe]
        %v2711 = vld [vmem:[%s866 + $0x138] sm:$0xfe]
        %v2712 = vld [vmem:[%s866 + $0x140] sm:$0x1]
        %v2713 = vld [vmem:[%s866 + $0x148] sm:$0x1]
        %v2714 = vld [vmem:[%s866 + $0x160] sm:$0xfe]
        %v2715 = vld [vmem:[%s866 + $0x168] sm:$0xfe]
        %v2716 = vld [vmem:[%s866 + $0x170] sm:$0x1]
        %v2717 = vld [vmem:[%s866 + $0x178] sm:$0x1]
        %v2718 = vld [vmem:[%s866 + $0x190] sm:$0xfe]
        %v2719 = vld [vmem:[%s866 + $0x198] sm:$0xfe]
        %v2720 = vld [vmem:[%s866 + $0x1a0] sm:$0x1]
        %v2721 = vld [vmem:[%s866 + $0x1a8] sm:$0x1]
        %v2722 = vld [vmem:[%s866 + $0x1c0] sm:$0xfe]
        %v2723 = vld [vmem:[%s866 + $0x1c8] sm:$0xfe]
        %v2724 = vld [vmem:[%s866 + $0x1d0] sm:$0x1]
        %v2725 = vld [vmem:[%s866 + $0x1d8] sm:$0x1]
        %v2726 = vld [vmem:[%s866 + $0x1f0] sm:$0xfe]
        %v2727 = vld [vmem:[%s866 + $0x1f8] sm:$0xfe]
        %v2728 = vld [vmem:[%s866 + $0x200] sm:$0x1]
        %v2729 = vld [vmem:[%s866 + $0x208] sm:$0x1]
        %v2730 = vld [vmem:[%s866 + $0x220] sm:$0xfe]
        %v2731 = vld [vmem:[%s866 + $0x228] sm:$0xfe]
        %v2732 = vld [vmem:[%s866 + $0x230] sm:$0x1]
        %v2733 = vld [vmem:[%s866 + $0x238] sm:$0x1]
        %v2734 = vld [vmem:[%s866 + $0x250] sm:$0xfe]
        %v2735 = vld [vmem:[%s866 + $0x258] sm:$0xfe]
        %v2736 = vld [vmem:[%s866 + $0x260] sm:$0x1]
        %v2737 = vld [vmem:[%s866 + $0x268] sm:$0x1]
        %v2738 = vld [vmem:[%s866 + $0x280] sm:$0xfe]
        %v2739 = vld [vmem:[%s866 + $0x288] sm:$0xfe]
        %v2740 = vld [vmem:[%s866 + $0x290] sm:$0x1]
        %v2741 = vld [vmem:[%s866 + $0x298] sm:$0x1]
        %v2742 = vld [vmem:[%s866 + $0x2b0] sm:$0xfe]
        %v2743 = vld [vmem:[%s866 + $0x2b8] sm:$0xfe]
        %v2744 = vld [vmem:[%s866 + $0x2c0] sm:$0x1]
        %v2745 = vld [vmem:[%s866 + $0x2c8] sm:$0x1]
        %v2746 = vld [vmem:[%s866 + $0x2e0] sm:$0xfe]
        %v2747 = vld [vmem:[%s866 + $0x2e8] sm:$0xfe]
        %v2748 = vld [vmem:[%s866 + $0x2f0] sm:$0x1]
        %v2749 = vld [vmem:[%s866 + $0x2f8] sm:$0x1]
        %v2814 = vrot.slane %v2686, 1
        %v2815 = vrot.slane %v2688, 1
        %v2816 = vsel %vm1687, %v2814, %v2815
        %v2817 = vrot.slane %v2687, 1
        %v2818 = vrot.slane %v2689, 1
        %v2819 = vsel %vm1687, %v2817, %v2818
        %v2820 = vrot.slane %v2690, 1
        %v2821 = vrot.slane %v2692, 1
        %v2822 = vsel %vm1687, %v2820, %v2821
        %v2823 = vrot.slane %v2691, 1
        %v2824 = vrot.slane %v2693, 1
        %v2825 = vsel %vm1687, %v2823, %v2824
        %v2826 = vrot.slane %v2694, 1
        %v2827 = vrot.slane %v2696, 1
        %v2828 = vsel %vm1687, %v2826, %v2827
        %v2829 = vrot.slane %v2695, 1
        %v2830 = vrot.slane %v2697, 1
        %v2831 = vsel %vm1687, %v2829, %v2830
        %v2832 = vrot.slane %v2698, 1
        %v2833 = vrot.slane %v2700, 1
        %v2834 = vsel %vm1687, %v2832, %v2833
        %v2835 = vrot.slane %v2699, 1
        %v2836 = vrot.slane %v2701, 1
        %v2837 = vsel %vm1687, %v2835, %v2836
        %v2838 = vrot.slane %v2702, 1
        %v2839 = vrot.slane %v2704, 1
        %v2840 = vsel %vm1687, %v2838, %v2839
        %v2841 = vrot.slane %v2703, 1
        %v2842 = vrot.slane %v2705, 1
        %v2843 = vsel %vm1687, %v2841, %v2842
        %v2844 = vrot.slane %v2706, 1
        %v2845 = vrot.slane %v2708, 1
        %v2846 = vsel %vm1687, %v2844, %v2845
        %v2847 = vrot.slane %v2707, 1
        %v2848 = vrot.slane %v2709, 1
        %v2849 = vsel %vm1687, %v2847, %v2848
        %v2850 = vrot.slane %v2710, 1
        %v2851 = vrot.slane %v2712, 1
        %v2852 = vsel %vm1687, %v2850, %v2851
        %v2853 = vrot.slane %v2711, 1
        %v2854 = vrot.slane %v2713, 1
        %v2855 = vsel %vm1687, %v2853, %v2854
        %v2856 = vrot.slane %v2714, 1
        %v2857 = vrot.slane %v2716, 1
        %v2858 = vsel %vm1687, %v2856, %v2857
        %v2859 = vrot.slane %v2715, 1
        %v2860 = vrot.slane %v2717, 1
        %v2861 = vsel %vm1687, %v2859, %v2860
        %v2862 = vrot.slane %v2718, 1
        %v2863 = vrot.slane %v2720, 1
        %v2864 = vsel %vm1687, %v2862, %v2863
        %v2865 = vrot.slane %v2719, 1
        %v2866 = vrot.slane %v2721, 1
        %v2867 = vsel %vm1687, %v2865, %v2866
        %v2868 = vrot.slane %v2722, 1
        %v2869 = vrot.slane %v2724, 1
        %v2870 = vsel %vm1687, %v2868, %v2869
        %v2871 = vrot.slane %v2723, 1
        %v2872 = vrot.slane %v2725, 1
        %v2873 = vsel %vm1687, %v2871, %v2872
        %v2874 = vrot.slane %v2726, 1
        %v2875 = vrot.slane %v2728, 1
        %v2876 = vsel %vm1687, %v2874, %v2875
        %v2877 = vrot.slane %v2727, 1
        %v2878 = vrot.slane %v2729, 1
        %v2879 = vsel %vm1687, %v2877, %v2878
        %v2880 = vrot.slane %v2730, 1
        %v2881 = vrot.slane %v2732, 1
        %v2882 = vsel %vm1687, %v2880, %v2881
        %v2883 = vrot.slane %v2731, 1
        %v2884 = vrot.slane %v2733, 1
        %v2885 = vsel %vm1687, %v2883, %v2884
        %v2886 = vrot.slane %v2734, 1
        %v2887 = vrot.slane %v2736, 1
        %v2888 = vsel %vm1687, %v2886, %v2887
        %v2889 = vrot.slane %v2735, 1
        %v2890 = vrot.slane %v2737, 1
        %v2891 = vsel %vm1687, %v2889, %v2890
        %v2892 = vrot.slane %v2738, 1
        %v2893 = vrot.slane %v2740, 1
        %v2894 = vsel %vm1687, %v2892, %v2893
        %v2895 = vrot.slane %v2739, 1
        %v2896 = vrot.slane %v2741, 1
        %v2897 = vsel %vm1687, %v2895, %v2896
        %v2898 = vrot.slane %v2742, 1
        %v2899 = vrot.slane %v2744, 1
        %v2900 = vsel %vm1687, %v2898, %v2899
        %v2901 = vrot.slane %v2743, 1
        %v2902 = vrot.slane %v2745, 1
        %v2903 = vsel %vm1687, %v2901, %v2902
        %v2904 = vrot.slane %v2746, 1
        %v2905 = vrot.slane %v2748, 1
        %v2906 = vsel %vm1687, %v2904, %v2905
        %v2907 = vrot.slane %v2747, 1
        %v2908 = vrot.slane %v2749, 1
        %v2909 = vsel %vm1687, %v2907, %v2908
        %s2942 = scalar_lea.vmem [#allocation12], 1280
        %v2943 = vld [vmem:[%s2942] sm:$0xff]
        %v2944 = vld [vmem:[%s2942 + $0x8] sm:$0xff]
        %v2945 = vld [vmem:[%s2942 + $0x10] sm:$0xff]
        %v2946 = vld [vmem:[%s2942 + $0x18] sm:$0xff]
        %v2947 = vld [vmem:[%s2942 + $0x20] sm:$0xff]
        %v2948 = vld [vmem:[%s2942 + $0x28] sm:$0xff]
        %v2949 = vld [vmem:[%s2942 + $0x30] sm:$0xff]
        %v2950 = vld [vmem:[%s2942 + $0x38] sm:$0xff]
        %v2951 = vld [vmem:[%s2942 + $0x40] sm:$0xff]
        %v2952 = vld [vmem:[%s2942 + $0x48] sm:$0xff]
        %v2953 = vld [vmem:[%s2942 + $0x50] sm:$0xff]
        %v2954 = vld [vmem:[%s2942 + $0x58] sm:$0xff]
        %v2955 = vld [vmem:[%s2942 + $0x60] sm:$0xff]
        %v2956 = vld [vmem:[%s2942 + $0x68] sm:$0xff]
        %v2957 = vld [vmem:[%s2942 + $0x70] sm:$0xff]
        %v2958 = vld [vmem:[%s2942 + $0x78] sm:$0xff]
        %v2959 = vld [vmem:[%s2942 + $0x80] sm:$0xff]
        %v2960 = vld [vmem:[%s2942 + $0x88] sm:$0xff]
        %v2961 = vld [vmem:[%s2942 + $0x90] sm:$0xff]
        %v2962 = vld [vmem:[%s2942 + $0x98] sm:$0xff]
        %v2963 = vld [vmem:[%s2942 + $0xa0] sm:$0xff]
        %v2964 = vld [vmem:[%s2942 + $0xa8] sm:$0xff]
        %v2965 = vld [vmem:[%s2942 + $0xb0] sm:$0xff]
        %v2966 = vld [vmem:[%s2942 + $0xb8] sm:$0xff]
        %v2967 = vld [vmem:[%s2942 + $0xc0] sm:$0xff]
        %v2968 = vld [vmem:[%s2942 + $0xc8] sm:$0xff]
        %v2969 = vld [vmem:[%s2942 + $0xd0] sm:$0xff]
        %v2970 = vld [vmem:[%s2942 + $0xd8] sm:$0xff]
        %v2971 = vld [vmem:[%s2942 + $0xe0] sm:$0xff]
        %v2972 = vld [vmem:[%s2942 + $0xe8] sm:$0xff]
        %v2973 = vld [vmem:[%s2942 + $0xf0] sm:$0xff]
        %v2974 = vld [vmem:[%s2942 + $0xf8] sm:$0xff]
        %2975 = vmatprep.subr.mxu0 0.0
        %2976 = vmatpush1.msra.mxu0 %v2958
        %2977 = vmatprep.subr.mxu0 0.0
        %2978 = vmatpush1.msra.mxu0 %v2957
        %2979 = vmatprep.subr.mxu0 0.0
        %2980 = vmatpush1.msra.mxu0 %v2956
        %2981 = vmatprep.subr.mxu0 0.0
        %2982 = vmatpush1.msra.mxu0 %v2955
        %2983 = vmatprep.subr.mxu0 0.0
        %2984 = vmatpush1.msra.mxu0 %v2954
        %2985 = vmatprep.subr.mxu0 0.0
        %2986 = vmatpush1.msra.mxu0 %v2953
        %2987 = vmatprep.subr.mxu0 0.0
        %2988 = vmatpush1.msra.mxu0 %v2952
        %2989 = vmatprep.subr.mxu0 0.0
        %2990 = vmatpush1.msra.mxu0 %v2951
        %2991 = vmatprep.subr.mxu0 0.0
        %2992 = vmatpush1.msra.mxu0 %v2950
        %2993 = vmatprep.subr.mxu0 0.0
        %2994 = vmatpush1.msra.mxu0 %v2949
        %2995 = vmatprep.subr.mxu0 0.0
        %2996 = vmatpush1.msra.mxu0 %v2948
        %2997 = vmatprep.subr.mxu0 0.0
        %2998 = vmatpush1.msra.mxu0 %v2947
        %2999 = vmatprep.subr.mxu0 0.0
        %3000 = vmatpush1.msra.mxu0 %v2946
        %3001 = vmatprep.subr.mxu0 0.0
        %3002 = vmatpush1.msra.mxu0 %v2945
        %3003 = vmatprep.subr.mxu0 0.0
        %3004 = vmatpush1.msra.mxu0 %v2944
        %3005 = vmatprep.subr.mxu0 0.0
        %3006 = vmatpush1.msra.mxu0 %v2943
        %3007 = vmatprep.subr.mxu0 0.0
        %3008 = vmatpush2.msra.mxu0 %v2974
        %3009 = vmatprep.subr.mxu0 0.0
        %3010 = vmatpush2.msra.mxu0 %v2973
        %3011 = vmatprep.subr.mxu0 0.0
        %3012 = vmatpush2.msra.mxu0 %v2972
        %3013 = vmatprep.subr.mxu0 0.0
        %3014 = vmatpush2.msra.mxu0 %v2971
        %3015 = vmatprep.subr.mxu0 0.0
        %3016 = vmatpush2.msra.mxu0 %v2970
        %3017 = vmatprep.subr.mxu0 0.0
        %3018 = vmatpush2.msra.mxu0 %v2969
        %3019 = vmatprep.subr.mxu0 0.0
        %3020 = vmatpush2.msra.mxu0 %v2968
        %3021 = vmatprep.subr.mxu0 0.0
        %3022 = vmatpush2.msra.mxu0 %v2967
        %3023 = vmatprep.subr.mxu0 0.0
        %3024 = vmatpush2.msra.mxu0 %v2966
        %3025 = vmatprep.subr.mxu0 0.0
        %3026 = vmatpush2.msra.mxu0 %v2965
        %3027 = vmatprep.subr.mxu0 0.0
        %3028 = vmatpush2.msra.mxu0 %v2964
        %3029 = vmatprep.subr.mxu0 0.0
        %3030 = vmatpush2.msra.mxu0 %v2963
        %3031 = vmatprep.subr.mxu0 0.0
        %3032 = vmatpush2.msra.mxu0 %v2962
        %3033 = vmatprep.subr.mxu0 0.0
        %3034 = vmatpush2.msra.mxu0 %v2961
        %3035 = vmatprep.subr.mxu0 0.0
        %3036 = vmatpush2.msra.mxu0 %v2960
        %3037 = vmatprep.subr.mxu0 0.0
        %3038 = vmatpush2.msra.mxu0 %v2959
        %3039 = vmatprep.mubr.f32.mxu0 %v2819
        %3040 = vmatmul.mubr.f32.gmra.mxu0 %v2816
        %v3041 = vpop.f32.mrf.mxu0
        %v3042 = vadd.f32 0.0, %v3041
        %v3043 = vpop.f32.mrf.mxu0
        %3044 = vmatprep.mubr.f32.mxu0 %v2825
        %3045 = vmatmul.mubr.f32.gmra.mxu0 %v2822
        %v3046 = vpop.f32.mrf.mxu0
        %v3047 = vadd.f32 0.0, %v3046
        %v3048 = vpop.f32.mrf.mxu0
        %3049 = vmatprep.mubr.f32.mxu0 %v2831
        %3050 = vmatmul.mubr.f32.gmra.mxu0 %v2828
        %v3051 = vpop.f32.mrf.mxu0
        %v3052 = vadd.f32 0.0, %v3051
        %v3053 = vpop.f32.mrf.mxu0
        %3054 = vmatprep.mubr.f32.mxu0 %v2837
        %3055 = vmatmul.mubr.f32.gmra.mxu0 %v2834
        %v3056 = vpop.f32.mrf.mxu0
        %v3057 = vadd.f32 0.0, %v3056
        %v3058 = vpop.f32.mrf.mxu0
        %3059 = vmatprep.mubr.f32.mxu0 %v2843
        %3060 = vmatmul.mubr.f32.gmra.mxu0 %v2840
        %v3061 = vpop.f32.mrf.mxu0
        %v3062 = vadd.f32 0.0, %v3061
        %v3063 = vpop.f32.mrf.mxu0
        %3064 = vmatprep.mubr.f32.mxu0 %v2849
        %3065 = vmatmul.mubr.f32.gmra.mxu0 %v2846
        %v3066 = vpop.f32.mrf.mxu0
        %v3067 = vadd.f32 0.0, %v3066
        %v3068 = vpop.f32.mrf.mxu0
        %3069 = vmatprep.mubr.f32.mxu0 %v2855
        %3070 = vmatmul.mubr.f32.gmra.mxu0 %v2852
        %v3071 = vpop.f32.mrf.mxu0
        %v3072 = vadd.f32 0.0, %v3071
        %v3073 = vpop.f32.mrf.mxu0
        %3074 = vmatprep.mubr.f32.mxu0 %v2861
        %3075 = vmatmul.mubr.f32.gmra.mxu0 %v2858
        %v3076 = vpop.f32.mrf.mxu0
        %v3077 = vadd.f32 0.0, %v3076
        %v3078 = vpop.f32.mrf.mxu0
        %3079 = vmatprep.mubr.f32.mxu0 %v2867
        %3080 = vmatmul.mubr.f32.gmra.mxu0 %v2864
        %v3081 = vpop.f32.mrf.mxu0
        %v3082 = vadd.f32 0.0, %v3081
        %v3083 = vpop.f32.mrf.mxu0
        %3084 = vmatprep.mubr.f32.mxu0 %v2873
        %3085 = vmatmul.mubr.f32.gmra.mxu0 %v2870
        %v3086 = vpop.f32.mrf.mxu0
        %v3087 = vadd.f32 0.0, %v3086
        %v3088 = vpop.f32.mrf.mxu0
        %3089 = vmatprep.mubr.f32.mxu0 %v2879
        %3090 = vmatmul.mubr.f32.gmra.mxu0 %v2876
        %v3091 = vpop.f32.mrf.mxu0
        %v3092 = vadd.f32 0.0, %v3091
        %v3093 = vpop.f32.mrf.mxu0
        %3094 = vmatprep.mubr.f32.mxu0 %v2885
        %3095 = vmatmul.mubr.f32.gmra.mxu0 %v2882
        %v3096 = vpop.f32.mrf.mxu0
        %v3097 = vadd.f32 0.0, %v3096
        %v3098 = vpop.f32.mrf.mxu0
        %3099 = vmatprep.mubr.f32.mxu0 %v2891
        %3100 = vmatmul.mubr.f32.gmra.mxu0 %v2888
        %v3101 = vpop.f32.mrf.mxu0
        %v3102 = vadd.f32 0.0, %v3101
        %v3103 = vpop.f32.mrf.mxu0
        %3104 = vmatprep.mubr.f32.mxu0 %v2897
        %3105 = vmatmul.mubr.f32.gmra.mxu0 %v2894
        %v3106 = vpop.f32.mrf.mxu0
        %v3107 = vadd.f32 0.0, %v3106
        %v3108 = vpop.f32.mrf.mxu0
        %3109 = vmatprep.mubr.f32.mxu0 %v2903
        %3110 = vmatmul.mubr.f32.gmra.mxu0 %v2900
        %v3111 = vpop.f32.mrf.mxu0
        %v3112 = vadd.f32 0.0, %v3111
        %v3113 = vpop.f32.mrf.mxu0
        %3114 = vmatprep.mubr.f32.mxu0 %v2909
        %3115 = vmatmul.mubr.f32.gmra.mxu0 %v2906
        %v3116 = vpop.f32.mrf.mxu0
        %v3117 = vadd.f32 0.0, %v3116
        %v3118 = vpop.f32.mrf.mxu0
        %3119 = vdwg.mxu0
        %v3120 = vadd.f32 %v2670, %v3042
        %v3121 = vadd.f32 %v2671, %v3047
        %v3122 = vadd.f32 %v2672, %v3052
        %v3123 = vadd.f32 %v2673, %v3057
        %v3124 = vadd.f32 %v2674, %v3062
        %v3125 = vadd.f32 %v2675, %v3067
        %v3126 = vadd.f32 %v2676, %v3072
        %v3127 = vadd.f32 %v2677, %v3077
        %v3128 = vadd.f32 %v2678, %v3082
        %v3129 = vadd.f32 %v2679, %v3087
        %v3130 = vadd.f32 %v2680, %v3092
        %v3131 = vadd.f32 %v2681, %v3097
        %v3132 = vadd.f32 %v2682, %v3102
        %v3133 = vadd.f32 %v2683, %v3107
        %v3134 = vadd.f32 %v2684, %v3112
        %v3135 = vadd.f32 %v2685, %v3117
        %s3136 = scalar_lea.vmem [#allocation2], 96
        %v3137 = vld [vmem:[%s3136] sm:$0x80]
        %v3138 = vld [vmem:[%s3136 + $0x8] sm:$0x80]
        %v3139 = vld [vmem:[%s3136 + $0x10] sm:$0x7f]
        %v3140 = vld [vmem:[%s3136 + $0x18] sm:$0x7f]
        %v3141 = vld [vmem:[%s3136 + $0x30] sm:$0x80]
        %v3142 = vld [vmem:[%s3136 + $0x38] sm:$0x80]
        %v3143 = vld [vmem:[%s3136 + $0x40] sm:$0x7f]
        %v3144 = vld [vmem:[%s3136 + $0x48] sm:$0x7f]
        %v3145 = vld [vmem:[%s3136 + $0x60] sm:$0x80]
        %v3146 = vld [vmem:[%s3136 + $0x68] sm:$0x80]
        %v3147 = vld [vmem:[%s3136 + $0x70] sm:$0x7f]
        %v3148 = vld [vmem:[%s3136 + $0x78] sm:$0x7f]
        %v3149 = vld [vmem:[%s3136 + $0x90] sm:$0x80]
        %v3150 = vld [vmem:[%s3136 + $0x98] sm:$0x80]
        %v3151 = vld [vmem:[%s3136 + $0xa0] sm:$0x7f]
        %v3152 = vld [vmem:[%s3136 + $0xa8] sm:$0x7f]
        %v3153 = vld [vmem:[%s3136 + $0xc0] sm:$0x80]
        %v3154 = vld [vmem:[%s3136 + $0xc8] sm:$0x80]
        %v3155 = vld [vmem:[%s3136 + $0xd0] sm:$0x7f]
        %v3156 = vld [vmem:[%s3136 + $0xd8] sm:$0x7f]
        %v3157 = vld [vmem:[%s3136 + $0xf0] sm:$0x80]
        %v3158 = vld [vmem:[%s3136 + $0xf8] sm:$0x80]
        %v3159 = vld [vmem:[%s3136 + $0x100] sm:$0x7f]
        %v3160 = vld [vmem:[%s3136 + $0x108] sm:$0x7f]
        %v3161 = vld [vmem:[%s3136 + $0x120] sm:$0x80]
        %v3162 = vld [vmem:[%s3136 + $0x128] sm:$0x80]
        %v3163 = vld [vmem:[%s3136 + $0x130] sm:$0x7f]
        %v3164 = vld [vmem:[%s3136 + $0x138] sm:$0x7f]
        %v3165 = vld [vmem:[%s3136 + $0x150] sm:$0x80]
        %v3166 = vld [vmem:[%s3136 + $0x158] sm:$0x80]
        %v3167 = vld [vmem:[%s3136 + $0x160] sm:$0x7f]
        %v3168 = vld [vmem:[%s3136 + $0x168] sm:$0x7f]
        %v3169 = vld [vmem:[%s3136 + $0x180] sm:$0x80]
        %v3170 = vld [vmem:[%s3136 + $0x188] sm:$0x80]
        %v3171 = vld [vmem:[%s3136 + $0x190] sm:$0x7f]
        %v3172 = vld [vmem:[%s3136 + $0x198] sm:$0x7f]
        %v3173 = vld [vmem:[%s3136 + $0x1b0] sm:$0x80]
        %v3174 = vld [vmem:[%s3136 + $0x1b8] sm:$0x80]
        %v3175 = vld [vmem:[%s3136 + $0x1c0] sm:$0x7f]
        %v3176 = vld [vmem:[%s3136 + $0x1c8] sm:$0x7f]
        %v3177 = vld [vmem:[%s3136 + $0x1e0] sm:$0x80]
        %v3178 = vld [vmem:[%s3136 + $0x1e8] sm:$0x80]
        %v3179 = vld [vmem:[%s3136 + $0x1f0] sm:$0x7f]
        %v3180 = vld [vmem:[%s3136 + $0x1f8] sm:$0x7f]
        %v3181 = vld [vmem:[%s3136 + $0x210] sm:$0x80]
        %v3182 = vld [vmem:[%s3136 + $0x218] sm:$0x80]
        %v3183 = vld [vmem:[%s3136 + $0x220] sm:$0x7f]
        %v3184 = vld [vmem:[%s3136 + $0x228] sm:$0x7f]
        %v3185 = vld [vmem:[%s3136 + $0x240] sm:$0x80]
        %v3186 = vld [vmem:[%s3136 + $0x248] sm:$0x80]
        %v3187 = vld [vmem:[%s3136 + $0x250] sm:$0x7f]
        %v3188 = vld [vmem:[%s3136 + $0x258] sm:$0x7f]
        %v3189 = vld [vmem:[%s3136 + $0x270] sm:$0x80]
        %v3190 = vld [vmem:[%s3136 + $0x278] sm:$0x80]
        %v3191 = vld [vmem:[%s3136 + $0x280] sm:$0x7f]
        %v3192 = vld [vmem:[%s3136 + $0x288] sm:$0x7f]
        %v3193 = vld [vmem:[%s3136 + $0x2a0] sm:$0x80]
        %v3194 = vld [vmem:[%s3136 + $0x2a8] sm:$0x80]
        %v3195 = vld [vmem:[%s3136 + $0x2b0] sm:$0x7f]
        %v3196 = vld [vmem:[%s3136 + $0x2b8] sm:$0x7f]
        %v3197 = vld [vmem:[%s3136 + $0x2d0] sm:$0x80]
        %v3198 = vld [vmem:[%s3136 + $0x2d8] sm:$0x80]
        %v3199 = vld [vmem:[%s3136 + $0x2e0] sm:$0x7f]
        %v3200 = vld [vmem:[%s3136 + $0x2e8] sm:$0x7f]
        %v3265 = vrot.slane %v3137, 7
        %v3266 = vrot.slane %v3139, 7
        %v3267 = vsel %vm1043, %v3265, %v3266
        %v3268 = vrot.slane %v3138, 7
        %v3269 = vrot.slane %v3140, 7
        %v3270 = vsel %vm1043, %v3268, %v3269
        %v3271 = vrot.slane %v3141, 7
        %v3272 = vrot.slane %v3143, 7
        %v3273 = vsel %vm1043, %v3271, %v3272
        %v3274 = vrot.slane %v3142, 7
        %v3275 = vrot.slane %v3144, 7
        %v3276 = vsel %vm1043, %v3274, %v3275
        %v3277 = vrot.slane %v3145, 7
        %v3278 = vrot.slane %v3147, 7
        %v3279 = vsel %vm1043, %v3277, %v3278
        %v3280 = vrot.slane %v3146, 7
        %v3281 = vrot.slane %v3148, 7
        %v3282 = vsel %vm1043, %v3280, %v3281
        %v3283 = vrot.slane %v3149, 7
        %v3284 = vrot.slane %v3151, 7
        %v3285 = vsel %vm1043, %v3283, %v3284
        %v3286 = vrot.slane %v3150, 7
        %v3287 = vrot.slane %v3152, 7
        %v3288 = vsel %vm1043, %v3286, %v3287
        %v3289 = vrot.slane %v3153, 7
        %v3290 = vrot.slane %v3155, 7
        %v3291 = vsel %vm1043, %v3289, %v3290
        %v3292 = vrot.slane %v3154, 7
        %v3293 = vrot.slane %v3156, 7
        %v3294 = vsel %vm1043, %v3292, %v3293
        %v3295 = vrot.slane %v3157, 7
        %v3296 = vrot.slane %v3159, 7
        %v3297 = vsel %vm1043, %v3295, %v3296
        %v3298 = vrot.slane %v3158, 7
        %v3299 = vrot.slane %v3160, 7
        %v3300 = vsel %vm1043, %v3298, %v3299
        %v3301 = vrot.slane %v3161, 7
        %v3302 = vrot.slane %v3163, 7
        %v3303 = vsel %vm1043, %v3301, %v3302
        %v3304 = vrot.slane %v3162, 7
        %v3305 = vrot.slane %v3164, 7
        %v3306 = vsel %vm1043, %v3304, %v3305
        %v3307 = vrot.slane %v3165, 7
        %v3308 = vrot.slane %v3167, 7
        %v3309 = vsel %vm1043, %v3307, %v3308
        %v3310 = vrot.slane %v3166, 7
        %v3311 = vrot.slane %v3168, 7
        %v3312 = vsel %vm1043, %v3310, %v3311
        %v3313 = vrot.slane %v3169, 7
        %v3314 = vrot.slane %v3171, 7
        %v3315 = vsel %vm1043, %v3313, %v3314
        %v3316 = vrot.slane %v3170, 7
        %v3317 = vrot.slane %v3172, 7
        %v3318 = vsel %vm1043, %v3316, %v3317
        %v3319 = vrot.slane %v3173, 7
        %v3320 = vrot.slane %v3175, 7
        %v3321 = vsel %vm1043, %v3319, %v3320
        %v3322 = vrot.slane %v3174, 7
        %v3323 = vrot.slane %v3176, 7
        %v3324 = vsel %vm1043, %v3322, %v3323
        %v3325 = vrot.slane %v3177, 7
        %v3326 = vrot.slane %v3179, 7
        %v3327 = vsel %vm1043, %v3325, %v3326
        %v3328 = vrot.slane %v3178, 7
        %v3329 = vrot.slane %v3180, 7
        %v3330 = vsel %vm1043, %v3328, %v3329
        %v3331 = vrot.slane %v3181, 7
        %v3332 = vrot.slane %v3183, 7
        %v3333 = vsel %vm1043, %v3331, %v3332
        %v3334 = vrot.slane %v3182, 7
        %v3335 = vrot.slane %v3184, 7
        %v3336 = vsel %vm1043, %v3334, %v3335
        %v3337 = vrot.slane %v3185, 7
        %v3338 = vrot.slane %v3187, 7
        %v3339 = vsel %vm1043, %v3337, %v3338
        %v3340 = vrot.slane %v3186, 7
        %v3341 = vrot.slane %v3188, 7
        %v3342 = vsel %vm1043, %v3340, %v3341
        %v3343 = vrot.slane %v3189, 7
        %v3344 = vrot.slane %v3191, 7
        %v3345 = vsel %vm1043, %v3343, %v3344
        %v3346 = vrot.slane %v3190, 7
        %v3347 = vrot.slane %v3192, 7
        %v3348 = vsel %vm1043, %v3346, %v3347
        %v3349 = vrot.slane %v3193, 7
        %v3350 = vrot.slane %v3195, 7
        %v3351 = vsel %vm1043, %v3349, %v3350
        %v3352 = vrot.slane %v3194, 7
        %v3353 = vrot.slane %v3196, 7
        %v3354 = vsel %vm1043, %v3352, %v3353
        %v3355 = vrot.slane %v3197, 7
        %v3356 = vrot.slane %v3199, 7
        %v3357 = vsel %vm1043, %v3355, %v3356
        %v3358 = vrot.slane %v3198, 7
        %v3359 = vrot.slane %v3200, 7
        %v3360 = vsel %vm1043, %v3358, %v3359
        %s3393 = scalar_lea.vmem [#allocation12], 1536
        %v3394 = vld [vmem:[%s3393] sm:$0xff]
        %v3395 = vld [vmem:[%s3393 + $0x8] sm:$0xff]
        %v3396 = vld [vmem:[%s3393 + $0x10] sm:$0xff]
        %v3397 = vld [vmem:[%s3393 + $0x18] sm:$0xff]
        %v3398 = vld [vmem:[%s3393 + $0x20] sm:$0xff]
        %v3399 = vld [vmem:[%s3393 + $0x28] sm:$0xff]
        %v3400 = vld [vmem:[%s3393 + $0x30] sm:$0xff]
        %v3401 = vld [vmem:[%s3393 + $0x38] sm:$0xff]
        %v3402 = vld [vmem:[%s3393 + $0x40] sm:$0xff]
        %v3403 = vld [vmem:[%s3393 + $0x48] sm:$0xff]
        %v3404 = vld [vmem:[%s3393 + $0x50] sm:$0xff]
        %v3405 = vld [vmem:[%s3393 + $0x58] sm:$0xff]
        %v3406 = vld [vmem:[%s3393 + $0x60] sm:$0xff]
        %v3407 = vld [vmem:[%s3393 + $0x68] sm:$0xff]
        %v3408 = vld [vmem:[%s3393 + $0x70] sm:$0xff]
        %v3409 = vld [vmem:[%s3393 + $0x78] sm:$0xff]
        %v3410 = vld [vmem:[%s3393 + $0x80] sm:$0xff]
        %v3411 = vld [vmem:[%s3393 + $0x88] sm:$0xff]
        %v3412 = vld [vmem:[%s3393 + $0x90] sm:$0xff]
        %v3413 = vld [vmem:[%s3393 + $0x98] sm:$0xff]
        %v3414 = vld [vmem:[%s3393 + $0xa0] sm:$0xff]
        %v3415 = vld [vmem:[%s3393 + $0xa8] sm:$0xff]
        %v3416 = vld [vmem:[%s3393 + $0xb0] sm:$0xff]
        %v3417 = vld [vmem:[%s3393 + $0xb8] sm:$0xff]
        %v3418 = vld [vmem:[%s3393 + $0xc0] sm:$0xff]
        %v3419 = vld [vmem:[%s3393 + $0xc8] sm:$0xff]
        %v3420 = vld [vmem:[%s3393 + $0xd0] sm:$0xff]
        %v3421 = vld [vmem:[%s3393 + $0xd8] sm:$0xff]
        %v3422 = vld [vmem:[%s3393 + $0xe0] sm:$0xff]
        %v3423 = vld [vmem:[%s3393 + $0xe8] sm:$0xff]
        %v3424 = vld [vmem:[%s3393 + $0xf0] sm:$0xff]
        %v3425 = vld [vmem:[%s3393 + $0xf8] sm:$0xff]
        %3426 = vmatprep.subr.mxu0 0.0
        %3427 = vmatpush1.msra.mxu0 %v3409
        %3428 = vmatprep.subr.mxu0 0.0
        %3429 = vmatpush1.msra.mxu0 %v3408
        %3430 = vmatprep.subr.mxu0 0.0
        %3431 = vmatpush1.msra.mxu0 %v3407
        %3432 = vmatprep.subr.mxu0 0.0
        %3433 = vmatpush1.msra.mxu0 %v3406
        %3434 = vmatprep.subr.mxu0 0.0
        %3435 = vmatpush1.msra.mxu0 %v3405
        %3436 = vmatprep.subr.mxu0 0.0
        %3437 = vmatpush1.msra.mxu0 %v3404
        %3438 = vmatprep.subr.mxu0 0.0
        %3439 = vmatpush1.msra.mxu0 %v3403
        %3440 = vmatprep.subr.mxu0 0.0
        %3441 = vmatpush1.msra.mxu0 %v3402
        %3442 = vmatprep.subr.mxu0 0.0
        %3443 = vmatpush1.msra.mxu0 %v3401
        %3444 = vmatprep.subr.mxu0 0.0
        %3445 = vmatpush1.msra.mxu0 %v3400
        %3446 = vmatprep.subr.mxu0 0.0
        %3447 = vmatpush1.msra.mxu0 %v3399
        %3448 = vmatprep.subr.mxu0 0.0
        %3449 = vmatpush1.msra.mxu0 %v3398
        %3450 = vmatprep.subr.mxu0 0.0
        %3451 = vmatpush1.msra.mxu0 %v3397
        %3452 = vmatprep.subr.mxu0 0.0
        %3453 = vmatpush1.msra.mxu0 %v3396
        %3454 = vmatprep.subr.mxu0 0.0
        %3455 = vmatpush1.msra.mxu0 %v3395
        %3456 = vmatprep.subr.mxu0 0.0
        %3457 = vmatpush1.msra.mxu0 %v3394
        %3458 = vmatprep.subr.mxu0 0.0
        %3459 = vmatpush2.msra.mxu0 %v3425
        %3460 = vmatprep.subr.mxu0 0.0
        %3461 = vmatpush2.msra.mxu0 %v3424
        %3462 = vmatprep.subr.mxu0 0.0
        %3463 = vmatpush2.msra.mxu0 %v3423
        %3464 = vmatprep.subr.mxu0 0.0
        %3465 = vmatpush2.msra.mxu0 %v3422
        %3466 = vmatprep.subr.mxu0 0.0
        %3467 = vmatpush2.msra.mxu0 %v3421
        %3468 = vmatprep.subr.mxu0 0.0
        %3469 = vmatpush2.msra.mxu0 %v3420
        %3470 = vmatprep.subr.mxu0 0.0
        %3471 = vmatpush2.msra.mxu0 %v3419
        %3472 = vmatprep.subr.mxu0 0.0
        %3473 = vmatpush2.msra.mxu0 %v3418
        %3474 = vmatprep.subr.mxu0 0.0
        %3475 = vmatpush2.msra.mxu0 %v3417
        %3476 = vmatprep.subr.mxu0 0.0
        %3477 = vmatpush2.msra.mxu0 %v3416
        %3478 = vmatprep.subr.mxu0 0.0
        %3479 = vmatpush2.msra.mxu0 %v3415
        %3480 = vmatprep.subr.mxu0 0.0
        %3481 = vmatpush2.msra.mxu0 %v3414
        %3482 = vmatprep.subr.mxu0 0.0
        %3483 = vmatpush2.msra.mxu0 %v3413
        %3484 = vmatprep.subr.mxu0 0.0
        %3485 = vmatpush2.msra.mxu0 %v3412
        %3486 = vmatprep.subr.mxu0 0.0
        %3487 = vmatpush2.msra.mxu0 %v3411
        %3488 = vmatprep.subr.mxu0 0.0
        %3489 = vmatpush2.msra.mxu0 %v3410
        %3490 = vmatprep.mubr.f32.mxu0 %v3270
        %3491 = vmatmul.mubr.f32.gmra.mxu0 %v3267
        %v3492 = vpop.f32.mrf.mxu0
        %v3493 = vadd.f32 0.0, %v3492
        %v3494 = vpop.f32.mrf.mxu0
        %3495 = vmatprep.mubr.f32.mxu0 %v3276
        %3496 = vmatmul.mubr.f32.gmra.mxu0 %v3273
        %v3497 = vpop.f32.mrf.mxu0
        %v3498 = vadd.f32 0.0, %v3497
        %v3499 = vpop.f32.mrf.mxu0
        %3500 = vmatprep.mubr.f32.mxu0 %v3282
        %3501 = vmatmul.mubr.f32.gmra.mxu0 %v3279
        %v3502 = vpop.f32.mrf.mxu0
        %v3503 = vadd.f32 0.0, %v3502
        %v3504 = vpop.f32.mrf.mxu0
        %3505 = vmatprep.mubr.f32.mxu0 %v3288
        %3506 = vmatmul.mubr.f32.gmra.mxu0 %v3285
        %v3507 = vpop.f32.mrf.mxu0
        %v3508 = vadd.f32 0.0, %v3507
        %v3509 = vpop.f32.mrf.mxu0
        %3510 = vmatprep.mubr.f32.mxu0 %v3294
        %3511 = vmatmul.mubr.f32.gmra.mxu0 %v3291
        %v3512 = vpop.f32.mrf.mxu0
        %v3513 = vadd.f32 0.0, %v3512
        %v3514 = vpop.f32.mrf.mxu0
        %3515 = vmatprep.mubr.f32.mxu0 %v3300
        %3516 = vmatmul.mubr.f32.gmra.mxu0 %v3297
        %v3517 = vpop.f32.mrf.mxu0
        %v3518 = vadd.f32 0.0, %v3517
        %v3519 = vpop.f32.mrf.mxu0
        %3520 = vmatprep.mubr.f32.mxu0 %v3306
        %3521 = vmatmul.mubr.f32.gmra.mxu0 %v3303
        %v3522 = vpop.f32.mrf.mxu0
        %v3523 = vadd.f32 0.0, %v3522
        %v3524 = vpop.f32.mrf.mxu0
        %3525 = vmatprep.mubr.f32.mxu0 %v3312
        %3526 = vmatmul.mubr.f32.gmra.mxu0 %v3309
        %v3527 = vpop.f32.mrf.mxu0
        %v3528 = vadd.f32 0.0, %v3527
        %v3529 = vpop.f32.mrf.mxu0
        %3530 = vmatprep.mubr.f32.mxu0 %v3318
        %3531 = vmatmul.mubr.f32.gmra.mxu0 %v3315
        %v3532 = vpop.f32.mrf.mxu0
        %v3533 = vadd.f32 0.0, %v3532
        %v3534 = vpop.f32.mrf.mxu0
        %3535 = vmatprep.mubr.f32.mxu0 %v3324
        %3536 = vmatmul.mubr.f32.gmra.mxu0 %v3321
        %v3537 = vpop.f32.mrf.mxu0
        %v3538 = vadd.f32 0.0, %v3537
        %v3539 = vpop.f32.mrf.mxu0
        %3540 = vmatprep.mubr.f32.mxu0 %v3330
        %3541 = vmatmul.mubr.f32.gmra.mxu0 %v3327
        %v3542 = vpop.f32.mrf.mxu0
        %v3543 = vadd.f32 0.0, %v3542
        %v3544 = vpop.f32.mrf.mxu0
        %3545 = vmatprep.mubr.f32.mxu0 %v3336
        %3546 = vmatmul.mubr.f32.gmra.mxu0 %v3333
        %v3547 = vpop.f32.mrf.mxu0
        %v3548 = vadd.f32 0.0, %v3547
        %v3549 = vpop.f32.mrf.mxu0
        %3550 = vmatprep.mubr.f32.mxu0 %v3342
        %3551 = vmatmul.mubr.f32.gmra.mxu0 %v3339
        %v3552 = vpop.f32.mrf.mxu0
        %v3553 = vadd.f32 0.0, %v3552
        %v3554 = vpop.f32.mrf.mxu0
        %3555 = vmatprep.mubr.f32.mxu0 %v3348
        %3556 = vmatmul.mubr.f32.gmra.mxu0 %v3345
        %v3557 = vpop.f32.mrf.mxu0
        %v3558 = vadd.f32 0.0, %v3557
        %v3559 = vpop.f32.mrf.mxu0
        %3560 = vmatprep.mubr.f32.mxu0 %v3354
        %3561 = vmatmul.mubr.f32.gmra.mxu0 %v3351
        %v3562 = vpop.f32.mrf.mxu0
        %v3563 = vadd.f32 0.0, %v3562
        %v3564 = vpop.f32.mrf.mxu0
        %3565 = vmatprep.mubr.f32.mxu0 %v3360
        %3566 = vmatmul.mubr.f32.gmra.mxu0 %v3357
        %v3567 = vpop.f32.mrf.mxu0
        %v3568 = vadd.f32 0.0, %v3567
        %v3569 = vpop.f32.mrf.mxu0
        %3570 = vdwg.mxu0
        %v3571 = vadd.f32 %v3120, %v3493
        %v3572 = vadd.f32 %v3121, %v3498
        %v3573 = vadd.f32 %v3122, %v3503
        %v3574 = vadd.f32 %v3123, %v3508
        %v3575 = vadd.f32 %v3124, %v3513
        %v3576 = vadd.f32 %v3125, %v3518
        %v3577 = vadd.f32 %v3126, %v3523
        %v3578 = vadd.f32 %v3127, %v3528
        %v3579 = vadd.f32 %v3128, %v3533
        %v3580 = vadd.f32 %v3129, %v3538
        %v3581 = vadd.f32 %v3130, %v3543
        %v3582 = vadd.f32 %v3131, %v3548
        %v3583 = vadd.f32 %v3132, %v3553
        %v3584 = vadd.f32 %v3133, %v3558
        %v3585 = vadd.f32 %v3134, %v3563
        %v3586 = vadd.f32 %v3135, %v3568
        %v3587 = vld [vmem:[%s3136 + $0x10] sm:$0xff]
        %v3588 = vld [vmem:[%s3136 + $0x18] sm:$0xff]
        %v3589 = vld [vmem:[%s3136 + $0x40] sm:$0xff]
        %v3590 = vld [vmem:[%s3136 + $0x48] sm:$0xff]
        %v3591 = vld [vmem:[%s3136 + $0x70] sm:$0xff]
        %v3592 = vld [vmem:[%s3136 + $0x78] sm:$0xff]
        %v3593 = vld [vmem:[%s3136 + $0xa0] sm:$0xff]
        %v3594 = vld [vmem:[%s3136 + $0xa8] sm:$0xff]
        %v3595 = vld [vmem:[%s3136 + $0xd0] sm:$0xff]
        %v3596 = vld [vmem:[%s3136 + $0xd8] sm:$0xff]
        %v3597 = vld [vmem:[%s3136 + $0x100] sm:$0xff]
        %v3598 = vld [vmem:[%s3136 + $0x108] sm:$0xff]
        %v3599 = vld [vmem:[%s3136 + $0x130] sm:$0xff]
        %v3600 = vld [vmem:[%s3136 + $0x138] sm:$0xff]
        %v3601 = vld [vmem:[%s3136 + $0x160] sm:$0xff]
        %v3602 = vld [vmem:[%s3136 + $0x168] sm:$0xff]
        %v3603 = vld [vmem:[%s3136 + $0x190] sm:$0xff]
        %v3604 = vld [vmem:[%s3136 + $0x198] sm:$0xff]
        %v3605 = vld [vmem:[%s3136 + $0x1c0] sm:$0xff]
        %v3606 = vld [vmem:[%s3136 + $0x1c8] sm:$0xff]
        %v3607 = vld [vmem:[%s3136 + $0x1f0] sm:$0xff]
        %v3608 = vld [vmem:[%s3136 + $0x1f8] sm:$0xff]
        %v3609 = vld [vmem:[%s3136 + $0x220] sm:$0xff]
        %v3610 = vld [vmem:[%s3136 + $0x228] sm:$0xff]
        %v3611 = vld [vmem:[%s3136 + $0x250] sm:$0xff]
        %v3612 = vld [vmem:[%s3136 + $0x258] sm:$0xff]
        %v3613 = vld [vmem:[%s3136 + $0x280] sm:$0xff]
        %v3614 = vld [vmem:[%s3136 + $0x288] sm:$0xff]
        %v3615 = vld [vmem:[%s3136 + $0x2b0] sm:$0xff]
        %v3616 = vld [vmem:[%s3136 + $0x2b8] sm:$0xff]
        %v3617 = vld [vmem:[%s3136 + $0x2e0] sm:$0xff]
        %v3618 = vld [vmem:[%s3136 + $0x2e8] sm:$0xff]
        %s3619 = scalar_lea.vmem [#allocation12], 1792
        %v3620 = vld [vmem:[%s3619] sm:$0xff]
        %v3621 = vld [vmem:[%s3619 + $0x8] sm:$0xff]
        %v3622 = vld [vmem:[%s3619 + $0x10] sm:$0xff]
        %v3623 = vld [vmem:[%s3619 + $0x18] sm:$0xff]
        %v3624 = vld [vmem:[%s3619 + $0x20] sm:$0xff]
        %v3625 = vld [vmem:[%s3619 + $0x28] sm:$0xff]
        %v3626 = vld [vmem:[%s3619 + $0x30] sm:$0xff]
        %v3627 = vld [vmem:[%s3619 + $0x38] sm:$0xff]
        %v3628 = vld [vmem:[%s3619 + $0x40] sm:$0xff]
        %v3629 = vld [vmem:[%s3619 + $0x48] sm:$0xff]
        %v3630 = vld [vmem:[%s3619 + $0x50] sm:$0xff]
        %v3631 = vld [vmem:[%s3619 + $0x58] sm:$0xff]
        %v3632 = vld [vmem:[%s3619 + $0x60] sm:$0xff]
        %v3633 = vld [vmem:[%s3619 + $0x68] sm:$0xff]
        %v3634 = vld [vmem:[%s3619 + $0x70] sm:$0xff]
        %v3635 = vld [vmem:[%s3619 + $0x78] sm:$0xff]
        %v3636 = vld [vmem:[%s3619 + $0x80] sm:$0xff]
        %v3637 = vld [vmem:[%s3619 + $0x88] sm:$0xff]
        %v3638 = vld [vmem:[%s3619 + $0x90] sm:$0xff]
        %v3639 = vld [vmem:[%s3619 + $0x98] sm:$0xff]
        %v3640 = vld [vmem:[%s3619 + $0xa0] sm:$0xff]
        %v3641 = vld [vmem:[%s3619 + $0xa8] sm:$0xff]
        %v3642 = vld [vmem:[%s3619 + $0xb0] sm:$0xff]
        %v3643 = vld [vmem:[%s3619 + $0xb8] sm:$0xff]
        %v3644 = vld [vmem:[%s3619 + $0xc0] sm:$0xff]
        %v3645 = vld [vmem:[%s3619 + $0xc8] sm:$0xff]
        %v3646 = vld [vmem:[%s3619 + $0xd0] sm:$0xff]
        %v3647 = vld [vmem:[%s3619 + $0xd8] sm:$0xff]
        %v3648 = vld [vmem:[%s3619 + $0xe0] sm:$0xff]
        %v3649 = vld [vmem:[%s3619 + $0xe8] sm:$0xff]
        %v3650 = vld [vmem:[%s3619 + $0xf0] sm:$0xff]
        %v3651 = vld [vmem:[%s3619 + $0xf8] sm:$0xff]
        %3652 = vmatprep.subr.mxu0 0.0
        %3653 = vmatpush1.msra.mxu0 %v3635
        %3654 = vmatprep.subr.mxu0 0.0
        %3655 = vmatpush1.msra.mxu0 %v3634
        %3656 = vmatprep.subr.mxu0 0.0
        %3657 = vmatpush1.msra.mxu0 %v3633
        %3658 = vmatprep.subr.mxu0 0.0
        %3659 = vmatpush1.msra.mxu0 %v3632
        %3660 = vmatprep.subr.mxu0 0.0
        %3661 = vmatpush1.msra.mxu0 %v3631
        %3662 = vmatprep.subr.mxu0 0.0
        %3663 = vmatpush1.msra.mxu0 %v3630
        %3664 = vmatprep.subr.mxu0 0.0
        %3665 = vmatpush1.msra.mxu0 %v3629
        %3666 = vmatprep.subr.mxu0 0.0
        %3667 = vmatpush1.msra.mxu0 %v3628
        %3668 = vmatprep.subr.mxu0 0.0
        %3669 = vmatpush1.msra.mxu0 %v3627
        %3670 = vmatprep.subr.mxu0 0.0
        %3671 = vmatpush1.msra.mxu0 %v3626
        %3672 = vmatprep.subr.mxu0 0.0
        %3673 = vmatpush1.msra.mxu0 %v3625
        %3674 = vmatprep.subr.mxu0 0.0
        %3675 = vmatpush1.msra.mxu0 %v3624
        %3676 = vmatprep.subr.mxu0 0.0
        %3677 = vmatpush1.msra.mxu0 %v3623
        %3678 = vmatprep.subr.mxu0 0.0
        %3679 = vmatpush1.msra.mxu0 %v3622
        %3680 = vmatprep.subr.mxu0 0.0
        %3681 = vmatpush1.msra.mxu0 %v3621
        %3682 = vmatprep.subr.mxu0 0.0
        %3683 = vmatpush1.msra.mxu0 %v3620
        %3684 = vmatprep.subr.mxu0 0.0
        %3685 = vmatpush2.msra.mxu0 %v3651
        %3686 = vmatprep.subr.mxu0 0.0
        %3687 = vmatpush2.msra.mxu0 %v3650
        %3688 = vmatprep.subr.mxu0 0.0
        %3689 = vmatpush2.msra.mxu0 %v3649
        %3690 = vmatprep.subr.mxu0 0.0
        %3691 = vmatpush2.msra.mxu0 %v3648
        %3692 = vmatprep.subr.mxu0 0.0
        %3693 = vmatpush2.msra.mxu0 %v3647
        %3694 = vmatprep.subr.mxu0 0.0
        %3695 = vmatpush2.msra.mxu0 %v3646
        %3696 = vmatprep.subr.mxu0 0.0
        %3697 = vmatpush2.msra.mxu0 %v3645
        %3698 = vmatprep.subr.mxu0 0.0
        %3699 = vmatpush2.msra.mxu0 %v3644
        %3700 = vmatprep.subr.mxu0 0.0
        %3701 = vmatpush2.msra.mxu0 %v3643
        %3702 = vmatprep.subr.mxu0 0.0
        %3703 = vmatpush2.msra.mxu0 %v3642
        %3704 = vmatprep.subr.mxu0 0.0
        %3705 = vmatpush2.msra.mxu0 %v3641
        %3706 = vmatprep.subr.mxu0 0.0
        %3707 = vmatpush2.msra.mxu0 %v3640
        %3708 = vmatprep.subr.mxu0 0.0
        %3709 = vmatpush2.msra.mxu0 %v3639
        %3710 = vmatprep.subr.mxu0 0.0
        %3711 = vmatpush2.msra.mxu0 %v3638
        %3712 = vmatprep.subr.mxu0 0.0
        %3713 = vmatpush2.msra.mxu0 %v3637
        %3714 = vmatprep.subr.mxu0 0.0
        %3715 = vmatpush2.msra.mxu0 %v3636
        %3716 = vmatprep.mubr.f32.mxu0 %v3588
        %3717 = vmatmul.mubr.f32.gmra.mxu0 %v3587
        %v3718 = vpop.f32.mrf.mxu0
        %v3719 = vadd.f32 0.0, %v3718
        %v3720 = vpop.f32.mrf.mxu0
        %3721 = vmatprep.mubr.f32.mxu0 %v3590
        %3722 = vmatmul.mubr.f32.gmra.mxu0 %v3589
        %v3723 = vpop.f32.mrf.mxu0
        %v3724 = vadd.f32 0.0, %v3723
        %v3725 = vpop.f32.mrf.mxu0
        %3726 = vmatprep.mubr.f32.mxu0 %v3592
        %3727 = vmatmul.mubr.f32.gmra.mxu0 %v3591
        %v3728 = vpop.f32.mrf.mxu0
        %v3729 = vadd.f32 0.0, %v3728
        %v3730 = vpop.f32.mrf.mxu0
        %3731 = vmatprep.mubr.f32.mxu0 %v3594
        %3732 = vmatmul.mubr.f32.gmra.mxu0 %v3593
        %v3733 = vpop.f32.mrf.mxu0
        %v3734 = vadd.f32 0.0, %v3733
        %v3735 = vpop.f32.mrf.mxu0
        %3736 = vmatprep.mubr.f32.mxu0 %v3596
        %3737 = vmatmul.mubr.f32.gmra.mxu0 %v3595
        %v3738 = vpop.f32.mrf.mxu0
        %v3739 = vadd.f32 0.0, %v3738
        %v3740 = vpop.f32.mrf.mxu0
        %3741 = vmatprep.mubr.f32.mxu0 %v3598
        %3742 = vmatmul.mubr.f32.gmra.mxu0 %v3597
        %v3743 = vpop.f32.mrf.mxu0
        %v3744 = vadd.f32 0.0, %v3743
        %v3745 = vpop.f32.mrf.mxu0
        %3746 = vmatprep.mubr.f32.mxu0 %v3600
        %3747 = vmatmul.mubr.f32.gmra.mxu0 %v3599
        %v3748 = vpop.f32.mrf.mxu0
        %v3749 = vadd.f32 0.0, %v3748
        %v3750 = vpop.f32.mrf.mxu0
        %3751 = vmatprep.mubr.f32.mxu0 %v3602
        %3752 = vmatmul.mubr.f32.gmra.mxu0 %v3601
        %v3753 = vpop.f32.mrf.mxu0
        %v3754 = vadd.f32 0.0, %v3753
        %v3755 = vpop.f32.mrf.mxu0
        %3756 = vmatprep.mubr.f32.mxu0 %v3604
        %3757 = vmatmul.mubr.f32.gmra.mxu0 %v3603
        %v3758 = vpop.f32.mrf.mxu0
        %v3759 = vadd.f32 0.0, %v3758
        %v3760 = vpop.f32.mrf.mxu0
        %3761 = vmatprep.mubr.f32.mxu0 %v3606
        %3762 = vmatmul.mubr.f32.gmra.mxu0 %v3605
        %v3763 = vpop.f32.mrf.mxu0
        %v3764 = vadd.f32 0.0, %v3763
        %v3765 = vpop.f32.mrf.mxu0
        %3766 = vmatprep.mubr.f32.mxu0 %v3608
        %3767 = vmatmul.mubr.f32.gmra.mxu0 %v3607
        %v3768 = vpop.f32.mrf.mxu0
        %v3769 = vadd.f32 0.0, %v3768
        %v3770 = vpop.f32.mrf.mxu0
        %3771 = vmatprep.mubr.f32.mxu0 %v3610
        %3772 = vmatmul.mubr.f32.gmra.mxu0 %v3609
        %v3773 = vpop.f32.mrf.mxu0
        %v3774 = vadd.f32 0.0, %v3773
        %v3775 = vpop.f32.mrf.mxu0
        %3776 = vmatprep.mubr.f32.mxu0 %v3612
        %3777 = vmatmul.mubr.f32.gmra.mxu0 %v3611
        %v3778 = vpop.f32.mrf.mxu0
        %v3779 = vadd.f32 0.0, %v3778
        %v3780 = vpop.f32.mrf.mxu0
        %3781 = vmatprep.mubr.f32.mxu0 %v3614
        %3782 = vmatmul.mubr.f32.gmra.mxu0 %v3613
        %v3783 = vpop.f32.mrf.mxu0
        %v3784 = vadd.f32 0.0, %v3783
        %v3785 = vpop.f32.mrf.mxu0
        %3786 = vmatprep.mubr.f32.mxu0 %v3616
        %3787 = vmatmul.mubr.f32.gmra.mxu0 %v3615
        %v3788 = vpop.f32.mrf.mxu0
        %v3789 = vadd.f32 0.0, %v3788
        %v3790 = vpop.f32.mrf.mxu0
        %3791 = vmatprep.mubr.f32.mxu0 %v3618
        %3792 = vmatmul.mubr.f32.gmra.mxu0 %v3617
        %v3793 = vpop.f32.mrf.mxu0
        %v3794 = vadd.f32 0.0, %v3793
        %v3795 = vpop.f32.mrf.mxu0
        %3796 = vdwg.mxu0
        %v3797 = vadd.f32 %v3571, %v3719
        %v3798 = vadd.f32 %v3572, %v3724
        %v3799 = vadd.f32 %v3573, %v3729
        %v3800 = vadd.f32 %v3574, %v3734
        %v3801 = vadd.f32 %v3575, %v3739
        %v3802 = vadd.f32 %v3576, %v3744
        %v3803 = vadd.f32 %v3577, %v3749
        %v3804 = vadd.f32 %v3578, %v3754
        %v3805 = vadd.f32 %v3579, %v3759
        %v3806 = vadd.f32 %v3580, %v3764
        %v3807 = vadd.f32 %v3581, %v3769
        %v3808 = vadd.f32 %v3582, %v3774
        %v3809 = vadd.f32 %v3583, %v3779
        %v3810 = vadd.f32 %v3584, %v3784
        %v3811 = vadd.f32 %v3585, %v3789
        %v3812 = vadd.f32 %v3586, %v3794
        %v3813 = vld [vmem:[%s3136 + $0x10] sm:$0xfe]
        %v3814 = vld [vmem:[%s3136 + $0x18] sm:$0xfe]
        %v3815 = vld [vmem:[%s3136 + $0x20] sm:$0x1]
        %v3816 = vld [vmem:[%s3136 + $0x28] sm:$0x1]
        %v3817 = vld [vmem:[%s3136 + $0x40] sm:$0xfe]
        %v3818 = vld [vmem:[%s3136 + $0x48] sm:$0xfe]
        %v3819 = vld [vmem:[%s3136 + $0x50] sm:$0x1]
        %v3820 = vld [vmem:[%s3136 + $0x58] sm:$0x1]
        %v3821 = vld [vmem:[%s3136 + $0x70] sm:$0xfe]
        %v3822 = vld [vmem:[%s3136 + $0x78] sm:$0xfe]
        %v3823 = vld [vmem:[%s3136 + $0x80] sm:$0x1]
        %v3824 = vld [vmem:[%s3136 + $0x88] sm:$0x1]
        %v3825 = vld [vmem:[%s3136 + $0xa0] sm:$0xfe]
        %v3826 = vld [vmem:[%s3136 + $0xa8] sm:$0xfe]
        %v3827 = vld [vmem:[%s3136 + $0xb0] sm:$0x1]
        %v3828 = vld [vmem:[%s3136 + $0xb8] sm:$0x1]
        %v3829 = vld [vmem:[%s3136 + $0xd0] sm:$0xfe]
        %v3830 = vld [vmem:[%s3136 + $0xd8] sm:$0xfe]
        %v3831 = vld [vmem:[%s3136 + $0xe0] sm:$0x1]
        %v3832 = vld [vmem:[%s3136 + $0xe8] sm:$0x1]
        %v3833 = vld [vmem:[%s3136 + $0x100] sm:$0xfe]
        %v3834 = vld [vmem:[%s3136 + $0x108] sm:$0xfe]
        %v3835 = vld [vmem:[%s3136 + $0x110] sm:$0x1]
        %v3836 = vld [vmem:[%s3136 + $0x118] sm:$0x1]
        %v3837 = vld [vmem:[%s3136 + $0x130] sm:$0xfe]
        %v3838 = vld [vmem:[%s3136 + $0x138] sm:$0xfe]
        %v3839 = vld [vmem:[%s3136 + $0x140] sm:$0x1]
        %v3840 = vld [vmem:[%s3136 + $0x148] sm:$0x1]
        %v3841 = vld [vmem:[%s3136 + $0x160] sm:$0xfe]
        %v3842 = vld [vmem:[%s3136 + $0x168] sm:$0xfe]
        %v3843 = vld [vmem:[%s3136 + $0x170] sm:$0x1]
        %v3844 = vld [vmem:[%s3136 + $0x178] sm:$0x1]
        %v3845 = vld [vmem:[%s3136 + $0x190] sm:$0xfe]
        %v3846 = vld [vmem:[%s3136 + $0x198] sm:$0xfe]
        %v3847 = vld [vmem:[%s3136 + $0x1a0] sm:$0x1]
        %v3848 = vld [vmem:[%s3136 + $0x1a8] sm:$0x1]
        %v3849 = vld [vmem:[%s3136 + $0x1c0] sm:$0xfe]
        %v3850 = vld [vmem:[%s3136 + $0x1c8] sm:$0xfe]
        %v3851 = vld [vmem:[%s3136 + $0x1d0] sm:$0x1]
        %v3852 = vld [vmem:[%s3136 + $0x1d8] sm:$0x1]
        %v3853 = vld [vmem:[%s3136 + $0x1f0] sm:$0xfe]
        %v3854 = vld [vmem:[%s3136 + $0x1f8] sm:$0xfe]
        %v3855 = vld [vmem:[%s3136 + $0x200] sm:$0x1]
        %v3856 = vld [vmem:[%s3136 + $0x208] sm:$0x1]
        %v3857 = vld [vmem:[%s3136 + $0x220] sm:$0xfe]
        %v3858 = vld [vmem:[%s3136 + $0x228] sm:$0xfe]
        %v3859 = vld [vmem:[%s3136 + $0x230] sm:$0x1]
        %v3860 = vld [vmem:[%s3136 + $0x238] sm:$0x1]
        %v3861 = vld [vmem:[%s3136 + $0x250] sm:$0xfe]
        %v3862 = vld [vmem:[%s3136 + $0x258] sm:$0xfe]
        %v3863 = vld [vmem:[%s3136 + $0x260] sm:$0x1]
        %v3864 = vld [vmem:[%s3136 + $0x268] sm:$0x1]
        %v3865 = vld [vmem:[%s3136 + $0x280] sm:$0xfe]
        %v3866 = vld [vmem:[%s3136 + $0x288] sm:$0xfe]
        %v3867 = vld [vmem:[%s3136 + $0x290] sm:$0x1]
        %v3868 = vld [vmem:[%s3136 + $0x298] sm:$0x1]
        %v3869 = vld [vmem:[%s3136 + $0x2b0] sm:$0xfe]
        %v3870 = vld [vmem:[%s3136 + $0x2b8] sm:$0xfe]
        %v3871 = vld [vmem:[%s3136 + $0x2c0] sm:$0x1]
        %v3872 = vld [vmem:[%s3136 + $0x2c8] sm:$0x1]
        %v3873 = vld [vmem:[%s3136 + $0x2e0] sm:$0xfe]
        %v3874 = vld [vmem:[%s3136 + $0x2e8] sm:$0xfe]
        %v3875 = vld [vmem:[%s3136 + $0x2f0] sm:$0x1]
        %v3876 = vld [vmem:[%s3136 + $0x2f8] sm:$0x1]
        %v3941 = vrot.slane %v3813, 1
        %v3942 = vrot.slane %v3815, 1
        %v3943 = vsel %vm1687, %v3941, %v3942
        %v3944 = vrot.slane %v3814, 1
        %v3945 = vrot.slane %v3816, 1
        %v3946 = vsel %vm1687, %v3944, %v3945
        %v3947 = vrot.slane %v3817, 1
        %v3948 = vrot.slane %v3819, 1
        %v3949 = vsel %vm1687, %v3947, %v3948
        %v3950 = vrot.slane %v3818, 1
        %v3951 = vrot.slane %v3820, 1
        %v3952 = vsel %vm1687, %v3950, %v3951
        %v3953 = vrot.slane %v3821, 1
        %v3954 = vrot.slane %v3823, 1
        %v3955 = vsel %vm1687, %v3953, %v3954
        %v3956 = vrot.slane %v3822, 1
        %v3957 = vrot.slane %v3824, 1
        %v3958 = vsel %vm1687, %v3956, %v3957
        %v3959 = vrot.slane %v3825, 1
        %v3960 = vrot.slane %v3827, 1
        %v3961 = vsel %vm1687, %v3959, %v3960
        %v3962 = vrot.slane %v3826, 1
        %v3963 = vrot.slane %v3828, 1
        %v3964 = vsel %vm1687, %v3962, %v3963
        %v3965 = vrot.slane %v3829, 1
        %v3966 = vrot.slane %v3831, 1
        %v3967 = vsel %vm1687, %v3965, %v3966
        %v3968 = vrot.slane %v3830, 1
        %v3969 = vrot.slane %v3832, 1
        %v3970 = vsel %vm1687, %v3968, %v3969
        %v3971 = vrot.slane %v3833, 1
        %v3972 = vrot.slane %v3835, 1
        %v3973 = vsel %vm1687, %v3971, %v3972
        %v3974 = vrot.slane %v3834, 1
        %v3975 = vrot.slane %v3836, 1
        %v3976 = vsel %vm1687, %v3974, %v3975
        %v3977 = vrot.slane %v3837, 1
        %v3978 = vrot.slane %v3839, 1
        %v3979 = vsel %vm1687, %v3977, %v3978
        %v3980 = vrot.slane %v3838, 1
        %v3981 = vrot.slane %v3840, 1
        %v3982 = vsel %vm1687, %v3980, %v3981
        %v3983 = vrot.slane %v3841, 1
        %v3984 = vrot.slane %v3843, 1
        %v3985 = vsel %vm1687, %v3983, %v3984
        %v3986 = vrot.slane %v3842, 1
        %v3987 = vrot.slane %v3844, 1
        %v3988 = vsel %vm1687, %v3986, %v3987
        %v3989 = vrot.slane %v3845, 1
        %v3990 = vrot.slane %v3847, 1
        %v3991 = vsel %vm1687, %v3989, %v3990
        %v3992 = vrot.slane %v3846, 1
        %v3993 = vrot.slane %v3848, 1
        %v3994 = vsel %vm1687, %v3992, %v3993
        %v3995 = vrot.slane %v3849, 1
        %v3996 = vrot.slane %v3851, 1
        %v3997 = vsel %vm1687, %v3995, %v3996
        %v3998 = vrot.slane %v3850, 1
        %v3999 = vrot.slane %v3852, 1
        %v4000 = vsel %vm1687, %v3998, %v3999
        %v4001 = vrot.slane %v3853, 1
        %v4002 = vrot.slane %v3855, 1
        %v4003 = vsel %vm1687, %v4001, %v4002
        %v4004 = vrot.slane %v3854, 1
        %v4005 = vrot.slane %v3856, 1
        %v4006 = vsel %vm1687, %v4004, %v4005
        %v4007 = vrot.slane %v3857, 1
        %v4008 = vrot.slane %v3859, 1
        %v4009 = vsel %vm1687, %v4007, %v4008
        %v4010 = vrot.slane %v3858, 1
        %v4011 = vrot.slane %v3860, 1
        %v4012 = vsel %vm1687, %v4010, %v4011
        %v4013 = vrot.slane %v3861, 1
        %v4014 = vrot.slane %v3863, 1
        %v4015 = vsel %vm1687, %v4013, %v4014
        %v4016 = vrot.slane %v3862, 1
        %v4017 = vrot.slane %v3864, 1
        %v4018 = vsel %vm1687, %v4016, %v4017
        %v4019 = vrot.slane %v3865, 1
        %v4020 = vrot.slane %v3867, 1
        %v4021 = vsel %vm1687, %v4019, %v4020
        %v4022 = vrot.slane %v3866, 1
        %v4023 = vrot.slane %v3868, 1
        %v4024 = vsel %vm1687, %v4022, %v4023
        %v4025 = vrot.slane %v3869, 1
        %v4026 = vrot.slane %v3871, 1
        %v4027 = vsel %vm1687, %v4025, %v4026
        %v4028 = vrot.slane %v3870, 1
        %v4029 = vrot.slane %v3872, 1
        %v4030 = vsel %vm1687, %v4028, %v4029
        %v4031 = vrot.slane %v3873, 1
        %v4032 = vrot.slane %v3875, 1
        %v4033 = vsel %vm1687, %v4031, %v4032
        %v4034 = vrot.slane %v3874, 1
        %v4035 = vrot.slane %v3876, 1
        %v4036 = vsel %vm1687, %v4034, %v4035
        %s4069 = scalar_lea.vmem [#allocation12], 2048
        %v4070 = vld [vmem:[%s4069] sm:$0xff]
        %v4071 = vld [vmem:[%s4069 + $0x8] sm:$0xff]
        %v4072 = vld [vmem:[%s4069 + $0x10] sm:$0xff]
        %v4073 = vld [vmem:[%s4069 + $0x18] sm:$0xff]
        %v4074 = vld [vmem:[%s4069 + $0x20] sm:$0xff]
        %v4075 = vld [vmem:[%s4069 + $0x28] sm:$0xff]
        %v4076 = vld [vmem:[%s4069 + $0x30] sm:$0xff]
        %v4077 = vld [vmem:[%s4069 + $0x38] sm:$0xff]
        %v4078 = vld [vmem:[%s4069 + $0x40] sm:$0xff]
        %v4079 = vld [vmem:[%s4069 + $0x48] sm:$0xff]
        %v4080 = vld [vmem:[%s4069 + $0x50] sm:$0xff]
        %v4081 = vld [vmem:[%s4069 + $0x58] sm:$0xff]
        %v4082 = vld [vmem:[%s4069 + $0x60] sm:$0xff]
        %v4083 = vld [vmem:[%s4069 + $0x68] sm:$0xff]
        %v4084 = vld [vmem:[%s4069 + $0x70] sm:$0xff]
        %v4085 = vld [vmem:[%s4069 + $0x78] sm:$0xff]
        %v4086 = vld [vmem:[%s4069 + $0x80] sm:$0xff]
        %v4087 = vld [vmem:[%s4069 + $0x88] sm:$0xff]
        %v4088 = vld [vmem:[%s4069 + $0x90] sm:$0xff]
        %v4089 = vld [vmem:[%s4069 + $0x98] sm:$0xff]
        %v4090 = vld [vmem:[%s4069 + $0xa0] sm:$0xff]
        %v4091 = vld [vmem:[%s4069 + $0xa8] sm:$0xff]
        %v4092 = vld [vmem:[%s4069 + $0xb0] sm:$0xff]
        %v4093 = vld [vmem:[%s4069 + $0xb8] sm:$0xff]
        %v4094 = vld [vmem:[%s4069 + $0xc0] sm:$0xff]
        %v4095 = vld [vmem:[%s4069 + $0xc8] sm:$0xff]
        %v4096 = vld [vmem:[%s4069 + $0xd0] sm:$0xff]
        %v4097 = vld [vmem:[%s4069 + $0xd8] sm:$0xff]
        %v4098 = vld [vmem:[%s4069 + $0xe0] sm:$0xff]
        %v4099 = vld [vmem:[%s4069 + $0xe8] sm:$0xff]
        %v4100 = vld [vmem:[%s4069 + $0xf0] sm:$0xff]
        %v4101 = vld [vmem:[%s4069 + $0xf8] sm:$0xff]
        %4102 = vmatprep.subr.mxu0 0.0
        %4103 = vmatpush1.msra.mxu0 %v4085
        %4104 = vmatprep.subr.mxu0 0.0
        %4105 = vmatpush1.msra.mxu0 %v4084
        %4106 = vmatprep.subr.mxu0 0.0
        %4107 = vmatpush1.msra.mxu0 %v4083
        %4108 = vmatprep.subr.mxu0 0.0
        %4109 = vmatpush1.msra.mxu0 %v4082
        %4110 = vmatprep.subr.mxu0 0.0
        %4111 = vmatpush1.msra.mxu0 %v4081
        %4112 = vmatprep.subr.mxu0 0.0
        %4113 = vmatpush1.msra.mxu0 %v4080
        %4114 = vmatprep.subr.mxu0 0.0
        %4115 = vmatpush1.msra.mxu0 %v4079
        %4116 = vmatprep.subr.mxu0 0.0
        %4117 = vmatpush1.msra.mxu0 %v4078
        %4118 = vmatprep.subr.mxu0 0.0
        %4119 = vmatpush1.msra.mxu0 %v4077
        %4120 = vmatprep.subr.mxu0 0.0
        %4121 = vmatpush1.msra.mxu0 %v4076
        %4122 = vmatprep.subr.mxu0 0.0
        %4123 = vmatpush1.msra.mxu0 %v4075
        %4124 = vmatprep.subr.mxu0 0.0
        %4125 = vmatpush1.msra.mxu0 %v4074
        %4126 = vmatprep.subr.mxu0 0.0
        %4127 = vmatpush1.msra.mxu0 %v4073
        %4128 = vmatprep.subr.mxu0 0.0
        %4129 = vmatpush1.msra.mxu0 %v4072
        %4130 = vmatprep.subr.mxu0 0.0
        %4131 = vmatpush1.msra.mxu0 %v4071
        %4132 = vmatprep.subr.mxu0 0.0
        %4133 = vmatpush1.msra.mxu0 %v4070
        %4134 = vmatprep.subr.mxu0 0.0
        %4135 = vmatpush2.msra.mxu0 %v4101
        %4136 = vmatprep.subr.mxu0 0.0
        %4137 = vmatpush2.msra.mxu0 %v4100
        %4138 = vmatprep.subr.mxu0 0.0
        %4139 = vmatpush2.msra.mxu0 %v4099
        %4140 = vmatprep.subr.mxu0 0.0
        %4141 = vmatpush2.msra.mxu0 %v4098
        %4142 = vmatprep.subr.mxu0 0.0
        %4143 = vmatpush2.msra.mxu0 %v4097
        %4144 = vmatprep.subr.mxu0 0.0
        %4145 = vmatpush2.msra.mxu0 %v4096
        %4146 = vmatprep.subr.mxu0 0.0
        %4147 = vmatpush2.msra.mxu0 %v4095
        %4148 = vmatprep.subr.mxu0 0.0
        %4149 = vmatpush2.msra.mxu0 %v4094
        %4150 = vmatprep.subr.mxu0 0.0
        %4151 = vmatpush2.msra.mxu0 %v4093
        %4152 = vmatprep.subr.mxu0 0.0
        %4153 = vmatpush2.msra.mxu0 %v4092
        %4154 = vmatprep.subr.mxu0 0.0
        %4155 = vmatpush2.msra.mxu0 %v4091
        %4156 = vmatprep.subr.mxu0 0.0
        %4157 = vmatpush2.msra.mxu0 %v4090
        %4158 = vmatprep.subr.mxu0 0.0
        %4159 = vmatpush2.msra.mxu0 %v4089
        %4160 = vmatprep.subr.mxu0 0.0
        %4161 = vmatpush2.msra.mxu0 %v4088
        %4162 = vmatprep.subr.mxu0 0.0
        %4163 = vmatpush2.msra.mxu0 %v4087
        %4164 = vmatprep.subr.mxu0 0.0
        %4165 = vmatpush2.msra.mxu0 %v4086
        %4166 = vmatprep.mubr.f32.mxu0 %v3946
        %4167 = vmatmul.mubr.f32.gmra.mxu0 %v3943
        %v4168 = vpop.f32.mrf.mxu0
        %v4169 = vadd.f32 0.0, %v4168
        %v4170 = vpop.f32.mrf.mxu0
        %4171 = vmatprep.mubr.f32.mxu0 %v3952
        %4172 = vmatmul.mubr.f32.gmra.mxu0 %v3949
        %v4173 = vpop.f32.mrf.mxu0
        %v4174 = vadd.f32 0.0, %v4173
        %v4175 = vpop.f32.mrf.mxu0
        %4176 = vmatprep.mubr.f32.mxu0 %v3958
        %4177 = vmatmul.mubr.f32.gmra.mxu0 %v3955
        %v4178 = vpop.f32.mrf.mxu0
        %v4179 = vadd.f32 0.0, %v4178
        %v4180 = vpop.f32.mrf.mxu0
        %4181 = vmatprep.mubr.f32.mxu0 %v3964
        %4182 = vmatmul.mubr.f32.gmra.mxu0 %v3961
        %v4183 = vpop.f32.mrf.mxu0
        %v4184 = vadd.f32 0.0, %v4183
        %v4185 = vpop.f32.mrf.mxu0
        %4186 = vmatprep.mubr.f32.mxu0 %v3970
        %4187 = vmatmul.mubr.f32.gmra.mxu0 %v3967
        %v4188 = vpop.f32.mrf.mxu0
        %v4189 = vadd.f32 0.0, %v4188
        %v4190 = vpop.f32.mrf.mxu0
        %4191 = vmatprep.mubr.f32.mxu0 %v3976
        %4192 = vmatmul.mubr.f32.gmra.mxu0 %v3973
        %v4193 = vpop.f32.mrf.mxu0
        %v4194 = vadd.f32 0.0, %v4193
        %v4195 = vpop.f32.mrf.mxu0
        %4196 = vmatprep.mubr.f32.mxu0 %v3982
        %4197 = vmatmul.mubr.f32.gmra.mxu0 %v3979
        %v4198 = vpop.f32.mrf.mxu0
        %v4199 = vadd.f32 0.0, %v4198
        %v4200 = vpop.f32.mrf.mxu0
        %4201 = vmatprep.mubr.f32.mxu0 %v3988
        %4202 = vmatmul.mubr.f32.gmra.mxu0 %v3985
        %v4203 = vpop.f32.mrf.mxu0
        %v4204 = vadd.f32 0.0, %v4203
        %v4205 = vpop.f32.mrf.mxu0
        %4206 = vmatprep.mubr.f32.mxu0 %v3994
        %4207 = vmatmul.mubr.f32.gmra.mxu0 %v3991
        %v4208 = vpop.f32.mrf.mxu0
        %v4209 = vadd.f32 0.0, %v4208
        %v4210 = vpop.f32.mrf.mxu0
        %4211 = vmatprep.mubr.f32.mxu0 %v4000
        %4212 = vmatmul.mubr.f32.gmra.mxu0 %v3997
        %v4213 = vpop.f32.mrf.mxu0
        %v4214 = vadd.f32 0.0, %v4213
        %v4215 = vpop.f32.mrf.mxu0
        %4216 = vmatprep.mubr.f32.mxu0 %v4006
        %4217 = vmatmul.mubr.f32.gmra.mxu0 %v4003
        %v4218 = vpop.f32.mrf.mxu0
        %v4219 = vadd.f32 0.0, %v4218
        %v4220 = vpop.f32.mrf.mxu0
        %4221 = vmatprep.mubr.f32.mxu0 %v4012
        %4222 = vmatmul.mubr.f32.gmra.mxu0 %v4009
        %v4223 = vpop.f32.mrf.mxu0
        %v4224 = vadd.f32 0.0, %v4223
        %v4225 = vpop.f32.mrf.mxu0
        %4226 = vmatprep.mubr.f32.mxu0 %v4018
        %4227 = vmatmul.mubr.f32.gmra.mxu0 %v4015
        %v4228 = vpop.f32.mrf.mxu0
        %v4229 = vadd.f32 0.0, %v4228
        %v4230 = vpop.f32.mrf.mxu0
        %4231 = vmatprep.mubr.f32.mxu0 %v4024
        %4232 = vmatmul.mubr.f32.gmra.mxu0 %v4021
        %v4233 = vpop.f32.mrf.mxu0
        %v4234 = vadd.f32 0.0, %v4233
        %v4235 = vpop.f32.mrf.mxu0
        %4236 = vmatprep.mubr.f32.mxu0 %v4030
        %4237 = vmatmul.mubr.f32.gmra.mxu0 %v4027
        %v4238 = vpop.f32.mrf.mxu0
        %v4239 = vadd.f32 0.0, %v4238
        %v4240 = vpop.f32.mrf.mxu0
        %4241 = vmatprep.mubr.f32.mxu0 %v4036
        %4242 = vmatmul.mubr.f32.gmra.mxu0 %v4033
        %v4243 = vpop.f32.mrf.mxu0
        %v4244 = vadd.f32 0.0, %v4243
        %v4245 = vpop.f32.mrf.mxu0
        %4246 = vdwg.mxu0
        %v4247 = vadd.f32 %v3797, %v4169
        %v4248 = vadd.f32 %v3798, %v4174
        %v4249 = vadd.f32 %v3799, %v4179
        %v4250 = vadd.f32 %v3800, %v4184
        %v4251 = vadd.f32 %v3801, %v4189
        %v4252 = vadd.f32 %v3802, %v4194
        %v4253 = vadd.f32 %v3803, %v4199
        %v4254 = vadd.f32 %v3804, %v4204
        %v4255 = vadd.f32 %v3805, %v4209
        %v4256 = vadd.f32 %v3806, %v4214
        %v4257 = vadd.f32 %v3807, %v4219
        %v4258 = vadd.f32 %v3808, %v4224
        %v4259 = vadd.f32 %v3809, %v4229
        %v4260 = vadd.f32 %v3810, %v4234
        %v4261 = vadd.f32 %v3811, %v4239
        %v4262 = vadd.f32 %v3812, %v4244
        %v4263 = vld [vmem:[#allocation13] sm:$0x1]
        %v4265 = vlaneseq
        %v4266 = vshrl.u32 %v4265, 7
        %v4267 = vsub.s32 0, %v4266
        %v4268 = vrot.slane %v4263, %v4267
        %v4270 = vadd.f32 %v4247, %v4268
        %v4271 = vadd.f32 %v4248, %v4268
        %v4272 = vadd.f32 %v4249, %v4268
        %v4273 = vadd.f32 %v4250, %v4268
        %v4274 = vadd.f32 %v4251, %v4268
        %v4275 = vadd.f32 %v4252, %v4268
        %v4276 = vadd.f32 %v4253, %v4268
        %v4277 = vadd.f32 %v4254, %v4268
        %v4278 = vadd.f32 %v4255, %v4268
        %v4279 = vadd.f32 %v4256, %v4268
        %v4280 = vadd.f32 %v4257, %v4268
        %v4281 = vadd.f32 %v4258, %v4268
        %v4282 = vadd.f32 %v4259, %v4268
        %v4283 = vadd.f32 %v4260, %v4268
        %v4284 = vadd.f32 %v4261, %v4268
        %v4285 = vadd.f32 %v4262, %v4268
        %v4286 = vmax.f32 %v4270, 0.0
        %v4287 = vmax.f32 %v4271, 0.0
        %v4288 = vmax.f32 %v4272, 0.0
        %v4289 = vmax.f32 %v4273, 0.0
        %v4290 = vmax.f32 %v4274, 0.0
        %v4291 = vmax.f32 %v4275, 0.0
        %v4292 = vmax.f32 %v4276, 0.0
        %v4293 = vmax.f32 %v4277, 0.0
        %v4294 = vmax.f32 %v4278, 0.0
        %v4295 = vmax.f32 %v4279, 0.0
        %v4296 = vmax.f32 %v4280, 0.0
        %v4297 = vmax.f32 %v4281, 0.0
        %v4298 = vmax.f32 %v4282, 0.0
        %v4299 = vmax.f32 %v4283, 0.0
        %v4300 = vmax.f32 %v4284, 0.0
        %v4301 = vmax.f32 %v4285, 0.0
        %s4302 = scalar_lea.vmem [#allocation3], 24
        %4303 = vst [vmem:[%s4302 + $0x8] sm:$0xff] %v4286
        %4304 = vst [vmem:[%s4302 + $0x20] sm:$0xff] %v4287
        %4305 = vst [vmem:[%s4302 + $0x38] sm:$0xff] %v4288
        %4306 = vst [vmem:[%s4302 + $0x50] sm:$0xff] %v4289
        %4307 = vst [vmem:[%s4302 + $0x68] sm:$0xff] %v4290
        %4308 = vst [vmem:[%s4302 + $0x80] sm:$0xff] %v4291
        %4309 = vst [vmem:[%s4302 + $0x98] sm:$0xff] %v4292
        %4310 = vst [vmem:[%s4302 + $0xb0] sm:$0xff] %v4293
        %4311 = vst [vmem:[%s4302 + $0xc8] sm:$0xff] %v4294
        %4312 = vst [vmem:[%s4302 + $0xe0] sm:$0xff] %v4295
        %4313 = vst [vmem:[%s4302 + $0xf8] sm:$0xff] %v4296
        %4314 = vst [vmem:[%s4302 + $0x110] sm:$0xff] %v4297
        %4315 = vst [vmem:[%s4302 + $0x128] sm:$0xff] %v4298
        %4316 = vst [vmem:[%s4302 + $0x140] sm:$0xff] %v4299
        %4317 = vst [vmem:[%s4302 + $0x158] sm:$0xff] %v4300
        %4318 = vst [vmem:[%s4302 + $0x170] sm:$0xff] %v4301
        %v4319 = vld [vmem:[#allocation3 + $0x7] sm:$0xff]
        %v4320 = vld [vmem:[#allocation3 + $0x1f] sm:$0xff]
        %v4321 = vld [vmem:[#allocation3 + $0x37] sm:$0xff]
        %v4322 = vld [vmem:[#allocation3 + $0x4f] sm:$0xff]
        %v4323 = vld [vmem:[#allocation3 + $0x67] sm:$0xff]
        %v4324 = vld [vmem:[#allocation3 + $0x7f] sm:$0xff]
        %v4325 = vld [vmem:[#allocation3 + $0x97] sm:$0xff]
        %v4326 = vld [vmem:[#allocation3 + $0xaf] sm:$0xff]
        %v4327 = vld [vmem:[#allocation3 + $0xc7] sm:$0xff]
        %v4328 = vld [vmem:[#allocation3 + $0xdf] sm:$0xff]
        %v4329 = vld [vmem:[#allocation3 + $0xf7] sm:$0xff]
        %v4330 = vld [vmem:[#allocation3 + $0x10f] sm:$0xff]
        %v4331 = vld [vmem:[#allocation3 + $0x127] sm:$0xff]
        %v4332 = vld [vmem:[#allocation3 + $0x13f] sm:$0xff]
        %v4333 = vld [vmem:[#allocation3 + $0x157] sm:$0xff]
        %v4334 = vld [vmem:[#allocation3 + $0x16f] sm:$0xff]
        %v4335 = vld [vmem:[#allocation15] sm:$0xff]
        %v4336 = vld [vmem:[#allocation15 + $0x8] sm:$0xff]
        %v4337 = vld [vmem:[#allocation15 + $0x10] sm:$0xff]
        %v4338 = vld [vmem:[#allocation15 + $0x18] sm:$0xff]
        %v4339 = vld [vmem:[#allocation15 + $0x20] sm:$0xff]
        %v4340 = vld [vmem:[#allocation15 + $0x28] sm:$0xff]
        %v4341 = vld [vmem:[#allocation15 + $0x30] sm:$0xff]
        %v4342 = vld [vmem:[#allocation15 + $0x38] sm:$0xff]
        %v4343 = vld [vmem:[#allocation15 + $0x40] sm:$0xff]
        %v4344 = vld [vmem:[#allocation15 + $0x48] sm:$0xff]
        %v4345 = vld [vmem:[#allocation15 + $0x50] sm:$0xff]
        %v4346 = vld [vmem:[#allocation15 + $0x58] sm:$0xff]
        %v4347 = vld [vmem:[#allocation15 + $0x60] sm:$0xff]
        %v4348 = vld [vmem:[#allocation15 + $0x68] sm:$0xff]
        %v4349 = vld [vmem:[#allocation15 + $0x70] sm:$0xff]
        %v4350 = vld [vmem:[#allocation15 + $0x78] sm:$0xff]
        %v4351 = vld [vmem:[#allocation3 + $0x8] sm:$0xff]
        %v4352 = vld [vmem:[#allocation3 + $0x20] sm:$0xff]
        %v4353 = vld [vmem:[#allocation3 + $0x38] sm:$0xff]
        %v4354 = vld [vmem:[#allocation3 + $0x50] sm:$0xff]
        %v4355 = vld [vmem:[#allocation3 + $0x68] sm:$0xff]
        %v4356 = vld [vmem:[#allocation3 + $0x80] sm:$0xff]
        %v4357 = vld [vmem:[#allocation3 + $0x98] sm:$0xff]
        %v4358 = vld [vmem:[#allocation3 + $0xb0] sm:$0xff]
        %v4359 = vld [vmem:[#allocation3 + $0xc8] sm:$0xff]
        %v4360 = vld [vmem:[#allocation3 + $0xe0] sm:$0xff]
        %v4361 = vld [vmem:[#allocation3 + $0xf8] sm:$0xff]
        %v4362 = vld [vmem:[#allocation3 + $0x110] sm:$0xff]
        %v4363 = vld [vmem:[#allocation3 + $0x128] sm:$0xff]
        %v4364 = vld [vmem:[#allocation3 + $0x140] sm:$0xff]
        %v4365 = vld [vmem:[#allocation3 + $0x158] sm:$0xff]
        %v4366 = vld [vmem:[#allocation3 + $0x170] sm:$0xff]
        %s4367 = scalar_lea.vmem [#allocation15], 128
        %v4368 = vld [vmem:[%s4367] sm:$0xff]
        %v4369 = vld [vmem:[%s4367 + $0x8] sm:$0xff]
        %v4370 = vld [vmem:[%s4367 + $0x10] sm:$0xff]
        %v4371 = vld [vmem:[%s4367 + $0x18] sm:$0xff]
        %v4372 = vld [vmem:[%s4367 + $0x20] sm:$0xff]
        %v4373 = vld [vmem:[%s4367 + $0x28] sm:$0xff]
        %v4374 = vld [vmem:[%s4367 + $0x30] sm:$0xff]
        %v4375 = vld [vmem:[%s4367 + $0x38] sm:$0xff]
        %v4376 = vld [vmem:[%s4367 + $0x40] sm:$0xff]
        %v4377 = vld [vmem:[%s4367 + $0x48] sm:$0xff]
        %v4378 = vld [vmem:[%s4367 + $0x50] sm:$0xff]
        %v4379 = vld [vmem:[%s4367 + $0x58] sm:$0xff]
        %v4380 = vld [vmem:[%s4367 + $0x60] sm:$0xff]
        %v4381 = vld [vmem:[%s4367 + $0x68] sm:$0xff]
        %v4382 = vld [vmem:[%s4367 + $0x70] sm:$0xff]
        %v4383 = vld [vmem:[%s4367 + $0x78] sm:$0xff]
        %4384 = vmatprep.subr.mxu0 0.0
        %4385 = vmatpush1.msra.mxu0 %v4383
        %4386 = vmatprep.subr.mxu0 0.0
        %4387 = vmatpush1.msra.mxu0 %v4382
        %4388 = vmatprep.subr.mxu0 0.0
        %4389 = vmatpush1.msra.mxu0 %v4381
        %4390 = vmatprep.subr.mxu0 0.0
        %4391 = vmatpush1.msra.mxu0 %v4380
        %4392 = vmatprep.subr.mxu0 0.0
        %4393 = vmatpush1.msra.mxu0 %v4379
        %4394 = vmatprep.subr.mxu0 0.0
        %4395 = vmatpush1.msra.mxu0 %v4378
        %4396 = vmatprep.subr.mxu0 0.0
        %4397 = vmatpush1.msra.mxu0 %v4377
        %4398 = vmatprep.subr.mxu0 0.0
        %4399 = vmatpush1.msra.mxu0 %v4376
        %4400 = vmatprep.subr.mxu0 0.0
        %4401 = vmatpush1.msra.mxu0 %v4375
        %4402 = vmatprep.subr.mxu0 0.0
        %4403 = vmatpush1.msra.mxu0 %v4374
        %4404 = vmatprep.subr.mxu0 0.0
        %4405 = vmatpush1.msra.mxu0 %v4373
        %4406 = vmatprep.subr.mxu0 0.0
        %4407 = vmatpush1.msra.mxu0 %v4372
        %4408 = vmatprep.subr.mxu0 0.0
        %4409 = vmatpush1.msra.mxu0 %v4371
        %4410 = vmatprep.subr.mxu0 0.0
        %4411 = vmatpush1.msra.mxu0 %v4370
        %4412 = vmatprep.subr.mxu0 0.0
        %4413 = vmatpush1.msra.mxu0 %v4369
        %4414 = vmatprep.subr.mxu0 0.0
        %4415 = vmatpush1.msra.mxu0 %v4368
        %4416 = vmatprep.subr.mxu0 0.0
        %4417 = vmatpush2.msra.mxu0 0.0
        %4418 = vmatprep.subr.mxu0 0.0
        %4419 = vmatpush2.msra.mxu0 0.0
        %4420 = vmatprep.subr.mxu0 0.0
        %4421 = vmatpush2.msra.mxu0 0.0
        %4422 = vmatprep.subr.mxu0 0.0
        %4423 = vmatpush2.msra.mxu0 0.0
        %4424 = vmatprep.subr.mxu0 0.0
        %4425 = vmatpush2.msra.mxu0 0.0
        %4426 = vmatprep.subr.mxu0 0.0
        %4427 = vmatpush2.msra.mxu0 0.0
        %4428 = vmatprep.subr.mxu0 0.0
        %4429 = vmatpush2.msra.mxu0 0.0
        %4430 = vmatprep.subr.mxu0 0.0
        %4431 = vmatpush2.msra.mxu0 0.0
        %4432 = vmatprep.subr.mxu0 0.0
        %4433 = vmatpush2.msra.mxu0 0.0
        %4434 = vmatprep.subr.mxu0 0.0
        %4435 = vmatpush2.msra.mxu0 0.0
        %4436 = vmatprep.subr.mxu0 0.0
        %4437 = vmatpush2.msra.mxu0 0.0
        %4438 = vmatprep.subr.mxu0 0.0
        %4439 = vmatpush2.msra.mxu0 0.0
        %4440 = vmatprep.subr.mxu0 0.0
        %4441 = vmatpush2.msra.mxu0 0.0
        %4442 = vmatprep.subr.mxu0 0.0
        %4443 = vmatpush2.msra.mxu0 0.0
        %4444 = vmatprep.subr.mxu0 0.0
        %4445 = vmatpush2.msra.mxu0 0.0
        %4446 = vmatprep.subr.mxu0 0.0
        %4447 = vmatpush2.msra.mxu0 0.0
        %4448 = vmatprep.mubr.f32.mxu0 0.0
        %4449 = vmatmul.mubr.f32.gmra.mxu0 %v4351
        %v4450 = vpop.f32.mrf.mxu0
        %v4451 = vadd.f32 0.0, %v4450
        %v4452 = vpop.f32.mrf.mxu0
        %4453 = vmatprep.mubr.f32.mxu0 0.0
        %4454 = vmatmul.mubr.f32.gmra.mxu0 %v4352
        %v4455 = vpop.f32.mrf.mxu0
        %v4456 = vadd.f32 0.0, %v4455
        %v4457 = vpop.f32.mrf.mxu0
        %4458 = vmatprep.mubr.f32.mxu0 0.0
        %4459 = vmatmul.mubr.f32.gmra.mxu0 %v4353
        %v4460 = vpop.f32.mrf.mxu0
        %v4461 = vadd.f32 0.0, %v4460
        %v4462 = vpop.f32.mrf.mxu0
        %4463 = vmatprep.mubr.f32.mxu0 0.0
        %4464 = vmatmul.mubr.f32.gmra.mxu0 %v4354
        %v4465 = vpop.f32.mrf.mxu0
        %v4466 = vadd.f32 0.0, %v4465
        %v4467 = vpop.f32.mrf.mxu0
        %4468 = vmatprep.mubr.f32.mxu0 0.0
        %4469 = vmatmul.mubr.f32.gmra.mxu0 %v4355
        %v4470 = vpop.f32.mrf.mxu0
        %v4471 = vadd.f32 0.0, %v4470
        %v4472 = vpop.f32.mrf.mxu0
        %4473 = vmatprep.mubr.f32.mxu0 0.0
        %4474 = vmatmul.mubr.f32.gmra.mxu0 %v4356
        %v4475 = vpop.f32.mrf.mxu0
        %v4476 = vadd.f32 0.0, %v4475
        %v4477 = vpop.f32.mrf.mxu0
        %4478 = vmatprep.mubr.f32.mxu0 0.0
        %4479 = vmatmul.mubr.f32.gmra.mxu0 %v4357
        %v4480 = vpop.f32.mrf.mxu0
        %v4481 = vadd.f32 0.0, %v4480
        %v4482 = vpop.f32.mrf.mxu0
        %4483 = vmatprep.mubr.f32.mxu0 0.0
        %4484 = vmatmul.mubr.f32.gmra.mxu0 %v4358
        %v4485 = vpop.f32.mrf.mxu0
        %v4486 = vadd.f32 0.0, %v4485
        %v4487 = vpop.f32.mrf.mxu0
        %4488 = vmatprep.mubr.f32.mxu0 0.0
        %4489 = vmatmul.mubr.f32.gmra.mxu0 %v4359
        %v4490 = vpop.f32.mrf.mxu0
        %v4491 = vadd.f32 0.0, %v4490
        %v4492 = vpop.f32.mrf.mxu0
        %4493 = vmatprep.mubr.f32.mxu0 0.0
        %4494 = vmatmul.mubr.f32.gmra.mxu0 %v4360
        %v4495 = vpop.f32.mrf.mxu0
        %v4496 = vadd.f32 0.0, %v4495
        %v4497 = vpop.f32.mrf.mxu0
        %4498 = vmatprep.mubr.f32.mxu0 0.0
        %4499 = vmatmul.mubr.f32.gmra.mxu0 %v4361
        %v4500 = vpop.f32.mrf.mxu0
        %v4501 = vadd.f32 0.0, %v4500
        %v4502 = vpop.f32.mrf.mxu0
        %4503 = vmatprep.mubr.f32.mxu0 0.0
        %4504 = vmatmul.mubr.f32.gmra.mxu0 %v4362
        %v4505 = vpop.f32.mrf.mxu0
        %v4506 = vadd.f32 0.0, %v4505
        %v4507 = vpop.f32.mrf.mxu0
        %4508 = vmatprep.mubr.f32.mxu0 0.0
        %4509 = vmatmul.mubr.f32.gmra.mxu0 %v4363
        %v4510 = vpop.f32.mrf.mxu0
        %v4511 = vadd.f32 0.0, %v4510
        %v4512 = vpop.f32.mrf.mxu0
        %4513 = vmatprep.mubr.f32.mxu0 0.0
        %4514 = vmatmul.mubr.f32.gmra.mxu0 %v4364
        %v4515 = vpop.f32.mrf.mxu0
        %v4516 = vadd.f32 0.0, %v4515
        %v4517 = vpop.f32.mrf.mxu0
        %4518 = vmatprep.mubr.f32.mxu0 0.0
        %4519 = vmatmul.mubr.f32.gmra.mxu0 %v4365
        %v4520 = vpop.f32.mrf.mxu0
        %v4521 = vadd.f32 0.0, %v4520
        %v4522 = vpop.f32.mrf.mxu0
        %4523 = vmatprep.mubr.f32.mxu0 0.0
        %4524 = vmatmul.mubr.f32.gmra.mxu0 %v4366
        %v4525 = vpop.f32.mrf.mxu0
        %v4526 = vadd.f32 0.0, %v4525
        %v4527 = vpop.f32.mrf.mxu0
        %4528 = vdwg.mxu0
        %4529 = vmatprep.subr.mxu0 0.0
        %4530 = vmatpush1.msra.mxu0 %v4350
        %4531 = vmatprep.subr.mxu0 0.0
        %4532 = vmatpush1.msra.mxu0 %v4349
        %4533 = vmatprep.subr.mxu0 0.0
        %4534 = vmatpush1.msra.mxu0 %v4348
        %4535 = vmatprep.subr.mxu0 0.0
        %4536 = vmatpush1.msra.mxu0 %v4347
        %4537 = vmatprep.subr.mxu0 0.0
        %4538 = vmatpush1.msra.mxu0 %v4346
        %4539 = vmatprep.subr.mxu0 0.0
        %4540 = vmatpush1.msra.mxu0 %v4345
        %4541 = vmatprep.subr.mxu0 0.0
        %4542 = vmatpush1.msra.mxu0 %v4344
        %4543 = vmatprep.subr.mxu0 0.0
        %4544 = vmatpush1.msra.mxu0 %v4343
        %4545 = vmatprep.subr.mxu0 0.0
        %4546 = vmatpush1.msra.mxu0 %v4342
        %4547 = vmatprep.subr.mxu0 0.0
        %4548 = vmatpush1.msra.mxu0 %v4341
        %4549 = vmatprep.subr.mxu0 0.0
        %4550 = vmatpush1.msra.mxu0 %v4340
        %4551 = vmatprep.subr.mxu0 0.0
        %4552 = vmatpush1.msra.mxu0 %v4339
        %4553 = vmatprep.subr.mxu0 0.0
        %4554 = vmatpush1.msra.mxu0 %v4338
        %4555 = vmatprep.subr.mxu0 0.0
        %4556 = vmatpush1.msra.mxu0 %v4337
        %4557 = vmatprep.subr.mxu0 0.0
        %4558 = vmatpush1.msra.mxu0 %v4336
        %4559 = vmatprep.subr.mxu0 0.0
        %4560 = vmatpush1.msra.mxu0 %v4335
        %4561 = vmatprep.subr.mxu0 0.0
        %4562 = vmatpush2.msra.mxu0 0.0
        %4563 = vmatprep.subr.mxu0 0.0
        %4564 = vmatpush2.msra.mxu0 0.0
        %4565 = vmatprep.subr.mxu0 0.0
        %4566 = vmatpush2.msra.mxu0 0.0
        %4567 = vmatprep.subr.mxu0 0.0
        %4568 = vmatpush2.msra.mxu0 0.0
        %4569 = vmatprep.subr.mxu0 0.0
        %4570 = vmatpush2.msra.mxu0 0.0
        %4571 = vmatprep.subr.mxu0 0.0
        %4572 = vmatpush2.msra.mxu0 0.0
        %4573 = vmatprep.subr.mxu0 0.0
        %4574 = vmatpush2.msra.mxu0 0.0
        %4575 = vmatprep.subr.mxu0 0.0
        %4576 = vmatpush2.msra.mxu0 0.0
        %4577 = vmatprep.subr.mxu0 0.0
        %4578 = vmatpush2.msra.mxu0 0.0
        %4579 = vmatprep.subr.mxu0 0.0
        %4580 = vmatpush2.msra.mxu0 0.0
        %4581 = vmatprep.subr.mxu0 0.0
        %4582 = vmatpush2.msra.mxu0 0.0
        %4583 = vmatprep.subr.mxu0 0.0
        %4584 = vmatpush2.msra.mxu0 0.0
        %4585 = vmatprep.subr.mxu0 0.0
        %4586 = vmatpush2.msra.mxu0 0.0
        %4587 = vmatprep.subr.mxu0 0.0
        %4588 = vmatpush2.msra.mxu0 0.0
        %4589 = vmatprep.subr.mxu0 0.0
        %4590 = vmatpush2.msra.mxu0 0.0
        %4591 = vmatprep.subr.mxu0 0.0
        %4592 = vmatpush2.msra.mxu0 0.0
        %4593 = vmatprep.mubr.f32.mxu0 0.0
        %4594 = vmatmul.mubr.f32.gmra.mxu0 %v4319
        %v4595 = vpop.f32.mrf.mxu0
        %v4596 = vadd.f32 %v4451, %v4595
        %v4597 = vpop.f32.mrf.mxu0
        %4598 = vmatprep.mubr.f32.mxu0 0.0
        %4599 = vmatmul.mubr.f32.gmra.mxu0 %v4320
        %v4600 = vpop.f32.mrf.mxu0
        %v4601 = vadd.f32 %v4456, %v4600
        %v4602 = vpop.f32.mrf.mxu0
        %4603 = vmatprep.mubr.f32.mxu0 0.0
        %4604 = vmatmul.mubr.f32.gmra.mxu0 %v4321
        %v4605 = vpop.f32.mrf.mxu0
        %v4606 = vadd.f32 %v4461, %v4605
        %v4607 = vpop.f32.mrf.mxu0
        %4608 = vmatprep.mubr.f32.mxu0 0.0
        %4609 = vmatmul.mubr.f32.gmra.mxu0 %v4322
        %v4610 = vpop.f32.mrf.mxu0
        %v4611 = vadd.f32 %v4466, %v4610
        %v4612 = vpop.f32.mrf.mxu0
        %4613 = vmatprep.mubr.f32.mxu0 0.0
        %4614 = vmatmul.mubr.f32.gmra.mxu0 %v4323
        %v4615 = vpop.f32.mrf.mxu0
        %v4616 = vadd.f32 %v4471, %v4615
        %v4617 = vpop.f32.mrf.mxu0
        %4618 = vmatprep.mubr.f32.mxu0 0.0
        %4619 = vmatmul.mubr.f32.gmra.mxu0 %v4324
        %v4620 = vpop.f32.mrf.mxu0
        %v4621 = vadd.f32 %v4476, %v4620
        %v4622 = vpop.f32.mrf.mxu0
        %4623 = vmatprep.mubr.f32.mxu0 0.0
        %4624 = vmatmul.mubr.f32.gmra.mxu0 %v4325
        %v4625 = vpop.f32.mrf.mxu0
        %v4626 = vadd.f32 %v4481, %v4625
        %v4627 = vpop.f32.mrf.mxu0
        %4628 = vmatprep.mubr.f32.mxu0 0.0
        %4629 = vmatmul.mubr.f32.gmra.mxu0 %v4326
        %v4630 = vpop.f32.mrf.mxu0
        %v4631 = vadd.f32 %v4486, %v4630
        %v4632 = vpop.f32.mrf.mxu0
        %4633 = vmatprep.mubr.f32.mxu0 0.0
        %4634 = vmatmul.mubr.f32.gmra.mxu0 %v4327
        %v4635 = vpop.f32.mrf.mxu0
        %v4636 = vadd.f32 %v4491, %v4635
        %v4637 = vpop.f32.mrf.mxu0
        %4638 = vmatprep.mubr.f32.mxu0 0.0
        %4639 = vmatmul.mubr.f32.gmra.mxu0 %v4328
        %v4640 = vpop.f32.mrf.mxu0
        %v4641 = vadd.f32 %v4496, %v4640
        %v4642 = vpop.f32.mrf.mxu0
        %4643 = vmatprep.mubr.f32.mxu0 0.0
        %4644 = vmatmul.mubr.f32.gmra.mxu0 %v4329
        %v4645 = vpop.f32.mrf.mxu0
        %v4646 = vadd.f32 %v4501, %v4645
        %v4647 = vpop.f32.mrf.mxu0
        %4648 = vmatprep.mubr.f32.mxu0 0.0
        %4649 = vmatmul.mubr.f32.gmra.mxu0 %v4330
        %v4650 = vpop.f32.mrf.mxu0
        %v4651 = vadd.f32 %v4506, %v4650
        %v4652 = vpop.f32.mrf.mxu0
        %4653 = vmatprep.mubr.f32.mxu0 0.0
        %4654 = vmatmul.mubr.f32.gmra.mxu0 %v4331
        %v4655 = vpop.f32.mrf.mxu0
        %v4656 = vadd.f32 %v4511, %v4655
        %v4657 = vpop.f32.mrf.mxu0
        %4658 = vmatprep.mubr.f32.mxu0 0.0
        %4659 = vmatmul.mubr.f32.gmra.mxu0 %v4332
        %v4660 = vpop.f32.mrf.mxu0
        %v4661 = vadd.f32 %v4516, %v4660
        %v4662 = vpop.f32.mrf.mxu0
        %4663 = vmatprep.mubr.f32.mxu0 0.0
        %4664 = vmatmul.mubr.f32.gmra.mxu0 %v4333
        %v4665 = vpop.f32.mrf.mxu0
        %v4666 = vadd.f32 %v4521, %v4665
        %v4667 = vpop.f32.mrf.mxu0
        %4668 = vmatprep.mubr.f32.mxu0 0.0
        %4669 = vmatmul.mubr.f32.gmra.mxu0 %v4334
        %v4670 = vpop.f32.mrf.mxu0
        %v4671 = vadd.f32 %v4526, %v4670
        %v4672 = vpop.f32.mrf.mxu0
        %4673 = vdwg.mxu0
        %v4674 = vld [vmem:[#allocation3 + $0x9] sm:$0xff]
        %v4675 = vld [vmem:[#allocation3 + $0x21] sm:$0xff]
        %v4676 = vld [vmem:[#allocation3 + $0x39] sm:$0xff]
        %v4677 = vld [vmem:[#allocation3 + $0x51] sm:$0xff]
        %v4678 = vld [vmem:[#allocation3 + $0x69] sm:$0xff]
        %v4679 = vld [vmem:[#allocation3 + $0x81] sm:$0xff]
        %v4680 = vld [vmem:[#allocation3 + $0x99] sm:$0xff]
        %v4681 = vld [vmem:[#allocation3 + $0xb1] sm:$0xff]
        %v4682 = vld [vmem:[#allocation3 + $0xc9] sm:$0xff]
        %v4683 = vld [vmem:[#allocation3 + $0xe1] sm:$0xff]
        %v4684 = vld [vmem:[#allocation3 + $0xf9] sm:$0xff]
        %v4685 = vld [vmem:[#allocation3 + $0x111] sm:$0xff]
        %v4686 = vld [vmem:[#allocation3 + $0x129] sm:$0xff]
        %v4687 = vld [vmem:[#allocation3 + $0x141] sm:$0xff]
        %v4688 = vld [vmem:[#allocation3 + $0x159] sm:$0xff]
        %v4689 = vld [vmem:[#allocation3 + $0x171] sm:$0xff]
        %s4690 = scalar_lea.vmem [#allocation15], 256
        %v4691 = vld [vmem:[%s4690] sm:$0xff]
        %v4692 = vld [vmem:[%s4690 + $0x8] sm:$0xff]
        %v4693 = vld [vmem:[%s4690 + $0x10] sm:$0xff]
        %v4694 = vld [vmem:[%s4690 + $0x18] sm:$0xff]
        %v4695 = vld [vmem:[%s4690 + $0x20] sm:$0xff]
        %v4696 = vld [vmem:[%s4690 + $0x28] sm:$0xff]
        %v4697 = vld [vmem:[%s4690 + $0x30] sm:$0xff]
        %v4698 = vld [vmem:[%s4690 + $0x38] sm:$0xff]
        %v4699 = vld [vmem:[%s4690 + $0x40] sm:$0xff]
        %v4700 = vld [vmem:[%s4690 + $0x48] sm:$0xff]
        %v4701 = vld [vmem:[%s4690 + $0x50] sm:$0xff]
        %v4702 = vld [vmem:[%s4690 + $0x58] sm:$0xff]
        %v4703 = vld [vmem:[%s4690 + $0x60] sm:$0xff]
        %v4704 = vld [vmem:[%s4690 + $0x68] sm:$0xff]
        %v4705 = vld [vmem:[%s4690 + $0x70] sm:$0xff]
        %v4706 = vld [vmem:[%s4690 + $0x78] sm:$0xff]
        %4707 = vmatprep.subr.mxu0 0.0
        %4708 = vmatpush1.msra.mxu0 %v4706
        %4709 = vmatprep.subr.mxu0 0.0
        %4710 = vmatpush1.msra.mxu0 %v4705
        %4711 = vmatprep.subr.mxu0 0.0
        %4712 = vmatpush1.msra.mxu0 %v4704
        %4713 = vmatprep.subr.mxu0 0.0
        %4714 = vmatpush1.msra.mxu0 %v4703
        %4715 = vmatprep.subr.mxu0 0.0
        %4716 = vmatpush1.msra.mxu0 %v4702
        %4717 = vmatprep.subr.mxu0 0.0
        %4718 = vmatpush1.msra.mxu0 %v4701
        %4719 = vmatprep.subr.mxu0 0.0
        %4720 = vmatpush1.msra.mxu0 %v4700
        %4721 = vmatprep.subr.mxu0 0.0
        %4722 = vmatpush1.msra.mxu0 %v4699
        %4723 = vmatprep.subr.mxu0 0.0
        %4724 = vmatpush1.msra.mxu0 %v4698
        %4725 = vmatprep.subr.mxu0 0.0
        %4726 = vmatpush1.msra.mxu0 %v4697
        %4727 = vmatprep.subr.mxu0 0.0
        %4728 = vmatpush1.msra.mxu0 %v4696
        %4729 = vmatprep.subr.mxu0 0.0
        %4730 = vmatpush1.msra.mxu0 %v4695
        %4731 = vmatprep.subr.mxu0 0.0
        %4732 = vmatpush1.msra.mxu0 %v4694
        %4733 = vmatprep.subr.mxu0 0.0
        %4734 = vmatpush1.msra.mxu0 %v4693
        %4735 = vmatprep.subr.mxu0 0.0
        %4736 = vmatpush1.msra.mxu0 %v4692
        %4737 = vmatprep.subr.mxu0 0.0
        %4738 = vmatpush1.msra.mxu0 %v4691
        %4739 = vmatprep.subr.mxu0 0.0
        %4740 = vmatpush2.msra.mxu0 0.0
        %4741 = vmatprep.subr.mxu0 0.0
        %4742 = vmatpush2.msra.mxu0 0.0
        %4743 = vmatprep.subr.mxu0 0.0
        %4744 = vmatpush2.msra.mxu0 0.0
        %4745 = vmatprep.subr.mxu0 0.0
        %4746 = vmatpush2.msra.mxu0 0.0
        %4747 = vmatprep.subr.mxu0 0.0
        %4748 = vmatpush2.msra.mxu0 0.0
        %4749 = vmatprep.subr.mxu0 0.0
        %4750 = vmatpush2.msra.mxu0 0.0
        %4751 = vmatprep.subr.mxu0 0.0
        %4752 = vmatpush2.msra.mxu0 0.0
        %4753 = vmatprep.subr.mxu0 0.0
        %4754 = vmatpush2.msra.mxu0 0.0
        %4755 = vmatprep.subr.mxu0 0.0
        %4756 = vmatpush2.msra.mxu0 0.0
        %4757 = vmatprep.subr.mxu0 0.0
        %4758 = vmatpush2.msra.mxu0 0.0
        %4759 = vmatprep.subr.mxu0 0.0
        %4760 = vmatpush2.msra.mxu0 0.0
        %4761 = vmatprep.subr.mxu0 0.0
        %4762 = vmatpush2.msra.mxu0 0.0
        %4763 = vmatprep.subr.mxu0 0.0
        %4764 = vmatpush2.msra.mxu0 0.0
        %4765 = vmatprep.subr.mxu0 0.0
        %4766 = vmatpush2.msra.mxu0 0.0
        %4767 = vmatprep.subr.mxu0 0.0
        %4768 = vmatpush2.msra.mxu0 0.0
        %4769 = vmatprep.subr.mxu0 0.0
        %4770 = vmatpush2.msra.mxu0 0.0
        %4771 = vmatprep.mubr.f32.mxu0 0.0
        %4772 = vmatmul.mubr.f32.gmra.mxu0 %v4674
        %v4773 = vpop.f32.mrf.mxu0
        %v4774 = vadd.f32 0.0, %v4773
        %v4775 = vpop.f32.mrf.mxu0
        %4776 = vmatprep.mubr.f32.mxu0 0.0
        %4777 = vmatmul.mubr.f32.gmra.mxu0 %v4675
        %v4778 = vpop.f32.mrf.mxu0
        %v4779 = vadd.f32 0.0, %v4778
        %v4780 = vpop.f32.mrf.mxu0
        %4781 = vmatprep.mubr.f32.mxu0 0.0
        %4782 = vmatmul.mubr.f32.gmra.mxu0 %v4676
        %v4783 = vpop.f32.mrf.mxu0
        %v4784 = vadd.f32 0.0, %v4783
        %v4785 = vpop.f32.mrf.mxu0
        %4786 = vmatprep.mubr.f32.mxu0 0.0
        %4787 = vmatmul.mubr.f32.gmra.mxu0 %v4677
        %v4788 = vpop.f32.mrf.mxu0
        %v4789 = vadd.f32 0.0, %v4788
        %v4790 = vpop.f32.mrf.mxu0
        %4791 = vmatprep.mubr.f32.mxu0 0.0
        %4792 = vmatmul.mubr.f32.gmra.mxu0 %v4678
        %v4793 = vpop.f32.mrf.mxu0
        %v4794 = vadd.f32 0.0, %v4793
        %v4795 = vpop.f32.mrf.mxu0
        %4796 = vmatprep.mubr.f32.mxu0 0.0
        %4797 = vmatmul.mubr.f32.gmra.mxu0 %v4679
        %v4798 = vpop.f32.mrf.mxu0
        %v4799 = vadd.f32 0.0, %v4798
        %v4800 = vpop.f32.mrf.mxu0
        %4801 = vmatprep.mubr.f32.mxu0 0.0
        %4802 = vmatmul.mubr.f32.gmra.mxu0 %v4680
        %v4803 = vpop.f32.mrf.mxu0
        %v4804 = vadd.f32 0.0, %v4803
        %v4805 = vpop.f32.mrf.mxu0
        %4806 = vmatprep.mubr.f32.mxu0 0.0
        %4807 = vmatmul.mubr.f32.gmra.mxu0 %v4681
        %v4808 = vpop.f32.mrf.mxu0
        %v4809 = vadd.f32 0.0, %v4808
        %v4810 = vpop.f32.mrf.mxu0
        %4811 = vmatprep.mubr.f32.mxu0 0.0
        %4812 = vmatmul.mubr.f32.gmra.mxu0 %v4682
        %v4813 = vpop.f32.mrf.mxu0
        %v4814 = vadd.f32 0.0, %v4813
        %v4815 = vpop.f32.mrf.mxu0
        %4816 = vmatprep.mubr.f32.mxu0 0.0
        %4817 = vmatmul.mubr.f32.gmra.mxu0 %v4683
        %v4818 = vpop.f32.mrf.mxu0
        %v4819 = vadd.f32 0.0, %v4818
        %v4820 = vpop.f32.mrf.mxu0
        %4821 = vmatprep.mubr.f32.mxu0 0.0
        %4822 = vmatmul.mubr.f32.gmra.mxu0 %v4684
        %v4823 = vpop.f32.mrf.mxu0
        %v4824 = vadd.f32 0.0, %v4823
        %v4825 = vpop.f32.mrf.mxu0
        %4826 = vmatprep.mubr.f32.mxu0 0.0
        %4827 = vmatmul.mubr.f32.gmra.mxu0 %v4685
        %v4828 = vpop.f32.mrf.mxu0
        %v4829 = vadd.f32 0.0, %v4828
        %v4830 = vpop.f32.mrf.mxu0
        %4831 = vmatprep.mubr.f32.mxu0 0.0
        %4832 = vmatmul.mubr.f32.gmra.mxu0 %v4686
        %v4833 = vpop.f32.mrf.mxu0
        %v4834 = vadd.f32 0.0, %v4833
        %v4835 = vpop.f32.mrf.mxu0
        %4836 = vmatprep.mubr.f32.mxu0 0.0
        %4837 = vmatmul.mubr.f32.gmra.mxu0 %v4687
        %v4838 = vpop.f32.mrf.mxu0
        %v4839 = vadd.f32 0.0, %v4838
        %v4840 = vpop.f32.mrf.mxu0
        %4841 = vmatprep.mubr.f32.mxu0 0.0
        %4842 = vmatmul.mubr.f32.gmra.mxu0 %v4688
        %v4843 = vpop.f32.mrf.mxu0
        %v4844 = vadd.f32 0.0, %v4843
        %v4845 = vpop.f32.mrf.mxu0
        %4846 = vmatprep.mubr.f32.mxu0 0.0
        %4847 = vmatmul.mubr.f32.gmra.mxu0 %v4689
        %v4848 = vpop.f32.mrf.mxu0
        %v4849 = vadd.f32 0.0, %v4848
        %v4850 = vpop.f32.mrf.mxu0
        %4851 = vdwg.mxu0
        %v4852 = vadd.f32 %v4596, %v4774
        %v4853 = vadd.f32 %v4601, %v4779
        %v4854 = vadd.f32 %v4606, %v4784
        %v4855 = vadd.f32 %v4611, %v4789
        %v4856 = vadd.f32 %v4616, %v4794
        %v4857 = vadd.f32 %v4621, %v4799
        %v4858 = vadd.f32 %v4626, %v4804
        %v4859 = vadd.f32 %v4631, %v4809
        %v4860 = vadd.f32 %v4636, %v4814
        %v4861 = vadd.f32 %v4641, %v4819
        %v4862 = vadd.f32 %v4646, %v4824
        %v4863 = vadd.f32 %v4651, %v4829
        %v4864 = vadd.f32 %v4656, %v4834
        %v4865 = vadd.f32 %v4661, %v4839
        %v4866 = vadd.f32 %v4666, %v4844
        %v4867 = vadd.f32 %v4671, %v4849
        %v4868 = vld [vmem:[%s4302 + $0x7] sm:$0xff]
        %v4869 = vld [vmem:[%s4302 + $0x1f] sm:$0xff]
        %v4870 = vld [vmem:[%s4302 + $0x37] sm:$0xff]
        %v4871 = vld [vmem:[%s4302 + $0x4f] sm:$0xff]
        %v4872 = vld [vmem:[%s4302 + $0x67] sm:$0xff]
        %v4873 = vld [vmem:[%s4302 + $0x7f] sm:$0xff]
        %v4874 = vld [vmem:[%s4302 + $0x97] sm:$0xff]
        %v4875 = vld [vmem:[%s4302 + $0xaf] sm:$0xff]
        %v4876 = vld [vmem:[%s4302 + $0xc7] sm:$0xff]
        %v4877 = vld [vmem:[%s4302 + $0xdf] sm:$0xff]
        %v4878 = vld [vmem:[%s4302 + $0xf7] sm:$0xff]
        %v4879 = vld [vmem:[%s4302 + $0x10f] sm:$0xff]
        %v4880 = vld [vmem:[%s4302 + $0x127] sm:$0xff]
        %v4881 = vld [vmem:[%s4302 + $0x13f] sm:$0xff]
        %v4882 = vld [vmem:[%s4302 + $0x157] sm:$0xff]
        %v4883 = vld [vmem:[%s4302 + $0x16f] sm:$0xff]
        %s4884 = scalar_lea.vmem [#allocation15], 384
        %v4885 = vld [vmem:[%s4884] sm:$0xff]
        %v4886 = vld [vmem:[%s4884 + $0x8] sm:$0xff]
        %v4887 = vld [vmem:[%s4884 + $0x10] sm:$0xff]
        %v4888 = vld [vmem:[%s4884 + $0x18] sm:$0xff]
        %v4889 = vld [vmem:[%s4884 + $0x20] sm:$0xff]
        %v4890 = vld [vmem:[%s4884 + $0x28] sm:$0xff]
        %v4891 = vld [vmem:[%s4884 + $0x30] sm:$0xff]
        %v4892 = vld [vmem:[%s4884 + $0x38] sm:$0xff]
        %v4893 = vld [vmem:[%s4884 + $0x40] sm:$0xff]
        %v4894 = vld [vmem:[%s4884 + $0x48] sm:$0xff]
        %v4895 = vld [vmem:[%s4884 + $0x50] sm:$0xff]
        %v4896 = vld [vmem:[%s4884 + $0x58] sm:$0xff]
        %v4897 = vld [vmem:[%s4884 + $0x60] sm:$0xff]
        %v4898 = vld [vmem:[%s4884 + $0x68] sm:$0xff]
        %v4899 = vld [vmem:[%s4884 + $0x70] sm:$0xff]
        %v4900 = vld [vmem:[%s4884 + $0x78] sm:$0xff]
        %4901 = vmatprep.subr.mxu0 0.0
        %4902 = vmatpush1.msra.mxu0 %v4900
        %4903 = vmatprep.subr.mxu0 0.0
        %4904 = vmatpush1.msra.mxu0 %v4899
        %4905 = vmatprep.subr.mxu0 0.0
        %4906 = vmatpush1.msra.mxu0 %v4898
        %4907 = vmatprep.subr.mxu0 0.0
        %4908 = vmatpush1.msra.mxu0 %v4897
        %4909 = vmatprep.subr.mxu0 0.0
        %4910 = vmatpush1.msra.mxu0 %v4896
        %4911 = vmatprep.subr.mxu0 0.0
        %4912 = vmatpush1.msra.mxu0 %v4895
        %4913 = vmatprep.subr.mxu0 0.0
        %4914 = vmatpush1.msra.mxu0 %v4894
        %4915 = vmatprep.subr.mxu0 0.0
        %4916 = vmatpush1.msra.mxu0 %v4893
        %4917 = vmatprep.subr.mxu0 0.0
        %4918 = vmatpush1.msra.mxu0 %v4892
        %4919 = vmatprep.subr.mxu0 0.0
        %4920 = vmatpush1.msra.mxu0 %v4891
        %4921 = vmatprep.subr.mxu0 0.0
        %4922 = vmatpush1.msra.mxu0 %v4890
        %4923 = vmatprep.subr.mxu0 0.0
        %4924 = vmatpush1.msra.mxu0 %v4889
        %4925 = vmatprep.subr.mxu0 0.0
        %4926 = vmatpush1.msra.mxu0 %v4888
        %4927 = vmatprep.subr.mxu0 0.0
        %4928 = vmatpush1.msra.mxu0 %v4887
        %4929 = vmatprep.subr.mxu0 0.0
        %4930 = vmatpush1.msra.mxu0 %v4886
        %4931 = vmatprep.subr.mxu0 0.0
        %4932 = vmatpush1.msra.mxu0 %v4885
        %4933 = vmatprep.subr.mxu0 0.0
        %4934 = vmatpush2.msra.mxu0 0.0
        %4935 = vmatprep.subr.mxu0 0.0
        %4936 = vmatpush2.msra.mxu0 0.0
        %4937 = vmatprep.subr.mxu0 0.0
        %4938 = vmatpush2.msra.mxu0 0.0
        %4939 = vmatprep.subr.mxu0 0.0
        %4940 = vmatpush2.msra.mxu0 0.0
        %4941 = vmatprep.subr.mxu0 0.0
        %4942 = vmatpush2.msra.mxu0 0.0
        %4943 = vmatprep.subr.mxu0 0.0
        %4944 = vmatpush2.msra.mxu0 0.0
        %4945 = vmatprep.subr.mxu0 0.0
        %4946 = vmatpush2.msra.mxu0 0.0
        %4947 = vmatprep.subr.mxu0 0.0
        %4948 = vmatpush2.msra.mxu0 0.0
        %4949 = vmatprep.subr.mxu0 0.0
        %4950 = vmatpush2.msra.mxu0 0.0
        %4951 = vmatprep.subr.mxu0 0.0
        %4952 = vmatpush2.msra.mxu0 0.0
        %4953 = vmatprep.subr.mxu0 0.0
        %4954 = vmatpush2.msra.mxu0 0.0
        %4955 = vmatprep.subr.mxu0 0.0
        %4956 = vmatpush2.msra.mxu0 0.0
        %4957 = vmatprep.subr.mxu0 0.0
        %4958 = vmatpush2.msra.mxu0 0.0
        %4959 = vmatprep.subr.mxu0 0.0
        %4960 = vmatpush2.msra.mxu0 0.0
        %4961 = vmatprep.subr.mxu0 0.0
        %4962 = vmatpush2.msra.mxu0 0.0
        %4963 = vmatprep.subr.mxu0 0.0
        %4964 = vmatpush2.msra.mxu0 0.0
        %4965 = vmatprep.mubr.f32.mxu0 0.0
        %4966 = vmatmul.mubr.f32.gmra.mxu0 %v4868
        %v4967 = vpop.f32.mrf.mxu0
        %v4968 = vadd.f32 0.0, %v4967
        %v4969 = vpop.f32.mrf.mxu0
        %4970 = vmatprep.mubr.f32.mxu0 0.0
        %4971 = vmatmul.mubr.f32.gmra.mxu0 %v4869
        %v4972 = vpop.f32.mrf.mxu0
        %v4973 = vadd.f32 0.0, %v4972
        %v4974 = vpop.f32.mrf.mxu0
        %4975 = vmatprep.mubr.f32.mxu0 0.0
        %4976 = vmatmul.mubr.f32.gmra.mxu0 %v4870
        %v4977 = vpop.f32.mrf.mxu0
        %v4978 = vadd.f32 0.0, %v4977
        %v4979 = vpop.f32.mrf.mxu0
        %4980 = vmatprep.mubr.f32.mxu0 0.0
        %4981 = vmatmul.mubr.f32.gmra.mxu0 %v4871
        %v4982 = vpop.f32.mrf.mxu0
        %v4983 = vadd.f32 0.0, %v4982
        %v4984 = vpop.f32.mrf.mxu0
        %4985 = vmatprep.mubr.f32.mxu0 0.0
        %4986 = vmatmul.mubr.f32.gmra.mxu0 %v4872
        %v4987 = vpop.f32.mrf.mxu0
        %v4988 = vadd.f32 0.0, %v4987
        %v4989 = vpop.f32.mrf.mxu0
        %4990 = vmatprep.mubr.f32.mxu0 0.0
        %4991 = vmatmul.mubr.f32.gmra.mxu0 %v4873
        %v4992 = vpop.f32.mrf.mxu0
        %v4993 = vadd.f32 0.0, %v4992
        %v4994 = vpop.f32.mrf.mxu0
        %4995 = vmatprep.mubr.f32.mxu0 0.0
        %4996 = vmatmul.mubr.f32.gmra.mxu0 %v4874
        %v4997 = vpop.f32.mrf.mxu0
        %v4998 = vadd.f32 0.0, %v4997
        %v4999 = vpop.f32.mrf.mxu0
        %5000 = vmatprep.mubr.f32.mxu0 0.0
        %5001 = vmatmul.mubr.f32.gmra.mxu0 %v4875
        %v5002 = vpop.f32.mrf.mxu0
        %v5003 = vadd.f32 0.0, %v5002
        %v5004 = vpop.f32.mrf.mxu0
        %5005 = vmatprep.mubr.f32.mxu0 0.0
        %5006 = vmatmul.mubr.f32.gmra.mxu0 %v4876
        %v5007 = vpop.f32.mrf.mxu0
        %v5008 = vadd.f32 0.0, %v5007
        %v5009 = vpop.f32.mrf.mxu0
        %5010 = vmatprep.mubr.f32.mxu0 0.0
        %5011 = vmatmul.mubr.f32.gmra.mxu0 %v4877
        %v5012 = vpop.f32.mrf.mxu0
        %v5013 = vadd.f32 0.0, %v5012
        %v5014 = vpop.f32.mrf.mxu0
        %5015 = vmatprep.mubr.f32.mxu0 0.0
        %5016 = vmatmul.mubr.f32.gmra.mxu0 %v4878
        %v5017 = vpop.f32.mrf.mxu0
        %v5018 = vadd.f32 0.0, %v5017
        %v5019 = vpop.f32.mrf.mxu0
        %5020 = vmatprep.mubr.f32.mxu0 0.0
        %5021 = vmatmul.mubr.f32.gmra.mxu0 %v4879
        %v5022 = vpop.f32.mrf.mxu0
        %v5023 = vadd.f32 0.0, %v5022
        %v5024 = vpop.f32.mrf.mxu0
        %5025 = vmatprep.mubr.f32.mxu0 0.0
        %5026 = vmatmul.mubr.f32.gmra.mxu0 %v4880
        %v5027 = vpop.f32.mrf.mxu0
        %v5028 = vadd.f32 0.0, %v5027
        %v5029 = vpop.f32.mrf.mxu0
        %5030 = vmatprep.mubr.f32.mxu0 0.0
        %5031 = vmatmul.mubr.f32.gmra.mxu0 %v4881
        %v5032 = vpop.f32.mrf.mxu0
        %v5033 = vadd.f32 0.0, %v5032
        %v5034 = vpop.f32.mrf.mxu0
        %5035 = vmatprep.mubr.f32.mxu0 0.0
        %5036 = vmatmul.mubr.f32.gmra.mxu0 %v4882
        %v5037 = vpop.f32.mrf.mxu0
        %v5038 = vadd.f32 0.0, %v5037
        %v5039 = vpop.f32.mrf.mxu0
        %5040 = vmatprep.mubr.f32.mxu0 0.0
        %5041 = vmatmul.mubr.f32.gmra.mxu0 %v4883
        %v5042 = vpop.f32.mrf.mxu0
        %v5043 = vadd.f32 0.0, %v5042
        %v5044 = vpop.f32.mrf.mxu0
        %5045 = vdwg.mxu0
        %v5046 = vadd.f32 %v4852, %v4968
        %v5047 = vadd.f32 %v4853, %v4973
        %v5048 = vadd.f32 %v4854, %v4978
        %v5049 = vadd.f32 %v4855, %v4983
        %v5050 = vadd.f32 %v4856, %v4988
        %v5051 = vadd.f32 %v4857, %v4993
        %v5052 = vadd.f32 %v4858, %v4998
        %v5053 = vadd.f32 %v4859, %v5003
        %v5054 = vadd.f32 %v4860, %v5008
        %v5055 = vadd.f32 %v4861, %v5013
        %v5056 = vadd.f32 %v4862, %v5018
        %v5057 = vadd.f32 %v4863, %v5023
        %v5058 = vadd.f32 %v4864, %v5028
        %v5059 = vadd.f32 %v4865, %v5033
        %v5060 = vadd.f32 %v4866, %v5038
        %v5061 = vadd.f32 %v4867, %v5043
        %v5062 = vld [vmem:[%s4302 + $0x8] sm:$0xff]
        %v5063 = vld [vmem:[%s4302 + $0x20] sm:$0xff]
        %v5064 = vld [vmem:[%s4302 + $0x38] sm:$0xff]
        %v5065 = vld [vmem:[%s4302 + $0x50] sm:$0xff]
        %v5066 = vld [vmem:[%s4302 + $0x68] sm:$0xff]
        %v5067 = vld [vmem:[%s4302 + $0x80] sm:$0xff]
        %v5068 = vld [vmem:[%s4302 + $0x98] sm:$0xff]
        %v5069 = vld [vmem:[%s4302 + $0xb0] sm:$0xff]
        %v5070 = vld [vmem:[%s4302 + $0xc8] sm:$0xff]
        %v5071 = vld [vmem:[%s4302 + $0xe0] sm:$0xff]
        %v5072 = vld [vmem:[%s4302 + $0xf8] sm:$0xff]
        %v5073 = vld [vmem:[%s4302 + $0x110] sm:$0xff]
        %v5074 = vld [vmem:[%s4302 + $0x128] sm:$0xff]
        %v5075 = vld [vmem:[%s4302 + $0x140] sm:$0xff]
        %v5076 = vld [vmem:[%s4302 + $0x158] sm:$0xff]
        %v5077 = vld [vmem:[%s4302 + $0x170] sm:$0xff]
        %s5078 = scalar_lea.vmem [#allocation15], 512
        %v5079 = vld [vmem:[%s5078] sm:$0xff]
        %v5080 = vld [vmem:[%s5078 + $0x8] sm:$0xff]
        %v5081 = vld [vmem:[%s5078 + $0x10] sm:$0xff]
        %v5082 = vld [vmem:[%s5078 + $0x18] sm:$0xff]
        %v5083 = vld [vmem:[%s5078 + $0x20] sm:$0xff]
        %v5084 = vld [vmem:[%s5078 + $0x28] sm:$0xff]
        %v5085 = vld [vmem:[%s5078 + $0x30] sm:$0xff]
        %v5086 = vld [vmem:[%s5078 + $0x38] sm:$0xff]
        %v5087 = vld [vmem:[%s5078 + $0x40] sm:$0xff]
        %v5088 = vld [vmem:[%s5078 + $0x48] sm:$0xff]
        %v5089 = vld [vmem:[%s5078 + $0x50] sm:$0xff]
        %v5090 = vld [vmem:[%s5078 + $0x58] sm:$0xff]
        %v5091 = vld [vmem:[%s5078 + $0x60] sm:$0xff]
        %v5092 = vld [vmem:[%s5078 + $0x68] sm:$0xff]
        %v5093 = vld [vmem:[%s5078 + $0x70] sm:$0xff]
        %v5094 = vld [vmem:[%s5078 + $0x78] sm:$0xff]
        %5095 = vmatprep.subr.mxu0 0.0
        %5096 = vmatpush1.msra.mxu0 %v5094
        %5097 = vmatprep.subr.mxu0 0.0
        %5098 = vmatpush1.msra.mxu0 %v5093
        %5099 = vmatprep.subr.mxu0 0.0
        %5100 = vmatpush1.msra.mxu0 %v5092
        %5101 = vmatprep.subr.mxu0 0.0
        %5102 = vmatpush1.msra.mxu0 %v5091
        %5103 = vmatprep.subr.mxu0 0.0
        %5104 = vmatpush1.msra.mxu0 %v5090
        %5105 = vmatprep.subr.mxu0 0.0
        %5106 = vmatpush1.msra.mxu0 %v5089
        %5107 = vmatprep.subr.mxu0 0.0
        %5108 = vmatpush1.msra.mxu0 %v5088
        %5109 = vmatprep.subr.mxu0 0.0
        %5110 = vmatpush1.msra.mxu0 %v5087
        %5111 = vmatprep.subr.mxu0 0.0
        %5112 = vmatpush1.msra.mxu0 %v5086
        %5113 = vmatprep.subr.mxu0 0.0
        %5114 = vmatpush1.msra.mxu0 %v5085
        %5115 = vmatprep.subr.mxu0 0.0
        %5116 = vmatpush1.msra.mxu0 %v5084
        %5117 = vmatprep.subr.mxu0 0.0
        %5118 = vmatpush1.msra.mxu0 %v5083
        %5119 = vmatprep.subr.mxu0 0.0
        %5120 = vmatpush1.msra.mxu0 %v5082
        %5121 = vmatprep.subr.mxu0 0.0
        %5122 = vmatpush1.msra.mxu0 %v5081
        %5123 = vmatprep.subr.mxu0 0.0
        %5124 = vmatpush1.msra.mxu0 %v5080
        %5125 = vmatprep.subr.mxu0 0.0
        %5126 = vmatpush1.msra.mxu0 %v5079
        %5127 = vmatprep.subr.mxu0 0.0
        %5128 = vmatpush2.msra.mxu0 0.0
        %5129 = vmatprep.subr.mxu0 0.0
        %5130 = vmatpush2.msra.mxu0 0.0
        %5131 = vmatprep.subr.mxu0 0.0
        %5132 = vmatpush2.msra.mxu0 0.0
        %5133 = vmatprep.subr.mxu0 0.0
        %5134 = vmatpush2.msra.mxu0 0.0
        %5135 = vmatprep.subr.mxu0 0.0
        %5136 = vmatpush2.msra.mxu0 0.0
        %5137 = vmatprep.subr.mxu0 0.0
        %5138 = vmatpush2.msra.mxu0 0.0
        %5139 = vmatprep.subr.mxu0 0.0
        %5140 = vmatpush2.msra.mxu0 0.0
        %5141 = vmatprep.subr.mxu0 0.0
        %5142 = vmatpush2.msra.mxu0 0.0
        %5143 = vmatprep.subr.mxu0 0.0
        %5144 = vmatpush2.msra.mxu0 0.0
        %5145 = vmatprep.subr.mxu0 0.0
        %5146 = vmatpush2.msra.mxu0 0.0
        %5147 = vmatprep.subr.mxu0 0.0
        %5148 = vmatpush2.msra.mxu0 0.0
        %5149 = vmatprep.subr.mxu0 0.0
        %5150 = vmatpush2.msra.mxu0 0.0
        %5151 = vmatprep.subr.mxu0 0.0
        %5152 = vmatpush2.msra.mxu0 0.0
        %5153 = vmatprep.subr.mxu0 0.0
        %5154 = vmatpush2.msra.mxu0 0.0
        %5155 = vmatprep.subr.mxu0 0.0
        %5156 = vmatpush2.msra.mxu0 0.0
        %5157 = vmatprep.subr.mxu0 0.0
        %5158 = vmatpush2.msra.mxu0 0.0
        %5159 = vmatprep.mubr.f32.mxu0 0.0
        %5160 = vmatmul.mubr.f32.gmra.mxu0 %v5062
        %v5161 = vpop.f32.mrf.mxu0
        %v5162 = vadd.f32 0.0, %v5161
        %v5163 = vpop.f32.mrf.mxu0
        %5164 = vmatprep.mubr.f32.mxu0 0.0
        %5165 = vmatmul.mubr.f32.gmra.mxu0 %v5063
        %v5166 = vpop.f32.mrf.mxu0
        %v5167 = vadd.f32 0.0, %v5166
        %v5168 = vpop.f32.mrf.mxu0
        %5169 = vmatprep.mubr.f32.mxu0 0.0
        %5170 = vmatmul.mubr.f32.gmra.mxu0 %v5064
        %v5171 = vpop.f32.mrf.mxu0
        %v5172 = vadd.f32 0.0, %v5171
        %v5173 = vpop.f32.mrf.mxu0
        %5174 = vmatprep.mubr.f32.mxu0 0.0
        %5175 = vmatmul.mubr.f32.gmra.mxu0 %v5065
        %v5176 = vpop.f32.mrf.mxu0
        %v5177 = vadd.f32 0.0, %v5176
        %v5178 = vpop.f32.mrf.mxu0
        %5179 = vmatprep.mubr.f32.mxu0 0.0
        %5180 = vmatmul.mubr.f32.gmra.mxu0 %v5066
        %v5181 = vpop.f32.mrf.mxu0
        %v5182 = vadd.f32 0.0, %v5181
        %v5183 = vpop.f32.mrf.mxu0
        %5184 = vmatprep.mubr.f32.mxu0 0.0
        %5185 = vmatmul.mubr.f32.gmra.mxu0 %v5067
        %v5186 = vpop.f32.mrf.mxu0
        %v5187 = vadd.f32 0.0, %v5186
        %v5188 = vpop.f32.mrf.mxu0
        %5189 = vmatprep.mubr.f32.mxu0 0.0
        %5190 = vmatmul.mubr.f32.gmra.mxu0 %v5068
        %v5191 = vpop.f32.mrf.mxu0
        %v5192 = vadd.f32 0.0, %v5191
        %v5193 = vpop.f32.mrf.mxu0
        %5194 = vmatprep.mubr.f32.mxu0 0.0
        %5195 = vmatmul.mubr.f32.gmra.mxu0 %v5069
        %v5196 = vpop.f32.mrf.mxu0
        %v5197 = vadd.f32 0.0, %v5196
        %v5198 = vpop.f32.mrf.mxu0
        %5199 = vmatprep.mubr.f32.mxu0 0.0
        %5200 = vmatmul.mubr.f32.gmra.mxu0 %v5070
        %v5201 = vpop.f32.mrf.mxu0
        %v5202 = vadd.f32 0.0, %v5201
        %v5203 = vpop.f32.mrf.mxu0
        %5204 = vmatprep.mubr.f32.mxu0 0.0
        %5205 = vmatmul.mubr.f32.gmra.mxu0 %v5071
        %v5206 = vpop.f32.mrf.mxu0
        %v5207 = vadd.f32 0.0, %v5206
        %v5208 = vpop.f32.mrf.mxu0
        %5209 = vmatprep.mubr.f32.mxu0 0.0
        %5210 = vmatmul.mubr.f32.gmra.mxu0 %v5072
        %v5211 = vpop.f32.mrf.mxu0
        %v5212 = vadd.f32 0.0, %v5211
        %v5213 = vpop.f32.mrf.mxu0
        %5214 = vmatprep.mubr.f32.mxu0 0.0
        %5215 = vmatmul.mubr.f32.gmra.mxu0 %v5073
        %v5216 = vpop.f32.mrf.mxu0
        %v5217 = vadd.f32 0.0, %v5216
        %v5218 = vpop.f32.mrf.mxu0
        %5219 = vmatprep.mubr.f32.mxu0 0.0
        %5220 = vmatmul.mubr.f32.gmra.mxu0 %v5074
        %v5221 = vpop.f32.mrf.mxu0
        %v5222 = vadd.f32 0.0, %v5221
        %v5223 = vpop.f32.mrf.mxu0
        %5224 = vmatprep.mubr.f32.mxu0 0.0
        %5225 = vmatmul.mubr.f32.gmra.mxu0 %v5075
        %v5226 = vpop.f32.mrf.mxu0
        %v5227 = vadd.f32 0.0, %v5226
        %v5228 = vpop.f32.mrf.mxu0
        %5229 = vmatprep.mubr.f32.mxu0 0.0
        %5230 = vmatmul.mubr.f32.gmra.mxu0 %v5076
        %v5231 = vpop.f32.mrf.mxu0
        %v5232 = vadd.f32 0.0, %v5231
        %v5233 = vpop.f32.mrf.mxu0
        %5234 = vmatprep.mubr.f32.mxu0 0.0
        %5235 = vmatmul.mubr.f32.gmra.mxu0 %v5077
        %v5236 = vpop.f32.mrf.mxu0
        %v5237 = vadd.f32 0.0, %v5236
        %v5238 = vpop.f32.mrf.mxu0
        %5239 = vdwg.mxu0
        %v5240 = vadd.f32 %v5046, %v5162
        %v5241 = vadd.f32 %v5047, %v5167
        %v5242 = vadd.f32 %v5048, %v5172
        %v5243 = vadd.f32 %v5049, %v5177
        %v5244 = vadd.f32 %v5050, %v5182
        %v5245 = vadd.f32 %v5051, %v5187
        %v5246 = vadd.f32 %v5052, %v5192
        %v5247 = vadd.f32 %v5053, %v5197
        %v5248 = vadd.f32 %v5054, %v5202
        %v5249 = vadd.f32 %v5055, %v5207
        %v5250 = vadd.f32 %v5056, %v5212
        %v5251 = vadd.f32 %v5057, %v5217
        %v5252 = vadd.f32 %v5058, %v5222
        %v5253 = vadd.f32 %v5059, %v5227
        %v5254 = vadd.f32 %v5060, %v5232
        %v5255 = vadd.f32 %v5061, %v5237
        %v5256 = vld [vmem:[%s4302 + $0x9] sm:$0xff]
        %v5257 = vld [vmem:[%s4302 + $0x21] sm:$0xff]
        %v5258 = vld [vmem:[%s4302 + $0x39] sm:$0xff]
        %v5259 = vld [vmem:[%s4302 + $0x51] sm:$0xff]
        %v5260 = vld [vmem:[%s4302 + $0x69] sm:$0xff]
        %v5261 = vld [vmem:[%s4302 + $0x81] sm:$0xff]
        %v5262 = vld [vmem:[%s4302 + $0x99] sm:$0xff]
        %v5263 = vld [vmem:[%s4302 + $0xb1] sm:$0xff]
        %v5264 = vld [vmem:[%s4302 + $0xc9] sm:$0xff]
        %v5265 = vld [vmem:[%s4302 + $0xe1] sm:$0xff]
        %v5266 = vld [vmem:[%s4302 + $0xf9] sm:$0xff]
        %v5267 = vld [vmem:[%s4302 + $0x111] sm:$0xff]
        %v5268 = vld [vmem:[%s4302 + $0x129] sm:$0xff]
        %v5269 = vld [vmem:[%s4302 + $0x141] sm:$0xff]
        %v5270 = vld [vmem:[%s4302 + $0x159] sm:$0xff]
        %v5271 = vld [vmem:[%s4302 + $0x171] sm:$0xff]
        %s5272 = scalar_lea.vmem [#allocation15], 640
        %v5273 = vld [vmem:[%s5272] sm:$0xff]
        %v5274 = vld [vmem:[%s5272 + $0x8] sm:$0xff]
        %v5275 = vld [vmem:[%s5272 + $0x10] sm:$0xff]
        %v5276 = vld [vmem:[%s5272 + $0x18] sm:$0xff]
        %v5277 = vld [vmem:[%s5272 + $0x20] sm:$0xff]
        %v5278 = vld [vmem:[%s5272 + $0x28] sm:$0xff]
        %v5279 = vld [vmem:[%s5272 + $0x30] sm:$0xff]
        %v5280 = vld [vmem:[%s5272 + $0x38] sm:$0xff]
        %v5281 = vld [vmem:[%s5272 + $0x40] sm:$0xff]
        %v5282 = vld [vmem:[%s5272 + $0x48] sm:$0xff]
        %v5283 = vld [vmem:[%s5272 + $0x50] sm:$0xff]
        %v5284 = vld [vmem:[%s5272 + $0x58] sm:$0xff]
        %v5285 = vld [vmem:[%s5272 + $0x60] sm:$0xff]
        %v5286 = vld [vmem:[%s5272 + $0x68] sm:$0xff]
        %v5287 = vld [vmem:[%s5272 + $0x70] sm:$0xff]
        %v5288 = vld [vmem:[%s5272 + $0x78] sm:$0xff]
        %5289 = vmatprep.subr.mxu0 0.0
        %5290 = vmatpush1.msra.mxu0 %v5288
        %5291 = vmatprep.subr.mxu0 0.0
        %5292 = vmatpush1.msra.mxu0 %v5287
        %5293 = vmatprep.subr.mxu0 0.0
        %5294 = vmatpush1.msra.mxu0 %v5286
        %5295 = vmatprep.subr.mxu0 0.0
        %5296 = vmatpush1.msra.mxu0 %v5285
        %5297 = vmatprep.subr.mxu0 0.0
        %5298 = vmatpush1.msra.mxu0 %v5284
        %5299 = vmatprep.subr.mxu0 0.0
        %5300 = vmatpush1.msra.mxu0 %v5283
        %5301 = vmatprep.subr.mxu0 0.0
        %5302 = vmatpush1.msra.mxu0 %v5282
        %5303 = vmatprep.subr.mxu0 0.0
        %5304 = vmatpush1.msra.mxu0 %v5281
        %5305 = vmatprep.subr.mxu0 0.0
        %5306 = vmatpush1.msra.mxu0 %v5280
        %5307 = vmatprep.subr.mxu0 0.0
        %5308 = vmatpush1.msra.mxu0 %v5279
        %5309 = vmatprep.subr.mxu0 0.0
        %5310 = vmatpush1.msra.mxu0 %v5278
        %5311 = vmatprep.subr.mxu0 0.0
        %5312 = vmatpush1.msra.mxu0 %v5277
        %5313 = vmatprep.subr.mxu0 0.0
        %5314 = vmatpush1.msra.mxu0 %v5276
        %5315 = vmatprep.subr.mxu0 0.0
        %5316 = vmatpush1.msra.mxu0 %v5275
        %5317 = vmatprep.subr.mxu0 0.0
        %5318 = vmatpush1.msra.mxu0 %v5274
        %5319 = vmatprep.subr.mxu0 0.0
        %5320 = vmatpush1.msra.mxu0 %v5273
        %5321 = vmatprep.subr.mxu0 0.0
        %5322 = vmatpush2.msra.mxu0 0.0
        %5323 = vmatprep.subr.mxu0 0.0
        %5324 = vmatpush2.msra.mxu0 0.0
        %5325 = vmatprep.subr.mxu0 0.0
        %5326 = vmatpush2.msra.mxu0 0.0
        %5327 = vmatprep.subr.mxu0 0.0
        %5328 = vmatpush2.msra.mxu0 0.0
        %5329 = vmatprep.subr.mxu0 0.0
        %5330 = vmatpush2.msra.mxu0 0.0
        %5331 = vmatprep.subr.mxu0 0.0
        %5332 = vmatpush2.msra.mxu0 0.0
        %5333 = vmatprep.subr.mxu0 0.0
        %5334 = vmatpush2.msra.mxu0 0.0
        %5335 = vmatprep.subr.mxu0 0.0
        %5336 = vmatpush2.msra.mxu0 0.0
        %5337 = vmatprep.subr.mxu0 0.0
        %5338 = vmatpush2.msra.mxu0 0.0
        %5339 = vmatprep.subr.mxu0 0.0
        %5340 = vmatpush2.msra.mxu0 0.0
        %5341 = vmatprep.subr.mxu0 0.0
        %5342 = vmatpush2.msra.mxu0 0.0
        %5343 = vmatprep.subr.mxu0 0.0
        %5344 = vmatpush2.msra.mxu0 0.0
        %5345 = vmatprep.subr.mxu0 0.0
        %5346 = vmatpush2.msra.mxu0 0.0
        %5347 = vmatprep.subr.mxu0 0.0
        %5348 = vmatpush2.msra.mxu0 0.0
        %5349 = vmatprep.subr.mxu0 0.0
        %5350 = vmatpush2.msra.mxu0 0.0
        %5351 = vmatprep.subr.mxu0 0.0
        %5352 = vmatpush2.msra.mxu0 0.0
        %5353 = vmatprep.mubr.f32.mxu0 0.0
        %5354 = vmatmul.mubr.f32.gmra.mxu0 %v5256
        %v5355 = vpop.f32.mrf.mxu0
        %v5356 = vadd.f32 0.0, %v5355
        %v5357 = vpop.f32.mrf.mxu0
        %5358 = vmatprep.mubr.f32.mxu0 0.0
        %5359 = vmatmul.mubr.f32.gmra.mxu0 %v5257
        %v5360 = vpop.f32.mrf.mxu0
        %v5361 = vadd.f32 0.0, %v5360
        %v5362 = vpop.f32.mrf.mxu0
        %5363 = vmatprep.mubr.f32.mxu0 0.0
        %5364 = vmatmul.mubr.f32.gmra.mxu0 %v5258
        %v5365 = vpop.f32.mrf.mxu0
        %v5366 = vadd.f32 0.0, %v5365
        %v5367 = vpop.f32.mrf.mxu0
        %5368 = vmatprep.mubr.f32.mxu0 0.0
        %5369 = vmatmul.mubr.f32.gmra.mxu0 %v5259
        %v5370 = vpop.f32.mrf.mxu0
        %v5371 = vadd.f32 0.0, %v5370
        %v5372 = vpop.f32.mrf.mxu0
        %5373 = vmatprep.mubr.f32.mxu0 0.0
        %5374 = vmatmul.mubr.f32.gmra.mxu0 %v5260
        %v5375 = vpop.f32.mrf.mxu0
        %v5376 = vadd.f32 0.0, %v5375
        %v5377 = vpop.f32.mrf.mxu0
        %5378 = vmatprep.mubr.f32.mxu0 0.0
        %5379 = vmatmul.mubr.f32.gmra.mxu0 %v5261
        %v5380 = vpop.f32.mrf.mxu0
        %v5381 = vadd.f32 0.0, %v5380
        %v5382 = vpop.f32.mrf.mxu0
        %5383 = vmatprep.mubr.f32.mxu0 0.0
        %5384 = vmatmul.mubr.f32.gmra.mxu0 %v5262
        %v5385 = vpop.f32.mrf.mxu0
        %v5386 = vadd.f32 0.0, %v5385
        %v5387 = vpop.f32.mrf.mxu0
        %5388 = vmatprep.mubr.f32.mxu0 0.0
        %5389 = vmatmul.mubr.f32.gmra.mxu0 %v5263
        %v5390 = vpop.f32.mrf.mxu0
        %v5391 = vadd.f32 0.0, %v5390
        %v5392 = vpop.f32.mrf.mxu0
        %5393 = vmatprep.mubr.f32.mxu0 0.0
        %5394 = vmatmul.mubr.f32.gmra.mxu0 %v5264
        %v5395 = vpop.f32.mrf.mxu0
        %v5396 = vadd.f32 0.0, %v5395
        %v5397 = vpop.f32.mrf.mxu0
        %5398 = vmatprep.mubr.f32.mxu0 0.0
        %5399 = vmatmul.mubr.f32.gmra.mxu0 %v5265
        %v5400 = vpop.f32.mrf.mxu0
        %v5401 = vadd.f32 0.0, %v5400
        %v5402 = vpop.f32.mrf.mxu0
        %5403 = vmatprep.mubr.f32.mxu0 0.0
        %5404 = vmatmul.mubr.f32.gmra.mxu0 %v5266
        %v5405 = vpop.f32.mrf.mxu0
        %v5406 = vadd.f32 0.0, %v5405
        %v5407 = vpop.f32.mrf.mxu0
        %5408 = vmatprep.mubr.f32.mxu0 0.0
        %5409 = vmatmul.mubr.f32.gmra.mxu0 %v5267
        %v5410 = vpop.f32.mrf.mxu0
        %v5411 = vadd.f32 0.0, %v5410
        %v5412 = vpop.f32.mrf.mxu0
        %5413 = vmatprep.mubr.f32.mxu0 0.0
        %5414 = vmatmul.mubr.f32.gmra.mxu0 %v5268
        %v5415 = vpop.f32.mrf.mxu0
        %v5416 = vadd.f32 0.0, %v5415
        %v5417 = vpop.f32.mrf.mxu0
        %5418 = vmatprep.mubr.f32.mxu0 0.0
        %5419 = vmatmul.mubr.f32.gmra.mxu0 %v5269
        %v5420 = vpop.f32.mrf.mxu0
        %v5421 = vadd.f32 0.0, %v5420
        %v5422 = vpop.f32.mrf.mxu0
        %5423 = vmatprep.mubr.f32.mxu0 0.0
        %5424 = vmatmul.mubr.f32.gmra.mxu0 %v5270
        %v5425 = vpop.f32.mrf.mxu0
        %v5426 = vadd.f32 0.0, %v5425
        %v5427 = vpop.f32.mrf.mxu0
        %5428 = vmatprep.mubr.f32.mxu0 0.0
        %5429 = vmatmul.mubr.f32.gmra.mxu0 %v5271
        %v5430 = vpop.f32.mrf.mxu0
        %v5431 = vadd.f32 0.0, %v5430
        %v5432 = vpop.f32.mrf.mxu0
        %5433 = vdwg.mxu0
        %v5434 = vadd.f32 %v5240, %v5356
        %v5435 = vadd.f32 %v5241, %v5361
        %v5436 = vadd.f32 %v5242, %v5366
        %v5437 = vadd.f32 %v5243, %v5371
        %v5438 = vadd.f32 %v5244, %v5376
        %v5439 = vadd.f32 %v5245, %v5381
        %v5440 = vadd.f32 %v5246, %v5386
        %v5441 = vadd.f32 %v5247, %v5391
        %v5442 = vadd.f32 %v5248, %v5396
        %v5443 = vadd.f32 %v5249, %v5401
        %v5444 = vadd.f32 %v5250, %v5406
        %v5445 = vadd.f32 %v5251, %v5411
        %v5446 = vadd.f32 %v5252, %v5416
        %v5447 = vadd.f32 %v5253, %v5421
        %v5448 = vadd.f32 %v5254, %v5426
        %v5449 = vadd.f32 %v5255, %v5431
        %s5450 = scalar_lea.vmem [#allocation3], 48
        %v5451 = vld [vmem:[%s5450 + $0x7] sm:$0xff]
        %v5452 = vld [vmem:[%s5450 + $0x1f] sm:$0xff]
        %v5453 = vld [vmem:[%s5450 + $0x37] sm:$0xff]
        %v5454 = vld [vmem:[%s5450 + $0x4f] sm:$0xff]
        %v5455 = vld [vmem:[%s5450 + $0x67] sm:$0xff]
        %v5456 = vld [vmem:[%s5450 + $0x7f] sm:$0xff]
        %v5457 = vld [vmem:[%s5450 + $0x97] sm:$0xff]
        %v5458 = vld [vmem:[%s5450 + $0xaf] sm:$0xff]
        %v5459 = vld [vmem:[%s5450 + $0xc7] sm:$0xff]
        %v5460 = vld [vmem:[%s5450 + $0xdf] sm:$0xff]
        %v5461 = vld [vmem:[%s5450 + $0xf7] sm:$0xff]
        %v5462 = vld [vmem:[%s5450 + $0x10f] sm:$0xff]
        %v5463 = vld [vmem:[%s5450 + $0x127] sm:$0xff]
        %v5464 = vld [vmem:[%s5450 + $0x13f] sm:$0xff]
        %v5465 = vld [vmem:[%s5450 + $0x157] sm:$0xff]
        %v5466 = vld [vmem:[%s5450 + $0x16f] sm:$0xff]
        %s5467 = scalar_lea.vmem [#allocation15], 768
        %v5468 = vld [vmem:[%s5467] sm:$0xff]
        %v5469 = vld [vmem:[%s5467 + $0x8] sm:$0xff]
        %v5470 = vld [vmem:[%s5467 + $0x10] sm:$0xff]
        %v5471 = vld [vmem:[%s5467 + $0x18] sm:$0xff]
        %v5472 = vld [vmem:[%s5467 + $0x20] sm:$0xff]
        %v5473 = vld [vmem:[%s5467 + $0x28] sm:$0xff]
        %v5474 = vld [vmem:[%s5467 + $0x30] sm:$0xff]
        %v5475 = vld [vmem:[%s5467 + $0x38] sm:$0xff]
        %v5476 = vld [vmem:[%s5467 + $0x40] sm:$0xff]
        %v5477 = vld [vmem:[%s5467 + $0x48] sm:$0xff]
        %v5478 = vld [vmem:[%s5467 + $0x50] sm:$0xff]
        %v5479 = vld [vmem:[%s5467 + $0x58] sm:$0xff]
        %v5480 = vld [vmem:[%s5467 + $0x60] sm:$0xff]
        %v5481 = vld [vmem:[%s5467 + $0x68] sm:$0xff]
        %v5482 = vld [vmem:[%s5467 + $0x70] sm:$0xff]
        %v5483 = vld [vmem:[%s5467 + $0x78] sm:$0xff]
        %5484 = vmatprep.subr.mxu0 0.0
        %5485 = vmatpush1.msra.mxu0 %v5483
        %5486 = vmatprep.subr.mxu0 0.0
        %5487 = vmatpush1.msra.mxu0 %v5482
        %5488 = vmatprep.subr.mxu0 0.0
        %5489 = vmatpush1.msra.mxu0 %v5481
        %5490 = vmatprep.subr.mxu0 0.0
        %5491 = vmatpush1.msra.mxu0 %v5480
        %5492 = vmatprep.subr.mxu0 0.0
        %5493 = vmatpush1.msra.mxu0 %v5479
        %5494 = vmatprep.subr.mxu0 0.0
        %5495 = vmatpush1.msra.mxu0 %v5478
        %5496 = vmatprep.subr.mxu0 0.0
        %5497 = vmatpush1.msra.mxu0 %v5477
        %5498 = vmatprep.subr.mxu0 0.0
        %5499 = vmatpush1.msra.mxu0 %v5476
        %5500 = vmatprep.subr.mxu0 0.0
        %5501 = vmatpush1.msra.mxu0 %v5475
        %5502 = vmatprep.subr.mxu0 0.0
        %5503 = vmatpush1.msra.mxu0 %v5474
        %5504 = vmatprep.subr.mxu0 0.0
        %5505 = vmatpush1.msra.mxu0 %v5473
        %5506 = vmatprep.subr.mxu0 0.0
        %5507 = vmatpush1.msra.mxu0 %v5472
        %5508 = vmatprep.subr.mxu0 0.0
        %5509 = vmatpush1.msra.mxu0 %v5471
        %5510 = vmatprep.subr.mxu0 0.0
        %5511 = vmatpush1.msra.mxu0 %v5470
        %5512 = vmatprep.subr.mxu0 0.0
        %5513 = vmatpush1.msra.mxu0 %v5469
        %5514 = vmatprep.subr.mxu0 0.0
        %5515 = vmatpush1.msra.mxu0 %v5468
        %5516 = vmatprep.subr.mxu0 0.0
        %5517 = vmatpush2.msra.mxu0 0.0
        %5518 = vmatprep.subr.mxu0 0.0
        %5519 = vmatpush2.msra.mxu0 0.0
        %5520 = vmatprep.subr.mxu0 0.0
        %5521 = vmatpush2.msra.mxu0 0.0
        %5522 = vmatprep.subr.mxu0 0.0
        %5523 = vmatpush2.msra.mxu0 0.0
        %5524 = vmatprep.subr.mxu0 0.0
        %5525 = vmatpush2.msra.mxu0 0.0
        %5526 = vmatprep.subr.mxu0 0.0
        %5527 = vmatpush2.msra.mxu0 0.0
        %5528 = vmatprep.subr.mxu0 0.0
        %5529 = vmatpush2.msra.mxu0 0.0
        %5530 = vmatprep.subr.mxu0 0.0
        %5531 = vmatpush2.msra.mxu0 0.0
        %5532 = vmatprep.subr.mxu0 0.0
        %5533 = vmatpush2.msra.mxu0 0.0
        %5534 = vmatprep.subr.mxu0 0.0
        %5535 = vmatpush2.msra.mxu0 0.0
        %5536 = vmatprep.subr.mxu0 0.0
        %5537 = vmatpush2.msra.mxu0 0.0
        %5538 = vmatprep.subr.mxu0 0.0
        %5539 = vmatpush2.msra.mxu0 0.0
        %5540 = vmatprep.subr.mxu0 0.0
        %5541 = vmatpush2.msra.mxu0 0.0
        %5542 = vmatprep.subr.mxu0 0.0
        %5543 = vmatpush2.msra.mxu0 0.0
        %5544 = vmatprep.subr.mxu0 0.0
        %5545 = vmatpush2.msra.mxu0 0.0
        %5546 = vmatprep.subr.mxu0 0.0
        %5547 = vmatpush2.msra.mxu0 0.0
        %5548 = vmatprep.mubr.f32.mxu0 0.0
        %5549 = vmatmul.mubr.f32.gmra.mxu0 %v5451
        %v5550 = vpop.f32.mrf.mxu0
        %v5551 = vadd.f32 0.0, %v5550
        %v5552 = vpop.f32.mrf.mxu0
        %5553 = vmatprep.mubr.f32.mxu0 0.0
        %5554 = vmatmul.mubr.f32.gmra.mxu0 %v5452
        %v5555 = vpop.f32.mrf.mxu0
        %v5556 = vadd.f32 0.0, %v5555
        %v5557 = vpop.f32.mrf.mxu0
        %5558 = vmatprep.mubr.f32.mxu0 0.0
        %5559 = vmatmul.mubr.f32.gmra.mxu0 %v5453
        %v5560 = vpop.f32.mrf.mxu0
        %v5561 = vadd.f32 0.0, %v5560
        %v5562 = vpop.f32.mrf.mxu0
        %5563 = vmatprep.mubr.f32.mxu0 0.0
        %5564 = vmatmul.mubr.f32.gmra.mxu0 %v5454
        %v5565 = vpop.f32.mrf.mxu0
        %v5566 = vadd.f32 0.0, %v5565
        %v5567 = vpop.f32.mrf.mxu0
        %5568 = vmatprep.mubr.f32.mxu0 0.0
        %5569 = vmatmul.mubr.f32.gmra.mxu0 %v5455
        %v5570 = vpop.f32.mrf.mxu0
        %v5571 = vadd.f32 0.0, %v5570
        %v5572 = vpop.f32.mrf.mxu0
        %5573 = vmatprep.mubr.f32.mxu0 0.0
        %5574 = vmatmul.mubr.f32.gmra.mxu0 %v5456
        %v5575 = vpop.f32.mrf.mxu0
        %v5576 = vadd.f32 0.0, %v5575
        %v5577 = vpop.f32.mrf.mxu0
        %5578 = vmatprep.mubr.f32.mxu0 0.0
        %5579 = vmatmul.mubr.f32.gmra.mxu0 %v5457
        %v5580 = vpop.f32.mrf.mxu0
        %v5581 = vadd.f32 0.0, %v5580
        %v5582 = vpop.f32.mrf.mxu0
        %5583 = vmatprep.mubr.f32.mxu0 0.0
        %5584 = vmatmul.mubr.f32.gmra.mxu0 %v5458
        %v5585 = vpop.f32.mrf.mxu0
        %v5586 = vadd.f32 0.0, %v5585
        %v5587 = vpop.f32.mrf.mxu0
        %5588 = vmatprep.mubr.f32.mxu0 0.0
        %5589 = vmatmul.mubr.f32.gmra.mxu0 %v5459
        %v5590 = vpop.f32.mrf.mxu0
        %v5591 = vadd.f32 0.0, %v5590
        %v5592 = vpop.f32.mrf.mxu0
        %5593 = vmatprep.mubr.f32.mxu0 0.0
        %5594 = vmatmul.mubr.f32.gmra.mxu0 %v5460
        %v5595 = vpop.f32.mrf.mxu0
        %v5596 = vadd.f32 0.0, %v5595
        %v5597 = vpop.f32.mrf.mxu0
        %5598 = vmatprep.mubr.f32.mxu0 0.0
        %5599 = vmatmul.mubr.f32.gmra.mxu0 %v5461
        %v5600 = vpop.f32.mrf.mxu0
        %v5601 = vadd.f32 0.0, %v5600
        %v5602 = vpop.f32.mrf.mxu0
        %5603 = vmatprep.mubr.f32.mxu0 0.0
        %5604 = vmatmul.mubr.f32.gmra.mxu0 %v5462
        %v5605 = vpop.f32.mrf.mxu0
        %v5606 = vadd.f32 0.0, %v5605
        %v5607 = vpop.f32.mrf.mxu0
        %5608 = vmatprep.mubr.f32.mxu0 0.0
        %5609 = vmatmul.mubr.f32.gmra.mxu0 %v5463
        %v5610 = vpop.f32.mrf.mxu0
        %v5611 = vadd.f32 0.0, %v5610
        %v5612 = vpop.f32.mrf.mxu0
        %5613 = vmatprep.mubr.f32.mxu0 0.0
        %5614 = vmatmul.mubr.f32.gmra.mxu0 %v5464
        %v5615 = vpop.f32.mrf.mxu0
        %v5616 = vadd.f32 0.0, %v5615
        %v5617 = vpop.f32.mrf.mxu0
        %5618 = vmatprep.mubr.f32.mxu0 0.0
        %5619 = vmatmul.mubr.f32.gmra.mxu0 %v5465
        %v5620 = vpop.f32.mrf.mxu0
        %v5621 = vadd.f32 0.0, %v5620
        %v5622 = vpop.f32.mrf.mxu0
        %5623 = vmatprep.mubr.f32.mxu0 0.0
        %5624 = vmatmul.mubr.f32.gmra.mxu0 %v5466
        %v5625 = vpop.f32.mrf.mxu0
        %v5626 = vadd.f32 0.0, %v5625
        %v5627 = vpop.f32.mrf.mxu0
        %5628 = vdwg.mxu0
        %v5629 = vadd.f32 %v5434, %v5551
        %v5630 = vadd.f32 %v5435, %v5556
        %v5631 = vadd.f32 %v5436, %v5561
        %v5632 = vadd.f32 %v5437, %v5566
        %v5633 = vadd.f32 %v5438, %v5571
        %v5634 = vadd.f32 %v5439, %v5576
        %v5635 = vadd.f32 %v5440, %v5581
        %v5636 = vadd.f32 %v5441, %v5586
        %v5637 = vadd.f32 %v5442, %v5591
        %v5638 = vadd.f32 %v5443, %v5596
        %v5639 = vadd.f32 %v5444, %v5601
        %v5640 = vadd.f32 %v5445, %v5606
        %v5641 = vadd.f32 %v5446, %v5611
        %v5642 = vadd.f32 %v5447, %v5616
        %v5643 = vadd.f32 %v5448, %v5621
        %v5644 = vadd.f32 %v5449, %v5626
        %v5645 = vld [vmem:[%s5450 + $0x8] sm:$0xff]
        %v5646 = vld [vmem:[%s5450 + $0x20] sm:$0xff]
        %v5647 = vld [vmem:[%s5450 + $0x38] sm:$0xff]
        %v5648 = vld [vmem:[%s5450 + $0x50] sm:$0xff]
        %v5649 = vld [vmem:[%s5450 + $0x68] sm:$0xff]
        %v5650 = vld [vmem:[%s5450 + $0x80] sm:$0xff]
        %v5651 = vld [vmem:[%s5450 + $0x98] sm:$0xff]
        %v5652 = vld [vmem:[%s5450 + $0xb0] sm:$0xff]
        %v5653 = vld [vmem:[%s5450 + $0xc8] sm:$0xff]
        %v5654 = vld [vmem:[%s5450 + $0xe0] sm:$0xff]
        %v5655 = vld [vmem:[%s5450 + $0xf8] sm:$0xff]
        %v5656 = vld [vmem:[%s5450 + $0x110] sm:$0xff]
        %v5657 = vld [vmem:[%s5450 + $0x128] sm:$0xff]
        %v5658 = vld [vmem:[%s5450 + $0x140] sm:$0xff]
        %v5659 = vld [vmem:[%s5450 + $0x158] sm:$0xff]
        %v5660 = vld [vmem:[%s5450 + $0x170] sm:$0xff]
        %s5661 = scalar_lea.vmem [#allocation15], 896
        %v5662 = vld [vmem:[%s5661] sm:$0xff]
        %v5663 = vld [vmem:[%s5661 + $0x8] sm:$0xff]
        %v5664 = vld [vmem:[%s5661 + $0x10] sm:$0xff]
        %v5665 = vld [vmem:[%s5661 + $0x18] sm:$0xff]
        %v5666 = vld [vmem:[%s5661 + $0x20] sm:$0xff]
        %v5667 = vld [vmem:[%s5661 + $0x28] sm:$0xff]
        %v5668 = vld [vmem:[%s5661 + $0x30] sm:$0xff]
        %v5669 = vld [vmem:[%s5661 + $0x38] sm:$0xff]
        %v5670 = vld [vmem:[%s5661 + $0x40] sm:$0xff]
        %v5671 = vld [vmem:[%s5661 + $0x48] sm:$0xff]
        %v5672 = vld [vmem:[%s5661 + $0x50] sm:$0xff]
        %v5673 = vld [vmem:[%s5661 + $0x58] sm:$0xff]
        %v5674 = vld [vmem:[%s5661 + $0x60] sm:$0xff]
        %v5675 = vld [vmem:[%s5661 + $0x68] sm:$0xff]
        %v5676 = vld [vmem:[%s5661 + $0x70] sm:$0xff]
        %v5677 = vld [vmem:[%s5661 + $0x78] sm:$0xff]
        %5678 = vmatprep.subr.mxu0 0.0
        %5679 = vmatpush1.msra.mxu0 %v5677
        %5680 = vmatprep.subr.mxu0 0.0
        %5681 = vmatpush1.msra.mxu0 %v5676
        %5682 = vmatprep.subr.mxu0 0.0
        %5683 = vmatpush1.msra.mxu0 %v5675
        %5684 = vmatprep.subr.mxu0 0.0
        %5685 = vmatpush1.msra.mxu0 %v5674
        %5686 = vmatprep.subr.mxu0 0.0
        %5687 = vmatpush1.msra.mxu0 %v5673
        %5688 = vmatprep.subr.mxu0 0.0
        %5689 = vmatpush1.msra.mxu0 %v5672
        %5690 = vmatprep.subr.mxu0 0.0
        %5691 = vmatpush1.msra.mxu0 %v5671
        %5692 = vmatprep.subr.mxu0 0.0
        %5693 = vmatpush1.msra.mxu0 %v5670
        %5694 = vmatprep.subr.mxu0 0.0
        %5695 = vmatpush1.msra.mxu0 %v5669
        %5696 = vmatprep.subr.mxu0 0.0
        %5697 = vmatpush1.msra.mxu0 %v5668
        %5698 = vmatprep.subr.mxu0 0.0
        %5699 = vmatpush1.msra.mxu0 %v5667
        %5700 = vmatprep.subr.mxu0 0.0
        %5701 = vmatpush1.msra.mxu0 %v5666
        %5702 = vmatprep.subr.mxu0 0.0
        %5703 = vmatpush1.msra.mxu0 %v5665
        %5704 = vmatprep.subr.mxu0 0.0
        %5705 = vmatpush1.msra.mxu0 %v5664
        %5706 = vmatprep.subr.mxu0 0.0
        %5707 = vmatpush1.msra.mxu0 %v5663
        %5708 = vmatprep.subr.mxu0 0.0
        %5709 = vmatpush1.msra.mxu0 %v5662
        %5710 = vmatprep.subr.mxu0 0.0
        %5711 = vmatpush2.msra.mxu0 0.0
        %5712 = vmatprep.subr.mxu0 0.0
        %5713 = vmatpush2.msra.mxu0 0.0
        %5714 = vmatprep.subr.mxu0 0.0
        %5715 = vmatpush2.msra.mxu0 0.0
        %5716 = vmatprep.subr.mxu0 0.0
        %5717 = vmatpush2.msra.mxu0 0.0
        %5718 = vmatprep.subr.mxu0 0.0
        %5719 = vmatpush2.msra.mxu0 0.0
        %5720 = vmatprep.subr.mxu0 0.0
        %5721 = vmatpush2.msra.mxu0 0.0
        %5722 = vmatprep.subr.mxu0 0.0
        %5723 = vmatpush2.msra.mxu0 0.0
        %5724 = vmatprep.subr.mxu0 0.0
        %5725 = vmatpush2.msra.mxu0 0.0
        %5726 = vmatprep.subr.mxu0 0.0
        %5727 = vmatpush2.msra.mxu0 0.0
        %5728 = vmatprep.subr.mxu0 0.0
        %5729 = vmatpush2.msra.mxu0 0.0
        %5730 = vmatprep.subr.mxu0 0.0
        %5731 = vmatpush2.msra.mxu0 0.0
        %5732 = vmatprep.subr.mxu0 0.0
        %5733 = vmatpush2.msra.mxu0 0.0
        %5734 = vmatprep.subr.mxu0 0.0
        %5735 = vmatpush2.msra.mxu0 0.0
        %5736 = vmatprep.subr.mxu0 0.0
        %5737 = vmatpush2.msra.mxu0 0.0
        %5738 = vmatprep.subr.mxu0 0.0
        %5739 = vmatpush2.msra.mxu0 0.0
        %5740 = vmatprep.subr.mxu0 0.0
        %5741 = vmatpush2.msra.mxu0 0.0
        %5742 = vmatprep.mubr.f32.mxu0 0.0
        %5743 = vmatmul.mubr.f32.gmra.mxu0 %v5645
        %v5744 = vpop.f32.mrf.mxu0
        %v5745 = vadd.f32 0.0, %v5744
        %v5746 = vpop.f32.mrf.mxu0
        %5747 = vmatprep.mubr.f32.mxu0 0.0
        %5748 = vmatmul.mubr.f32.gmra.mxu0 %v5646
        %v5749 = vpop.f32.mrf.mxu0
        %v5750 = vadd.f32 0.0, %v5749
        %v5751 = vpop.f32.mrf.mxu0
        %5752 = vmatprep.mubr.f32.mxu0 0.0
        %5753 = vmatmul.mubr.f32.gmra.mxu0 %v5647
        %v5754 = vpop.f32.mrf.mxu0
        %v5755 = vadd.f32 0.0, %v5754
        %v5756 = vpop.f32.mrf.mxu0
        %5757 = vmatprep.mubr.f32.mxu0 0.0
        %5758 = vmatmul.mubr.f32.gmra.mxu0 %v5648
        %v5759 = vpop.f32.mrf.mxu0
        %v5760 = vadd.f32 0.0, %v5759
        %v5761 = vpop.f32.mrf.mxu0
        %5762 = vmatprep.mubr.f32.mxu0 0.0
        %5763 = vmatmul.mubr.f32.gmra.mxu0 %v5649
        %v5764 = vpop.f32.mrf.mxu0
        %v5765 = vadd.f32 0.0, %v5764
        %v5766 = vpop.f32.mrf.mxu0
        %5767 = vmatprep.mubr.f32.mxu0 0.0
        %5768 = vmatmul.mubr.f32.gmra.mxu0 %v5650
        %v5769 = vpop.f32.mrf.mxu0
        %v5770 = vadd.f32 0.0, %v5769
        %v5771 = vpop.f32.mrf.mxu0
        %5772 = vmatprep.mubr.f32.mxu0 0.0
        %5773 = vmatmul.mubr.f32.gmra.mxu0 %v5651
        %v5774 = vpop.f32.mrf.mxu0
        %v5775 = vadd.f32 0.0, %v5774
        %v5776 = vpop.f32.mrf.mxu0
        %5777 = vmatprep.mubr.f32.mxu0 0.0
        %5778 = vmatmul.mubr.f32.gmra.mxu0 %v5652
        %v5779 = vpop.f32.mrf.mxu0
        %v5780 = vadd.f32 0.0, %v5779
        %v5781 = vpop.f32.mrf.mxu0
        %5782 = vmatprep.mubr.f32.mxu0 0.0
        %5783 = vmatmul.mubr.f32.gmra.mxu0 %v5653
        %v5784 = vpop.f32.mrf.mxu0
        %v5785 = vadd.f32 0.0, %v5784
        %v5786 = vpop.f32.mrf.mxu0
        %5787 = vmatprep.mubr.f32.mxu0 0.0
        %5788 = vmatmul.mubr.f32.gmra.mxu0 %v5654
        %v5789 = vpop.f32.mrf.mxu0
        %v5790 = vadd.f32 0.0, %v5789
        %v5791 = vpop.f32.mrf.mxu0
        %5792 = vmatprep.mubr.f32.mxu0 0.0
        %5793 = vmatmul.mubr.f32.gmra.mxu0 %v5655
        %v5794 = vpop.f32.mrf.mxu0
        %v5795 = vadd.f32 0.0, %v5794
        %v5796 = vpop.f32.mrf.mxu0
        %5797 = vmatprep.mubr.f32.mxu0 0.0
        %5798 = vmatmul.mubr.f32.gmra.mxu0 %v5656
        %v5799 = vpop.f32.mrf.mxu0
        %v5800 = vadd.f32 0.0, %v5799
        %v5801 = vpop.f32.mrf.mxu0
        %5802 = vmatprep.mubr.f32.mxu0 0.0
        %5803 = vmatmul.mubr.f32.gmra.mxu0 %v5657
        %v5804 = vpop.f32.mrf.mxu0
        %v5805 = vadd.f32 0.0, %v5804
        %v5806 = vpop.f32.mrf.mxu0
        %5807 = vmatprep.mubr.f32.mxu0 0.0
        %5808 = vmatmul.mubr.f32.gmra.mxu0 %v5658
        %v5809 = vpop.f32.mrf.mxu0
        %v5810 = vadd.f32 0.0, %v5809
        %v5811 = vpop.f32.mrf.mxu0
        %5812 = vmatprep.mubr.f32.mxu0 0.0
        %5813 = vmatmul.mubr.f32.gmra.mxu0 %v5659
        %v5814 = vpop.f32.mrf.mxu0
        %v5815 = vadd.f32 0.0, %v5814
        %v5816 = vpop.f32.mrf.mxu0
        %5817 = vmatprep.mubr.f32.mxu0 0.0
        %5818 = vmatmul.mubr.f32.gmra.mxu0 %v5660
        %v5819 = vpop.f32.mrf.mxu0
        %v5820 = vadd.f32 0.0, %v5819
        %v5821 = vpop.f32.mrf.mxu0
        %5822 = vdwg.mxu0
        %v5823 = vadd.f32 %v5629, %v5745
        %v5824 = vadd.f32 %v5630, %v5750
        %v5825 = vadd.f32 %v5631, %v5755
        %v5826 = vadd.f32 %v5632, %v5760
        %v5827 = vadd.f32 %v5633, %v5765
        %v5828 = vadd.f32 %v5634, %v5770
        %v5829 = vadd.f32 %v5635, %v5775
        %v5830 = vadd.f32 %v5636, %v5780
        %v5831 = vadd.f32 %v5637, %v5785
        %v5832 = vadd.f32 %v5638, %v5790
        %v5833 = vadd.f32 %v5639, %v5795
        %v5834 = vadd.f32 %v5640, %v5800
        %v5835 = vadd.f32 %v5641, %v5805
        %v5836 = vadd.f32 %v5642, %v5810
        %v5837 = vadd.f32 %v5643, %v5815
        %v5838 = vadd.f32 %v5644, %v5820
        %v5839 = vld [vmem:[%s5450 + $0x9] sm:$0xff]
        %v5840 = vld [vmem:[%s5450 + $0x21] sm:$0xff]
        %v5841 = vld [vmem:[%s5450 + $0x39] sm:$0xff]
        %v5842 = vld [vmem:[%s5450 + $0x51] sm:$0xff]
        %v5843 = vld [vmem:[%s5450 + $0x69] sm:$0xff]
        %v5844 = vld [vmem:[%s5450 + $0x81] sm:$0xff]
        %v5845 = vld [vmem:[%s5450 + $0x99] sm:$0xff]
        %v5846 = vld [vmem:[%s5450 + $0xb1] sm:$0xff]
        %v5847 = vld [vmem:[%s5450 + $0xc9] sm:$0xff]
        %v5848 = vld [vmem:[%s5450 + $0xe1] sm:$0xff]
        %v5849 = vld [vmem:[%s5450 + $0xf9] sm:$0xff]
        %v5850 = vld [vmem:[%s5450 + $0x111] sm:$0xff]
        %v5851 = vld [vmem:[%s5450 + $0x129] sm:$0xff]
        %v5852 = vld [vmem:[%s5450 + $0x141] sm:$0xff]
        %v5853 = vld [vmem:[%s5450 + $0x159] sm:$0xff]
        %v5854 = vld [vmem:[%s5450 + $0x171] sm:$0xff]
        %s5855 = scalar_lea.vmem [#allocation15], 1024
        %v5856 = vld [vmem:[%s5855] sm:$0xff]
        %v5857 = vld [vmem:[%s5855 + $0x8] sm:$0xff]
        %v5858 = vld [vmem:[%s5855 + $0x10] sm:$0xff]
        %v5859 = vld [vmem:[%s5855 + $0x18] sm:$0xff]
        %v5860 = vld [vmem:[%s5855 + $0x20] sm:$0xff]
        %v5861 = vld [vmem:[%s5855 + $0x28] sm:$0xff]
        %v5862 = vld [vmem:[%s5855 + $0x30] sm:$0xff]
        %v5863 = vld [vmem:[%s5855 + $0x38] sm:$0xff]
        %v5864 = vld [vmem:[%s5855 + $0x40] sm:$0xff]
        %v5865 = vld [vmem:[%s5855 + $0x48] sm:$0xff]
        %v5866 = vld [vmem:[%s5855 + $0x50] sm:$0xff]
        %v5867 = vld [vmem:[%s5855 + $0x58] sm:$0xff]
        %v5868 = vld [vmem:[%s5855 + $0x60] sm:$0xff]
        %v5869 = vld [vmem:[%s5855 + $0x68] sm:$0xff]
        %v5870 = vld [vmem:[%s5855 + $0x70] sm:$0xff]
        %v5871 = vld [vmem:[%s5855 + $0x78] sm:$0xff]
        %5872 = vmatprep.subr.mxu0 0.0
        %5873 = vmatpush1.msra.mxu0 %v5871
        %5874 = vmatprep.subr.mxu0 0.0
        %5875 = vmatpush1.msra.mxu0 %v5870
        %5876 = vmatprep.subr.mxu0 0.0
        %5877 = vmatpush1.msra.mxu0 %v5869
        %5878 = vmatprep.subr.mxu0 0.0
        %5879 = vmatpush1.msra.mxu0 %v5868
        %5880 = vmatprep.subr.mxu0 0.0
        %5881 = vmatpush1.msra.mxu0 %v5867
        %5882 = vmatprep.subr.mxu0 0.0
        %5883 = vmatpush1.msra.mxu0 %v5866
        %5884 = vmatprep.subr.mxu0 0.0
        %5885 = vmatpush1.msra.mxu0 %v5865
        %5886 = vmatprep.subr.mxu0 0.0
        %5887 = vmatpush1.msra.mxu0 %v5864
        %5888 = vmatprep.subr.mxu0 0.0
        %5889 = vmatpush1.msra.mxu0 %v5863
        %5890 = vmatprep.subr.mxu0 0.0
        %5891 = vmatpush1.msra.mxu0 %v5862
        %5892 = vmatprep.subr.mxu0 0.0
        %5893 = vmatpush1.msra.mxu0 %v5861
        %5894 = vmatprep.subr.mxu0 0.0
        %5895 = vmatpush1.msra.mxu0 %v5860
        %5896 = vmatprep.subr.mxu0 0.0
        %5897 = vmatpush1.msra.mxu0 %v5859
        %5898 = vmatprep.subr.mxu0 0.0
        %5899 = vmatpush1.msra.mxu0 %v5858
        %5900 = vmatprep.subr.mxu0 0.0
        %5901 = vmatpush1.msra.mxu0 %v5857
        %5902 = vmatprep.subr.mxu0 0.0
        %5903 = vmatpush1.msra.mxu0 %v5856
        %5904 = vmatprep.subr.mxu0 0.0
        %5905 = vmatpush2.msra.mxu0 0.0
        %5906 = vmatprep.subr.mxu0 0.0
        %5907 = vmatpush2.msra.mxu0 0.0
        %5908 = vmatprep.subr.mxu0 0.0
        %5909 = vmatpush2.msra.mxu0 0.0
        %5910 = vmatprep.subr.mxu0 0.0
        %5911 = vmatpush2.msra.mxu0 0.0
        %5912 = vmatprep.subr.mxu0 0.0
        %5913 = vmatpush2.msra.mxu0 0.0
        %5914 = vmatprep.subr.mxu0 0.0
        %5915 = vmatpush2.msra.mxu0 0.0
        %5916 = vmatprep.subr.mxu0 0.0
        %5917 = vmatpush2.msra.mxu0 0.0
        %5918 = vmatprep.subr.mxu0 0.0
        %5919 = vmatpush2.msra.mxu0 0.0
        %5920 = vmatprep.subr.mxu0 0.0
        %5921 = vmatpush2.msra.mxu0 0.0
        %5922 = vmatprep.subr.mxu0 0.0
        %5923 = vmatpush2.msra.mxu0 0.0
        %5924 = vmatprep.subr.mxu0 0.0
        %5925 = vmatpush2.msra.mxu0 0.0
        %5926 = vmatprep.subr.mxu0 0.0
        %5927 = vmatpush2.msra.mxu0 0.0
        %5928 = vmatprep.subr.mxu0 0.0
        %5929 = vmatpush2.msra.mxu0 0.0
        %5930 = vmatprep.subr.mxu0 0.0
        %5931 = vmatpush2.msra.mxu0 0.0
        %5932 = vmatprep.subr.mxu0 0.0
        %5933 = vmatpush2.msra.mxu0 0.0
        %5934 = vmatprep.subr.mxu0 0.0
        %5935 = vmatpush2.msra.mxu0 0.0
        %5936 = vmatprep.mubr.f32.mxu0 0.0
        %5937 = vmatmul.mubr.f32.gmra.mxu0 %v5839
        %v5938 = vpop.f32.mrf.mxu0
        %v5939 = vadd.f32 0.0, %v5938
        %v5940 = vpop.f32.mrf.mxu0
        %5941 = vmatprep.mubr.f32.mxu0 0.0
        %5942 = vmatmul.mubr.f32.gmra.mxu0 %v5840
        %v5943 = vpop.f32.mrf.mxu0
        %v5944 = vadd.f32 0.0, %v5943
        %v5945 = vpop.f32.mrf.mxu0
        %5946 = vmatprep.mubr.f32.mxu0 0.0
        %5947 = vmatmul.mubr.f32.gmra.mxu0 %v5841
        %v5948 = vpop.f32.mrf.mxu0
        %v5949 = vadd.f32 0.0, %v5948
        %v5950 = vpop.f32.mrf.mxu0
        %5951 = vmatprep.mubr.f32.mxu0 0.0
        %5952 = vmatmul.mubr.f32.gmra.mxu0 %v5842
        %v5953 = vpop.f32.mrf.mxu0
        %v5954 = vadd.f32 0.0, %v5953
        %v5955 = vpop.f32.mrf.mxu0
        %5956 = vmatprep.mubr.f32.mxu0 0.0
        %5957 = vmatmul.mubr.f32.gmra.mxu0 %v5843
        %v5958 = vpop.f32.mrf.mxu0
        %v5959 = vadd.f32 0.0, %v5958
        %v5960 = vpop.f32.mrf.mxu0
        %5961 = vmatprep.mubr.f32.mxu0 0.0
        %5962 = vmatmul.mubr.f32.gmra.mxu0 %v5844
        %v5963 = vpop.f32.mrf.mxu0
        %v5964 = vadd.f32 0.0, %v5963
        %v5965 = vpop.f32.mrf.mxu0
        %5966 = vmatprep.mubr.f32.mxu0 0.0
        %5967 = vmatmul.mubr.f32.gmra.mxu0 %v5845
        %v5968 = vpop.f32.mrf.mxu0
        %v5969 = vadd.f32 0.0, %v5968
        %v5970 = vpop.f32.mrf.mxu0
        %5971 = vmatprep.mubr.f32.mxu0 0.0
        %5972 = vmatmul.mubr.f32.gmra.mxu0 %v5846
        %v5973 = vpop.f32.mrf.mxu0
        %v5974 = vadd.f32 0.0, %v5973
        %v5975 = vpop.f32.mrf.mxu0
        %5976 = vmatprep.mubr.f32.mxu0 0.0
        %5977 = vmatmul.mubr.f32.gmra.mxu0 %v5847
        %v5978 = vpop.f32.mrf.mxu0
        %v5979 = vadd.f32 0.0, %v5978
        %v5980 = vpop.f32.mrf.mxu0
        %5981 = vmatprep.mubr.f32.mxu0 0.0
        %5982 = vmatmul.mubr.f32.gmra.mxu0 %v5848
        %v5983 = vpop.f32.mrf.mxu0
        %v5984 = vadd.f32 0.0, %v5983
        %v5985 = vpop.f32.mrf.mxu0
        %5986 = vmatprep.mubr.f32.mxu0 0.0
        %5987 = vmatmul.mubr.f32.gmra.mxu0 %v5849
        %v5988 = vpop.f32.mrf.mxu0
        %v5989 = vadd.f32 0.0, %v5988
        %v5990 = vpop.f32.mrf.mxu0
        %5991 = vmatprep.mubr.f32.mxu0 0.0
        %5992 = vmatmul.mubr.f32.gmra.mxu0 %v5850
        %v5993 = vpop.f32.mrf.mxu0
        %v5994 = vadd.f32 0.0, %v5993
        %v5995 = vpop.f32.mrf.mxu0
        %5996 = vmatprep.mubr.f32.mxu0 0.0
        %5997 = vmatmul.mubr.f32.gmra.mxu0 %v5851
        %v5998 = vpop.f32.mrf.mxu0
        %v5999 = vadd.f32 0.0, %v5998
        %v6000 = vpop.f32.mrf.mxu0
        %6001 = vmatprep.mubr.f32.mxu0 0.0
        %6002 = vmatmul.mubr.f32.gmra.mxu0 %v5852
        %v6003 = vpop.f32.mrf.mxu0
        %v6004 = vadd.f32 0.0, %v6003
        %v6005 = vpop.f32.mrf.mxu0
        %6006 = vmatprep.mubr.f32.mxu0 0.0
        %6007 = vmatmul.mubr.f32.gmra.mxu0 %v5853
        %v6008 = vpop.f32.mrf.mxu0
        %v6009 = vadd.f32 0.0, %v6008
        %v6010 = vpop.f32.mrf.mxu0
        %6011 = vmatprep.mubr.f32.mxu0 0.0
        %6012 = vmatmul.mubr.f32.gmra.mxu0 %v5854
        %v6013 = vpop.f32.mrf.mxu0
        %v6014 = vadd.f32 0.0, %v6013
        %v6015 = vpop.f32.mrf.mxu0
        %6016 = vdwg.mxu0
        %v6017 = vadd.f32 %v5823, %v5939
        %v6018 = vadd.f32 %v5824, %v5944
        %v6019 = vadd.f32 %v5825, %v5949
        %v6020 = vadd.f32 %v5826, %v5954
        %v6021 = vadd.f32 %v5827, %v5959
        %v6022 = vadd.f32 %v5828, %v5964
        %v6023 = vadd.f32 %v5829, %v5969
        %v6024 = vadd.f32 %v5830, %v5974
        %v6025 = vadd.f32 %v5831, %v5979
        %v6026 = vadd.f32 %v5832, %v5984
        %v6027 = vadd.f32 %v5833, %v5989
        %v6028 = vadd.f32 %v5834, %v5994
        %v6029 = vadd.f32 %v5835, %v5999
        %v6030 = vadd.f32 %v5836, %v6004
        %v6031 = vadd.f32 %v5837, %v6009
        %v6032 = vadd.f32 %v5838, %v6014
        %v6033 = vld [vmem:[#allocation16] sm:$0x1]
        %v6035 = vlaneseq
        %v6036 = vshrl.u32 %v6035, 7
        %v6037 = vsub.s32 0, %v6036
        %v6038 = vrot.slane %v6033, %v6037
        %v6040 = vadd.f32 %v6017, %v6038
        %v6041 = vadd.f32 %v6018, %v6038
        %v6042 = vadd.f32 %v6019, %v6038
        %v6043 = vadd.f32 %v6020, %v6038
        %v6044 = vadd.f32 %v6021, %v6038
        %v6045 = vadd.f32 %v6022, %v6038
        %v6046 = vadd.f32 %v6023, %v6038
        %v6047 = vadd.f32 %v6024, %v6038
        %v6048 = vadd.f32 %v6025, %v6038
        %v6049 = vadd.f32 %v6026, %v6038
        %v6050 = vadd.f32 %v6027, %v6038
        %v6051 = vadd.f32 %v6028, %v6038
        %v6052 = vadd.f32 %v6029, %v6038
        %v6053 = vadd.f32 %v6030, %v6038
        %v6054 = vadd.f32 %v6031, %v6038
        %v6055 = vadd.f32 %v6032, %v6038
        %v6056 = vmax.f32 %v6040, 0.0
        %v6057 = vmax.f32 %v6041, 0.0
        %v6058 = vmax.f32 %v6042, 0.0
        %v6059 = vmax.f32 %v6043, 0.0
        %v6060 = vmax.f32 %v6044, 0.0
        %v6061 = vmax.f32 %v6045, 0.0
        %v6062 = vmax.f32 %v6046, 0.0
        %v6063 = vmax.f32 %v6047, 0.0
        %v6064 = vmax.f32 %v6048, 0.0
        %v6065 = vmax.f32 %v6049, 0.0
        %v6066 = vmax.f32 %v6050, 0.0
        %v6067 = vmax.f32 %v6051, 0.0
        %v6068 = vmax.f32 %v6052, 0.0
        %v6069 = vmax.f32 %v6053, 0.0
        %v6070 = vmax.f32 %v6054, 0.0
        %v6071 = vmax.f32 %v6055, 0.0
        %6072 = vst [vmem:[%s444] sm:$0xff] %v6056
        %6073 = vst [vmem:[%s444 + $0x8] sm:$0xff] %v6057
        %6074 = vst [vmem:[%s444 + $0x10] sm:$0xff] %v6058
        %6075 = vst [vmem:[%s444 + $0x18] sm:$0xff] %v6059
        %6076 = vst [vmem:[%s444 + $0x20] sm:$0xff] %v6060
        %6077 = vst [vmem:[%s444 + $0x28] sm:$0xff] %v6061
        %6078 = vst [vmem:[%s444 + $0x30] sm:$0xff] %v6062
        %6079 = vst [vmem:[%s444 + $0x38] sm:$0xff] %v6063
        %6080 = vst [vmem:[%s444 + $0x40] sm:$0xff] %v6064
        %6081 = vst [vmem:[%s444 + $0x48] sm:$0xff] %v6065
        %6082 = vst [vmem:[%s444 + $0x50] sm:$0xff] %v6066
        %6083 = vst [vmem:[%s444 + $0x58] sm:$0xff] %v6067
        %6084 = vst [vmem:[%s444 + $0x60] sm:$0xff] %v6068
        %6085 = vst [vmem:[%s444 + $0x68] sm:$0xff] %v6069
        %6086 = vst [vmem:[%s444 + $0x70] sm:$0xff] %v6070
        %6087 = vst [vmem:[%s444 + $0x78] sm:$0xff] %v6071
        %s6088 = sand.u32 %s217, 1
        %s6089 = scalar_lea.sflag [#allocation6], %s6088
        %s6090 = sand.u32 %s217, 1
        %s6091 = smul.addr %s6090, 128
        %s6092 = scalar_lea.vmem [#allocation18], %s6091
        // Predicated region
        $region85: #{tpu_custom_call.1} parent=51 // pred_check
          %p6093 = pneg %p227
        $region86: #{tpu_custom_call.1} parent=51 // pred_check_branch
          %6095 = sbr.rel (%p6093) target = $region88
        $region87: #{tpu_custom_call.1} parent=51 // pred_region
          %s6097 = ssub.s32 2048, 2048
          %6098 = vsyncadd %s6089, %s6097
          %s6099 = smul.addr %s31, 16
          %s6100 = smul.addr %s6099, 128
          %s6101 = scalar_lea.hbm %s8, %s6100
          %s6102 = sshll.u32 %s6092, 4
          %s6103 = int_to_ptr.vmem [resolvable:$true] %s6102
          %6108 = dma.vmem_to_hbm [thread:$0]  %s6103, 2048, %s6101, %s6089, 128, 128, 8
        $region88: #{tpu_custom_call.1} parent=51 // pred_fallthru
          _
      $region52: #{tpu_custom_call.1} parent=5 // pred_fallthru
        _
      %p6109 = scmp.le.s32.totalorder 2, %s26
      // Predicated region
      $region89: #{tpu_custom_call.1} parent=5 // pred_check
        %p6110 = pneg %p6109
      $region90: #{tpu_custom_call.1} parent=5 // pred_check_branch
        %6112 = sbr.rel (%p6110) target = $region92
      $region91: #{tpu_custom_call.1} parent=5 // pred_region
        %s6113 = ssub.s32 %s26, 2
        // Predicated region
        $region93: #{tpu_custom_call.1} parent=91 // pred_check
          %p6114 = pneg %p233
        $region94: #{tpu_custom_call.1} parent=91 // pred_check_branch
          %6116 = sbr.rel (%p6114) target = $region96
        $region95: #{tpu_custom_call.1} parent=91 // pred_region
          %s6117 = sand.u32 %s218, 1
          %s6118 = scalar_lea.sflag [#allocation6], %s6117
          %s6119 = sand.u32 %s218, 1
          %s6120 = smul.addr %s6119, 128
          %s6121 = scalar_lea.vmem [#allocation18], %s6120
          %6122 = dma.done %s6118, 2048
        $region96: #{tpu_custom_call.1} parent=91 // pred_fallthru
          _
      $region92: #{tpu_custom_call.1} parent=5 // pred_fallthru
        _
    $region6: #{tpu_custom_call.1} parent=1 // loop_footer
      %s30 = sadd.s32 1, %s26
    $region7: #{tpu_custom_call.1} parent=1 // loop_footer_branch
      %25 = sbr.rel target = $region3
    $region8: #{tpu_custom_call.1} parent=1 // loop_exit
      _
    %6123 = vsyncpa [#allocation5], 1
    %s6124 = scalar_lea.sflag [#allocation5], 1
    %6125 = vsyncpa %s6124, 1
    %6126 = vsyncpa [#allocation8], 1
    %s6127 = scalar_lea.sflag [#allocation8], 1
    %6128 = vsyncpa %s6127, 1
    %6129 = vsyncpa [#allocation11], 1
    %6130 = vsyncpa [#allocation14], 1
    %6131 = vsyncpa [#allocation17], 1
    %6132 = vsyncpa [#allocation6], 1
    %s6133 = scalar_lea.sflag [#allocation6], 1
    %6134 = vsyncpa %s6133, 1

</llo_original>
